<compile_context>
chip_gen: v7x
topology: tpu7x:2x2x1
jax: 0.10.0
libtpu: 0.0.40
codegen_flags: <defaults>
</compile_context>

<pallas_src>
import functools

import jax
import jax.numpy as jnp
import numpy as np
from jax.experimental import pallas as pl
from jax.experimental.pallas import tpu as pltpu


# ---------------------------------------------------------------------------
# 1-D interpolation weight matrices (host-side, cached, built once per shape).
# ---------------------------------------------------------------------------
def _bilinear_weight_matrix(in_size: int, scale: int) -> np.ndarray:
    """[out, in] matrix matching F.interpolate(mode='bilinear', align_corners=False)."""
    out_size = in_size * scale
    out_idx = np.arange(out_size, dtype=np.float64)
    src = (out_idx + 0.5) / scale - 0.5          # half-pixel centers (PyTorch AC=False)
    src = np.maximum(src, 0.0)
    i0 = np.minimum(np.floor(src).astype(np.int64), in_size - 1)
    i1 = np.minimum(i0 + 1, in_size - 1)
    frac = src - i0
    w = np.zeros((out_size, in_size), dtype=np.float64)
    w[np.arange(out_size), i0] += 1.0 - frac
    w[np.arange(out_size), i1] += frac
    return w.astype(np.float32)


def _nearest_weight_matrix(in_size: int, scale: int) -> np.ndarray:
    """[out, in] selection matrix matching F.interpolate(mode='nearest')."""
    out_size = in_size * scale
    src = (np.arange(out_size) * in_size) // out_size
    w = np.zeros((out_size, in_size), dtype=np.float32)
    w[np.arange(out_size), src] = 1.0
    return w


@functools.lru_cache(maxsize=None)
def _interp_matrices(h: int, w: int, scale: int, mode: str):
    if mode == "bilinear":
        build = _bilinear_weight_matrix
    elif mode == "nearest":
        build = _nearest_weight_matrix
    else:
        raise NotImplementedError(f"mode={mode!r} not supported")
    a_h = build(h, scale)                              # (H_out, H)
    a_wt = np.ascontiguousarray(build(w, scale).T)     # (W, W_out) -- pre-transposed
    return jnp.asarray(a_h), jnp.asarray(a_wt)


# ---------------------------------------------------------------------------
# Kernel: upsample a batch of TB (n, c) planes in one grid step.
# ---------------------------------------------------------------------------
def _upsample_kernel(x_ref, ah_ref, awt_ref, o_ref):
    # x_ref:   (TB, H, W)
    # ah_ref:  (H_out, H)     row interpolation matrix
    # awt_ref: (W, W_out)     column interpolation matrix, pre-transposed
    # o_ref:   (TB, H_out, W_out)
    tb, h, w = x_ref.shape
    h_out = ah_ref.shape[0]
    w_out = awt_ref.shape[1]

    x = x_ref[...].astype(jnp.float32)

    # Column (W / lane) pass: a single large MXU matmul, M = TB*H, lane-dense result.
    y = jnp.dot(x.reshape(tb * h, w), awt_ref[...],
                preferred_element_type=jnp.float32,
                precision=jax.lax.Precision.HIGHEST)          # (TB*H, W_out)
    y = y.reshape(tb, h, w_out)

    # Row (H / sublane) pass: per-plane matmul, statically unrolled over the batch.
    ah = ah_ref[...]
    for b in range(tb):
        o_ref[b] = jnp.dot(ah, y[b],
                           preferred_element_type=jnp.float32,
                           precision=jax.lax.Precision.HIGHEST).astype(o_ref.dtype)


# ---------------------------------------------------------------------------
# Wrapper.
# ---------------------------------------------------------------------------
def _choose_tb(nc, h, w, h_out, w_out, budget_bytes=24 * 2**20):
    """Pick planes-per-block from a VMEM budget (portable across v5e/v6e/v7x)."""
    itemsize = 4
    # input block + output block (double buffered by the pipeline) + W-pass intermediate
    per_plane = (2 * h * w + 2 * h_out * w_out + h * w_out) * itemsize
    fixed = 2 * (h_out * h + w * w_out) * itemsize            # weights (worst case 2x)
    tb = int(max(1, min((budget_bytes - fixed) // per_plane, 32, nc)))
    if nc >= 2:
        # Keep >= 2 grid steps so the "parallel" axis can shard across v7x's 2 cores.
        tb = min(tb, (nc + 1) // 2)
    for cand in range(tb, max(0, tb - 4), -1):                # prefer a divisor of nc
        if nc % cand == 0:
            tb = cand
            break
    return max(tb, 1), per_plane, fixed


def upsample(x: jax.Array, scale_factor=2, mode: str = "bilinear") -> jax.Array:
    """x: [N, C, H, W] -> [N, C, H*s, W*s]; matches F.interpolate(x, scale_factor, mode)."""
    s = int(scale_factor)
    if s != scale_factor or s < 1:
        raise NotImplementedError("only positive integer scale_factor is supported")
    N, C, H, W = x.shape
    H_out, W_out = H * s, W * s
    nc = N * C

    a_h, a_wt = _interp_matrices(H, W, s, mode)
    x_flat = x.reshape(nc, H, W)

    tb, per_plane, fixed = _choose_tb(nc, H, W, H_out, W_out)
    grid = (pl.cdiv(nc, tb),)
    est = fixed + tb * per_plane
    vmem_limit = int(min(max(2 * est, 32 * 2**20), 96 * 2**20))

    def make_call(single_buffer_weights: bool):
        wkw = dict(pipeline_mode=pl.Buffered(1)) if single_buffer_weights else {}
        grid_spec = pltpu.PrefetchScalarGridSpec(
            num_scalar_prefetch=0,
            grid=grid,
            in_specs=[
                pl.BlockSpec((tb, H, W), lambda i: (i, 0, 0)),
                pl.BlockSpec((H_out, H), lambda i: (0, 0), **wkw),
                pl.BlockSpec((W, W_out), lambda i: (0, 0), **wkw),
            ],
            out_specs=pl.BlockSpec((tb, H_out, W_out), lambda i: (i, 0, 0)),
        )
        return pl.pallas_call(
            _upsample_kernel,
            out_shape=jax.ShapeDtypeStruct((nc, H_out, W_out), x.dtype),
            grid_spec=grid_spec,
            compiler_params=pltpu.CompilerParams(
                dimension_semantics=("parallel",),
                vmem_limit_bytes=vmem_limit),
        )

    try:
        # Constant weights fetched once, single-buffered (saves VMEM).
        out_flat = make_call(True)(x_flat, a_h, a_wt)
    except Exception:
        # Fallback for JAX versions where pipeline_mode/Buffered(1) is unsupported.
        out_flat = make_call(False)(x_flat, a_h, a_wt)

    return out_flat.reshape(N, C, H_out, W_out)


class Upsample:
    """Pallas counterpart of the PyTorch Upsample module (forward only)."""

    def __init__(self, scale_factor, mode):
        self._scale_factor = scale_factor
        self._mode = mode

    def __call__(self, x):
        return upsample(x, scale_factor=self._scale_factor, mode=self._mode)


# ---------------------------------------------------------------------------
# Pure-JAX reference (same math as PyTorch bilinear / nearest).
# ---------------------------------------------------------------------------
def _reference_upsample(x, scale_factor=2, mode="bilinear"):
    N, C, H, W = x.shape
    build = _bilinear_weight_matrix if mode == "bilinear" else _nearest_weight_matrix
    a_h = jnp.asarray(build(H, scale_factor))
    a_w = jnp.asarray(build(W, scale_factor))
    return jnp.einsum("ph,nchw,qw->ncpq", a_h, x, a_w,
                      precision=jax.lax.Precision.HIGHEST)


if __name__ == "__main__":
    key = jax.random.PRNGKey(0)
    N, C, H, W = 2, 4, 16, 16
    x = jax.random.normal(key, (N, C, H, W), dtype=jnp.float32)

    mod = Upsample(scale_factor=2, mode="bilinear")
    out = jax.block_until_ready(mod(x))
    assert out.shape == (N, C, 2 * H, 2 * W), out.shape

    ref = _reference_upsample(x, 2, "bilinear")
    np.testing.assert_allclose(np.asarray(out), np.asarray(ref),
                               rtol=1e-5, atol=1e-5)

    print("KERNEL_OK")
</pallas_src>

<mosaic_0001>
module attributes {stable_mosaic.version = 11 : i64} {
  func.func @_upsample_kernel(%arg0: i32, %arg1: memref<4x16x16xf32, #tpu.memory_space<vmem>>, %arg2: memref<32x16xf32, #tpu.memory_space<vmem>>, %arg3: memref<16x32xf32, #tpu.memory_space<vmem>>, %arg4: memref<4x32x32xf32, #tpu.memory_space<vmem>>) attributes {dimension_semantics = [#tpu.dimension_semantics<parallel>], iteration_bounds = array<i64: 2>, scalar_prefetch = 0 : i64, scratch_operands = 0 : i64, tpu.core_type = #tpu.core_type<tc>, window_params = [{transform_indices = @transform_0, window_bounds = array<i64: 4, 16, 16>}, {pipeline_mode = #tpu.pipeline_mode<synchronous>, transform_indices = @transform_1, window_bounds = array<i64: 32, 16>}, {pipeline_mode = #tpu.pipeline_mode<synchronous>, transform_indices = @transform_2, window_bounds = array<i64: 16, 32>}, {transform_indices = @transform_3, window_bounds = array<i64: 4, 32, 32>}]} {
    %c0 = arith.constant 0 : index
    %c0_0 = arith.constant 0 : index
    %c0_1 = arith.constant 0 : index
    %0 = vector.load %arg1[%c0, %c0_0, %c0_1] : memref<4x16x16xf32, #tpu.memory_space<vmem>>, vector<4x16x16xf32>
    %1 = vector.shape_cast %0 : vector<4x16x16xf32> to vector<64x16xf32>
    %c0_2 = arith.constant 0 : index
    %c0_3 = arith.constant 0 : index
    %2 = vector.load %arg3[%c0_2, %c0_3] : memref<16x32xf32, #tpu.memory_space<vmem>>, vector<16x32xf32>
    %cst = arith.constant dense<0.000000e+00> : vector<64x32xf32>
    %3 = tpu.matmul %1, %2, %cst {dimension_numbers = #tpu.dot_dimension_numbers<[1], [0], [0], [1], [0, 0, 1, 1], [], []>, precision = #tpu.contract_precision<fp32>} : vector<64x16xf32>, vector<16x32xf32>, vector<64x32xf32> -> vector<64x32xf32>
    %4 = vector.shape_cast %3 : vector<64x32xf32> to vector<4x16x32xf32>
    %c0_4 = arith.constant 0 : index
    %c0_5 = arith.constant 0 : index
    %5 = vector.load %arg2[%c0_4, %c0_5] : memref<32x16xf32, #tpu.memory_space<vmem>>, vector<32x16xf32>
    %6 = vector.extract_strided_slice %4 {offsets = [0, 0, 0], sizes = [1, 16, 32], strides = [1, 1, 1]} : vector<4x16x32xf32> to vector<1x16x32xf32>
    %7 = vector.shape_cast %6 : vector<1x16x32xf32> to vector<16x32xf32>
    %cst_6 = arith.constant dense<0.000000e+00> : vector<32x32xf32>
    %8 = tpu.matmul %5, %7, %cst_6 {dimension_numbers = #tpu.dot_dimension_numbers<[1], [0], [0], [1], [0, 0, 1, 1], [], []>, precision = #tpu.contract_precision<fp32>} : vector<32x16xf32>, vector<16x32xf32>, vector<32x32xf32> -> vector<32x32xf32>
    %c0_7 = arith.constant 0 : index
    %c0_8 = arith.constant 0 : index
    %c0_9 = arith.constant 0 : index
    %9 = vector.load %arg4[%c0_7, %c0_8, %c0_9] : memref<4x32x32xf32, #tpu.memory_space<vmem>>, vector<1x32x32xf32>
    %10 = vector.shape_cast %9 : vector<1x32x32xf32> to vector<32x32xf32>
    %11 = vector.shape_cast %8 : vector<32x32xf32> to vector<1x32x32xf32>
    tpu.vector_store %arg4[%c0_7, %c0_8, %c0_9], %11 {strides = array<i32>} : memref<4x32x32xf32, #tpu.memory_space<vmem>>, vector<1x32x32xf32>,
    %12 = vector.extract_strided_slice %4 {offsets = [1, 0, 0], sizes = [1, 16, 32], strides = [1, 1, 1]} : vector<4x16x32xf32> to vector<1x16x32xf32>
    %13 = vector.shape_cast %12 : vector<1x16x32xf32> to vector<16x32xf32>
    %cst_10 = arith.constant dense<0.000000e+00> : vector<32x32xf32>
    %14 = tpu.matmul %5, %13, %cst_10 {dimension_numbers = #tpu.dot_dimension_numbers<[1], [0], [0], [1], [0, 0, 1, 1], [], []>, precision = #tpu.contract_precision<fp32>} : vector<32x16xf32>, vector<16x32xf32>, vector<32x32xf32> -> vector<32x32xf32>
    %c1 = arith.constant 1 : index
    %c0_11 = arith.constant 0 : index
    %c0_12 = arith.constant 0 : index
    %15 = vector.load %arg4[%c1, %c0_11, %c0_12] : memref<4x32x32xf32, #tpu.memory_space<vmem>>, vector<1x32x32xf32>
    %16 = vector.shape_cast %15 : vector<1x32x32xf32> to vector<32x32xf32>
    %17 = vector.shape_cast %14 : vector<32x32xf32> to vector<1x32x32xf32>
    tpu.vector_store %arg4[%c1, %c0_11, %c0_12], %17 {strides = array<i32>} : memref<4x32x32xf32, #tpu.memory_space<vmem>>, vector<1x32x32xf32>,
    %18 = vector.extract_strided_slice %4 {offsets = [2, 0, 0], sizes = [1, 16, 32], strides = [1, 1, 1]} : vector<4x16x32xf32> to vector<1x16x32xf32>
    %19 = vector.shape_cast %18 : vector<1x16x32xf32> to vector<16x32xf32>
    %cst_13 = arith.constant dense<0.000000e+00> : vector<32x32xf32>
    %20 = tpu.matmul %5, %19, %cst_13 {dimension_numbers = #tpu.dot_dimension_numbers<[1], [0], [0], [1], [0, 0, 1, 1], [], []>, precision = #tpu.contract_precision<fp32>} : vector<32x16xf32>, vector<16x32xf32>, vector<32x32xf32> -> vector<32x32xf32>
    %c2 = arith.constant 2 : index
    %c0_14 = arith.constant 0 : index
    %c0_15 = arith.constant 0 : index
    %21 = vector.load %arg4[%c2, %c0_14, %c0_15] : memref<4x32x32xf32, #tpu.memory_space<vmem>>, vector<1x32x32xf32>
    %22 = vector.shape_cast %21 : vector<1x32x32xf32> to vector<32x32xf32>
    %23 = vector.shape_cast %20 : vector<32x32xf32> to vector<1x32x32xf32>
    tpu.vector_store %arg4[%c2, %c0_14, %c0_15], %23 {strides = array<i32>} : memref<4x32x32xf32, #tpu.memory_space<vmem>>, vector<1x32x32xf32>,
    %24 = vector.extract_strided_slice %4 {offsets = [3, 0, 0], sizes = [1, 16, 32], strides = [1, 1, 1]} : vector<4x16x32xf32> to vector<1x16x32xf32>
    %25 = vector.shape_cast %24 : vector<1x16x32xf32> to vector<16x32xf32>
    %cst_16 = arith.constant dense<0.000000e+00> : vector<32x32xf32>
    %26 = tpu.matmul %5, %25, %cst_16 {dimension_numbers = #tpu.dot_dimension_numbers<[1], [0], [0], [1], [0, 0, 1, 1], [], []>, precision = #tpu.contract_precision<fp32>} : vector<32x16xf32>, vector<16x32xf32>, vector<32x32xf32> -> vector<32x32xf32>
    %c3 = arith.constant 3 : index
    %c0_17 = arith.constant 0 : index
    %c0_18 = arith.constant 0 : index
    %27 = vector.load %arg4[%c3, %c0_17, %c0_18] : memref<4x32x32xf32, #tpu.memory_space<vmem>>, vector<1x32x32xf32>
    %28 = vector.shape_cast %27 : vector<1x32x32xf32> to vector<32x32xf32>
    %29 = vector.shape_cast %26 : vector<32x32xf32> to vector<1x32x32xf32>
    tpu.vector_store %arg4[%c3, %c0_17, %c0_18], %29 {strides = array<i32>} : memref<4x32x32xf32, #tpu.memory_space<vmem>>, vector<1x32x32xf32>,
    return
  }
  func.func @transform_0(%arg0: i32) -> (i32, i32, i32) {
    %c0_i32 = arith.constant 0 : i32
    %c0_i32_0 = arith.constant 0 : i32
    %c0_i32_1 = arith.constant 0 : i32
    return %arg0, %c0_i32, %c0_i32_0 : i32, i32, i32
  }
  func.func @transform_1(%arg0: i32) -> (i32, i32) {
    %c0_i32 = arith.constant 0 : i32
    %c0_i32_0 = arith.constant 0 : i32
    %c0_i32_1 = arith.constant 0 : i32
    return %c0_i32, %c0_i32_0 : i32, i32
  }
  func.func @transform_2(%arg0: i32) -> (i32, i32) {
    %c0_i32 = arith.constant 0 : i32
    %c0_i32_0 = arith.constant 0 : i32
    %c0_i32_1 = arith.constant 0 : i32
    return %c0_i32, %c0_i32_0 : i32, i32
  }
  func.func @transform_3(%arg0: i32) -> (i32, i32, i32) {
    %c0_i32 = arith.constant 0 : i32
    %c0_i32_0 = arith.constant 0 : i32
    %c0_i32_1 = arith.constant 0 : i32
    return %arg0, %c0_i32, %c0_i32_0 : i32, i32, i32
  }
}

module attributes {stable_mosaic.version = 11 : i64} {
  func.func @_upsample_kernel(%arg0: i32, %arg1: memref<4x16x16xf32, #tpu.memory_space<vmem>>, %arg2: memref<32x16xf32, #tpu.memory_space<vmem>>, %arg3: memref<16x32xf32, #tpu.memory_space<vmem>>, %arg4: memref<4x32x32xf32, #tpu.memory_space<vmem>>) attributes {dimension_semantics = [#tpu.dimension_semantics<parallel>], iteration_bounds = array<i64: 2>, scalar_prefetch = 0 : i64, scratch_operands = 0 : i64, tpu.core_type = #tpu.core_type<tc>, window_params = [{transform_indices = @transform_0, window_bounds = array<i64: 4, 16, 16>}, {pipeline_mode = #tpu.pipeline_mode<synchronous>, transform_indices = @transform_1, window_bounds = array<i64: 32, 16>}, {pipeline_mode = #tpu.pipeline_mode<synchronous>, transform_indices = @transform_2, window_bounds = array<i64: 16, 32>}, {transform_indices = @transform_3, window_bounds = array<i64: 4, 32, 32>}]} {
    %c0 = arith.constant 0 : index
    %c0_0 = arith.constant 0 : index
    %c0_1 = arith.constant 0 : index
    %0 = vector.load %arg1[%c0, %c0_0, %c0_1] : memref<4x16x16xf32, #tpu.memory_space<vmem>>, vector<4x16x16xf32>
    %1 = vector.shape_cast %0 : vector<4x16x16xf32> to vector<64x16xf32>
    %c0_2 = arith.constant 0 : index
    %c0_3 = arith.constant 0 : index
    %2 = vector.load %arg3[%c0_2, %c0_3] : memref<16x32xf32, #tpu.memory_space<vmem>>, vector<16x32xf32>
    %cst = arith.constant dense<0.000000e+00> : vector<64x32xf32>
    %3 = tpu.matmul %1, %2, %cst {dimension_numbers = #tpu.dot_dimension_numbers<[1], [0], [0], [1], [0, 0, 1, 1], [], []>, precision = #tpu.contract_precision<fp32>} : vector<64x16xf32>, vector<16x32xf32>, vector<64x32xf32> -> vector<64x32xf32>
    %4 = vector.shape_cast %3 : vector<64x32xf32> to vector<4x16x32xf32>
    %c0_4 = arith.constant 0 : index
    %c0_5 = arith.constant 0 : index
    %5 = vector.load %arg2[%c0_4, %c0_5] : memref<32x16xf32, #tpu.memory_space<vmem>>, vector<32x16xf32>
    %6 = vector.extract_strided_slice %4 {offsets = [0, 0, 0], sizes = [1, 16, 32], strides = [1, 1, 1]} : vector<4x16x32xf32> to vector<1x16x32xf32>
    %7 = vector.shape_cast %6 : vector<1x16x32xf32> to vector<16x32xf32>
    %cst_6 = arith.constant dense<0.000000e+00> : vector<32x32xf32>
    %8 = tpu.matmul %5, %7, %cst_6 {dimension_numbers = #tpu.dot_dimension_numbers<[1], [0], [0], [1], [0, 0, 1, 1], [], []>, precision = #tpu.contract_precision<fp32>} : vector<32x16xf32>, vector<16x32xf32>, vector<32x32xf32> -> vector<32x32xf32>
    %c0_7 = arith.constant 0 : index
    %c0_8 = arith.constant 0 : index
    %c0_9 = arith.constant 0 : index
    %9 = vector.load %arg4[%c0_7, %c0_8, %c0_9] : memref<4x32x32xf32, #tpu.memory_space<vmem>>, vector<1x32x32xf32>
    %10 = vector.shape_cast %9 : vector<1x32x32xf32> to vector<32x32xf32>
    %11 = vector.shape_cast %8 : vector<32x32xf32> to vector<1x32x32xf32>
    tpu.vector_store %arg4[%c0_7, %c0_8, %c0_9], %11 {strides = array<i32>} : memref<4x32x32xf32, #tpu.memory_space<vmem>>, vector<1x32x32xf32>,
    %12 = vector.extract_strided_slice %4 {offsets = [1, 0, 0], sizes = [1, 16, 32], strides = [1, 1, 1]} : vector<4x16x32xf32> to vector<1x16x32xf32>
    %13 = vector.shape_cast %12 : vector<1x16x32xf32> to vector<16x32xf32>
    %cst_10 = arith.constant dense<0.000000e+00> : vector<32x32xf32>
    %14 = tpu.matmul %5, %13, %cst_10 {dimension_numbers = #tpu.dot_dimension_numbers<[1], [0], [0], [1], [0, 0, 1, 1], [], []>, precision = #tpu.contract_precision<fp32>} : vector<32x16xf32>, vector<16x32xf32>, vector<32x32xf32> -> vector<32x32xf32>
    %c1 = arith.constant 1 : index
    %c0_11 = arith.constant 0 : index
    %c0_12 = arith.constant 0 : index
    %15 = vector.load %arg4[%c1, %c0_11, %c0_12] : memref<4x32x32xf32, #tpu.memory_space<vmem>>, vector<1x32x32xf32>
    %16 = vector.shape_cast %15 : vector<1x32x32xf32> to vector<32x32xf32>
    %17 = vector.shape_cast %14 : vector<32x32xf32> to vector<1x32x32xf32>
    tpu.vector_store %arg4[%c1, %c0_11, %c0_12], %17 {strides = array<i32>} : memref<4x32x32xf32, #tpu.memory_space<vmem>>, vector<1x32x32xf32>,
    %18 = vector.extract_strided_slice %4 {offsets = [2, 0, 0], sizes = [1, 16, 32], strides = [1, 1, 1]} : vector<4x16x32xf32> to vector<1x16x32xf32>
    %19 = vector.shape_cast %18 : vector<1x16x32xf32> to vector<16x32xf32>
    %cst_13 = arith.constant dense<0.000000e+00> : vector<32x32xf32>
    %20 = tpu.matmul %5, %19, %cst_13 {dimension_numbers = #tpu.dot_dimension_numbers<[1], [0], [0], [1], [0, 0, 1, 1], [], []>, precision = #tpu.contract_precision<fp32>} : vector<32x16xf32>, vector<16x32xf32>, vector<32x32xf32> -> vector<32x32xf32>
    %c2 = arith.constant 2 : index
    %c0_14 = arith.constant 0 : index
    %c0_15 = arith.constant 0 : index
    %21 = vector.load %arg4[%c2, %c0_14, %c0_15] : memref<4x32x32xf32, #tpu.memory_space<vmem>>, vector<1x32x32xf32>
    %22 = vector.shape_cast %21 : vector<1x32x32xf32> to vector<32x32xf32>
    %23 = vector.shape_cast %20 : vector<32x32xf32> to vector<1x32x32xf32>
    tpu.vector_store %arg4[%c2, %c0_14, %c0_15], %23 {strides = array<i32>} : memref<4x32x32xf32, #tpu.memory_space<vmem>>, vector<1x32x32xf32>,
    %24 = vector.extract_strided_slice %4 {offsets = [3, 0, 0], sizes = [1, 16, 32], strides = [1, 1, 1]} : vector<4x16x32xf32> to vector<1x16x32xf32>
    %25 = vector.shape_cast %24 : vector<1x16x32xf32> to vector<16x32xf32>
    %cst_16 = arith.constant dense<0.000000e+00> : vector<32x32xf32>
    %26 = tpu.matmul %5, %25, %cst_16 {dimension_numbers = #tpu.dot_dimension_numbers<[1], [0], [0], [1], [0, 0, 1, 1], [], []>, precision = #tpu.contract_precision<fp32>} : vector<32x16xf32>, vector<16x32xf32>, vector<32x32xf32> -> vector<32x32xf32>
    %c3 = arith.constant 3 : index
    %c0_17 = arith.constant 0 : index
    %c0_18 = arith.constant 0 : index
    %27 = vector.load %arg4[%c3, %c0_17, %c0_18] : memref<4x32x32xf32, #tpu.memory_space<vmem>>, vector<1x32x32xf32>
    %28 = vector.shape_cast %27 : vector<1x32x32xf32> to vector<32x32xf32>
    %29 = vector.shape_cast %26 : vector<32x32xf32> to vector<1x32x32xf32>
    tpu.vector_store %arg4[%c3, %c0_17, %c0_18], %29 {strides = array<i32>} : memref<4x32x32xf32, #tpu.memory_space<vmem>>, vector<1x32x32xf32>,
    return
  }
  func.func @transform_0(%arg0: i32) -> (i32, i32, i32) {
    %c0_i32 = arith.constant 0 : i32
    %c0_i32_0 = arith.constant 0 : i32
    %c0_i32_1 = arith.constant 0 : i32
    return %arg0, %c0_i32, %c0_i32_0 : i32, i32, i32
  }
  func.func @transform_1(%arg0: i32) -> (i32, i32) {
    %c0_i32 = arith.constant 0 : i32
    %c0_i32_0 = arith.constant 0 : i32
    %c0_i32_1 = arith.constant 0 : i32
    return %c0_i32, %c0_i32_0 : i32, i32
  }
  func.func @transform_2(%arg0: i32) -> (i32, i32) {
    %c0_i32 = arith.constant 0 : i32
    %c0_i32_0 = arith.constant 0 : i32
    %c0_i32_1 = arith.constant 0 : i32
    return %c0_i32, %c0_i32_0 : i32, i32
  }
  func.func @transform_3(%arg0: i32) -> (i32, i32, i32) {
    %c0_i32 = arith.constant 0 : i32
    %c0_i32_0 = arith.constant 0 : i32
    %c0_i32_1 = arith.constant 0 : i32
    return %arg0, %c0_i32, %c0_i32_0 : i32, i32, i32
  }
}

</mosaic_0001>

<llo_original>
// kernel: tpu_custom_call.1
$region0: #{tpu_custom_call.1}
  #allocation0 [shape = 'u32[]', space=smem, size = 0x4, offset = 0x4, fixed_abs, tag = 'smem constant byte address 0x4 - core index']
  #allocation1 [shape = 'u32[144,128]{1,0:T(1,128)}', space=vmem, size = 0x12000, scoped, tag = 'internal scratch']
  %s0 = inlined_call_operand.hbm [shape: f32[8,16,16], index: 0, kind: input, shape index: {}]
  %s1 = inlined_call_operand.vmem [shape: f32[32,16], index: 1, kind: input, shape index: {}]
  %s2 = inlined_call_operand.vmem [shape: f32[16,32], index: 2, kind: input, shape index: {}]
  %s3 = inlined_call_operand.hbm [shape: f32[8,32,32], index: 3, kind: output, shape index: {}]
  %s4 = sld [smem:[#allocation0]]
  $region49: #{tpu_custom_call.1} parent=0
    _
  %s6 = ssub.s32 1, %s4
  %s7 = scalar_select 0, %s6, %s4
  $region1: #{tpu_custom_call.1} parent=0
    #allocation2 [shape = 'u8[65536]{0}', space=vmem, size = 0x10000, scoped, tag = 'input window, operand 0']
    #allocation3 [shape = 's32[2]{0}', space=sflag, size = 0x8, scoped, tag = 'scoped memory for tpu_custom_call.1']
    #allocation4 [shape = 's32[2]{0}', space=sflag, size = 0x8, scoped, tag = 'scoped memory for tpu_custom_call.1']
    #allocation5 [shape = 'u8[131072]{0}', space=vmem, size = 0x20000, scoped, tag = 'output window, operand 0']
    %8 = vsyncpa [#allocation3], 0
    %s9 = scalar_lea.sflag [#allocation3], 1
    %10 = vsyncpa %s9, 0
    %11 = vsyncpa [#allocation4], 0
    %s12 = scalar_lea.sflag [#allocation4], 1
    %13 = vsyncpa %s12, 0
    loop: start=0, step=1, limit=4
    $region2: #{tpu_custom_call.1} parent=1 // loop_pre_header
      _
    $region3: #{tpu_custom_call.1} parent=1 // loop_header
      %s15 = sphi 0, %s19
      %p16 = scmp.ge.s32.totalorder %s15, 4
      %s25 = sphi 0, %s27
      %s28 = sphi 0, %s25
      %s29 = sphi 0, %s28
      %s45 = sphi 0, %s29
      %s49 = sphi 0, %s49
      %s51 = sphi 0, %s49
      %s52 = sphi 0, %s51
      %s66 = sphi 0, %s52
      %s70 = sphi 0, %s70
      %s72 = sphi 0, %s70
      %s73 = sphi 0, %s72
      %s87 = sphi 0, %s73
      %s93 = sphi 0, %s95
      %s96 = sphi 0, %s93
      %s97 = sphi 0, %s96
      %s113 = sphi 0, %s97
    $region4: #{tpu_custom_call.1} parent=1 // loop_header_branch
      %18 = sbr.rel (%p16) target = $region8
    $region5: #{tpu_custom_call.1} parent=1 // loop_body
      %s20 = ssub.s32 %s15, 1
      %s21 = ssub.s32 %s15, 2
      %s22 = sadd.s32 %s15, 1
      %s23 = ssub.s32 %s15, %s22
      %p24 = scmp.eq.s32.totalorder %s23, 0
      %s26 = sadd.s32 %s25, 1
      %s27 = scalar_select %p24, %s25, %s26
      %p30 = pneg %p24
      %p31 = scmp.eq.s32.totalorder %s15, 1
      %p32 = por %p30, %p31
      %p33 = scmp.ne.s32.totalorder %s25, %s28
      %p34 = scmp.eq.s32.totalorder %s15, 0
      %p35 = por %p33, %p34
      %p36 = scmp.ne.s32.totalorder %s25, %s28
      %p37 = scmp.eq.s32.totalorder %s20, 1
      %p38 = por %p36, %p37
      %p39 = scmp.ne.s32.totalorder %s28, %s29
      %p40 = scmp.eq.s32.totalorder %s20, 0
      %p41 = por %p39, %p40
      %p42 = scmp.ne.s32.totalorder %s28, %s29
      %p43 = scmp.eq.s32.totalorder %s21, 1
      %p44 = por %p42, %p43
      %p46 = scmp.ne.s32.totalorder %s29, %s45
      %p47 = scmp.eq.s32.totalorder %s21, 0
      %p48 = por %p46, %p47
      %s50 = sadd.s32 %s49, 1
      %p53 = scmp.eq.s32.totalorder %s15, 1
      %p54 = scmp.ne.s32.totalorder %s49, %s51
      %p55 = scmp.eq.s32.totalorder %s15, 0
      %p56 = por %p54, %p55
      %p57 = scmp.ne.s32.totalorder %s49, %s51
      %p58 = scmp.eq.s32.totalorder %s20, 1
      %p59 = por %p57, %p58
      %p60 = scmp.ne.s32.totalorder %s51, %s52
      %p61 = scmp.eq.s32.totalorder %s20, 0
      %p62 = por %p60, %p61
      %p63 = scmp.ne.s32.totalorder %s51, %s52
      %p64 = scmp.eq.s32.totalorder %s21, 1
      %p65 = por %p63, %p64
      %p67 = scmp.ne.s32.totalorder %s52, %s66
      %p68 = scmp.eq.s32.totalorder %s21, 0
      %p69 = por %p67, %p68
      %s71 = sadd.s32 %s70, 1
      %p74 = scmp.eq.s32.totalorder %s15, 1
      %p75 = scmp.ne.s32.totalorder %s70, %s72
      %p76 = scmp.eq.s32.totalorder %s15, 0
      %p77 = por %p75, %p76
      %p78 = scmp.ne.s32.totalorder %s70, %s72
      %p79 = scmp.eq.s32.totalorder %s20, 1
      %p80 = por %p78, %p79
      %p81 = scmp.ne.s32.totalorder %s72, %s73
      %p82 = scmp.eq.s32.totalorder %s20, 0
      %p83 = por %p81, %p82
      %p84 = scmp.ne.s32.totalorder %s72, %s73
      %p85 = scmp.eq.s32.totalorder %s21, 1
      %p86 = por %p84, %p85
      %p88 = scmp.ne.s32.totalorder %s73, %s87
      %p89 = scmp.eq.s32.totalorder %s21, 0
      %p90 = por %p88, %p89
      %s91 = ssub.s32 %s15, %s22
      %p92 = scmp.eq.s32.totalorder %s91, 0
      %s94 = sadd.s32 %s93, 1
      %s95 = scalar_select %p92, %s93, %s94
      %p98 = pneg %p92
      %p99 = scmp.eq.s32.totalorder %s15, 1
      %p100 = por %p98, %p99
      %p101 = scmp.ne.s32.totalorder %s93, %s96
      %p102 = scmp.eq.s32.totalorder %s15, 0
      %p103 = por %p101, %p102
      %p104 = scmp.ne.s32.totalorder %s93, %s96
      %p105 = scmp.eq.s32.totalorder %s20, 1
      %p106 = por %p104, %p105
      %p107 = scmp.ne.s32.totalorder %s96, %s97
      %p108 = scmp.eq.s32.totalorder %s20, 0
      %p109 = por %p107, %p108
      %p110 = scmp.ne.s32.totalorder %s96, %s97
      %p111 = scmp.eq.s32.totalorder %s21, 1
      %p112 = por %p110, %p111
      %p114 = scmp.ne.s32.totalorder %s97, %s113
      %p115 = scmp.eq.s32.totalorder %s21, 0
      %p116 = por %p114, %p115
      %p117 = scmp.le.s32.totalorder 1, %s15
      %p118 = scmp.lt.s32.totalorder %s15, 3
      %p119 = pnand %p117, %p118
      %p120 = pneg %p119
      // Predicated region
      $region9: #{tpu_custom_call.1} parent=5 // pred_check
        _
      $region10: #{tpu_custom_call.1} parent=5 // pred_check_branch
        %122 = sbr.rel (%p119) target = $region12
      $region11: #{tpu_custom_call.1} parent=5 // pred_region
        %s123 = ssub.s32 %s15, 1
        // Predicated region
        $region13: #{tpu_custom_call.1} parent=11 // pred_check
          %p124 = pneg %p62
        $region14: #{tpu_custom_call.1} parent=11 // pred_check_branch
          %126 = sbr.rel (%p124) target = $region16
        $region15: #{tpu_custom_call.1} parent=11 // pred_region
          _
        $region16: #{tpu_custom_call.1} parent=11 // pred_fallthru
          _
        // Predicated region
        $region17: #{tpu_custom_call.1} parent=11 // pred_check
          %p127 = pneg %p83
        $region18: #{tpu_custom_call.1} parent=11 // pred_check_branch
          %129 = sbr.rel (%p127) target = $region20
        $region19: #{tpu_custom_call.1} parent=11 // pred_region
          _
        $region20: #{tpu_custom_call.1} parent=11 // pred_fallthru
          _
      $region12: #{tpu_custom_call.1} parent=5 // pred_fallthru
        _
      %p130 = scmp.lt.s32.totalorder %s15, 2
      // Predicated region
      $region21: #{tpu_custom_call.1} parent=5 // pred_check
        %p131 = pneg %p130
      $region22: #{tpu_custom_call.1} parent=5 // pred_check_branch
        %133 = sbr.rel (%p131) target = $region24
      $region23: #{tpu_custom_call.1} parent=5 // pred_region
        // Predicated region
        $region25: #{tpu_custom_call.1} parent=23 // pred_check
          %p134 = pneg %p35
        $region26: #{tpu_custom_call.1} parent=23 // pred_check_branch
          %136 = sbr.rel (%p134) target = $region28
        $region27: #{tpu_custom_call.1} parent=23 // pred_region
          %s137 = sand.u32 %s25, 1
          %s138 = scalar_lea.sflag [#allocation3], %s137
          %s139 = sand.u32 %s25, 1
          %s140 = smul.addr %s139, 64
          %s141 = scalar_lea.vmem [#allocation2], %s140
          %s142 = smul.u32 4, %s15
          %s144 = ssub.s32 1024, 1024
          %145 = vsyncadd %s138, %s144
          %s146 = smul.addr %s142, 2
          %s147 = smul.addr %s146, 128
          %s148 = scalar_lea.hbm %s0, %s147
          %s149 = sshll.u32 %s141, 4
          %s150 = int_to_ptr.vmem [resolvable:$true] %s149
          %155 = dma.hbm_to_vmem [thread:$0]  %s148, 1024, %s150, %s138, 128, 128, 8
        $region28: #{tpu_custom_call.1} parent=23 // pred_fallthru
          _
      $region24: #{tpu_custom_call.1} parent=5 // pred_fallthru
        _
      %p156 = scmp.le.s32.totalorder 1, %s15
      %p157 = scmp.lt.s32.totalorder %s15, 3
      %p158 = pnand %p156, %p157
      %p159 = pneg %p158
      // Predicated region
      $region29: #{tpu_custom_call.1} parent=5 // pred_check
        _
      $region30: #{tpu_custom_call.1} parent=5 // pred_check_branch
        %161 = sbr.rel (%p158) target = $region32
      $region31: #{tpu_custom_call.1} parent=5 // pred_region
        %s162 = ssub.s32 %s15, 1
        %s163 = sand.u32 %s28, 1
        %s164 = scalar_lea.sflag [#allocation3], %s163
        %s165 = sand.u32 %s28, 1
        %s166 = smul.addr %s165, 64
        %s167 = scalar_lea.vmem [#allocation2], %s166
        // Predicated region
        $region33: #{tpu_custom_call.1} parent=31 // pred_check
          %p168 = pneg %p41
        $region34: #{tpu_custom_call.1} parent=31 // pred_check_branch
          %170 = sbr.rel (%p168) target = $region36
        $region35: #{tpu_custom_call.1} parent=31 // pred_region
          %171 = dma.done %s164, 1024
        $region36: #{tpu_custom_call.1} parent=31 // pred_fallthru
          _
        %s172 = sand.u32 %s28, 1
        %s173 = scalar_lea.sflag [#allocation3], %s172
        %s174 = sand.u32 %s28, 1
        %s175 = smul.addr %s174, 64
        %s176 = scalar_lea.vmem [#allocation2], %s175
        %p177 = pneg %p41
        %p178 = pneg %p38
        %p179 = pneg %p62
        %p180 = pneg %p59
        %p181 = pneg %p83
        %p182 = pneg %p80
        %p183 = pneg %p109
        %p184 = pneg %p106
        %s185 = sand.u32 %s96, 1
        %s186 = scalar_lea.sflag [#allocation4], %s185
        %s187 = sand.u32 %s96, 1
        %s188 = smul.addr %s187, 128
        %s189 = scalar_lea.vmem [#allocation5], %s188
        %s190 = smul.u32 4, %s20
        %s191 = smul.u32 4, %s20
        %v192 = vld [vmem:[%s167] sm:$0xff]
        %v193 = vld [vmem:[%s167 + $0x8] sm:$0xff]
        %v194 = vld [vmem:[%s167 + $0x10] sm:$0xff]
        %v195 = vld [vmem:[%s167 + $0x18] sm:$0xff]
        %v196 = vld [vmem:[%s167 + $0x20] sm:$0xff]
        %v197 = vld [vmem:[%s167 + $0x28] sm:$0xff]
        %v198 = vld [vmem:[%s167 + $0x30] sm:$0xff]
        %v199 = vld [vmem:[%s167 + $0x38] sm:$0xff]
        %v200 = vld [vmem:[%s2] sm:$0xff]
        %v201 = vld [vmem:[%s2 + $0x8] sm:$0xff]
        %vm202 = vcmask 130048
        %v204 = vsel %vm202, %v192, 0
        %v207 = vsel %vm202, %v193, 0
        %v210 = vsel %vm202, %v194, 0
        %v213 = vsel %vm202, %v195, 0
        %v216 = vsel %vm202, %v196, 0
        %v219 = vsel %vm202, %v197, 0
        %v222 = vsel %vm202, %v198, 0
        %v225 = vsel %vm202, %v199, 0
        %227 = vmatprep.subr.mxu0 0.0
        %v228 = vand.u32 %v200, 4294901760
        %229 = vmatpush1.msra.mxu0 %v228
        %230 = vmatprep.subr.mxu0 0.0
        %v231 = vand.u32 %v201, 4294901760
        %232 = vmatpush1.msra.mxu0 %v231
        %233 = vmatprep.subr.mxu0 0.0
        %234 = vmatpush1.msra.mxu0 0.0
        %235 = vmatprep.subr.mxu0 0.0
        %236 = vmatpush1.msra.mxu0 0.0
        %237 = vmatprep.subr.mxu0 0.0
        %238 = vmatpush1.msra.mxu0 0.0
        %239 = vmatprep.subr.mxu0 0.0
        %240 = vmatpush1.msra.mxu0 0.0
        %241 = vmatprep.subr.mxu0 0.0
        %242 = vmatpush1.msra.mxu0 0.0
        %243 = vmatprep.subr.mxu0 0.0
        %244 = vmatpush1.msra.mxu0 0.0
        %245 = vmatprep.subr.mxu0 0.0
        %246 = vmatpush1.msra.mxu0 0.0
        %247 = vmatprep.subr.mxu0 0.0
        %248 = vmatpush1.msra.mxu0 0.0
        %249 = vmatprep.subr.mxu0 0.0
        %250 = vmatpush1.msra.mxu0 0.0
        %251 = vmatprep.subr.mxu0 0.0
        %252 = vmatpush1.msra.mxu0 0.0
        %253 = vmatprep.subr.mxu0 0.0
        %254 = vmatpush1.msra.mxu0 0.0
        %255 = vmatprep.subr.mxu0 0.0
        %256 = vmatpush1.msra.mxu0 0.0
        %257 = vmatprep.subr.mxu0 0.0
        %258 = vmatpush1.msra.mxu0 0.0
        %259 = vmatprep.subr.mxu0 0.0
        %260 = vmatpush1.msra.mxu0 0.0
        %261 = vmatprep.subr.mxu0 0.0
        %262 = vmatpush1.msra.mxu0 0.0
        %263 = vmatprep.subr.mxu0 0.0
        %264 = vmatpush1.msra.mxu0 0.0
        %265 = vmatprep.subr.mxu0 0.0
        %266 = vmatpush1.msra.mxu0 0.0
        %267 = vmatprep.subr.mxu0 0.0
        %268 = vmatpush1.msra.mxu0 0.0
        %269 = vmatprep.subr.mxu0 0.0
        %270 = vmatpush1.msra.mxu0 0.0
        %271 = vmatprep.subr.mxu0 0.0
        %272 = vmatpush1.msra.mxu0 0.0
        %273 = vmatprep.subr.mxu0 0.0
        %274 = vmatpush1.msra.mxu0 0.0
        %275 = vmatprep.subr.mxu0 0.0
        %276 = vmatpush1.msra.mxu0 0.0
        %277 = vmatprep.subr.mxu0 0.0
        %278 = vmatpush1.msra.mxu0 0.0
        %279 = vmatprep.subr.mxu0 0.0
        %280 = vmatpush1.msra.mxu0 0.0
        %281 = vmatprep.subr.mxu0 0.0
        %282 = vmatpush1.msra.mxu0 0.0
        %283 = vmatprep.subr.mxu0 0.0
        %284 = vmatpush1.msra.mxu0 0.0
        %285 = vmatprep.subr.mxu0 0.0
        %286 = vmatpush1.msra.mxu0 0.0
        %287 = vmatprep.subr.mxu0 0.0
        %288 = vmatpush1.msra.mxu0 0.0
        %289 = vmatprep.subr.mxu0 0.0
        %290 = vmatpush1.msra.mxu0 0.0
        %291 = vmatprep.subr.mxu0 0.0
        %292 = vmatpush1.msra.mxu0 0.0
        %293 = vmatprep.mubr.f32.mxu0 0.0
        %v294 = vand.u32 %v204, 4294901760
        %v295 = vsub.f32 %v204, %v294
        %v296 = vand.u32 %v295, 4294901760
        %v297 = vsub.f32 %v295, %v296
        %v298 = vand.u32 %v297, 4294901760
        %299 = vmatmul.mubr.f32.gmra.mrb[0].mxu0 %v298
        %v300 = vpop.f32.mrb[0].mxu0
        %v301 = vadd.f32 0.0, %v300
        %v302 = vpop.f32.mrb[0].mxu0
        %303 = vmatprep.mubr.f32.mxu0 0.0
        %v304 = vand.u32 %v207, 4294901760
        %v305 = vsub.f32 %v207, %v304
        %v306 = vand.u32 %v305, 4294901760
        %v307 = vsub.f32 %v305, %v306
        %v308 = vand.u32 %v307, 4294901760
        %309 = vmatmul.mubr.f32.gmra.mrb[0].mxu0 %v308
        %v310 = vpop.f32.mrb[0].mxu0
        %v311 = vadd.f32 0.0, %v310
        %v312 = vpop.f32.mrb[0].mxu0
        %313 = vmatprep.mubr.f32.mxu0 0.0
        %v314 = vand.u32 %v210, 4294901760
        %v315 = vsub.f32 %v210, %v314
        %v316 = vand.u32 %v315, 4294901760
        %v317 = vsub.f32 %v315, %v316
        %v318 = vand.u32 %v317, 4294901760
        %319 = vmatmul.mubr.f32.gmra.mrb[0].mxu0 %v318
        %v320 = vpop.f32.mrb[0].mxu0
        %v321 = vadd.f32 0.0, %v320
        %v322 = vpop.f32.mrb[0].mxu0
        %323 = vmatprep.mubr.f32.mxu0 0.0
        %v324 = vand.u32 %v213, 4294901760
        %v325 = vsub.f32 %v213, %v324
        %v326 = vand.u32 %v325, 4294901760
        %v327 = vsub.f32 %v325, %v326
        %v328 = vand.u32 %v327, 4294901760
        %329 = vmatmul.mubr.f32.gmra.mrb[0].mxu0 %v328
        %v330 = vpop.f32.mrb[0].mxu0
        %v331 = vadd.f32 0.0, %v330
        %v332 = vpop.f32.mrb[0].mxu0
        %333 = vmatprep.mubr.f32.mxu0 0.0
        %v334 = vand.u32 %v216, 4294901760
        %v335 = vsub.f32 %v216, %v334
        %v336 = vand.u32 %v335, 4294901760
        %v337 = vsub.f32 %v335, %v336
        %v338 = vand.u32 %v337, 4294901760
        %339 = vmatmul.mubr.f32.gmra.mrb[0].mxu0 %v338
        %v340 = vpop.f32.mrb[0].mxu0
        %v341 = vadd.f32 0.0, %v340
        %v342 = vpop.f32.mrb[0].mxu0
        %343 = vmatprep.mubr.f32.mxu0 0.0
        %v344 = vand.u32 %v219, 4294901760
        %v345 = vsub.f32 %v219, %v344
        %v346 = vand.u32 %v345, 4294901760
        %v347 = vsub.f32 %v345, %v346
        %v348 = vand.u32 %v347, 4294901760
        %349 = vmatmul.mubr.f32.gmra.mrb[0].mxu0 %v348
        %v350 = vpop.f32.mrb[0].mxu0
        %v351 = vadd.f32 0.0, %v350
        %v352 = vpop.f32.mrb[0].mxu0
        %353 = vmatprep.mubr.f32.mxu0 0.0
        %v354 = vand.u32 %v222, 4294901760
        %v355 = vsub.f32 %v222, %v354
        %v356 = vand.u32 %v355, 4294901760
        %v357 = vsub.f32 %v355, %v356
        %v358 = vand.u32 %v357, 4294901760
        %359 = vmatmul.mubr.f32.gmra.mrb[0].mxu0 %v358
        %v360 = vpop.f32.mrb[0].mxu0
        %v361 = vadd.f32 0.0, %v360
        %v362 = vpop.f32.mrb[0].mxu0
        %363 = vmatprep.mubr.f32.mxu0 0.0
        %v364 = vand.u32 %v225, 4294901760
        %v365 = vsub.f32 %v225, %v364
        %v366 = vand.u32 %v365, 4294901760
        %v367 = vsub.f32 %v365, %v366
        %v368 = vand.u32 %v367, 4294901760
        %369 = vmatmul.mubr.f32.gmra.mrb[0].mxu0 %v368
        %v370 = vpop.f32.mrb[0].mxu0
        %v371 = vadd.f32 0.0, %v370
        %v372 = vpop.f32.mrb[0].mxu0
        %373 = vdwg.mxu0
        %374 = vmatprep.subr.mxu0 0.0
        %v375 = vand.u32 %v200, 4294901760
        %v376 = vsub.f32 %v200, %v375
        %v377 = vand.u32 %v376, 4294901760
        %v378 = vsub.f32 %v376, %v377
        %v379 = vand.u32 %v378, 4294901760
        %380 = vmatpush1.msra.mxu0 %v379
        %381 = vmatprep.subr.mxu0 0.0
        %v382 = vand.u32 %v201, 4294901760
        %v383 = vsub.f32 %v201, %v382
        %v384 = vand.u32 %v383, 4294901760
        %v385 = vsub.f32 %v383, %v384
        %v386 = vand.u32 %v385, 4294901760
        %387 = vmatpush1.msra.mxu0 %v386
        %388 = vmatprep.subr.mxu0 0.0
        %389 = vmatpush1.msra.mxu0 0.0
        %390 = vmatprep.subr.mxu0 0.0
        %391 = vmatpush1.msra.mxu0 0.0
        %392 = vmatprep.subr.mxu0 0.0
        %393 = vmatpush1.msra.mxu0 0.0
        %394 = vmatprep.subr.mxu0 0.0
        %395 = vmatpush1.msra.mxu0 0.0
        %396 = vmatprep.subr.mxu0 0.0
        %397 = vmatpush1.msra.mxu0 0.0
        %398 = vmatprep.subr.mxu0 0.0
        %399 = vmatpush1.msra.mxu0 0.0
        %400 = vmatprep.subr.mxu0 0.0
        %401 = vmatpush1.msra.mxu0 0.0
        %402 = vmatprep.subr.mxu0 0.0
        %403 = vmatpush1.msra.mxu0 0.0
        %404 = vmatprep.subr.mxu0 0.0
        %405 = vmatpush1.msra.mxu0 0.0
        %406 = vmatprep.subr.mxu0 0.0
        %407 = vmatpush1.msra.mxu0 0.0
        %408 = vmatprep.subr.mxu0 0.0
        %409 = vmatpush1.msra.mxu0 0.0
        %410 = vmatprep.subr.mxu0 0.0
        %411 = vmatpush1.msra.mxu0 0.0
        %412 = vmatprep.subr.mxu0 0.0
        %413 = vmatpush1.msra.mxu0 0.0
        %414 = vmatprep.subr.mxu0 0.0
        %415 = vmatpush1.msra.mxu0 0.0
        %416 = vmatprep.subr.mxu0 0.0
        %417 = vmatpush1.msra.mxu0 0.0
        %418 = vmatprep.subr.mxu0 0.0
        %419 = vmatpush1.msra.mxu0 0.0
        %420 = vmatprep.subr.mxu0 0.0
        %421 = vmatpush1.msra.mxu0 0.0
        %422 = vmatprep.subr.mxu0 0.0
        %423 = vmatpush1.msra.mxu0 0.0
        %424 = vmatprep.subr.mxu0 0.0
        %425 = vmatpush1.msra.mxu0 0.0
        %426 = vmatprep.subr.mxu0 0.0
        %427 = vmatpush1.msra.mxu0 0.0
        %428 = vmatprep.subr.mxu0 0.0
        %429 = vmatpush1.msra.mxu0 0.0
        %430 = vmatprep.subr.mxu0 0.0
        %431 = vmatpush1.msra.mxu0 0.0
        %432 = vmatprep.subr.mxu0 0.0
        %433 = vmatpush1.msra.mxu0 0.0
        %434 = vmatprep.subr.mxu0 0.0
        %435 = vmatpush1.msra.mxu0 0.0
        %436 = vmatprep.subr.mxu0 0.0
        %437 = vmatpush1.msra.mxu0 0.0
        %438 = vmatprep.subr.mxu0 0.0
        %439 = vmatpush1.msra.mxu0 0.0
        %440 = vmatprep.subr.mxu0 0.0
        %441 = vmatpush1.msra.mxu0 0.0
        %442 = vmatprep.subr.mxu0 0.0
        %443 = vmatpush1.msra.mxu0 0.0
        %444 = vmatprep.subr.mxu0 0.0
        %445 = vmatpush1.msra.mxu0 0.0
        %446 = vmatprep.subr.mxu0 0.0
        %447 = vmatpush1.msra.mxu0 0.0
        %448 = vmatprep.mubr.f32.mxu0 0.0
        %v449 = vand.u32 %v204, 4294901760
        %450 = vmatmul.mubr.f32.gmra.mrb[0].mxu0 %v449
        %v451 = vpop.f32.mrb[0].mxu0
        %v452 = vadd.f32 %v301, %v451
        %v453 = vpop.f32.mrb[0].mxu0
        %454 = vmatprep.mubr.f32.mxu0 0.0
        %v455 = vand.u32 %v207, 4294901760
        %456 = vmatmul.mubr.f32.gmra.mrb[0].mxu0 %v455
        %v457 = vpop.f32.mrb[0].mxu0
        %v458 = vadd.f32 %v311, %v457
        %v459 = vpop.f32.mrb[0].mxu0
        %460 = vmatprep.mubr.f32.mxu0 0.0
        %v461 = vand.u32 %v210, 4294901760
        %462 = vmatmul.mubr.f32.gmra.mrb[0].mxu0 %v461
        %v463 = vpop.f32.mrb[0].mxu0
        %v464 = vadd.f32 %v321, %v463
        %v465 = vpop.f32.mrb[0].mxu0
        %466 = vmatprep.mubr.f32.mxu0 0.0
        %v467 = vand.u32 %v213, 4294901760
        %468 = vmatmul.mubr.f32.gmra.mrb[0].mxu0 %v467
        %v469 = vpop.f32.mrb[0].mxu0
        %v470 = vadd.f32 %v331, %v469
        %v471 = vpop.f32.mrb[0].mxu0
        %472 = vmatprep.mubr.f32.mxu0 0.0
        %v473 = vand.u32 %v216, 4294901760
        %474 = vmatmul.mubr.f32.gmra.mrb[0].mxu0 %v473
        %v475 = vpop.f32.mrb[0].mxu0
        %v476 = vadd.f32 %v341, %v475
        %v477 = vpop.f32.mrb[0].mxu0
        %478 = vmatprep.mubr.f32.mxu0 0.0
        %v479 = vand.u32 %v219, 4294901760
        %480 = vmatmul.mubr.f32.gmra.mrb[0].mxu0 %v479
        %v481 = vpop.f32.mrb[0].mxu0
        %v482 = vadd.f32 %v351, %v481
        %v483 = vpop.f32.mrb[0].mxu0
        %484 = vmatprep.mubr.f32.mxu0 0.0
        %v485 = vand.u32 %v222, 4294901760
        %486 = vmatmul.mubr.f32.gmra.mrb[0].mxu0 %v485
        %v487 = vpop.f32.mrb[0].mxu0
        %v488 = vadd.f32 %v361, %v487
        %v489 = vpop.f32.mrb[0].mxu0
        %490 = vmatprep.mubr.f32.mxu0 0.0
        %v491 = vand.u32 %v225, 4294901760
        %492 = vmatmul.mubr.f32.gmra.mrb[0].mxu0 %v491
        %v493 = vpop.f32.mrb[0].mxu0
        %v494 = vadd.f32 %v371, %v493
        %v495 = vpop.f32.mrb[0].mxu0
        %496 = vdwg.mxu0
        %497 = vmatprep.subr.mxu0 0.0
        %v498 = vand.u32 %v200, 4294901760
        %v499 = vsub.f32 %v200, %v498
        %500 = vmatpush1.msra.mxu0 %v499
        %501 = vmatprep.subr.mxu0 0.0
        %v502 = vand.u32 %v201, 4294901760
        %v503 = vsub.f32 %v201, %v502
        %504 = vmatpush1.msra.mxu0 %v503
        %505 = vmatprep.subr.mxu0 0.0
        %506 = vmatpush1.msra.mxu0 0.0
        %507 = vmatprep.subr.mxu0 0.0
        %508 = vmatpush1.msra.mxu0 0.0
        %509 = vmatprep.subr.mxu0 0.0
        %510 = vmatpush1.msra.mxu0 0.0
        %511 = vmatprep.subr.mxu0 0.0
        %512 = vmatpush1.msra.mxu0 0.0
        %513 = vmatprep.subr.mxu0 0.0
        %514 = vmatpush1.msra.mxu0 0.0
        %515 = vmatprep.subr.mxu0 0.0
        %516 = vmatpush1.msra.mxu0 0.0
        %517 = vmatprep.subr.mxu0 0.0
        %518 = vmatpush1.msra.mxu0 0.0
        %519 = vmatprep.subr.mxu0 0.0
        %520 = vmatpush1.msra.mxu0 0.0
        %521 = vmatprep.subr.mxu0 0.0
        %522 = vmatpush1.msra.mxu0 0.0
        %523 = vmatprep.subr.mxu0 0.0
        %524 = vmatpush1.msra.mxu0 0.0
        %525 = vmatprep.subr.mxu0 0.0
        %526 = vmatpush1.msra.mxu0 0.0
        %527 = vmatprep.subr.mxu0 0.0
        %528 = vmatpush1.msra.mxu0 0.0
        %529 = vmatprep.subr.mxu0 0.0
        %530 = vmatpush1.msra.mxu0 0.0
        %531 = vmatprep.subr.mxu0 0.0
        %532 = vmatpush1.msra.mxu0 0.0
        %533 = vmatprep.subr.mxu0 0.0
        %534 = vmatpush1.msra.mxu0 0.0
        %535 = vmatprep.subr.mxu0 0.0
        %536 = vmatpush1.msra.mxu0 0.0
        %537 = vmatprep.subr.mxu0 0.0
        %538 = vmatpush1.msra.mxu0 0.0
        %539 = vmatprep.subr.mxu0 0.0
        %540 = vmatpush1.msra.mxu0 0.0
        %541 = vmatprep.subr.mxu0 0.0
        %542 = vmatpush1.msra.mxu0 0.0
        %543 = vmatprep.subr.mxu0 0.0
        %544 = vmatpush1.msra.mxu0 0.0
        %545 = vmatprep.subr.mxu0 0.0
        %546 = vmatpush1.msra.mxu0 0.0
        %547 = vmatprep.subr.mxu0 0.0
        %548 = vmatpush1.msra.mxu0 0.0
        %549 = vmatprep.subr.mxu0 0.0
        %550 = vmatpush1.msra.mxu0 0.0
        %551 = vmatprep.subr.mxu0 0.0
        %552 = vmatpush1.msra.mxu0 0.0
        %553 = vmatprep.subr.mxu0 0.0
        %554 = vmatpush1.msra.mxu0 0.0
        %555 = vmatprep.subr.mxu0 0.0
        %556 = vmatpush1.msra.mxu0 0.0
        %557 = vmatprep.subr.mxu0 0.0
        %558 = vmatpush1.msra.mxu0 0.0
        %559 = vmatprep.subr.mxu0 0.0
        %560 = vmatpush1.msra.mxu0 0.0
        %561 = vmatprep.subr.mxu0 0.0
        %562 = vmatpush1.msra.mxu0 0.0
        %563 = vmatprep.subr.mxu0 0.0
        %564 = vmatpush1.msra.mxu0 0.0
        %565 = vmatprep.mubr.f32.mxu0 0.0
        %v566 = vand.u32 %v204, 4294901760
        %v567 = vsub.f32 %v204, %v566
        %568 = vmatmul.mubr.f32.gmra.mrb[0].mxu0 %v567
        %v569 = vpop.f32.mrb[0].mxu0
        %v570 = vadd.f32 %v452, %v569
        %v571 = vpop.f32.mrb[0].mxu0
        %572 = vmatprep.mubr.f32.mxu0 0.0
        %v573 = vand.u32 %v207, 4294901760
        %v574 = vsub.f32 %v207, %v573
        %575 = vmatmul.mubr.f32.gmra.mrb[0].mxu0 %v574
        %v576 = vpop.f32.mrb[0].mxu0
        %v577 = vadd.f32 %v458, %v576
        %v578 = vpop.f32.mrb[0].mxu0
        %579 = vmatprep.mubr.f32.mxu0 0.0
        %v580 = vand.u32 %v210, 4294901760
        %v581 = vsub.f32 %v210, %v580
        %582 = vmatmul.mubr.f32.gmra.mrb[0].mxu0 %v581
        %v583 = vpop.f32.mrb[0].mxu0
        %v584 = vadd.f32 %v464, %v583
        %v585 = vpop.f32.mrb[0].mxu0
        %586 = vmatprep.mubr.f32.mxu0 0.0
        %v587 = vand.u32 %v213, 4294901760
        %v588 = vsub.f32 %v213, %v587
        %589 = vmatmul.mubr.f32.gmra.mrb[0].mxu0 %v588
        %v590 = vpop.f32.mrb[0].mxu0
        %v591 = vadd.f32 %v470, %v590
        %v592 = vpop.f32.mrb[0].mxu0
        %593 = vmatprep.mubr.f32.mxu0 0.0
        %v594 = vand.u32 %v216, 4294901760
        %v595 = vsub.f32 %v216, %v594
        %596 = vmatmul.mubr.f32.gmra.mrb[0].mxu0 %v595
        %v597 = vpop.f32.mrb[0].mxu0
        %v598 = vadd.f32 %v476, %v597
        %v599 = vpop.f32.mrb[0].mxu0
        %600 = vmatprep.mubr.f32.mxu0 0.0
        %v601 = vand.u32 %v219, 4294901760
        %v602 = vsub.f32 %v219, %v601
        %603 = vmatmul.mubr.f32.gmra.mrb[0].mxu0 %v602
        %v604 = vpop.f32.mrb[0].mxu0
        %v605 = vadd.f32 %v482, %v604
        %v606 = vpop.f32.mrb[0].mxu0
        %607 = vmatprep.mubr.f32.mxu0 0.0
        %v608 = vand.u32 %v222, 4294901760
        %v609 = vsub.f32 %v222, %v608
        %610 = vmatmul.mubr.f32.gmra.mrb[0].mxu0 %v609
        %v611 = vpop.f32.mrb[0].mxu0
        %v612 = vadd.f32 %v488, %v611
        %v613 = vpop.f32.mrb[0].mxu0
        %614 = vmatprep.mubr.f32.mxu0 0.0
        %v615 = vand.u32 %v225, 4294901760
        %v616 = vsub.f32 %v225, %v615
        %617 = vmatmul.mubr.f32.gmra.mrb[0].mxu0 %v616
        %v618 = vpop.f32.mrb[0].mxu0
        %v619 = vadd.f32 %v494, %v618
        %v620 = vpop.f32.mrb[0].mxu0
        %621 = vdwg.mxu0
        %622 = vmatprep.subr.mxu0 0.0
        %v623 = vand.u32 %v200, 4294901760
        %624 = vmatpush1.msra.mxu0 %v623
        %625 = vmatprep.subr.mxu0 0.0
        %v626 = vand.u32 %v201, 4294901760
        %627 = vmatpush1.msra.mxu0 %v626
        %628 = vmatprep.subr.mxu0 0.0
        %629 = vmatpush1.msra.mxu0 0.0
        %630 = vmatprep.subr.mxu0 0.0
        %631 = vmatpush1.msra.mxu0 0.0
        %632 = vmatprep.subr.mxu0 0.0
        %633 = vmatpush1.msra.mxu0 0.0
        %634 = vmatprep.subr.mxu0 0.0
        %635 = vmatpush1.msra.mxu0 0.0
        %636 = vmatprep.subr.mxu0 0.0
        %637 = vmatpush1.msra.mxu0 0.0
        %638 = vmatprep.subr.mxu0 0.0
        %639 = vmatpush1.msra.mxu0 0.0
        %640 = vmatprep.subr.mxu0 0.0
        %641 = vmatpush1.msra.mxu0 0.0
        %642 = vmatprep.subr.mxu0 0.0
        %643 = vmatpush1.msra.mxu0 0.0
        %644 = vmatprep.subr.mxu0 0.0
        %645 = vmatpush1.msra.mxu0 0.0
        %646 = vmatprep.subr.mxu0 0.0
        %647 = vmatpush1.msra.mxu0 0.0
        %648 = vmatprep.subr.mxu0 0.0
        %649 = vmatpush1.msra.mxu0 0.0
        %650 = vmatprep.subr.mxu0 0.0
        %651 = vmatpush1.msra.mxu0 0.0
        %652 = vmatprep.subr.mxu0 0.0
        %653 = vmatpush1.msra.mxu0 0.0
        %654 = vmatprep.subr.mxu0 0.0
        %655 = vmatpush1.msra.mxu0 0.0
        %656 = vmatprep.subr.mxu0 0.0
        %657 = vmatpush1.msra.mxu0 0.0
        %658 = vmatprep.subr.mxu0 0.0
        %659 = vmatpush1.msra.mxu0 0.0
        %660 = vmatprep.subr.mxu0 0.0
        %661 = vmatpush1.msra.mxu0 0.0
        %662 = vmatprep.subr.mxu0 0.0
        %663 = vmatpush1.msra.mxu0 0.0
        %664 = vmatprep.subr.mxu0 0.0
        %665 = vmatpush1.msra.mxu0 0.0
        %666 = vmatprep.subr.mxu0 0.0
        %667 = vmatpush1.msra.mxu0 0.0
        %668 = vmatprep.subr.mxu0 0.0
        %669 = vmatpush1.msra.mxu0 0.0
        %670 = vmatprep.subr.mxu0 0.0
        %671 = vmatpush1.msra.mxu0 0.0
        %672 = vmatprep.subr.mxu0 0.0
        %673 = vmatpush1.msra.mxu0 0.0
        %674 = vmatprep.subr.mxu0 0.0
        %675 = vmatpush1.msra.mxu0 0.0
        %676 = vmatprep.subr.mxu0 0.0
        %677 = vmatpush1.msra.mxu0 0.0
        %678 = vmatprep.subr.mxu0 0.0
        %679 = vmatpush1.msra.mxu0 0.0
        %680 = vmatprep.subr.mxu0 0.0
        %681 = vmatpush1.msra.mxu0 0.0
        %682 = vmatprep.subr.mxu0 0.0
        %683 = vmatpush1.msra.mxu0 0.0
        %684 = vmatprep.subr.mxu0 0.0
        %685 = vmatpush1.msra.mxu0 0.0
        %686 = vmatprep.subr.mxu0 0.0
        %687 = vmatpush1.msra.mxu0 0.0
        %688 = vmatprep.mubr.f32.mxu0 0.0
        %v689 = vand.u32 %v204, 4294901760
        %v690 = vsub.f32 %v204, %v689
        %v691 = vand.u32 %v690, 4294901760
        %692 = vmatmul.mubr.f32.gmra.mrb[0].mxu0 %v691
        %v693 = vpop.f32.mrb[0].mxu0
        %v694 = vadd.f32 %v570, %v693
        %v695 = vpop.f32.mrb[0].mxu0
        %696 = vmatprep.mubr.f32.mxu0 0.0
        %v697 = vand.u32 %v207, 4294901760
        %v698 = vsub.f32 %v207, %v697
        %v699 = vand.u32 %v698, 4294901760
        %700 = vmatmul.mubr.f32.gmra.mrb[0].mxu0 %v699
        %v701 = vpop.f32.mrb[0].mxu0
        %v702 = vadd.f32 %v577, %v701
        %v703 = vpop.f32.mrb[0].mxu0
        %704 = vmatprep.mubr.f32.mxu0 0.0
        %v705 = vand.u32 %v210, 4294901760
        %v706 = vsub.f32 %v210, %v705
        %v707 = vand.u32 %v706, 4294901760
        %708 = vmatmul.mubr.f32.gmra.mrb[0].mxu0 %v707
        %v709 = vpop.f32.mrb[0].mxu0
        %v710 = vadd.f32 %v584, %v709
        %v711 = vpop.f32.mrb[0].mxu0
        %712 = vmatprep.mubr.f32.mxu0 0.0
        %v713 = vand.u32 %v213, 4294901760
        %v714 = vsub.f32 %v213, %v713
        %v715 = vand.u32 %v714, 4294901760
        %716 = vmatmul.mubr.f32.gmra.mrb[0].mxu0 %v715
        %v717 = vpop.f32.mrb[0].mxu0
        %v718 = vadd.f32 %v591, %v717
        %v719 = vpop.f32.mrb[0].mxu0
        %720 = vmatprep.mubr.f32.mxu0 0.0
        %v721 = vand.u32 %v216, 4294901760
        %v722 = vsub.f32 %v216, %v721
        %v723 = vand.u32 %v722, 4294901760
        %724 = vmatmul.mubr.f32.gmra.mrb[0].mxu0 %v723
        %v725 = vpop.f32.mrb[0].mxu0
        %v726 = vadd.f32 %v598, %v725
        %v727 = vpop.f32.mrb[0].mxu0
        %728 = vmatprep.mubr.f32.mxu0 0.0
        %v729 = vand.u32 %v219, 4294901760
        %v730 = vsub.f32 %v219, %v729
        %v731 = vand.u32 %v730, 4294901760
        %732 = vmatmul.mubr.f32.gmra.mrb[0].mxu0 %v731
        %v733 = vpop.f32.mrb[0].mxu0
        %v734 = vadd.f32 %v605, %v733
        %v735 = vpop.f32.mrb[0].mxu0
        %736 = vmatprep.mubr.f32.mxu0 0.0
        %v737 = vand.u32 %v222, 4294901760
        %v738 = vsub.f32 %v222, %v737
        %v739 = vand.u32 %v738, 4294901760
        %740 = vmatmul.mubr.f32.gmra.mrb[0].mxu0 %v739
        %v741 = vpop.f32.mrb[0].mxu0
        %v742 = vadd.f32 %v612, %v741
        %v743 = vpop.f32.mrb[0].mxu0
        %744 = vmatprep.mubr.f32.mxu0 0.0
        %v745 = vand.u32 %v225, 4294901760
        %v746 = vsub.f32 %v225, %v745
        %v747 = vand.u32 %v746, 4294901760
        %748 = vmatmul.mubr.f32.gmra.mrb[0].mxu0 %v747
        %v749 = vpop.f32.mrb[0].mxu0
        %v750 = vadd.f32 %v619, %v749
        %v751 = vpop.f32.mrb[0].mxu0
        %752 = vdwg.mxu0
        %753 = vmatprep.subr.mxu0 0.0
        %v754 = vand.u32 %v200, 4294901760
        %v755 = vsub.f32 %v200, %v754
        %v756 = vand.u32 %v755, 4294901760
        %757 = vmatpush1.msra.mxu0 %v756
        %758 = vmatprep.subr.mxu0 0.0
        %v759 = vand.u32 %v201, 4294901760
        %v760 = vsub.f32 %v201, %v759
        %v761 = vand.u32 %v760, 4294901760
        %762 = vmatpush1.msra.mxu0 %v761
        %763 = vmatprep.subr.mxu0 0.0
        %764 = vmatpush1.msra.mxu0 0.0
        %765 = vmatprep.subr.mxu0 0.0
        %766 = vmatpush1.msra.mxu0 0.0
        %767 = vmatprep.subr.mxu0 0.0
        %768 = vmatpush1.msra.mxu0 0.0
        %769 = vmatprep.subr.mxu0 0.0
        %770 = vmatpush1.msra.mxu0 0.0
        %771 = vmatprep.subr.mxu0 0.0
        %772 = vmatpush1.msra.mxu0 0.0
        %773 = vmatprep.subr.mxu0 0.0
        %774 = vmatpush1.msra.mxu0 0.0
        %775 = vmatprep.subr.mxu0 0.0
        %776 = vmatpush1.msra.mxu0 0.0
        %777 = vmatprep.subr.mxu0 0.0
        %778 = vmatpush1.msra.mxu0 0.0
        %779 = vmatprep.subr.mxu0 0.0
        %780 = vmatpush1.msra.mxu0 0.0
        %781 = vmatprep.subr.mxu0 0.0
        %782 = vmatpush1.msra.mxu0 0.0
        %783 = vmatprep.subr.mxu0 0.0
        %784 = vmatpush1.msra.mxu0 0.0
        %785 = vmatprep.subr.mxu0 0.0
        %786 = vmatpush1.msra.mxu0 0.0
        %787 = vmatprep.subr.mxu0 0.0
        %788 = vmatpush1.msra.mxu0 0.0
        %789 = vmatprep.subr.mxu0 0.0
        %790 = vmatpush1.msra.mxu0 0.0
        %791 = vmatprep.subr.mxu0 0.0
        %792 = vmatpush1.msra.mxu0 0.0
        %793 = vmatprep.subr.mxu0 0.0
        %794 = vmatpush1.msra.mxu0 0.0
        %795 = vmatprep.subr.mxu0 0.0
        %796 = vmatpush1.msra.mxu0 0.0
        %797 = vmatprep.subr.mxu0 0.0
        %798 = vmatpush1.msra.mxu0 0.0
        %799 = vmatprep.subr.mxu0 0.0
        %800 = vmatpush1.msra.mxu0 0.0
        %801 = vmatprep.subr.mxu0 0.0
        %802 = vmatpush1.msra.mxu0 0.0
        %803 = vmatprep.subr.mxu0 0.0
        %804 = vmatpush1.msra.mxu0 0.0
        %805 = vmatprep.subr.mxu0 0.0
        %806 = vmatpush1.msra.mxu0 0.0
        %807 = vmatprep.subr.mxu0 0.0
        %808 = vmatpush1.msra.mxu0 0.0
        %809 = vmatprep.subr.mxu0 0.0
        %810 = vmatpush1.msra.mxu0 0.0
        %811 = vmatprep.subr.mxu0 0.0
        %812 = vmatpush1.msra.mxu0 0.0
        %813 = vmatprep.subr.mxu0 0.0
        %814 = vmatpush1.msra.mxu0 0.0
        %815 = vmatprep.subr.mxu0 0.0
        %816 = vmatpush1.msra.mxu0 0.0
        %817 = vmatprep.subr.mxu0 0.0
        %818 = vmatpush1.msra.mxu0 0.0
        %819 = vmatprep.subr.mxu0 0.0
        %820 = vmatpush1.msra.mxu0 0.0
        %821 = vmatprep.subr.mxu0 0.0
        %822 = vmatpush1.msra.mxu0 0.0
        %823 = vmatprep.mubr.f32.mxu0 0.0
        %v824 = vand.u32 %v204, 4294901760
        %825 = vmatmul.mubr.f32.gmra.mrb[0].mxu0 %v824
        %v826 = vpop.f32.mrb[0].mxu0
        %v827 = vadd.f32 %v694, %v826
        %v828 = vpop.f32.mrb[0].mxu0
        %829 = vmatprep.mubr.f32.mxu0 0.0
        %v830 = vand.u32 %v207, 4294901760
        %831 = vmatmul.mubr.f32.gmra.mrb[0].mxu0 %v830
        %v832 = vpop.f32.mrb[0].mxu0
        %v833 = vadd.f32 %v702, %v832
        %v834 = vpop.f32.mrb[0].mxu0
        %835 = vmatprep.mubr.f32.mxu0 0.0
        %v836 = vand.u32 %v210, 4294901760
        %837 = vmatmul.mubr.f32.gmra.mrb[0].mxu0 %v836
        %v838 = vpop.f32.mrb[0].mxu0
        %v839 = vadd.f32 %v710, %v838
        %v840 = vpop.f32.mrb[0].mxu0
        %841 = vmatprep.mubr.f32.mxu0 0.0
        %v842 = vand.u32 %v213, 4294901760
        %843 = vmatmul.mubr.f32.gmra.mrb[0].mxu0 %v842
        %v844 = vpop.f32.mrb[0].mxu0
        %v845 = vadd.f32 %v718, %v844
        %v846 = vpop.f32.mrb[0].mxu0
        %847 = vmatprep.mubr.f32.mxu0 0.0
        %v848 = vand.u32 %v216, 4294901760
        %849 = vmatmul.mubr.f32.gmra.mrb[0].mxu0 %v848
        %v850 = vpop.f32.mrb[0].mxu0
        %v851 = vadd.f32 %v726, %v850
        %v852 = vpop.f32.mrb[0].mxu0
        %853 = vmatprep.mubr.f32.mxu0 0.0
        %v854 = vand.u32 %v219, 4294901760
        %855 = vmatmul.mubr.f32.gmra.mrb[0].mxu0 %v854
        %v856 = vpop.f32.mrb[0].mxu0
        %v857 = vadd.f32 %v734, %v856
        %v858 = vpop.f32.mrb[0].mxu0
        %859 = vmatprep.mubr.f32.mxu0 0.0
        %v860 = vand.u32 %v222, 4294901760
        %861 = vmatmul.mubr.f32.gmra.mrb[0].mxu0 %v860
        %v862 = vpop.f32.mrb[0].mxu0
        %v863 = vadd.f32 %v742, %v862
        %v864 = vpop.f32.mrb[0].mxu0
        %865 = vmatprep.mubr.f32.mxu0 0.0
        %v866 = vand.u32 %v225, 4294901760
        %867 = vmatmul.mubr.f32.gmra.mrb[0].mxu0 %v866
        %v868 = vpop.f32.mrb[0].mxu0
        %v869 = vadd.f32 %v750, %v868
        %v870 = vpop.f32.mrb[0].mxu0
        %871 = vdwg.mxu0
        %872 = vmatprep.subr.mxu0 0.0
        %v873 = vand.u32 %v200, 4294901760
        %874 = vmatpush1.msra.mxu0 %v873
        %875 = vmatprep.subr.mxu0 0.0
        %v876 = vand.u32 %v201, 4294901760
        %877 = vmatpush1.msra.mxu0 %v876
        %878 = vmatprep.subr.mxu0 0.0
        %879 = vmatpush1.msra.mxu0 0.0
        %880 = vmatprep.subr.mxu0 0.0
        %881 = vmatpush1.msra.mxu0 0.0
        %882 = vmatprep.subr.mxu0 0.0
        %883 = vmatpush1.msra.mxu0 0.0
        %884 = vmatprep.subr.mxu0 0.0
        %885 = vmatpush1.msra.mxu0 0.0
        %886 = vmatprep.subr.mxu0 0.0
        %887 = vmatpush1.msra.mxu0 0.0
        %888 = vmatprep.subr.mxu0 0.0
        %889 = vmatpush1.msra.mxu0 0.0
        %890 = vmatprep.subr.mxu0 0.0
        %891 = vmatpush1.msra.mxu0 0.0
        %892 = vmatprep.subr.mxu0 0.0
        %893 = vmatpush1.msra.mxu0 0.0
        %894 = vmatprep.subr.mxu0 0.0
        %895 = vmatpush1.msra.mxu0 0.0
        %896 = vmatprep.subr.mxu0 0.0
        %897 = vmatpush1.msra.mxu0 0.0
        %898 = vmatprep.subr.mxu0 0.0
        %899 = vmatpush1.msra.mxu0 0.0
        %900 = vmatprep.subr.mxu0 0.0
        %901 = vmatpush1.msra.mxu0 0.0
        %902 = vmatprep.subr.mxu0 0.0
        %903 = vmatpush1.msra.mxu0 0.0
        %904 = vmatprep.subr.mxu0 0.0
        %905 = vmatpush1.msra.mxu0 0.0
        %906 = vmatprep.subr.mxu0 0.0
        %907 = vmatpush1.msra.mxu0 0.0
        %908 = vmatprep.subr.mxu0 0.0
        %909 = vmatpush1.msra.mxu0 0.0
        %910 = vmatprep.subr.mxu0 0.0
        %911 = vmatpush1.msra.mxu0 0.0
        %912 = vmatprep.subr.mxu0 0.0
        %913 = vmatpush1.msra.mxu0 0.0
        %914 = vmatprep.subr.mxu0 0.0
        %915 = vmatpush1.msra.mxu0 0.0
        %916 = vmatprep.subr.mxu0 0.0
        %917 = vmatpush1.msra.mxu0 0.0
        %918 = vmatprep.subr.mxu0 0.0
        %919 = vmatpush1.msra.mxu0 0.0
        %920 = vmatprep.subr.mxu0 0.0
        %921 = vmatpush1.msra.mxu0 0.0
        %922 = vmatprep.subr.mxu0 0.0
        %923 = vmatpush1.msra.mxu0 0.0
        %924 = vmatprep.subr.mxu0 0.0
        %925 = vmatpush1.msra.mxu0 0.0
        %926 = vmatprep.subr.mxu0 0.0
        %927 = vmatpush1.msra.mxu0 0.0
        %928 = vmatprep.subr.mxu0 0.0
        %929 = vmatpush1.msra.mxu0 0.0
        %930 = vmatprep.subr.mxu0 0.0
        %931 = vmatpush1.msra.mxu0 0.0
        %932 = vmatprep.subr.mxu0 0.0
        %933 = vmatpush1.msra.mxu0 0.0
        %934 = vmatprep.subr.mxu0 0.0
        %935 = vmatpush1.msra.mxu0 0.0
        %936 = vmatprep.subr.mxu0 0.0
        %937 = vmatpush1.msra.mxu0 0.0
        %938 = vmatprep.mubr.f32.mxu0 0.0
        %v939 = vand.u32 %v204, 4294901760
        %940 = vmatmul.mubr.f32.gmra.mrb[0].mxu0 %v939
        %v941 = vpop.f32.mrb[0].mxu0
        %v942 = vadd.f32 %v827, %v941
        %v943 = vpop.f32.mrb[0].mxu0
        %944 = vmatprep.mubr.f32.mxu0 0.0
        %v945 = vand.u32 %v207, 4294901760
        %946 = vmatmul.mubr.f32.gmra.mrb[0].mxu0 %v945
        %v947 = vpop.f32.mrb[0].mxu0
        %v948 = vadd.f32 %v833, %v947
        %v949 = vpop.f32.mrb[0].mxu0
        %950 = vmatprep.mubr.f32.mxu0 0.0
        %v951 = vand.u32 %v210, 4294901760
        %952 = vmatmul.mubr.f32.gmra.mrb[0].mxu0 %v951
        %v953 = vpop.f32.mrb[0].mxu0
        %v954 = vadd.f32 %v839, %v953
        %v955 = vpop.f32.mrb[0].mxu0
        %956 = vmatprep.mubr.f32.mxu0 0.0
        %v957 = vand.u32 %v213, 4294901760
        %958 = vmatmul.mubr.f32.gmra.mrb[0].mxu0 %v957
        %v959 = vpop.f32.mrb[0].mxu0
        %v960 = vadd.f32 %v845, %v959
        %v961 = vpop.f32.mrb[0].mxu0
        %962 = vmatprep.mubr.f32.mxu0 0.0
        %v963 = vand.u32 %v216, 4294901760
        %964 = vmatmul.mubr.f32.gmra.mrb[0].mxu0 %v963
        %v965 = vpop.f32.mrb[0].mxu0
        %v966 = vadd.f32 %v851, %v965
        %v967 = vpop.f32.mrb[0].mxu0
        %968 = vmatprep.mubr.f32.mxu0 0.0
        %v969 = vand.u32 %v219, 4294901760
        %970 = vmatmul.mubr.f32.gmra.mrb[0].mxu0 %v969
        %v971 = vpop.f32.mrb[0].mxu0
        %v972 = vadd.f32 %v857, %v971
        %v973 = vpop.f32.mrb[0].mxu0
        %974 = vmatprep.mubr.f32.mxu0 0.0
        %v975 = vand.u32 %v222, 4294901760
        %976 = vmatmul.mubr.f32.gmra.mrb[0].mxu0 %v975
        %v977 = vpop.f32.mrb[0].mxu0
        %v978 = vadd.f32 %v863, %v977
        %v979 = vpop.f32.mrb[0].mxu0
        %980 = vmatprep.mubr.f32.mxu0 0.0
        %v981 = vand.u32 %v225, 4294901760
        %982 = vmatmul.mubr.f32.gmra.mrb[0].mxu0 %v981
        %v983 = vpop.f32.mrb[0].mxu0
        %v984 = vadd.f32 %v869, %v983
        %v985 = vpop.f32.mrb[0].mxu0
        %986 = vdwg.mxu0
        %v987 = vld [vmem:[%s1] sm:$0xff]
        %v988 = vld [vmem:[%s1 + $0x8] sm:$0xff]
        %v989 = vld [vmem:[%s1 + $0x10] sm:$0xff]
        %v990 = vld [vmem:[%s1 + $0x18] sm:$0xff]
        %v992 = vsel %vm202, %v987, 0
        %v995 = vsel %vm202, %v988, 0
        %v998 = vsel %vm202, %v989, 0
        %v1001 = vsel %vm202, %v990, 0
        %1003 = vmatprep.subr.mxu0 0.0
        %v1004 = vand.u32 %v942, 4294901760
        %1005 = vmatpush1.msra.mxu0 %v1004
        %1006 = vmatprep.subr.mxu0 0.0
        %v1007 = vand.u32 %v948, 4294901760
        %1008 = vmatpush1.msra.mxu0 %v1007
        %1009 = vmatprep.subr.mxu0 0.0
        %1010 = vmatpush1.msra.mxu0 0.0
        %1011 = vmatprep.subr.mxu0 0.0
        %1012 = vmatpush1.msra.mxu0 0.0
        %1013 = vmatprep.subr.mxu0 0.0
        %1014 = vmatpush1.msra.mxu0 0.0
        %1015 = vmatprep.subr.mxu0 0.0
        %1016 = vmatpush1.msra.mxu0 0.0
        %1017 = vmatprep.subr.mxu0 0.0
        %1018 = vmatpush1.msra.mxu0 0.0
        %1019 = vmatprep.subr.mxu0 0.0
        %1020 = vmatpush1.msra.mxu0 0.0
        %1021 = vmatprep.subr.mxu0 0.0
        %1022 = vmatpush1.msra.mxu0 0.0
        %1023 = vmatprep.subr.mxu0 0.0
        %1024 = vmatpush1.msra.mxu0 0.0
        %1025 = vmatprep.subr.mxu0 0.0
        %1026 = vmatpush1.msra.mxu0 0.0
        %1027 = vmatprep.subr.mxu0 0.0
        %1028 = vmatpush1.msra.mxu0 0.0
        %1029 = vmatprep.subr.mxu0 0.0
        %1030 = vmatpush1.msra.mxu0 0.0
        %1031 = vmatprep.subr.mxu0 0.0
        %1032 = vmatpush1.msra.mxu0 0.0
        %1033 = vmatprep.subr.mxu0 0.0
        %1034 = vmatpush1.msra.mxu0 0.0
        %1035 = vmatprep.subr.mxu0 0.0
        %1036 = vmatpush1.msra.mxu0 0.0
        %1037 = vmatprep.subr.mxu0 0.0
        %1038 = vmatpush1.msra.mxu0 0.0
        %1039 = vmatprep.subr.mxu0 0.0
        %1040 = vmatpush1.msra.mxu0 0.0
        %1041 = vmatprep.subr.mxu0 0.0
        %1042 = vmatpush1.msra.mxu0 0.0
        %1043 = vmatprep.subr.mxu0 0.0
        %1044 = vmatpush1.msra.mxu0 0.0
        %1045 = vmatprep.subr.mxu0 0.0
        %1046 = vmatpush1.msra.mxu0 0.0
        %1047 = vmatprep.subr.mxu0 0.0
        %1048 = vmatpush1.msra.mxu0 0.0
        %1049 = vmatprep.subr.mxu0 0.0
        %1050 = vmatpush1.msra.mxu0 0.0
        %1051 = vmatprep.subr.mxu0 0.0
        %1052 = vmatpush1.msra.mxu0 0.0
        %1053 = vmatprep.subr.mxu0 0.0
        %1054 = vmatpush1.msra.mxu0 0.0
        %1055 = vmatprep.subr.mxu0 0.0
        %1056 = vmatpush1.msra.mxu0 0.0
        %1057 = vmatprep.subr.mxu0 0.0
        %1058 = vmatpush1.msra.mxu0 0.0
        %1059 = vmatprep.subr.mxu0 0.0
        %1060 = vmatpush1.msra.mxu0 0.0
        %1061 = vmatprep.subr.mxu0 0.0
        %1062 = vmatpush1.msra.mxu0 0.0
        %1063 = vmatprep.subr.mxu0 0.0
        %1064 = vmatpush1.msra.mxu0 0.0
        %1065 = vmatprep.subr.mxu0 0.0
        %1066 = vmatpush1.msra.mxu0 0.0
        %1067 = vmatprep.subr.mxu0 0.0
        %1068 = vmatpush1.msra.mxu0 0.0
        %1069 = vmatprep.mubr.f32.mxu0 0.0
        %v1070 = vand.u32 %v992, 4294901760
        %v1071 = vsub.f32 %v992, %v1070
        %v1072 = vand.u32 %v1071, 4294901760
        %v1073 = vsub.f32 %v1071, %v1072
        %v1074 = vand.u32 %v1073, 4294901760
        %1075 = vmatmul.mubr.f32.gmra.mrb[0].mxu0 %v1074
        %v1076 = vpop.f32.mrb[0].mxu0
        %v1077 = vadd.f32 0.0, %v1076
        %v1078 = vpop.f32.mrb[0].mxu0
        %1079 = vmatprep.mubr.f32.mxu0 0.0
        %v1080 = vand.u32 %v995, 4294901760
        %v1081 = vsub.f32 %v995, %v1080
        %v1082 = vand.u32 %v1081, 4294901760
        %v1083 = vsub.f32 %v1081, %v1082
        %v1084 = vand.u32 %v1083, 4294901760
        %1085 = vmatmul.mubr.f32.gmra.mrb[0].mxu0 %v1084
        %v1086 = vpop.f32.mrb[0].mxu0
        %v1087 = vadd.f32 0.0, %v1086
        %v1088 = vpop.f32.mrb[0].mxu0
        %1089 = vmatprep.mubr.f32.mxu0 0.0
        %v1090 = vand.u32 %v998, 4294901760
        %v1091 = vsub.f32 %v998, %v1090
        %v1092 = vand.u32 %v1091, 4294901760
        %v1093 = vsub.f32 %v1091, %v1092
        %v1094 = vand.u32 %v1093, 4294901760
        %1095 = vmatmul.mubr.f32.gmra.mrb[0].mxu0 %v1094
        %v1096 = vpop.f32.mrb[0].mxu0
        %v1097 = vadd.f32 0.0, %v1096
        %v1098 = vpop.f32.mrb[0].mxu0
        %1099 = vmatprep.mubr.f32.mxu0 0.0
        %v1100 = vand.u32 %v1001, 4294901760
        %v1101 = vsub.f32 %v1001, %v1100
        %v1102 = vand.u32 %v1101, 4294901760
        %v1103 = vsub.f32 %v1101, %v1102
        %v1104 = vand.u32 %v1103, 4294901760
        %1105 = vmatmul.mubr.f32.gmra.mrb[0].mxu0 %v1104
        %v1106 = vpop.f32.mrb[0].mxu0
        %v1107 = vadd.f32 0.0, %v1106
        %v1108 = vpop.f32.mrb[0].mxu0
        %1109 = vdwg.mxu0
        %1110 = vmatprep.subr.mxu0 0.0
        %v1111 = vand.u32 %v942, 4294901760
        %v1112 = vsub.f32 %v942, %v1111
        %v1113 = vand.u32 %v1112, 4294901760
        %v1114 = vsub.f32 %v1112, %v1113
        %v1115 = vand.u32 %v1114, 4294901760
        %1116 = vmatpush1.msra.mxu0 %v1115
        %1117 = vmatprep.subr.mxu0 0.0
        %v1118 = vand.u32 %v948, 4294901760
        %v1119 = vsub.f32 %v948, %v1118
        %v1120 = vand.u32 %v1119, 4294901760
        %v1121 = vsub.f32 %v1119, %v1120
        %v1122 = vand.u32 %v1121, 4294901760
        %1123 = vmatpush1.msra.mxu0 %v1122
        %1124 = vmatprep.subr.mxu0 0.0
        %1125 = vmatpush1.msra.mxu0 0.0
        %1126 = vmatprep.subr.mxu0 0.0
        %1127 = vmatpush1.msra.mxu0 0.0
        %1128 = vmatprep.subr.mxu0 0.0
        %1129 = vmatpush1.msra.mxu0 0.0
        %1130 = vmatprep.subr.mxu0 0.0
        %1131 = vmatpush1.msra.mxu0 0.0
        %1132 = vmatprep.subr.mxu0 0.0
        %1133 = vmatpush1.msra.mxu0 0.0
        %1134 = vmatprep.subr.mxu0 0.0
        %1135 = vmatpush1.msra.mxu0 0.0
        %1136 = vmatprep.subr.mxu0 0.0
        %1137 = vmatpush1.msra.mxu0 0.0
        %1138 = vmatprep.subr.mxu0 0.0
        %1139 = vmatpush1.msra.mxu0 0.0
        %1140 = vmatprep.subr.mxu0 0.0
        %1141 = vmatpush1.msra.mxu0 0.0
        %1142 = vmatprep.subr.mxu0 0.0
        %1143 = vmatpush1.msra.mxu0 0.0
        %1144 = vmatprep.subr.mxu0 0.0
        %1145 = vmatpush1.msra.mxu0 0.0
        %1146 = vmatprep.subr.mxu0 0.0
        %1147 = vmatpush1.msra.mxu0 0.0
        %1148 = vmatprep.subr.mxu0 0.0
        %1149 = vmatpush1.msra.mxu0 0.0
        %1150 = vmatprep.subr.mxu0 0.0
        %1151 = vmatpush1.msra.mxu0 0.0
        %1152 = vmatprep.subr.mxu0 0.0
        %1153 = vmatpush1.msra.mxu0 0.0
        %1154 = vmatprep.subr.mxu0 0.0
        %1155 = vmatpush1.msra.mxu0 0.0
        %1156 = vmatprep.subr.mxu0 0.0
        %1157 = vmatpush1.msra.mxu0 0.0
        %1158 = vmatprep.subr.mxu0 0.0
        %1159 = vmatpush1.msra.mxu0 0.0
        %1160 = vmatprep.subr.mxu0 0.0
        %1161 = vmatpush1.msra.mxu0 0.0
        %1162 = vmatprep.subr.mxu0 0.0
        %1163 = vmatpush1.msra.mxu0 0.0
        %1164 = vmatprep.subr.mxu0 0.0
        %1165 = vmatpush1.msra.mxu0 0.0
        %1166 = vmatprep.subr.mxu0 0.0
        %1167 = vmatpush1.msra.mxu0 0.0
        %1168 = vmatprep.subr.mxu0 0.0
        %1169 = vmatpush1.msra.mxu0 0.0
        %1170 = vmatprep.subr.mxu0 0.0
        %1171 = vmatpush1.msra.mxu0 0.0
        %1172 = vmatprep.subr.mxu0 0.0
        %1173 = vmatpush1.msra.mxu0 0.0
        %1174 = vmatprep.subr.mxu0 0.0
        %1175 = vmatpush1.msra.mxu0 0.0
        %1176 = vmatprep.subr.mxu0 0.0
        %1177 = vmatpush1.msra.mxu0 0.0
        %1178 = vmatprep.subr.mxu0 0.0
        %1179 = vmatpush1.msra.mxu0 0.0
        %1180 = vmatprep.subr.mxu0 0.0
        %1181 = vmatpush1.msra.mxu0 0.0
        %1182 = vmatprep.subr.mxu0 0.0
        %1183 = vmatpush1.msra.mxu0 0.0
        %1184 = vmatprep.mubr.f32.mxu0 0.0
        %v1185 = vand.u32 %v992, 4294901760
        %1186 = vmatmul.mubr.f32.gmra.mrb[0].mxu0 %v1185
        %v1187 = vpop.f32.mrb[0].mxu0
        %v1188 = vadd.f32 %v1077, %v1187
        %v1189 = vpop.f32.mrb[0].mxu0
        %1190 = vmatprep.mubr.f32.mxu0 0.0
        %v1191 = vand.u32 %v995, 4294901760
        %1192 = vmatmul.mubr.f32.gmra.mrb[0].mxu0 %v1191
        %v1193 = vpop.f32.mrb[0].mxu0
        %v1194 = vadd.f32 %v1087, %v1193
        %v1195 = vpop.f32.mrb[0].mxu0
        %1196 = vmatprep.mubr.f32.mxu0 0.0
        %v1197 = vand.u32 %v998, 4294901760
        %1198 = vmatmul.mubr.f32.gmra.mrb[0].mxu0 %v1197
        %v1199 = vpop.f32.mrb[0].mxu0
        %v1200 = vadd.f32 %v1097, %v1199
        %v1201 = vpop.f32.mrb[0].mxu0
        %1202 = vmatprep.mubr.f32.mxu0 0.0
        %v1203 = vand.u32 %v1001, 4294901760
        %1204 = vmatmul.mubr.f32.gmra.mrb[0].mxu0 %v1203
        %v1205 = vpop.f32.mrb[0].mxu0
        %v1206 = vadd.f32 %v1107, %v1205
        %v1207 = vpop.f32.mrb[0].mxu0
        %1208 = vdwg.mxu0
        %1209 = vmatprep.subr.mxu0 0.0
        %v1210 = vand.u32 %v942, 4294901760
        %v1211 = vsub.f32 %v942, %v1210
        %1212 = vmatpush1.msra.mxu0 %v1211
        %1213 = vmatprep.subr.mxu0 0.0
        %v1214 = vand.u32 %v948, 4294901760
        %v1215 = vsub.f32 %v948, %v1214
        %1216 = vmatpush1.msra.mxu0 %v1215
        %1217 = vmatprep.subr.mxu0 0.0
        %1218 = vmatpush1.msra.mxu0 0.0
        %1219 = vmatprep.subr.mxu0 0.0
        %1220 = vmatpush1.msra.mxu0 0.0
        %1221 = vmatprep.subr.mxu0 0.0
        %1222 = vmatpush1.msra.mxu0 0.0
        %1223 = vmatprep.subr.mxu0 0.0
        %1224 = vmatpush1.msra.mxu0 0.0
        %1225 = vmatprep.subr.mxu0 0.0
        %1226 = vmatpush1.msra.mxu0 0.0
        %1227 = vmatprep.subr.mxu0 0.0
        %1228 = vmatpush1.msra.mxu0 0.0
        %1229 = vmatprep.subr.mxu0 0.0
        %1230 = vmatpush1.msra.mxu0 0.0
        %1231 = vmatprep.subr.mxu0 0.0
        %1232 = vmatpush1.msra.mxu0 0.0
        %1233 = vmatprep.subr.mxu0 0.0
        %1234 = vmatpush1.msra.mxu0 0.0
        %1235 = vmatprep.subr.mxu0 0.0
        %1236 = vmatpush1.msra.mxu0 0.0
        %1237 = vmatprep.subr.mxu0 0.0
        %1238 = vmatpush1.msra.mxu0 0.0
        %1239 = vmatprep.subr.mxu0 0.0
        %1240 = vmatpush1.msra.mxu0 0.0
        %1241 = vmatprep.subr.mxu0 0.0
        %1242 = vmatpush1.msra.mxu0 0.0
        %1243 = vmatprep.subr.mxu0 0.0
        %1244 = vmatpush1.msra.mxu0 0.0
        %1245 = vmatprep.subr.mxu0 0.0
        %1246 = vmatpush1.msra.mxu0 0.0
        %1247 = vmatprep.subr.mxu0 0.0
        %1248 = vmatpush1.msra.mxu0 0.0
        %1249 = vmatprep.subr.mxu0 0.0
        %1250 = vmatpush1.msra.mxu0 0.0
        %1251 = vmatprep.subr.mxu0 0.0
        %1252 = vmatpush1.msra.mxu0 0.0
        %1253 = vmatprep.subr.mxu0 0.0
        %1254 = vmatpush1.msra.mxu0 0.0
        %1255 = vmatprep.subr.mxu0 0.0
        %1256 = vmatpush1.msra.mxu0 0.0
        %1257 = vmatprep.subr.mxu0 0.0
        %1258 = vmatpush1.msra.mxu0 0.0
        %1259 = vmatprep.subr.mxu0 0.0
        %1260 = vmatpush1.msra.mxu0 0.0
        %1261 = vmatprep.subr.mxu0 0.0
        %1262 = vmatpush1.msra.mxu0 0.0
        %1263 = vmatprep.subr.mxu0 0.0
        %1264 = vmatpush1.msra.mxu0 0.0
        %1265 = vmatprep.subr.mxu0 0.0
        %1266 = vmatpush1.msra.mxu0 0.0
        %1267 = vmatprep.subr.mxu0 0.0
        %1268 = vmatpush1.msra.mxu0 0.0
        %1269 = vmatprep.subr.mxu0 0.0
        %1270 = vmatpush1.msra.mxu0 0.0
        %1271 = vmatprep.subr.mxu0 0.0
        %1272 = vmatpush1.msra.mxu0 0.0
        %1273 = vmatprep.subr.mxu0 0.0
        %1274 = vmatpush1.msra.mxu0 0.0
        %1275 = vmatprep.subr.mxu0 0.0
        %1276 = vmatpush1.msra.mxu0 0.0
        %1277 = vmatprep.mubr.f32.mxu0 0.0
        %v1278 = vand.u32 %v992, 4294901760
        %v1279 = vsub.f32 %v992, %v1278
        %1280 = vmatmul.mubr.f32.gmra.mrb[0].mxu0 %v1279
        %v1281 = vpop.f32.mrb[0].mxu0
        %v1282 = vadd.f32 %v1188, %v1281
        %v1283 = vpop.f32.mrb[0].mxu0
        %1284 = vmatprep.mubr.f32.mxu0 0.0
        %v1285 = vand.u32 %v995, 4294901760
        %v1286 = vsub.f32 %v995, %v1285
        %1287 = vmatmul.mubr.f32.gmra.mrb[0].mxu0 %v1286
        %v1288 = vpop.f32.mrb[0].mxu0
        %v1289 = vadd.f32 %v1194, %v1288
        %v1290 = vpop.f32.mrb[0].mxu0
        %1291 = vmatprep.mubr.f32.mxu0 0.0
        %v1292 = vand.u32 %v998, 4294901760
        %v1293 = vsub.f32 %v998, %v1292
        %1294 = vmatmul.mubr.f32.gmra.mrb[0].mxu0 %v1293
        %v1295 = vpop.f32.mrb[0].mxu0
        %v1296 = vadd.f32 %v1200, %v1295
        %v1297 = vpop.f32.mrb[0].mxu0
        %1298 = vmatprep.mubr.f32.mxu0 0.0
        %v1299 = vand.u32 %v1001, 4294901760
        %v1300 = vsub.f32 %v1001, %v1299
        %1301 = vmatmul.mubr.f32.gmra.mrb[0].mxu0 %v1300
        %v1302 = vpop.f32.mrb[0].mxu0
        %v1303 = vadd.f32 %v1206, %v1302
        %v1304 = vpop.f32.mrb[0].mxu0
        %1305 = vdwg.mxu0
        %1306 = vmatprep.subr.mxu0 0.0
        %v1307 = vand.u32 %v942, 4294901760
        %1308 = vmatpush1.msra.mxu0 %v1307
        %1309 = vmatprep.subr.mxu0 0.0
        %v1310 = vand.u32 %v948, 4294901760
        %1311 = vmatpush1.msra.mxu0 %v1310
        %1312 = vmatprep.subr.mxu0 0.0
        %1313 = vmatpush1.msra.mxu0 0.0
        %1314 = vmatprep.subr.mxu0 0.0
        %1315 = vmatpush1.msra.mxu0 0.0
        %1316 = vmatprep.subr.mxu0 0.0
        %1317 = vmatpush1.msra.mxu0 0.0
        %1318 = vmatprep.subr.mxu0 0.0
        %1319 = vmatpush1.msra.mxu0 0.0
        %1320 = vmatprep.subr.mxu0 0.0
        %1321 = vmatpush1.msra.mxu0 0.0
        %1322 = vmatprep.subr.mxu0 0.0
        %1323 = vmatpush1.msra.mxu0 0.0
        %1324 = vmatprep.subr.mxu0 0.0
        %1325 = vmatpush1.msra.mxu0 0.0
        %1326 = vmatprep.subr.mxu0 0.0
        %1327 = vmatpush1.msra.mxu0 0.0
        %1328 = vmatprep.subr.mxu0 0.0
        %1329 = vmatpush1.msra.mxu0 0.0
        %1330 = vmatprep.subr.mxu0 0.0
        %1331 = vmatpush1.msra.mxu0 0.0
        %1332 = vmatprep.subr.mxu0 0.0
        %1333 = vmatpush1.msra.mxu0 0.0
        %1334 = vmatprep.subr.mxu0 0.0
        %1335 = vmatpush1.msra.mxu0 0.0
        %1336 = vmatprep.subr.mxu0 0.0
        %1337 = vmatpush1.msra.mxu0 0.0
        %1338 = vmatprep.subr.mxu0 0.0
        %1339 = vmatpush1.msra.mxu0 0.0
        %1340 = vmatprep.subr.mxu0 0.0
        %1341 = vmatpush1.msra.mxu0 0.0
        %1342 = vmatprep.subr.mxu0 0.0
        %1343 = vmatpush1.msra.mxu0 0.0
        %1344 = vmatprep.subr.mxu0 0.0
        %1345 = vmatpush1.msra.mxu0 0.0
        %1346 = vmatprep.subr.mxu0 0.0
        %1347 = vmatpush1.msra.mxu0 0.0
        %1348 = vmatprep.subr.mxu0 0.0
        %1349 = vmatpush1.msra.mxu0 0.0
        %1350 = vmatprep.subr.mxu0 0.0
        %1351 = vmatpush1.msra.mxu0 0.0
        %1352 = vmatprep.subr.mxu0 0.0
        %1353 = vmatpush1.msra.mxu0 0.0
        %1354 = vmatprep.subr.mxu0 0.0
        %1355 = vmatpush1.msra.mxu0 0.0
        %1356 = vmatprep.subr.mxu0 0.0
        %1357 = vmatpush1.msra.mxu0 0.0
        %1358 = vmatprep.subr.mxu0 0.0
        %1359 = vmatpush1.msra.mxu0 0.0
        %1360 = vmatprep.subr.mxu0 0.0
        %1361 = vmatpush1.msra.mxu0 0.0
        %1362 = vmatprep.subr.mxu0 0.0
        %1363 = vmatpush1.msra.mxu0 0.0
        %1364 = vmatprep.subr.mxu0 0.0
        %1365 = vmatpush1.msra.mxu0 0.0
        %1366 = vmatprep.subr.mxu0 0.0
        %1367 = vmatpush1.msra.mxu0 0.0
        %1368 = vmatprep.subr.mxu0 0.0
        %1369 = vmatpush1.msra.mxu0 0.0
        %1370 = vmatprep.subr.mxu0 0.0
        %1371 = vmatpush1.msra.mxu0 0.0
        %1372 = vmatprep.mubr.f32.mxu0 0.0
        %v1373 = vand.u32 %v992, 4294901760
        %v1374 = vsub.f32 %v992, %v1373
        %v1375 = vand.u32 %v1374, 4294901760
        %1376 = vmatmul.mubr.f32.gmra.mrb[0].mxu0 %v1375
        %v1377 = vpop.f32.mrb[0].mxu0
        %v1378 = vadd.f32 %v1282, %v1377
        %v1379 = vpop.f32.mrb[0].mxu0
        %1380 = vmatprep.mubr.f32.mxu0 0.0
        %v1381 = vand.u32 %v995, 4294901760
        %v1382 = vsub.f32 %v995, %v1381
        %v1383 = vand.u32 %v1382, 4294901760
        %1384 = vmatmul.mubr.f32.gmra.mrb[0].mxu0 %v1383
        %v1385 = vpop.f32.mrb[0].mxu0
        %v1386 = vadd.f32 %v1289, %v1385
        %v1387 = vpop.f32.mrb[0].mxu0
        %1388 = vmatprep.mubr.f32.mxu0 0.0
        %v1389 = vand.u32 %v998, 4294901760
        %v1390 = vsub.f32 %v998, %v1389
        %v1391 = vand.u32 %v1390, 4294901760
        %1392 = vmatmul.mubr.f32.gmra.mrb[0].mxu0 %v1391
        %v1393 = vpop.f32.mrb[0].mxu0
        %v1394 = vadd.f32 %v1296, %v1393
        %v1395 = vpop.f32.mrb[0].mxu0
        %1396 = vmatprep.mubr.f32.mxu0 0.0
        %v1397 = vand.u32 %v1001, 4294901760
        %v1398 = vsub.f32 %v1001, %v1397
        %v1399 = vand.u32 %v1398, 4294901760
        %1400 = vmatmul.mubr.f32.gmra.mrb[0].mxu0 %v1399
        %v1401 = vpop.f32.mrb[0].mxu0
        %v1402 = vadd.f32 %v1303, %v1401
        %v1403 = vpop.f32.mrb[0].mxu0
        %1404 = vdwg.mxu0
        %1405 = vmatprep.subr.mxu0 0.0
        %v1406 = vand.u32 %v942, 4294901760
        %v1407 = vsub.f32 %v942, %v1406
        %v1408 = vand.u32 %v1407, 4294901760
        %1409 = vmatpush1.msra.mxu0 %v1408
        %1410 = vmatprep.subr.mxu0 0.0
        %v1411 = vand.u32 %v948, 4294901760
        %v1412 = vsub.f32 %v948, %v1411
        %v1413 = vand.u32 %v1412, 4294901760
        %1414 = vmatpush1.msra.mxu0 %v1413
        %1415 = vmatprep.subr.mxu0 0.0
        %1416 = vmatpush1.msra.mxu0 0.0
        %1417 = vmatprep.subr.mxu0 0.0
        %1418 = vmatpush1.msra.mxu0 0.0
        %1419 = vmatprep.subr.mxu0 0.0
        %1420 = vmatpush1.msra.mxu0 0.0
        %1421 = vmatprep.subr.mxu0 0.0
        %1422 = vmatpush1.msra.mxu0 0.0
        %1423 = vmatprep.subr.mxu0 0.0
        %1424 = vmatpush1.msra.mxu0 0.0
        %1425 = vmatprep.subr.mxu0 0.0
        %1426 = vmatpush1.msra.mxu0 0.0
        %1427 = vmatprep.subr.mxu0 0.0
        %1428 = vmatpush1.msra.mxu0 0.0
        %1429 = vmatprep.subr.mxu0 0.0
        %1430 = vmatpush1.msra.mxu0 0.0
        %1431 = vmatprep.subr.mxu0 0.0
        %1432 = vmatpush1.msra.mxu0 0.0
        %1433 = vmatprep.subr.mxu0 0.0
        %1434 = vmatpush1.msra.mxu0 0.0
        %1435 = vmatprep.subr.mxu0 0.0
        %1436 = vmatpush1.msra.mxu0 0.0
        %1437 = vmatprep.subr.mxu0 0.0
        %1438 = vmatpush1.msra.mxu0 0.0
        %1439 = vmatprep.subr.mxu0 0.0
        %1440 = vmatpush1.msra.mxu0 0.0
        %1441 = vmatprep.subr.mxu0 0.0
        %1442 = vmatpush1.msra.mxu0 0.0
        %1443 = vmatprep.subr.mxu0 0.0
        %1444 = vmatpush1.msra.mxu0 0.0
        %1445 = vmatprep.subr.mxu0 0.0
        %1446 = vmatpush1.msra.mxu0 0.0
        %1447 = vmatprep.subr.mxu0 0.0
        %1448 = vmatpush1.msra.mxu0 0.0
        %1449 = vmatprep.subr.mxu0 0.0
        %1450 = vmatpush1.msra.mxu0 0.0
        %1451 = vmatprep.subr.mxu0 0.0
        %1452 = vmatpush1.msra.mxu0 0.0
        %1453 = vmatprep.subr.mxu0 0.0
        %1454 = vmatpush1.msra.mxu0 0.0
        %1455 = vmatprep.subr.mxu0 0.0
        %1456 = vmatpush1.msra.mxu0 0.0
        %1457 = vmatprep.subr.mxu0 0.0
        %1458 = vmatpush1.msra.mxu0 0.0
        %1459 = vmatprep.subr.mxu0 0.0
        %1460 = vmatpush1.msra.mxu0 0.0
        %1461 = vmatprep.subr.mxu0 0.0
        %1462 = vmatpush1.msra.mxu0 0.0
        %1463 = vmatprep.subr.mxu0 0.0
        %1464 = vmatpush1.msra.mxu0 0.0
        %1465 = vmatprep.subr.mxu0 0.0
        %1466 = vmatpush1.msra.mxu0 0.0
        %1467 = vmatprep.subr.mxu0 0.0
        %1468 = vmatpush1.msra.mxu0 0.0
        %1469 = vmatprep.subr.mxu0 0.0
        %1470 = vmatpush1.msra.mxu0 0.0
        %1471 = vmatprep.subr.mxu0 0.0
        %1472 = vmatpush1.msra.mxu0 0.0
        %1473 = vmatprep.subr.mxu0 0.0
        %1474 = vmatpush1.msra.mxu0 0.0
        %1475 = vmatprep.mubr.f32.mxu0 0.0
        %v1476 = vand.u32 %v992, 4294901760
        %1477 = vmatmul.mubr.f32.gmra.mrb[0].mxu0 %v1476
        %v1478 = vpop.f32.mrb[0].mxu0
        %v1479 = vadd.f32 %v1378, %v1478
        %v1480 = vpop.f32.mrb[0].mxu0
        %1481 = vmatprep.mubr.f32.mxu0 0.0
        %v1482 = vand.u32 %v995, 4294901760
        %1483 = vmatmul.mubr.f32.gmra.mrb[0].mxu0 %v1482
        %v1484 = vpop.f32.mrb[0].mxu0
        %v1485 = vadd.f32 %v1386, %v1484
        %v1486 = vpop.f32.mrb[0].mxu0
        %1487 = vmatprep.mubr.f32.mxu0 0.0
        %v1488 = vand.u32 %v998, 4294901760
        %1489 = vmatmul.mubr.f32.gmra.mrb[0].mxu0 %v1488
        %v1490 = vpop.f32.mrb[0].mxu0
        %v1491 = vadd.f32 %v1394, %v1490
        %v1492 = vpop.f32.mrb[0].mxu0
        %1493 = vmatprep.mubr.f32.mxu0 0.0
        %v1494 = vand.u32 %v1001, 4294901760
        %1495 = vmatmul.mubr.f32.gmra.mrb[0].mxu0 %v1494
        %v1496 = vpop.f32.mrb[0].mxu0
        %v1497 = vadd.f32 %v1402, %v1496
        %v1498 = vpop.f32.mrb[0].mxu0
        %1499 = vdwg.mxu0
        %1500 = vmatprep.subr.mxu0 0.0
        %v1501 = vand.u32 %v942, 4294901760
        %1502 = vmatpush1.msra.mxu0 %v1501
        %1503 = vmatprep.subr.mxu0 0.0
        %v1504 = vand.u32 %v948, 4294901760
        %1505 = vmatpush1.msra.mxu0 %v1504
        %1506 = vmatprep.subr.mxu0 0.0
        %1507 = vmatpush1.msra.mxu0 0.0
        %1508 = vmatprep.subr.mxu0 0.0
        %1509 = vmatpush1.msra.mxu0 0.0
        %1510 = vmatprep.subr.mxu0 0.0
        %1511 = vmatpush1.msra.mxu0 0.0
        %1512 = vmatprep.subr.mxu0 0.0
        %1513 = vmatpush1.msra.mxu0 0.0
        %1514 = vmatprep.subr.mxu0 0.0
        %1515 = vmatpush1.msra.mxu0 0.0
        %1516 = vmatprep.subr.mxu0 0.0
        %1517 = vmatpush1.msra.mxu0 0.0
        %1518 = vmatprep.subr.mxu0 0.0
        %1519 = vmatpush1.msra.mxu0 0.0
        %1520 = vmatprep.subr.mxu0 0.0
        %1521 = vmatpush1.msra.mxu0 0.0
        %1522 = vmatprep.subr.mxu0 0.0
        %1523 = vmatpush1.msra.mxu0 0.0
        %1524 = vmatprep.subr.mxu0 0.0
        %1525 = vmatpush1.msra.mxu0 0.0
        %1526 = vmatprep.subr.mxu0 0.0
        %1527 = vmatpush1.msra.mxu0 0.0
        %1528 = vmatprep.subr.mxu0 0.0
        %1529 = vmatpush1.msra.mxu0 0.0
        %1530 = vmatprep.subr.mxu0 0.0
        %1531 = vmatpush1.msra.mxu0 0.0
        %1532 = vmatprep.subr.mxu0 0.0
        %1533 = vmatpush1.msra.mxu0 0.0
        %1534 = vmatprep.subr.mxu0 0.0
        %1535 = vmatpush1.msra.mxu0 0.0
        %1536 = vmatprep.subr.mxu0 0.0
        %1537 = vmatpush1.msra.mxu0 0.0
        %1538 = vmatprep.subr.mxu0 0.0
        %1539 = vmatpush1.msra.mxu0 0.0
        %1540 = vmatprep.subr.mxu0 0.0
        %1541 = vmatpush1.msra.mxu0 0.0
        %1542 = vmatprep.subr.mxu0 0.0
        %1543 = vmatpush1.msra.mxu0 0.0
        %1544 = vmatprep.subr.mxu0 0.0
        %1545 = vmatpush1.msra.mxu0 0.0
        %1546 = vmatprep.subr.mxu0 0.0
        %1547 = vmatpush1.msra.mxu0 0.0
        %1548 = vmatprep.subr.mxu0 0.0
        %1549 = vmatpush1.msra.mxu0 0.0
        %1550 = vmatprep.subr.mxu0 0.0
        %1551 = vmatpush1.msra.mxu0 0.0
        %1552 = vmatprep.subr.mxu0 0.0
        %1553 = vmatpush1.msra.mxu0 0.0
        %1554 = vmatprep.subr.mxu0 0.0
        %1555 = vmatpush1.msra.mxu0 0.0
        %1556 = vmatprep.subr.mxu0 0.0
        %1557 = vmatpush1.msra.mxu0 0.0
        %1558 = vmatprep.subr.mxu0 0.0
        %1559 = vmatpush1.msra.mxu0 0.0
        %1560 = vmatprep.subr.mxu0 0.0
        %1561 = vmatpush1.msra.mxu0 0.0
        %1562 = vmatprep.subr.mxu0 0.0
        %1563 = vmatpush1.msra.mxu0 0.0
        %1564 = vmatprep.subr.mxu0 0.0
        %1565 = vmatpush1.msra.mxu0 0.0
        %1566 = vmatprep.mubr.f32.mxu0 0.0
        %v1567 = vand.u32 %v992, 4294901760
        %1568 = vmatmul.mubr.f32.gmra.mrb[0].mxu0 %v1567
        %v1569 = vpop.f32.mrb[0].mxu0
        %v1570 = vadd.f32 %v1479, %v1569
        %v1571 = vpop.f32.mrb[0].mxu0
        %1572 = vmatprep.mubr.f32.mxu0 0.0
        %v1573 = vand.u32 %v995, 4294901760
        %1574 = vmatmul.mubr.f32.gmra.mrb[0].mxu0 %v1573
        %v1575 = vpop.f32.mrb[0].mxu0
        %v1576 = vadd.f32 %v1485, %v1575
        %v1577 = vpop.f32.mrb[0].mxu0
        %1578 = vmatprep.mubr.f32.mxu0 0.0
        %v1579 = vand.u32 %v998, 4294901760
        %1580 = vmatmul.mubr.f32.gmra.mrb[0].mxu0 %v1579
        %v1581 = vpop.f32.mrb[0].mxu0
        %v1582 = vadd.f32 %v1491, %v1581
        %v1583 = vpop.f32.mrb[0].mxu0
        %1584 = vmatprep.mubr.f32.mxu0 0.0
        %v1585 = vand.u32 %v1001, 4294901760
        %1586 = vmatmul.mubr.f32.gmra.mrb[0].mxu0 %v1585
        %v1587 = vpop.f32.mrb[0].mxu0
        %v1588 = vadd.f32 %v1497, %v1587
        %v1589 = vpop.f32.mrb[0].mxu0
        %1590 = vdwg.mxu0
        %vm1591 = vcmask 261120
        %1592 = vst.msk [vmem:[%s189] sm:$0xff] %vm1591, %v1570
        %1593 = vst.msk [vmem:[%s189 + $0x8] sm:$0xff] %vm1591, %v1576
        %1594 = vst.msk [vmem:[%s189 + $0x10] sm:$0xff] %vm1591, %v1582
        %1595 = vst.msk [vmem:[%s189 + $0x18] sm:$0xff] %vm1591, %v1588
        %1596 = vmatprep.subr.mxu0 0.0
        %v1597 = vand.u32 %v954, 4294901760
        %1598 = vmatpush1.msra.mxu0 %v1597
        %1599 = vmatprep.subr.mxu0 0.0
        %v1600 = vand.u32 %v960, 4294901760
        %1601 = vmatpush1.msra.mxu0 %v1600
        %1602 = vmatprep.subr.mxu0 0.0
        %1603 = vmatpush1.msra.mxu0 0.0
        %1604 = vmatprep.subr.mxu0 0.0
        %1605 = vmatpush1.msra.mxu0 0.0
        %1606 = vmatprep.subr.mxu0 0.0
        %1607 = vmatpush1.msra.mxu0 0.0
        %1608 = vmatprep.subr.mxu0 0.0
        %1609 = vmatpush1.msra.mxu0 0.0
        %1610 = vmatprep.subr.mxu0 0.0
        %1611 = vmatpush1.msra.mxu0 0.0
        %1612 = vmatprep.subr.mxu0 0.0
        %1613 = vmatpush1.msra.mxu0 0.0
        %1614 = vmatprep.subr.mxu0 0.0
        %1615 = vmatpush1.msra.mxu0 0.0
        %1616 = vmatprep.subr.mxu0 0.0
        %1617 = vmatpush1.msra.mxu0 0.0
        %1618 = vmatprep.subr.mxu0 0.0
        %1619 = vmatpush1.msra.mxu0 0.0
        %1620 = vmatprep.subr.mxu0 0.0
        %1621 = vmatpush1.msra.mxu0 0.0
        %1622 = vmatprep.subr.mxu0 0.0
        %1623 = vmatpush1.msra.mxu0 0.0
        %1624 = vmatprep.subr.mxu0 0.0
        %1625 = vmatpush1.msra.mxu0 0.0
        %1626 = vmatprep.subr.mxu0 0.0
        %1627 = vmatpush1.msra.mxu0 0.0
        %1628 = vmatprep.subr.mxu0 0.0
        %1629 = vmatpush1.msra.mxu0 0.0
        %1630 = vmatprep.subr.mxu0 0.0
        %1631 = vmatpush1.msra.mxu0 0.0
        %1632 = vmatprep.subr.mxu0 0.0
        %1633 = vmatpush1.msra.mxu0 0.0
        %1634 = vmatprep.subr.mxu0 0.0
        %1635 = vmatpush1.msra.mxu0 0.0
        %1636 = vmatprep.subr.mxu0 0.0
        %1637 = vmatpush1.msra.mxu0 0.0
        %1638 = vmatprep.subr.mxu0 0.0
        %1639 = vmatpush1.msra.mxu0 0.0
        %1640 = vmatprep.subr.mxu0 0.0
        %1641 = vmatpush1.msra.mxu0 0.0
        %1642 = vmatprep.subr.mxu0 0.0
        %1643 = vmatpush1.msra.mxu0 0.0
        %1644 = vmatprep.subr.mxu0 0.0
        %1645 = vmatpush1.msra.mxu0 0.0
        %1646 = vmatprep.subr.mxu0 0.0
        %1647 = vmatpush1.msra.mxu0 0.0
        %1648 = vmatprep.subr.mxu0 0.0
        %1649 = vmatpush1.msra.mxu0 0.0
        %1650 = vmatprep.subr.mxu0 0.0
        %1651 = vmatpush1.msra.mxu0 0.0
        %1652 = vmatprep.subr.mxu0 0.0
        %1653 = vmatpush1.msra.mxu0 0.0
        %1654 = vmatprep.subr.mxu0 0.0
        %1655 = vmatpush1.msra.mxu0 0.0
        %1656 = vmatprep.subr.mxu0 0.0
        %1657 = vmatpush1.msra.mxu0 0.0
        %1658 = vmatprep.subr.mxu0 0.0
        %1659 = vmatpush1.msra.mxu0 0.0
        %1660 = vmatprep.subr.mxu0 0.0
        %1661 = vmatpush1.msra.mxu0 0.0
        %1662 = vmatprep.mubr.f32.mxu0 0.0
        %v1663 = vand.u32 %v992, 4294901760
        %v1664 = vsub.f32 %v992, %v1663
        %v1665 = vand.u32 %v1664, 4294901760
        %v1666 = vsub.f32 %v1664, %v1665
        %v1667 = vand.u32 %v1666, 4294901760
        %1668 = vmatmul.mubr.f32.gmra.mrb[0].mxu0 %v1667
        %v1669 = vpop.f32.mrb[0].mxu0
        %v1670 = vadd.f32 0.0, %v1669
        %v1671 = vpop.f32.mrb[0].mxu0
        %1672 = vmatprep.mubr.f32.mxu0 0.0
        %v1673 = vand.u32 %v995, 4294901760
        %v1674 = vsub.f32 %v995, %v1673
        %v1675 = vand.u32 %v1674, 4294901760
        %v1676 = vsub.f32 %v1674, %v1675
        %v1677 = vand.u32 %v1676, 4294901760
        %1678 = vmatmul.mubr.f32.gmra.mrb[0].mxu0 %v1677
        %v1679 = vpop.f32.mrb[0].mxu0
        %v1680 = vadd.f32 0.0, %v1679
        %v1681 = vpop.f32.mrb[0].mxu0
        %1682 = vmatprep.mubr.f32.mxu0 0.0
        %v1683 = vand.u32 %v998, 4294901760
        %v1684 = vsub.f32 %v998, %v1683
        %v1685 = vand.u32 %v1684, 4294901760
        %v1686 = vsub.f32 %v1684, %v1685
        %v1687 = vand.u32 %v1686, 4294901760
        %1688 = vmatmul.mubr.f32.gmra.mrb[0].mxu0 %v1687
        %v1689 = vpop.f32.mrb[0].mxu0
        %v1690 = vadd.f32 0.0, %v1689
        %v1691 = vpop.f32.mrb[0].mxu0
        %1692 = vmatprep.mubr.f32.mxu0 0.0
        %v1693 = vand.u32 %v1001, 4294901760
        %v1694 = vsub.f32 %v1001, %v1693
        %v1695 = vand.u32 %v1694, 4294901760
        %v1696 = vsub.f32 %v1694, %v1695
        %v1697 = vand.u32 %v1696, 4294901760
        %1698 = vmatmul.mubr.f32.gmra.mrb[0].mxu0 %v1697
        %v1699 = vpop.f32.mrb[0].mxu0
        %v1700 = vadd.f32 0.0, %v1699
        %v1701 = vpop.f32.mrb[0].mxu0
        %1702 = vdwg.mxu0
        %1703 = vmatprep.subr.mxu0 0.0
        %v1704 = vand.u32 %v954, 4294901760
        %v1705 = vsub.f32 %v954, %v1704
        %v1706 = vand.u32 %v1705, 4294901760
        %v1707 = vsub.f32 %v1705, %v1706
        %v1708 = vand.u32 %v1707, 4294901760
        %1709 = vmatpush1.msra.mxu0 %v1708
        %1710 = vmatprep.subr.mxu0 0.0
        %v1711 = vand.u32 %v960, 4294901760
        %v1712 = vsub.f32 %v960, %v1711
        %v1713 = vand.u32 %v1712, 4294901760
        %v1714 = vsub.f32 %v1712, %v1713
        %v1715 = vand.u32 %v1714, 4294901760
        %1716 = vmatpush1.msra.mxu0 %v1715
        %1717 = vmatprep.subr.mxu0 0.0
        %1718 = vmatpush1.msra.mxu0 0.0
        %1719 = vmatprep.subr.mxu0 0.0
        %1720 = vmatpush1.msra.mxu0 0.0
        %1721 = vmatprep.subr.mxu0 0.0
        %1722 = vmatpush1.msra.mxu0 0.0
        %1723 = vmatprep.subr.mxu0 0.0
        %1724 = vmatpush1.msra.mxu0 0.0
        %1725 = vmatprep.subr.mxu0 0.0
        %1726 = vmatpush1.msra.mxu0 0.0
        %1727 = vmatprep.subr.mxu0 0.0
        %1728 = vmatpush1.msra.mxu0 0.0
        %1729 = vmatprep.subr.mxu0 0.0
        %1730 = vmatpush1.msra.mxu0 0.0
        %1731 = vmatprep.subr.mxu0 0.0
        %1732 = vmatpush1.msra.mxu0 0.0
        %1733 = vmatprep.subr.mxu0 0.0
        %1734 = vmatpush1.msra.mxu0 0.0
        %1735 = vmatprep.subr.mxu0 0.0
        %1736 = vmatpush1.msra.mxu0 0.0
        %1737 = vmatprep.subr.mxu0 0.0
        %1738 = vmatpush1.msra.mxu0 0.0
        %1739 = vmatprep.subr.mxu0 0.0
        %1740 = vmatpush1.msra.mxu0 0.0
        %1741 = vmatprep.subr.mxu0 0.0
        %1742 = vmatpush1.msra.mxu0 0.0
        %1743 = vmatprep.subr.mxu0 0.0
        %1744 = vmatpush1.msra.mxu0 0.0
        %1745 = vmatprep.subr.mxu0 0.0
        %1746 = vmatpush1.msra.mxu0 0.0
        %1747 = vmatprep.subr.mxu0 0.0
        %1748 = vmatpush1.msra.mxu0 0.0
        %1749 = vmatprep.subr.mxu0 0.0
        %1750 = vmatpush1.msra.mxu0 0.0
        %1751 = vmatprep.subr.mxu0 0.0
        %1752 = vmatpush1.msra.mxu0 0.0
        %1753 = vmatprep.subr.mxu0 0.0
        %1754 = vmatpush1.msra.mxu0 0.0
        %1755 = vmatprep.subr.mxu0 0.0
        %1756 = vmatpush1.msra.mxu0 0.0
        %1757 = vmatprep.subr.mxu0 0.0
        %1758 = vmatpush1.msra.mxu0 0.0
        %1759 = vmatprep.subr.mxu0 0.0
        %1760 = vmatpush1.msra.mxu0 0.0
        %1761 = vmatprep.subr.mxu0 0.0
        %1762 = vmatpush1.msra.mxu0 0.0
        %1763 = vmatprep.subr.mxu0 0.0
        %1764 = vmatpush1.msra.mxu0 0.0
        %1765 = vmatprep.subr.mxu0 0.0
        %1766 = vmatpush1.msra.mxu0 0.0
        %1767 = vmatprep.subr.mxu0 0.0
        %1768 = vmatpush1.msra.mxu0 0.0
        %1769 = vmatprep.subr.mxu0 0.0
        %1770 = vmatpush1.msra.mxu0 0.0
        %1771 = vmatprep.subr.mxu0 0.0
        %1772 = vmatpush1.msra.mxu0 0.0
        %1773 = vmatprep.subr.mxu0 0.0
        %1774 = vmatpush1.msra.mxu0 0.0
        %1775 = vmatprep.subr.mxu0 0.0
        %1776 = vmatpush1.msra.mxu0 0.0
        %1777 = vmatprep.mubr.f32.mxu0 0.0
        %v1778 = vand.u32 %v992, 4294901760
        %1779 = vmatmul.mubr.f32.gmra.mrb[0].mxu0 %v1778
        %v1780 = vpop.f32.mrb[0].mxu0
        %v1781 = vadd.f32 %v1670, %v1780
        %v1782 = vpop.f32.mrb[0].mxu0
        %1783 = vmatprep.mubr.f32.mxu0 0.0
        %v1784 = vand.u32 %v995, 4294901760
        %1785 = vmatmul.mubr.f32.gmra.mrb[0].mxu0 %v1784
        %v1786 = vpop.f32.mrb[0].mxu0
        %v1787 = vadd.f32 %v1680, %v1786
        %v1788 = vpop.f32.mrb[0].mxu0
        %1789 = vmatprep.mubr.f32.mxu0 0.0
        %v1790 = vand.u32 %v998, 4294901760
        %1791 = vmatmul.mubr.f32.gmra.mrb[0].mxu0 %v1790
        %v1792 = vpop.f32.mrb[0].mxu0
        %v1793 = vadd.f32 %v1690, %v1792
        %v1794 = vpop.f32.mrb[0].mxu0
        %1795 = vmatprep.mubr.f32.mxu0 0.0
        %v1796 = vand.u32 %v1001, 4294901760
        %1797 = vmatmul.mubr.f32.gmra.mrb[0].mxu0 %v1796
        %v1798 = vpop.f32.mrb[0].mxu0
        %v1799 = vadd.f32 %v1700, %v1798
        %v1800 = vpop.f32.mrb[0].mxu0
        %1801 = vdwg.mxu0
        %1802 = vmatprep.subr.mxu0 0.0
        %v1803 = vand.u32 %v954, 4294901760
        %v1804 = vsub.f32 %v954, %v1803
        %1805 = vmatpush1.msra.mxu0 %v1804
        %1806 = vmatprep.subr.mxu0 0.0
        %v1807 = vand.u32 %v960, 4294901760
        %v1808 = vsub.f32 %v960, %v1807
        %1809 = vmatpush1.msra.mxu0 %v1808
        %1810 = vmatprep.subr.mxu0 0.0
        %1811 = vmatpush1.msra.mxu0 0.0
        %1812 = vmatprep.subr.mxu0 0.0
        %1813 = vmatpush1.msra.mxu0 0.0
        %1814 = vmatprep.subr.mxu0 0.0
        %1815 = vmatpush1.msra.mxu0 0.0
        %1816 = vmatprep.subr.mxu0 0.0
        %1817 = vmatpush1.msra.mxu0 0.0
        %1818 = vmatprep.subr.mxu0 0.0
        %1819 = vmatpush1.msra.mxu0 0.0
        %1820 = vmatprep.subr.mxu0 0.0
        %1821 = vmatpush1.msra.mxu0 0.0
        %1822 = vmatprep.subr.mxu0 0.0
        %1823 = vmatpush1.msra.mxu0 0.0
        %1824 = vmatprep.subr.mxu0 0.0
        %1825 = vmatpush1.msra.mxu0 0.0
        %1826 = vmatprep.subr.mxu0 0.0
        %1827 = vmatpush1.msra.mxu0 0.0
        %1828 = vmatprep.subr.mxu0 0.0
        %1829 = vmatpush1.msra.mxu0 0.0
        %1830 = vmatprep.subr.mxu0 0.0
        %1831 = vmatpush1.msra.mxu0 0.0
        %1832 = vmatprep.subr.mxu0 0.0
        %1833 = vmatpush1.msra.mxu0 0.0
        %1834 = vmatprep.subr.mxu0 0.0
        %1835 = vmatpush1.msra.mxu0 0.0
        %1836 = vmatprep.subr.mxu0 0.0
        %1837 = vmatpush1.msra.mxu0 0.0
        %1838 = vmatprep.subr.mxu0 0.0
        %1839 = vmatpush1.msra.mxu0 0.0
        %1840 = vmatprep.subr.mxu0 0.0
        %1841 = vmatpush1.msra.mxu0 0.0
        %1842 = vmatprep.subr.mxu0 0.0
        %1843 = vmatpush1.msra.mxu0 0.0
        %1844 = vmatprep.subr.mxu0 0.0
        %1845 = vmatpush1.msra.mxu0 0.0
        %1846 = vmatprep.subr.mxu0 0.0
        %1847 = vmatpush1.msra.mxu0 0.0
        %1848 = vmatprep.subr.mxu0 0.0
        %1849 = vmatpush1.msra.mxu0 0.0
        %1850 = vmatprep.subr.mxu0 0.0
        %1851 = vmatpush1.msra.mxu0 0.0
        %1852 = vmatprep.subr.mxu0 0.0
        %1853 = vmatpush1.msra.mxu0 0.0
        %1854 = vmatprep.subr.mxu0 0.0
        %1855 = vmatpush1.msra.mxu0 0.0
        %1856 = vmatprep.subr.mxu0 0.0
        %1857 = vmatpush1.msra.mxu0 0.0
        %1858 = vmatprep.subr.mxu0 0.0
        %1859 = vmatpush1.msra.mxu0 0.0
        %1860 = vmatprep.subr.mxu0 0.0
        %1861 = vmatpush1.msra.mxu0 0.0
        %1862 = vmatprep.subr.mxu0 0.0
        %1863 = vmatpush1.msra.mxu0 0.0
        %1864 = vmatprep.subr.mxu0 0.0
        %1865 = vmatpush1.msra.mxu0 0.0
        %1866 = vmatprep.subr.mxu0 0.0
        %1867 = vmatpush1.msra.mxu0 0.0
        %1868 = vmatprep.subr.mxu0 0.0
        %1869 = vmatpush1.msra.mxu0 0.0
        %1870 = vmatprep.mubr.f32.mxu0 0.0
        %v1871 = vand.u32 %v992, 4294901760
        %v1872 = vsub.f32 %v992, %v1871
        %1873 = vmatmul.mubr.f32.gmra.mrb[0].mxu0 %v1872
        %v1874 = vpop.f32.mrb[0].mxu0
        %v1875 = vadd.f32 %v1781, %v1874
        %v1876 = vpop.f32.mrb[0].mxu0
        %1877 = vmatprep.mubr.f32.mxu0 0.0
        %v1878 = vand.u32 %v995, 4294901760
        %v1879 = vsub.f32 %v995, %v1878
        %1880 = vmatmul.mubr.f32.gmra.mrb[0].mxu0 %v1879
        %v1881 = vpop.f32.mrb[0].mxu0
        %v1882 = vadd.f32 %v1787, %v1881
        %v1883 = vpop.f32.mrb[0].mxu0
        %1884 = vmatprep.mubr.f32.mxu0 0.0
        %v1885 = vand.u32 %v998, 4294901760
        %v1886 = vsub.f32 %v998, %v1885
        %1887 = vmatmul.mubr.f32.gmra.mrb[0].mxu0 %v1886
        %v1888 = vpop.f32.mrb[0].mxu0
        %v1889 = vadd.f32 %v1793, %v1888
        %v1890 = vpop.f32.mrb[0].mxu0
        %1891 = vmatprep.mubr.f32.mxu0 0.0
        %v1892 = vand.u32 %v1001, 4294901760
        %v1893 = vsub.f32 %v1001, %v1892
        %1894 = vmatmul.mubr.f32.gmra.mrb[0].mxu0 %v1893
        %v1895 = vpop.f32.mrb[0].mxu0
        %v1896 = vadd.f32 %v1799, %v1895
        %v1897 = vpop.f32.mrb[0].mxu0
        %1898 = vdwg.mxu0
        %1899 = vmatprep.subr.mxu0 0.0
        %v1900 = vand.u32 %v954, 4294901760
        %1901 = vmatpush1.msra.mxu0 %v1900
        %1902 = vmatprep.subr.mxu0 0.0
        %v1903 = vand.u32 %v960, 4294901760
        %1904 = vmatpush1.msra.mxu0 %v1903
        %1905 = vmatprep.subr.mxu0 0.0
        %1906 = vmatpush1.msra.mxu0 0.0
        %1907 = vmatprep.subr.mxu0 0.0
        %1908 = vmatpush1.msra.mxu0 0.0
        %1909 = vmatprep.subr.mxu0 0.0
        %1910 = vmatpush1.msra.mxu0 0.0
        %1911 = vmatprep.subr.mxu0 0.0
        %1912 = vmatpush1.msra.mxu0 0.0
        %1913 = vmatprep.subr.mxu0 0.0
        %1914 = vmatpush1.msra.mxu0 0.0
        %1915 = vmatprep.subr.mxu0 0.0
        %1916 = vmatpush1.msra.mxu0 0.0
        %1917 = vmatprep.subr.mxu0 0.0
        %1918 = vmatpush1.msra.mxu0 0.0
        %1919 = vmatprep.subr.mxu0 0.0
        %1920 = vmatpush1.msra.mxu0 0.0
        %1921 = vmatprep.subr.mxu0 0.0
        %1922 = vmatpush1.msra.mxu0 0.0
        %1923 = vmatprep.subr.mxu0 0.0
        %1924 = vmatpush1.msra.mxu0 0.0
        %1925 = vmatprep.subr.mxu0 0.0
        %1926 = vmatpush1.msra.mxu0 0.0
        %1927 = vmatprep.subr.mxu0 0.0
        %1928 = vmatpush1.msra.mxu0 0.0
        %1929 = vmatprep.subr.mxu0 0.0
        %1930 = vmatpush1.msra.mxu0 0.0
        %1931 = vmatprep.subr.mxu0 0.0
        %1932 = vmatpush1.msra.mxu0 0.0
        %1933 = vmatprep.subr.mxu0 0.0
        %1934 = vmatpush1.msra.mxu0 0.0
        %1935 = vmatprep.subr.mxu0 0.0
        %1936 = vmatpush1.msra.mxu0 0.0
        %1937 = vmatprep.subr.mxu0 0.0
        %1938 = vmatpush1.msra.mxu0 0.0
        %1939 = vmatprep.subr.mxu0 0.0
        %1940 = vmatpush1.msra.mxu0 0.0
        %1941 = vmatprep.subr.mxu0 0.0
        %1942 = vmatpush1.msra.mxu0 0.0
        %1943 = vmatprep.subr.mxu0 0.0
        %1944 = vmatpush1.msra.mxu0 0.0
        %1945 = vmatprep.subr.mxu0 0.0
        %1946 = vmatpush1.msra.mxu0 0.0
        %1947 = vmatprep.subr.mxu0 0.0
        %1948 = vmatpush1.msra.mxu0 0.0
        %1949 = vmatprep.subr.mxu0 0.0
        %1950 = vmatpush1.msra.mxu0 0.0
        %1951 = vmatprep.subr.mxu0 0.0
        %1952 = vmatpush1.msra.mxu0 0.0
        %1953 = vmatprep.subr.mxu0 0.0
        %1954 = vmatpush1.msra.mxu0 0.0
        %1955 = vmatprep.subr.mxu0 0.0
        %1956 = vmatpush1.msra.mxu0 0.0
        %1957 = vmatprep.subr.mxu0 0.0
        %1958 = vmatpush1.msra.mxu0 0.0
        %1959 = vmatprep.subr.mxu0 0.0
        %1960 = vmatpush1.msra.mxu0 0.0
        %1961 = vmatprep.subr.mxu0 0.0
        %1962 = vmatpush1.msra.mxu0 0.0
        %1963 = vmatprep.subr.mxu0 0.0
        %1964 = vmatpush1.msra.mxu0 0.0
        %1965 = vmatprep.mubr.f32.mxu0 0.0
        %v1966 = vand.u32 %v992, 4294901760
        %v1967 = vsub.f32 %v992, %v1966
        %v1968 = vand.u32 %v1967, 4294901760
        %1969 = vmatmul.mubr.f32.gmra.mrb[0].mxu0 %v1968
        %v1970 = vpop.f32.mrb[0].mxu0
        %v1971 = vadd.f32 %v1875, %v1970
        %v1972 = vpop.f32.mrb[0].mxu0
        %1973 = vmatprep.mubr.f32.mxu0 0.0
        %v1974 = vand.u32 %v995, 4294901760
        %v1975 = vsub.f32 %v995, %v1974
        %v1976 = vand.u32 %v1975, 4294901760
        %1977 = vmatmul.mubr.f32.gmra.mrb[0].mxu0 %v1976
        %v1978 = vpop.f32.mrb[0].mxu0
        %v1979 = vadd.f32 %v1882, %v1978
        %v1980 = vpop.f32.mrb[0].mxu0
        %1981 = vmatprep.mubr.f32.mxu0 0.0
        %v1982 = vand.u32 %v998, 4294901760
        %v1983 = vsub.f32 %v998, %v1982
        %v1984 = vand.u32 %v1983, 4294901760
        %1985 = vmatmul.mubr.f32.gmra.mrb[0].mxu0 %v1984
        %v1986 = vpop.f32.mrb[0].mxu0
        %v1987 = vadd.f32 %v1889, %v1986
        %v1988 = vpop.f32.mrb[0].mxu0
        %1989 = vmatprep.mubr.f32.mxu0 0.0
        %v1990 = vand.u32 %v1001, 4294901760
        %v1991 = vsub.f32 %v1001, %v1990
        %v1992 = vand.u32 %v1991, 4294901760
        %1993 = vmatmul.mubr.f32.gmra.mrb[0].mxu0 %v1992
        %v1994 = vpop.f32.mrb[0].mxu0
        %v1995 = vadd.f32 %v1896, %v1994
        %v1996 = vpop.f32.mrb[0].mxu0
        %1997 = vdwg.mxu0
        %1998 = vmatprep.subr.mxu0 0.0
        %v1999 = vand.u32 %v954, 4294901760
        %v2000 = vsub.f32 %v954, %v1999
        %v2001 = vand.u32 %v2000, 4294901760
        %2002 = vmatpush1.msra.mxu0 %v2001
        %2003 = vmatprep.subr.mxu0 0.0
        %v2004 = vand.u32 %v960, 4294901760
        %v2005 = vsub.f32 %v960, %v2004
        %v2006 = vand.u32 %v2005, 4294901760
        %2007 = vmatpush1.msra.mxu0 %v2006
        %2008 = vmatprep.subr.mxu0 0.0
        %2009 = vmatpush1.msra.mxu0 0.0
        %2010 = vmatprep.subr.mxu0 0.0
        %2011 = vmatpush1.msra.mxu0 0.0
        %2012 = vmatprep.subr.mxu0 0.0
        %2013 = vmatpush1.msra.mxu0 0.0
        %2014 = vmatprep.subr.mxu0 0.0
        %2015 = vmatpush1.msra.mxu0 0.0
        %2016 = vmatprep.subr.mxu0 0.0
        %2017 = vmatpush1.msra.mxu0 0.0
        %2018 = vmatprep.subr.mxu0 0.0
        %2019 = vmatpush1.msra.mxu0 0.0
        %2020 = vmatprep.subr.mxu0 0.0
        %2021 = vmatpush1.msra.mxu0 0.0
        %2022 = vmatprep.subr.mxu0 0.0
        %2023 = vmatpush1.msra.mxu0 0.0
        %2024 = vmatprep.subr.mxu0 0.0
        %2025 = vmatpush1.msra.mxu0 0.0
        %2026 = vmatprep.subr.mxu0 0.0
        %2027 = vmatpush1.msra.mxu0 0.0
        %2028 = vmatprep.subr.mxu0 0.0
        %2029 = vmatpush1.msra.mxu0 0.0
        %2030 = vmatprep.subr.mxu0 0.0
        %2031 = vmatpush1.msra.mxu0 0.0
        %2032 = vmatprep.subr.mxu0 0.0
        %2033 = vmatpush1.msra.mxu0 0.0
        %2034 = vmatprep.subr.mxu0 0.0
        %2035 = vmatpush1.msra.mxu0 0.0
        %2036 = vmatprep.subr.mxu0 0.0
        %2037 = vmatpush1.msra.mxu0 0.0
        %2038 = vmatprep.subr.mxu0 0.0
        %2039 = vmatpush1.msra.mxu0 0.0
        %2040 = vmatprep.subr.mxu0 0.0
        %2041 = vmatpush1.msra.mxu0 0.0
        %2042 = vmatprep.subr.mxu0 0.0
        %2043 = vmatpush1.msra.mxu0 0.0
        %2044 = vmatprep.subr.mxu0 0.0
        %2045 = vmatpush1.msra.mxu0 0.0
        %2046 = vmatprep.subr.mxu0 0.0
        %2047 = vmatpush1.msra.mxu0 0.0
        %2048 = vmatprep.subr.mxu0 0.0
        %2049 = vmatpush1.msra.mxu0 0.0
        %2050 = vmatprep.subr.mxu0 0.0
        %2051 = vmatpush1.msra.mxu0 0.0
        %2052 = vmatprep.subr.mxu0 0.0
        %2053 = vmatpush1.msra.mxu0 0.0
        %2054 = vmatprep.subr.mxu0 0.0
        %2055 = vmatpush1.msra.mxu0 0.0
        %2056 = vmatprep.subr.mxu0 0.0
        %2057 = vmatpush1.msra.mxu0 0.0
        %2058 = vmatprep.subr.mxu0 0.0
        %2059 = vmatpush1.msra.mxu0 0.0
        %2060 = vmatprep.subr.mxu0 0.0
        %2061 = vmatpush1.msra.mxu0 0.0
        %2062 = vmatprep.subr.mxu0 0.0
        %2063 = vmatpush1.msra.mxu0 0.0
        %2064 = vmatprep.subr.mxu0 0.0
        %2065 = vmatpush1.msra.mxu0 0.0
        %2066 = vmatprep.subr.mxu0 0.0
        %2067 = vmatpush1.msra.mxu0 0.0
        %2068 = vmatprep.mubr.f32.mxu0 0.0
        %v2069 = vand.u32 %v992, 4294901760
        %2070 = vmatmul.mubr.f32.gmra.mrb[0].mxu0 %v2069
        %v2071 = vpop.f32.mrb[0].mxu0
        %v2072 = vadd.f32 %v1971, %v2071
        %v2073 = vpop.f32.mrb[0].mxu0
        %2074 = vmatprep.mubr.f32.mxu0 0.0
        %v2075 = vand.u32 %v995, 4294901760
        %2076 = vmatmul.mubr.f32.gmra.mrb[0].mxu0 %v2075
        %v2077 = vpop.f32.mrb[0].mxu0
        %v2078 = vadd.f32 %v1979, %v2077
        %v2079 = vpop.f32.mrb[0].mxu0
        %2080 = vmatprep.mubr.f32.mxu0 0.0
        %v2081 = vand.u32 %v998, 4294901760
        %2082 = vmatmul.mubr.f32.gmra.mrb[0].mxu0 %v2081
        %v2083 = vpop.f32.mrb[0].mxu0
        %v2084 = vadd.f32 %v1987, %v2083
        %v2085 = vpop.f32.mrb[0].mxu0
        %2086 = vmatprep.mubr.f32.mxu0 0.0
        %v2087 = vand.u32 %v1001, 4294901760
        %2088 = vmatmul.mubr.f32.gmra.mrb[0].mxu0 %v2087
        %v2089 = vpop.f32.mrb[0].mxu0
        %v2090 = vadd.f32 %v1995, %v2089
        %v2091 = vpop.f32.mrb[0].mxu0
        %2092 = vdwg.mxu0
        %2093 = vmatprep.subr.mxu0 0.0
        %v2094 = vand.u32 %v954, 4294901760
        %2095 = vmatpush1.msra.mxu0 %v2094
        %2096 = vmatprep.subr.mxu0 0.0
        %v2097 = vand.u32 %v960, 4294901760
        %2098 = vmatpush1.msra.mxu0 %v2097
        %2099 = vmatprep.subr.mxu0 0.0
        %2100 = vmatpush1.msra.mxu0 0.0
        %2101 = vmatprep.subr.mxu0 0.0
        %2102 = vmatpush1.msra.mxu0 0.0
        %2103 = vmatprep.subr.mxu0 0.0
        %2104 = vmatpush1.msra.mxu0 0.0
        %2105 = vmatprep.subr.mxu0 0.0
        %2106 = vmatpush1.msra.mxu0 0.0
        %2107 = vmatprep.subr.mxu0 0.0
        %2108 = vmatpush1.msra.mxu0 0.0
        %2109 = vmatprep.subr.mxu0 0.0
        %2110 = vmatpush1.msra.mxu0 0.0
        %2111 = vmatprep.subr.mxu0 0.0
        %2112 = vmatpush1.msra.mxu0 0.0
        %2113 = vmatprep.subr.mxu0 0.0
        %2114 = vmatpush1.msra.mxu0 0.0
        %2115 = vmatprep.subr.mxu0 0.0
        %2116 = vmatpush1.msra.mxu0 0.0
        %2117 = vmatprep.subr.mxu0 0.0
        %2118 = vmatpush1.msra.mxu0 0.0
        %2119 = vmatprep.subr.mxu0 0.0
        %2120 = vmatpush1.msra.mxu0 0.0
        %2121 = vmatprep.subr.mxu0 0.0
        %2122 = vmatpush1.msra.mxu0 0.0
        %2123 = vmatprep.subr.mxu0 0.0
        %2124 = vmatpush1.msra.mxu0 0.0
        %2125 = vmatprep.subr.mxu0 0.0
        %2126 = vmatpush1.msra.mxu0 0.0
        %2127 = vmatprep.subr.mxu0 0.0
        %2128 = vmatpush1.msra.mxu0 0.0
        %2129 = vmatprep.subr.mxu0 0.0
        %2130 = vmatpush1.msra.mxu0 0.0
        %2131 = vmatprep.subr.mxu0 0.0
        %2132 = vmatpush1.msra.mxu0 0.0
        %2133 = vmatprep.subr.mxu0 0.0
        %2134 = vmatpush1.msra.mxu0 0.0
        %2135 = vmatprep.subr.mxu0 0.0
        %2136 = vmatpush1.msra.mxu0 0.0
        %2137 = vmatprep.subr.mxu0 0.0
        %2138 = vmatpush1.msra.mxu0 0.0
        %2139 = vmatprep.subr.mxu0 0.0
        %2140 = vmatpush1.msra.mxu0 0.0
        %2141 = vmatprep.subr.mxu0 0.0
        %2142 = vmatpush1.msra.mxu0 0.0
        %2143 = vmatprep.subr.mxu0 0.0
        %2144 = vmatpush1.msra.mxu0 0.0
        %2145 = vmatprep.subr.mxu0 0.0
        %2146 = vmatpush1.msra.mxu0 0.0
        %2147 = vmatprep.subr.mxu0 0.0
        %2148 = vmatpush1.msra.mxu0 0.0
        %2149 = vmatprep.subr.mxu0 0.0
        %2150 = vmatpush1.msra.mxu0 0.0
        %2151 = vmatprep.subr.mxu0 0.0
        %2152 = vmatpush1.msra.mxu0 0.0
        %2153 = vmatprep.subr.mxu0 0.0
        %2154 = vmatpush1.msra.mxu0 0.0
        %2155 = vmatprep.subr.mxu0 0.0
        %2156 = vmatpush1.msra.mxu0 0.0
        %2157 = vmatprep.subr.mxu0 0.0
        %2158 = vmatpush1.msra.mxu0 0.0
        %2159 = vmatprep.mubr.f32.mxu0 0.0
        %v2160 = vand.u32 %v992, 4294901760
        %2161 = vmatmul.mubr.f32.gmra.mrb[0].mxu0 %v2160
        %v2162 = vpop.f32.mrb[0].mxu0
        %v2163 = vadd.f32 %v2072, %v2162
        %v2164 = vpop.f32.mrb[0].mxu0
        %2165 = vmatprep.mubr.f32.mxu0 0.0
        %v2166 = vand.u32 %v995, 4294901760
        %2167 = vmatmul.mubr.f32.gmra.mrb[0].mxu0 %v2166
        %v2168 = vpop.f32.mrb[0].mxu0
        %v2169 = vadd.f32 %v2078, %v2168
        %v2170 = vpop.f32.mrb[0].mxu0
        %2171 = vmatprep.mubr.f32.mxu0 0.0
        %v2172 = vand.u32 %v998, 4294901760
        %2173 = vmatmul.mubr.f32.gmra.mrb[0].mxu0 %v2172
        %v2174 = vpop.f32.mrb[0].mxu0
        %v2175 = vadd.f32 %v2084, %v2174
        %v2176 = vpop.f32.mrb[0].mxu0
        %2177 = vmatprep.mubr.f32.mxu0 0.0
        %v2178 = vand.u32 %v1001, 4294901760
        %2179 = vmatmul.mubr.f32.gmra.mrb[0].mxu0 %v2178
        %v2180 = vpop.f32.mrb[0].mxu0
        %v2181 = vadd.f32 %v2090, %v2180
        %v2182 = vpop.f32.mrb[0].mxu0
        %2183 = vdwg.mxu0
        %s2184 = scalar_lea.vmem %s189, 32 [#allocation5]
        %2185 = vst.msk [vmem:[%s2184] sm:$0xff] %vm1591, %v2163
        %2186 = vst.msk [vmem:[%s2184 + $0x8] sm:$0xff] %vm1591, %v2169
        %2187 = vst.msk [vmem:[%s2184 + $0x10] sm:$0xff] %vm1591, %v2175
        %2188 = vst.msk [vmem:[%s2184 + $0x18] sm:$0xff] %vm1591, %v2181
        %2189 = vmatprep.subr.mxu0 0.0
        %v2190 = vand.u32 %v966, 4294901760
        %2191 = vmatpush1.msra.mxu0 %v2190
        %2192 = vmatprep.subr.mxu0 0.0
        %v2193 = vand.u32 %v972, 4294901760
        %2194 = vmatpush1.msra.mxu0 %v2193
        %2195 = vmatprep.subr.mxu0 0.0
        %2196 = vmatpush1.msra.mxu0 0.0
        %2197 = vmatprep.subr.mxu0 0.0
        %2198 = vmatpush1.msra.mxu0 0.0
        %2199 = vmatprep.subr.mxu0 0.0
        %2200 = vmatpush1.msra.mxu0 0.0
        %2201 = vmatprep.subr.mxu0 0.0
        %2202 = vmatpush1.msra.mxu0 0.0
        %2203 = vmatprep.subr.mxu0 0.0
        %2204 = vmatpush1.msra.mxu0 0.0
        %2205 = vmatprep.subr.mxu0 0.0
        %2206 = vmatpush1.msra.mxu0 0.0
        %2207 = vmatprep.subr.mxu0 0.0
        %2208 = vmatpush1.msra.mxu0 0.0
        %2209 = vmatprep.subr.mxu0 0.0
        %2210 = vmatpush1.msra.mxu0 0.0
        %2211 = vmatprep.subr.mxu0 0.0
        %2212 = vmatpush1.msra.mxu0 0.0
        %2213 = vmatprep.subr.mxu0 0.0
        %2214 = vmatpush1.msra.mxu0 0.0
        %2215 = vmatprep.subr.mxu0 0.0
        %2216 = vmatpush1.msra.mxu0 0.0
        %2217 = vmatprep.subr.mxu0 0.0
        %2218 = vmatpush1.msra.mxu0 0.0
        %2219 = vmatprep.subr.mxu0 0.0
        %2220 = vmatpush1.msra.mxu0 0.0
        %2221 = vmatprep.subr.mxu0 0.0
        %2222 = vmatpush1.msra.mxu0 0.0
        %2223 = vmatprep.subr.mxu0 0.0
        %2224 = vmatpush1.msra.mxu0 0.0
        %2225 = vmatprep.subr.mxu0 0.0
        %2226 = vmatpush1.msra.mxu0 0.0
        %2227 = vmatprep.subr.mxu0 0.0
        %2228 = vmatpush1.msra.mxu0 0.0
        %2229 = vmatprep.subr.mxu0 0.0
        %2230 = vmatpush1.msra.mxu0 0.0
        %2231 = vmatprep.subr.mxu0 0.0
        %2232 = vmatpush1.msra.mxu0 0.0
        %2233 = vmatprep.subr.mxu0 0.0
        %2234 = vmatpush1.msra.mxu0 0.0
        %2235 = vmatprep.subr.mxu0 0.0
        %2236 = vmatpush1.msra.mxu0 0.0
        %2237 = vmatprep.subr.mxu0 0.0
        %2238 = vmatpush1.msra.mxu0 0.0
        %2239 = vmatprep.subr.mxu0 0.0
        %2240 = vmatpush1.msra.mxu0 0.0
        %2241 = vmatprep.subr.mxu0 0.0
        %2242 = vmatpush1.msra.mxu0 0.0
        %2243 = vmatprep.subr.mxu0 0.0
        %2244 = vmatpush1.msra.mxu0 0.0
        %2245 = vmatprep.subr.mxu0 0.0
        %2246 = vmatpush1.msra.mxu0 0.0
        %2247 = vmatprep.subr.mxu0 0.0
        %2248 = vmatpush1.msra.mxu0 0.0
        %2249 = vmatprep.subr.mxu0 0.0
        %2250 = vmatpush1.msra.mxu0 0.0
        %2251 = vmatprep.subr.mxu0 0.0
        %2252 = vmatpush1.msra.mxu0 0.0
        %2253 = vmatprep.subr.mxu0 0.0
        %2254 = vmatpush1.msra.mxu0 0.0
        %2255 = vmatprep.mubr.f32.mxu0 0.0
        %v2256 = vand.u32 %v992, 4294901760
        %v2257 = vsub.f32 %v992, %v2256
        %v2258 = vand.u32 %v2257, 4294901760
        %v2259 = vsub.f32 %v2257, %v2258
        %v2260 = vand.u32 %v2259, 4294901760
        %2261 = vmatmul.mubr.f32.gmra.mrb[0].mxu0 %v2260
        %v2262 = vpop.f32.mrb[0].mxu0
        %v2263 = vadd.f32 0.0, %v2262
        %v2264 = vpop.f32.mrb[0].mxu0
        %2265 = vmatprep.mubr.f32.mxu0 0.0
        %v2266 = vand.u32 %v995, 4294901760
        %v2267 = vsub.f32 %v995, %v2266
        %v2268 = vand.u32 %v2267, 4294901760
        %v2269 = vsub.f32 %v2267, %v2268
        %v2270 = vand.u32 %v2269, 4294901760
        %2271 = vmatmul.mubr.f32.gmra.mrb[0].mxu0 %v2270
        %v2272 = vpop.f32.mrb[0].mxu0
        %v2273 = vadd.f32 0.0, %v2272
        %v2274 = vpop.f32.mrb[0].mxu0
        %2275 = vmatprep.mubr.f32.mxu0 0.0
        %v2276 = vand.u32 %v998, 4294901760
        %v2277 = vsub.f32 %v998, %v2276
        %v2278 = vand.u32 %v2277, 4294901760
        %v2279 = vsub.f32 %v2277, %v2278
        %v2280 = vand.u32 %v2279, 4294901760
        %2281 = vmatmul.mubr.f32.gmra.mrb[0].mxu0 %v2280
        %v2282 = vpop.f32.mrb[0].mxu0
        %v2283 = vadd.f32 0.0, %v2282
        %v2284 = vpop.f32.mrb[0].mxu0
        %2285 = vmatprep.mubr.f32.mxu0 0.0
        %v2286 = vand.u32 %v1001, 4294901760
        %v2287 = vsub.f32 %v1001, %v2286
        %v2288 = vand.u32 %v2287, 4294901760
        %v2289 = vsub.f32 %v2287, %v2288
        %v2290 = vand.u32 %v2289, 4294901760
        %2291 = vmatmul.mubr.f32.gmra.mrb[0].mxu0 %v2290
        %v2292 = vpop.f32.mrb[0].mxu0
        %v2293 = vadd.f32 0.0, %v2292
        %v2294 = vpop.f32.mrb[0].mxu0
        %2295 = vdwg.mxu0
        %2296 = vmatprep.subr.mxu0 0.0
        %v2297 = vand.u32 %v966, 4294901760
        %v2298 = vsub.f32 %v966, %v2297
        %v2299 = vand.u32 %v2298, 4294901760
        %v2300 = vsub.f32 %v2298, %v2299
        %v2301 = vand.u32 %v2300, 4294901760
        %2302 = vmatpush1.msra.mxu0 %v2301
        %2303 = vmatprep.subr.mxu0 0.0
        %v2304 = vand.u32 %v972, 4294901760
        %v2305 = vsub.f32 %v972, %v2304
        %v2306 = vand.u32 %v2305, 4294901760
        %v2307 = vsub.f32 %v2305, %v2306
        %v2308 = vand.u32 %v2307, 4294901760
        %2309 = vmatpush1.msra.mxu0 %v2308
        %2310 = vmatprep.subr.mxu0 0.0
        %2311 = vmatpush1.msra.mxu0 0.0
        %2312 = vmatprep.subr.mxu0 0.0
        %2313 = vmatpush1.msra.mxu0 0.0
        %2314 = vmatprep.subr.mxu0 0.0
        %2315 = vmatpush1.msra.mxu0 0.0
        %2316 = vmatprep.subr.mxu0 0.0
        %2317 = vmatpush1.msra.mxu0 0.0
        %2318 = vmatprep.subr.mxu0 0.0
        %2319 = vmatpush1.msra.mxu0 0.0
        %2320 = vmatprep.subr.mxu0 0.0
        %2321 = vmatpush1.msra.mxu0 0.0
        %2322 = vmatprep.subr.mxu0 0.0
        %2323 = vmatpush1.msra.mxu0 0.0
        %2324 = vmatprep.subr.mxu0 0.0
        %2325 = vmatpush1.msra.mxu0 0.0
        %2326 = vmatprep.subr.mxu0 0.0
        %2327 = vmatpush1.msra.mxu0 0.0
        %2328 = vmatprep.subr.mxu0 0.0
        %2329 = vmatpush1.msra.mxu0 0.0
        %2330 = vmatprep.subr.mxu0 0.0
        %2331 = vmatpush1.msra.mxu0 0.0
        %2332 = vmatprep.subr.mxu0 0.0
        %2333 = vmatpush1.msra.mxu0 0.0
        %2334 = vmatprep.subr.mxu0 0.0
        %2335 = vmatpush1.msra.mxu0 0.0
        %2336 = vmatprep.subr.mxu0 0.0
        %2337 = vmatpush1.msra.mxu0 0.0
        %2338 = vmatprep.subr.mxu0 0.0
        %2339 = vmatpush1.msra.mxu0 0.0
        %2340 = vmatprep.subr.mxu0 0.0
        %2341 = vmatpush1.msra.mxu0 0.0
        %2342 = vmatprep.subr.mxu0 0.0
        %2343 = vmatpush1.msra.mxu0 0.0
        %2344 = vmatprep.subr.mxu0 0.0
        %2345 = vmatpush1.msra.mxu0 0.0
        %2346 = vmatprep.subr.mxu0 0.0
        %2347 = vmatpush1.msra.mxu0 0.0
        %2348 = vmatprep.subr.mxu0 0.0
        %2349 = vmatpush1.msra.mxu0 0.0
        %2350 = vmatprep.subr.mxu0 0.0
        %2351 = vmatpush1.msra.mxu0 0.0
        %2352 = vmatprep.subr.mxu0 0.0
        %2353 = vmatpush1.msra.mxu0 0.0
        %2354 = vmatprep.subr.mxu0 0.0
        %2355 = vmatpush1.msra.mxu0 0.0
        %2356 = vmatprep.subr.mxu0 0.0
        %2357 = vmatpush1.msra.mxu0 0.0
        %2358 = vmatprep.subr.mxu0 0.0
        %2359 = vmatpush1.msra.mxu0 0.0
        %2360 = vmatprep.subr.mxu0 0.0
        %2361 = vmatpush1.msra.mxu0 0.0
        %2362 = vmatprep.subr.mxu0 0.0
        %2363 = vmatpush1.msra.mxu0 0.0
        %2364 = vmatprep.subr.mxu0 0.0
        %2365 = vmatpush1.msra.mxu0 0.0
        %2366 = vmatprep.subr.mxu0 0.0
        %2367 = vmatpush1.msra.mxu0 0.0
        %2368 = vmatprep.subr.mxu0 0.0
        %2369 = vmatpush1.msra.mxu0 0.0
        %2370 = vmatprep.mubr.f32.mxu0 0.0
        %v2371 = vand.u32 %v992, 4294901760
        %2372 = vmatmul.mubr.f32.gmra.mrb[0].mxu0 %v2371
        %v2373 = vpop.f32.mrb[0].mxu0
        %v2374 = vadd.f32 %v2263, %v2373
        %v2375 = vpop.f32.mrb[0].mxu0
        %2376 = vmatprep.mubr.f32.mxu0 0.0
        %v2377 = vand.u32 %v995, 4294901760
        %2378 = vmatmul.mubr.f32.gmra.mrb[0].mxu0 %v2377
        %v2379 = vpop.f32.mrb[0].mxu0
        %v2380 = vadd.f32 %v2273, %v2379
        %v2381 = vpop.f32.mrb[0].mxu0
        %2382 = vmatprep.mubr.f32.mxu0 0.0
        %v2383 = vand.u32 %v998, 4294901760
        %2384 = vmatmul.mubr.f32.gmra.mrb[0].mxu0 %v2383
        %v2385 = vpop.f32.mrb[0].mxu0
        %v2386 = vadd.f32 %v2283, %v2385
        %v2387 = vpop.f32.mrb[0].mxu0
        %2388 = vmatprep.mubr.f32.mxu0 0.0
        %v2389 = vand.u32 %v1001, 4294901760
        %2390 = vmatmul.mubr.f32.gmra.mrb[0].mxu0 %v2389
        %v2391 = vpop.f32.mrb[0].mxu0
        %v2392 = vadd.f32 %v2293, %v2391
        %v2393 = vpop.f32.mrb[0].mxu0
        %2394 = vdwg.mxu0
        %2395 = vmatprep.subr.mxu0 0.0
        %v2396 = vand.u32 %v966, 4294901760
        %v2397 = vsub.f32 %v966, %v2396
        %2398 = vmatpush1.msra.mxu0 %v2397
        %2399 = vmatprep.subr.mxu0 0.0
        %v2400 = vand.u32 %v972, 4294901760
        %v2401 = vsub.f32 %v972, %v2400
        %2402 = vmatpush1.msra.mxu0 %v2401
        %2403 = vmatprep.subr.mxu0 0.0
        %2404 = vmatpush1.msra.mxu0 0.0
        %2405 = vmatprep.subr.mxu0 0.0
        %2406 = vmatpush1.msra.mxu0 0.0
        %2407 = vmatprep.subr.mxu0 0.0
        %2408 = vmatpush1.msra.mxu0 0.0
        %2409 = vmatprep.subr.mxu0 0.0
        %2410 = vmatpush1.msra.mxu0 0.0
        %2411 = vmatprep.subr.mxu0 0.0
        %2412 = vmatpush1.msra.mxu0 0.0
        %2413 = vmatprep.subr.mxu0 0.0
        %2414 = vmatpush1.msra.mxu0 0.0
        %2415 = vmatprep.subr.mxu0 0.0
        %2416 = vmatpush1.msra.mxu0 0.0
        %2417 = vmatprep.subr.mxu0 0.0
        %2418 = vmatpush1.msra.mxu0 0.0
        %2419 = vmatprep.subr.mxu0 0.0
        %2420 = vmatpush1.msra.mxu0 0.0
        %2421 = vmatprep.subr.mxu0 0.0
        %2422 = vmatpush1.msra.mxu0 0.0
        %2423 = vmatprep.subr.mxu0 0.0
        %2424 = vmatpush1.msra.mxu0 0.0
        %2425 = vmatprep.subr.mxu0 0.0
        %2426 = vmatpush1.msra.mxu0 0.0
        %2427 = vmatprep.subr.mxu0 0.0
        %2428 = vmatpush1.msra.mxu0 0.0
        %2429 = vmatprep.subr.mxu0 0.0
        %2430 = vmatpush1.msra.mxu0 0.0
        %2431 = vmatprep.subr.mxu0 0.0
        %2432 = vmatpush1.msra.mxu0 0.0
        %2433 = vmatprep.subr.mxu0 0.0
        %2434 = vmatpush1.msra.mxu0 0.0
        %2435 = vmatprep.subr.mxu0 0.0
        %2436 = vmatpush1.msra.mxu0 0.0
        %2437 = vmatprep.subr.mxu0 0.0
        %2438 = vmatpush1.msra.mxu0 0.0
        %2439 = vmatprep.subr.mxu0 0.0
        %2440 = vmatpush1.msra.mxu0 0.0
        %2441 = vmatprep.subr.mxu0 0.0
        %2442 = vmatpush1.msra.mxu0 0.0
        %2443 = vmatprep.subr.mxu0 0.0
        %2444 = vmatpush1.msra.mxu0 0.0
        %2445 = vmatprep.subr.mxu0 0.0
        %2446 = vmatpush1.msra.mxu0 0.0
        %2447 = vmatprep.subr.mxu0 0.0
        %2448 = vmatpush1.msra.mxu0 0.0
        %2449 = vmatprep.subr.mxu0 0.0
        %2450 = vmatpush1.msra.mxu0 0.0
        %2451 = vmatprep.subr.mxu0 0.0
        %2452 = vmatpush1.msra.mxu0 0.0
        %2453 = vmatprep.subr.mxu0 0.0
        %2454 = vmatpush1.msra.mxu0 0.0
        %2455 = vmatprep.subr.mxu0 0.0
        %2456 = vmatpush1.msra.mxu0 0.0
        %2457 = vmatprep.subr.mxu0 0.0
        %2458 = vmatpush1.msra.mxu0 0.0
        %2459 = vmatprep.subr.mxu0 0.0
        %2460 = vmatpush1.msra.mxu0 0.0
        %2461 = vmatprep.subr.mxu0 0.0
        %2462 = vmatpush1.msra.mxu0 0.0
        %2463 = vmatprep.mubr.f32.mxu0 0.0
        %v2464 = vand.u32 %v992, 4294901760
        %v2465 = vsub.f32 %v992, %v2464
        %2466 = vmatmul.mubr.f32.gmra.mrb[0].mxu0 %v2465
        %v2467 = vpop.f32.mrb[0].mxu0
        %v2468 = vadd.f32 %v2374, %v2467
        %v2469 = vpop.f32.mrb[0].mxu0
        %2470 = vmatprep.mubr.f32.mxu0 0.0
        %v2471 = vand.u32 %v995, 4294901760
        %v2472 = vsub.f32 %v995, %v2471
        %2473 = vmatmul.mubr.f32.gmra.mrb[0].mxu0 %v2472
        %v2474 = vpop.f32.mrb[0].mxu0
        %v2475 = vadd.f32 %v2380, %v2474
        %v2476 = vpop.f32.mrb[0].mxu0
        %2477 = vmatprep.mubr.f32.mxu0 0.0
        %v2478 = vand.u32 %v998, 4294901760
        %v2479 = vsub.f32 %v998, %v2478
        %2480 = vmatmul.mubr.f32.gmra.mrb[0].mxu0 %v2479
        %v2481 = vpop.f32.mrb[0].mxu0
        %v2482 = vadd.f32 %v2386, %v2481
        %v2483 = vpop.f32.mrb[0].mxu0
        %2484 = vmatprep.mubr.f32.mxu0 0.0
        %v2485 = vand.u32 %v1001, 4294901760
        %v2486 = vsub.f32 %v1001, %v2485
        %2487 = vmatmul.mubr.f32.gmra.mrb[0].mxu0 %v2486
        %v2488 = vpop.f32.mrb[0].mxu0
        %v2489 = vadd.f32 %v2392, %v2488
        %v2490 = vpop.f32.mrb[0].mxu0
        %2491 = vdwg.mxu0
        %2492 = vmatprep.subr.mxu0 0.0
        %v2493 = vand.u32 %v966, 4294901760
        %2494 = vmatpush1.msra.mxu0 %v2493
        %2495 = vmatprep.subr.mxu0 0.0
        %v2496 = vand.u32 %v972, 4294901760
        %2497 = vmatpush1.msra.mxu0 %v2496
        %2498 = vmatprep.subr.mxu0 0.0
        %2499 = vmatpush1.msra.mxu0 0.0
        %2500 = vmatprep.subr.mxu0 0.0
        %2501 = vmatpush1.msra.mxu0 0.0
        %2502 = vmatprep.subr.mxu0 0.0
        %2503 = vmatpush1.msra.mxu0 0.0
        %2504 = vmatprep.subr.mxu0 0.0
        %2505 = vmatpush1.msra.mxu0 0.0
        %2506 = vmatprep.subr.mxu0 0.0
        %2507 = vmatpush1.msra.mxu0 0.0
        %2508 = vmatprep.subr.mxu0 0.0
        %2509 = vmatpush1.msra.mxu0 0.0
        %2510 = vmatprep.subr.mxu0 0.0
        %2511 = vmatpush1.msra.mxu0 0.0
        %2512 = vmatprep.subr.mxu0 0.0
        %2513 = vmatpush1.msra.mxu0 0.0
        %2514 = vmatprep.subr.mxu0 0.0
        %2515 = vmatpush1.msra.mxu0 0.0
        %2516 = vmatprep.subr.mxu0 0.0
        %2517 = vmatpush1.msra.mxu0 0.0
        %2518 = vmatprep.subr.mxu0 0.0
        %2519 = vmatpush1.msra.mxu0 0.0
        %2520 = vmatprep.subr.mxu0 0.0
        %2521 = vmatpush1.msra.mxu0 0.0
        %2522 = vmatprep.subr.mxu0 0.0
        %2523 = vmatpush1.msra.mxu0 0.0
        %2524 = vmatprep.subr.mxu0 0.0
        %2525 = vmatpush1.msra.mxu0 0.0
        %2526 = vmatprep.subr.mxu0 0.0
        %2527 = vmatpush1.msra.mxu0 0.0
        %2528 = vmatprep.subr.mxu0 0.0
        %2529 = vmatpush1.msra.mxu0 0.0
        %2530 = vmatprep.subr.mxu0 0.0
        %2531 = vmatpush1.msra.mxu0 0.0
        %2532 = vmatprep.subr.mxu0 0.0
        %2533 = vmatpush1.msra.mxu0 0.0
        %2534 = vmatprep.subr.mxu0 0.0
        %2535 = vmatpush1.msra.mxu0 0.0
        %2536 = vmatprep.subr.mxu0 0.0
        %2537 = vmatpush1.msra.mxu0 0.0
        %2538 = vmatprep.subr.mxu0 0.0
        %2539 = vmatpush1.msra.mxu0 0.0
        %2540 = vmatprep.subr.mxu0 0.0
        %2541 = vmatpush1.msra.mxu0 0.0
        %2542 = vmatprep.subr.mxu0 0.0
        %2543 = vmatpush1.msra.mxu0 0.0
        %2544 = vmatprep.subr.mxu0 0.0
        %2545 = vmatpush1.msra.mxu0 0.0
        %2546 = vmatprep.subr.mxu0 0.0
        %2547 = vmatpush1.msra.mxu0 0.0
        %2548 = vmatprep.subr.mxu0 0.0
        %2549 = vmatpush1.msra.mxu0 0.0
        %2550 = vmatprep.subr.mxu0 0.0
        %2551 = vmatpush1.msra.mxu0 0.0
        %2552 = vmatprep.subr.mxu0 0.0
        %2553 = vmatpush1.msra.mxu0 0.0
        %2554 = vmatprep.subr.mxu0 0.0
        %2555 = vmatpush1.msra.mxu0 0.0
        %2556 = vmatprep.subr.mxu0 0.0
        %2557 = vmatpush1.msra.mxu0 0.0
        %2558 = vmatprep.mubr.f32.mxu0 0.0
        %v2559 = vand.u32 %v992, 4294901760
        %v2560 = vsub.f32 %v992, %v2559
        %v2561 = vand.u32 %v2560, 4294901760
        %2562 = vmatmul.mubr.f32.gmra.mrb[0].mxu0 %v2561
        %v2563 = vpop.f32.mrb[0].mxu0
        %v2564 = vadd.f32 %v2468, %v2563
        %v2565 = vpop.f32.mrb[0].mxu0
        %2566 = vmatprep.mubr.f32.mxu0 0.0
        %v2567 = vand.u32 %v995, 4294901760
        %v2568 = vsub.f32 %v995, %v2567
        %v2569 = vand.u32 %v2568, 4294901760
        %2570 = vmatmul.mubr.f32.gmra.mrb[0].mxu0 %v2569
        %v2571 = vpop.f32.mrb[0].mxu0
        %v2572 = vadd.f32 %v2475, %v2571
        %v2573 = vpop.f32.mrb[0].mxu0
        %2574 = vmatprep.mubr.f32.mxu0 0.0
        %v2575 = vand.u32 %v998, 4294901760
        %v2576 = vsub.f32 %v998, %v2575
        %v2577 = vand.u32 %v2576, 4294901760
        %2578 = vmatmul.mubr.f32.gmra.mrb[0].mxu0 %v2577
        %v2579 = vpop.f32.mrb[0].mxu0
        %v2580 = vadd.f32 %v2482, %v2579
        %v2581 = vpop.f32.mrb[0].mxu0
        %2582 = vmatprep.mubr.f32.mxu0 0.0
        %v2583 = vand.u32 %v1001, 4294901760
        %v2584 = vsub.f32 %v1001, %v2583
        %v2585 = vand.u32 %v2584, 4294901760
        %2586 = vmatmul.mubr.f32.gmra.mrb[0].mxu0 %v2585
        %v2587 = vpop.f32.mrb[0].mxu0
        %v2588 = vadd.f32 %v2489, %v2587
        %v2589 = vpop.f32.mrb[0].mxu0
        %2590 = vdwg.mxu0
        %2591 = vmatprep.subr.mxu0 0.0
        %v2592 = vand.u32 %v966, 4294901760
        %v2593 = vsub.f32 %v966, %v2592
        %v2594 = vand.u32 %v2593, 4294901760
        %2595 = vmatpush1.msra.mxu0 %v2594
        %2596 = vmatprep.subr.mxu0 0.0
        %v2597 = vand.u32 %v972, 4294901760
        %v2598 = vsub.f32 %v972, %v2597
        %v2599 = vand.u32 %v2598, 4294901760
        %2600 = vmatpush1.msra.mxu0 %v2599
        %2601 = vmatprep.subr.mxu0 0.0
        %2602 = vmatpush1.msra.mxu0 0.0
        %2603 = vmatprep.subr.mxu0 0.0
        %2604 = vmatpush1.msra.mxu0 0.0
        %2605 = vmatprep.subr.mxu0 0.0
        %2606 = vmatpush1.msra.mxu0 0.0
        %2607 = vmatprep.subr.mxu0 0.0
        %2608 = vmatpush1.msra.mxu0 0.0
        %2609 = vmatprep.subr.mxu0 0.0
        %2610 = vmatpush1.msra.mxu0 0.0
        %2611 = vmatprep.subr.mxu0 0.0
        %2612 = vmatpush1.msra.mxu0 0.0
        %2613 = vmatprep.subr.mxu0 0.0
        %2614 = vmatpush1.msra.mxu0 0.0
        %2615 = vmatprep.subr.mxu0 0.0
        %2616 = vmatpush1.msra.mxu0 0.0
        %2617 = vmatprep.subr.mxu0 0.0
        %2618 = vmatpush1.msra.mxu0 0.0
        %2619 = vmatprep.subr.mxu0 0.0
        %2620 = vmatpush1.msra.mxu0 0.0
        %2621 = vmatprep.subr.mxu0 0.0
        %2622 = vmatpush1.msra.mxu0 0.0
        %2623 = vmatprep.subr.mxu0 0.0
        %2624 = vmatpush1.msra.mxu0 0.0
        %2625 = vmatprep.subr.mxu0 0.0
        %2626 = vmatpush1.msra.mxu0 0.0
        %2627 = vmatprep.subr.mxu0 0.0
        %2628 = vmatpush1.msra.mxu0 0.0
        %2629 = vmatprep.subr.mxu0 0.0
        %2630 = vmatpush1.msra.mxu0 0.0
        %2631 = vmatprep.subr.mxu0 0.0
        %2632 = vmatpush1.msra.mxu0 0.0
        %2633 = vmatprep.subr.mxu0 0.0
        %2634 = vmatpush1.msra.mxu0 0.0
        %2635 = vmatprep.subr.mxu0 0.0
        %2636 = vmatpush1.msra.mxu0 0.0
        %2637 = vmatprep.subr.mxu0 0.0
        %2638 = vmatpush1.msra.mxu0 0.0
        %2639 = vmatprep.subr.mxu0 0.0
        %2640 = vmatpush1.msra.mxu0 0.0
        %2641 = vmatprep.subr.mxu0 0.0
        %2642 = vmatpush1.msra.mxu0 0.0
        %2643 = vmatprep.subr.mxu0 0.0
        %2644 = vmatpush1.msra.mxu0 0.0
        %2645 = vmatprep.subr.mxu0 0.0
        %2646 = vmatpush1.msra.mxu0 0.0
        %2647 = vmatprep.subr.mxu0 0.0
        %2648 = vmatpush1.msra.mxu0 0.0
        %2649 = vmatprep.subr.mxu0 0.0
        %2650 = vmatpush1.msra.mxu0 0.0
        %2651 = vmatprep.subr.mxu0 0.0
        %2652 = vmatpush1.msra.mxu0 0.0
        %2653 = vmatprep.subr.mxu0 0.0
        %2654 = vmatpush1.msra.mxu0 0.0
        %2655 = vmatprep.subr.mxu0 0.0
        %2656 = vmatpush1.msra.mxu0 0.0
        %2657 = vmatprep.subr.mxu0 0.0
        %2658 = vmatpush1.msra.mxu0 0.0
        %2659 = vmatprep.subr.mxu0 0.0
        %2660 = vmatpush1.msra.mxu0 0.0
        %2661 = vmatprep.mubr.f32.mxu0 0.0
        %v2662 = vand.u32 %v992, 4294901760
        %2663 = vmatmul.mubr.f32.gmra.mrb[0].mxu0 %v2662
        %v2664 = vpop.f32.mrb[0].mxu0
        %v2665 = vadd.f32 %v2564, %v2664
        %v2666 = vpop.f32.mrb[0].mxu0
        %2667 = vmatprep.mubr.f32.mxu0 0.0
        %v2668 = vand.u32 %v995, 4294901760
        %2669 = vmatmul.mubr.f32.gmra.mrb[0].mxu0 %v2668
        %v2670 = vpop.f32.mrb[0].mxu0
        %v2671 = vadd.f32 %v2572, %v2670
        %v2672 = vpop.f32.mrb[0].mxu0
        %2673 = vmatprep.mubr.f32.mxu0 0.0
        %v2674 = vand.u32 %v998, 4294901760
        %2675 = vmatmul.mubr.f32.gmra.mrb[0].mxu0 %v2674
        %v2676 = vpop.f32.mrb[0].mxu0
        %v2677 = vadd.f32 %v2580, %v2676
        %v2678 = vpop.f32.mrb[0].mxu0
        %2679 = vmatprep.mubr.f32.mxu0 0.0
        %v2680 = vand.u32 %v1001, 4294901760
        %2681 = vmatmul.mubr.f32.gmra.mrb[0].mxu0 %v2680
        %v2682 = vpop.f32.mrb[0].mxu0
        %v2683 = vadd.f32 %v2588, %v2682
        %v2684 = vpop.f32.mrb[0].mxu0
        %2685 = vdwg.mxu0
        %2686 = vmatprep.subr.mxu0 0.0
        %v2687 = vand.u32 %v966, 4294901760
        %2688 = vmatpush1.msra.mxu0 %v2687
        %2689 = vmatprep.subr.mxu0 0.0
        %v2690 = vand.u32 %v972, 4294901760
        %2691 = vmatpush1.msra.mxu0 %v2690
        %2692 = vmatprep.subr.mxu0 0.0
        %2693 = vmatpush1.msra.mxu0 0.0
        %2694 = vmatprep.subr.mxu0 0.0
        %2695 = vmatpush1.msra.mxu0 0.0
        %2696 = vmatprep.subr.mxu0 0.0
        %2697 = vmatpush1.msra.mxu0 0.0
        %2698 = vmatprep.subr.mxu0 0.0
        %2699 = vmatpush1.msra.mxu0 0.0
        %2700 = vmatprep.subr.mxu0 0.0
        %2701 = vmatpush1.msra.mxu0 0.0
        %2702 = vmatprep.subr.mxu0 0.0
        %2703 = vmatpush1.msra.mxu0 0.0
        %2704 = vmatprep.subr.mxu0 0.0
        %2705 = vmatpush1.msra.mxu0 0.0
        %2706 = vmatprep.subr.mxu0 0.0
        %2707 = vmatpush1.msra.mxu0 0.0
        %2708 = vmatprep.subr.mxu0 0.0
        %2709 = vmatpush1.msra.mxu0 0.0
        %2710 = vmatprep.subr.mxu0 0.0
        %2711 = vmatpush1.msra.mxu0 0.0
        %2712 = vmatprep.subr.mxu0 0.0
        %2713 = vmatpush1.msra.mxu0 0.0
        %2714 = vmatprep.subr.mxu0 0.0
        %2715 = vmatpush1.msra.mxu0 0.0
        %2716 = vmatprep.subr.mxu0 0.0
        %2717 = vmatpush1.msra.mxu0 0.0
        %2718 = vmatprep.subr.mxu0 0.0
        %2719 = vmatpush1.msra.mxu0 0.0
        %2720 = vmatprep.subr.mxu0 0.0
        %2721 = vmatpush1.msra.mxu0 0.0
        %2722 = vmatprep.subr.mxu0 0.0
        %2723 = vmatpush1.msra.mxu0 0.0
        %2724 = vmatprep.subr.mxu0 0.0
        %2725 = vmatpush1.msra.mxu0 0.0
        %2726 = vmatprep.subr.mxu0 0.0
        %2727 = vmatpush1.msra.mxu0 0.0
        %2728 = vmatprep.subr.mxu0 0.0
        %2729 = vmatpush1.msra.mxu0 0.0
        %2730 = vmatprep.subr.mxu0 0.0
        %2731 = vmatpush1.msra.mxu0 0.0
        %2732 = vmatprep.subr.mxu0 0.0
        %2733 = vmatpush1.msra.mxu0 0.0
        %2734 = vmatprep.subr.mxu0 0.0
        %2735 = vmatpush1.msra.mxu0 0.0
        %2736 = vmatprep.subr.mxu0 0.0
        %2737 = vmatpush1.msra.mxu0 0.0
        %2738 = vmatprep.subr.mxu0 0.0
        %2739 = vmatpush1.msra.mxu0 0.0
        %2740 = vmatprep.subr.mxu0 0.0
        %2741 = vmatpush1.msra.mxu0 0.0
        %2742 = vmatprep.subr.mxu0 0.0
        %2743 = vmatpush1.msra.mxu0 0.0
        %2744 = vmatprep.subr.mxu0 0.0
        %2745 = vmatpush1.msra.mxu0 0.0
        %2746 = vmatprep.subr.mxu0 0.0
        %2747 = vmatpush1.msra.mxu0 0.0
        %2748 = vmatprep.subr.mxu0 0.0
        %2749 = vmatpush1.msra.mxu0 0.0
        %2750 = vmatprep.subr.mxu0 0.0
        %2751 = vmatpush1.msra.mxu0 0.0
        %2752 = vmatprep.mubr.f32.mxu0 0.0
        %v2753 = vand.u32 %v992, 4294901760
        %2754 = vmatmul.mubr.f32.gmra.mrb[0].mxu0 %v2753
        %v2755 = vpop.f32.mrb[0].mxu0
        %v2756 = vadd.f32 %v2665, %v2755
        %v2757 = vpop.f32.mrb[0].mxu0
        %2758 = vmatprep.mubr.f32.mxu0 0.0
        %v2759 = vand.u32 %v995, 4294901760
        %2760 = vmatmul.mubr.f32.gmra.mrb[0].mxu0 %v2759
        %v2761 = vpop.f32.mrb[0].mxu0
        %v2762 = vadd.f32 %v2671, %v2761
        %v2763 = vpop.f32.mrb[0].mxu0
        %2764 = vmatprep.mubr.f32.mxu0 0.0
        %v2765 = vand.u32 %v998, 4294901760
        %2766 = vmatmul.mubr.f32.gmra.mrb[0].mxu0 %v2765
        %v2767 = vpop.f32.mrb[0].mxu0
        %v2768 = vadd.f32 %v2677, %v2767
        %v2769 = vpop.f32.mrb[0].mxu0
        %2770 = vmatprep.mubr.f32.mxu0 0.0
        %v2771 = vand.u32 %v1001, 4294901760
        %2772 = vmatmul.mubr.f32.gmra.mrb[0].mxu0 %v2771
        %v2773 = vpop.f32.mrb[0].mxu0
        %v2774 = vadd.f32 %v2683, %v2773
        %v2775 = vpop.f32.mrb[0].mxu0
        %2776 = vdwg.mxu0
        %s2777 = scalar_lea.vmem %s189, 64 [#allocation5]
        %2778 = vst.msk [vmem:[%s2777] sm:$0xff] %vm1591, %v2756
        %2779 = vst.msk [vmem:[%s2777 + $0x8] sm:$0xff] %vm1591, %v2762
        %2780 = vst.msk [vmem:[%s2777 + $0x10] sm:$0xff] %vm1591, %v2768
        %2781 = vst.msk [vmem:[%s2777 + $0x18] sm:$0xff] %vm1591, %v2774
        %2782 = vmatprep.subr.mxu0 0.0
        %v2783 = vand.u32 %v978, 4294901760
        %2784 = vmatpush1.msra.mxu0 %v2783
        %2785 = vmatprep.subr.mxu0 0.0
        %v2786 = vand.u32 %v984, 4294901760
        %2787 = vmatpush1.msra.mxu0 %v2786
        %2788 = vmatprep.subr.mxu0 0.0
        %2789 = vmatpush1.msra.mxu0 0.0
        %2790 = vmatprep.subr.mxu0 0.0
        %2791 = vmatpush1.msra.mxu0 0.0
        %2792 = vmatprep.subr.mxu0 0.0
        %2793 = vmatpush1.msra.mxu0 0.0
        %2794 = vmatprep.subr.mxu0 0.0
        %2795 = vmatpush1.msra.mxu0 0.0
        %2796 = vmatprep.subr.mxu0 0.0
        %2797 = vmatpush1.msra.mxu0 0.0
        %2798 = vmatprep.subr.mxu0 0.0
        %2799 = vmatpush1.msra.mxu0 0.0
        %2800 = vmatprep.subr.mxu0 0.0
        %2801 = vmatpush1.msra.mxu0 0.0
        %2802 = vmatprep.subr.mxu0 0.0
        %2803 = vmatpush1.msra.mxu0 0.0
        %2804 = vmatprep.subr.mxu0 0.0
        %2805 = vmatpush1.msra.mxu0 0.0
        %2806 = vmatprep.subr.mxu0 0.0
        %2807 = vmatpush1.msra.mxu0 0.0
        %2808 = vmatprep.subr.mxu0 0.0
        %2809 = vmatpush1.msra.mxu0 0.0
        %2810 = vmatprep.subr.mxu0 0.0
        %2811 = vmatpush1.msra.mxu0 0.0
        %2812 = vmatprep.subr.mxu0 0.0
        %2813 = vmatpush1.msra.mxu0 0.0
        %2814 = vmatprep.subr.mxu0 0.0
        %2815 = vmatpush1.msra.mxu0 0.0
        %2816 = vmatprep.subr.mxu0 0.0
        %2817 = vmatpush1.msra.mxu0 0.0
        %2818 = vmatprep.subr.mxu0 0.0
        %2819 = vmatpush1.msra.mxu0 0.0
        %2820 = vmatprep.subr.mxu0 0.0
        %2821 = vmatpush1.msra.mxu0 0.0
        %2822 = vmatprep.subr.mxu0 0.0
        %2823 = vmatpush1.msra.mxu0 0.0
        %2824 = vmatprep.subr.mxu0 0.0
        %2825 = vmatpush1.msra.mxu0 0.0
        %2826 = vmatprep.subr.mxu0 0.0
        %2827 = vmatpush1.msra.mxu0 0.0
        %2828 = vmatprep.subr.mxu0 0.0
        %2829 = vmatpush1.msra.mxu0 0.0
        %2830 = vmatprep.subr.mxu0 0.0
        %2831 = vmatpush1.msra.mxu0 0.0
        %2832 = vmatprep.subr.mxu0 0.0
        %2833 = vmatpush1.msra.mxu0 0.0
        %2834 = vmatprep.subr.mxu0 0.0
        %2835 = vmatpush1.msra.mxu0 0.0
        %2836 = vmatprep.subr.mxu0 0.0
        %2837 = vmatpush1.msra.mxu0 0.0
        %2838 = vmatprep.subr.mxu0 0.0
        %2839 = vmatpush1.msra.mxu0 0.0
        %2840 = vmatprep.subr.mxu0 0.0
        %2841 = vmatpush1.msra.mxu0 0.0
        %2842 = vmatprep.subr.mxu0 0.0
        %2843 = vmatpush1.msra.mxu0 0.0
        %2844 = vmatprep.subr.mxu0 0.0
        %2845 = vmatpush1.msra.mxu0 0.0
        %2846 = vmatprep.subr.mxu0 0.0
        %2847 = vmatpush1.msra.mxu0 0.0
        %2848 = vmatprep.mubr.f32.mxu0 0.0
        %v2849 = vand.u32 %v992, 4294901760
        %v2850 = vsub.f32 %v992, %v2849
        %v2851 = vand.u32 %v2850, 4294901760
        %v2852 = vsub.f32 %v2850, %v2851
        %v2853 = vand.u32 %v2852, 4294901760
        %2854 = vmatmul.mubr.f32.gmra.mrb[0].mxu0 %v2853
        %v2855 = vpop.f32.mrb[0].mxu0
        %v2856 = vadd.f32 0.0, %v2855
        %v2857 = vpop.f32.mrb[0].mxu0
        %2858 = vmatprep.mubr.f32.mxu0 0.0
        %v2859 = vand.u32 %v995, 4294901760
        %v2860 = vsub.f32 %v995, %v2859
        %v2861 = vand.u32 %v2860, 4294901760
        %v2862 = vsub.f32 %v2860, %v2861
        %v2863 = vand.u32 %v2862, 4294901760
        %2864 = vmatmul.mubr.f32.gmra.mrb[0].mxu0 %v2863
        %v2865 = vpop.f32.mrb[0].mxu0
        %v2866 = vadd.f32 0.0, %v2865
        %v2867 = vpop.f32.mrb[0].mxu0
        %2868 = vmatprep.mubr.f32.mxu0 0.0
        %v2869 = vand.u32 %v998, 4294901760
        %v2870 = vsub.f32 %v998, %v2869
        %v2871 = vand.u32 %v2870, 4294901760
        %v2872 = vsub.f32 %v2870, %v2871
        %v2873 = vand.u32 %v2872, 4294901760
        %2874 = vmatmul.mubr.f32.gmra.mrb[0].mxu0 %v2873
        %v2875 = vpop.f32.mrb[0].mxu0
        %v2876 = vadd.f32 0.0, %v2875
        %v2877 = vpop.f32.mrb[0].mxu0
        %2878 = vmatprep.mubr.f32.mxu0 0.0
        %v2879 = vand.u32 %v1001, 4294901760
        %v2880 = vsub.f32 %v1001, %v2879
        %v2881 = vand.u32 %v2880, 4294901760
        %v2882 = vsub.f32 %v2880, %v2881
        %v2883 = vand.u32 %v2882, 4294901760
        %2884 = vmatmul.mubr.f32.gmra.mrb[0].mxu0 %v2883
        %v2885 = vpop.f32.mrb[0].mxu0
        %v2886 = vadd.f32 0.0, %v2885
        %v2887 = vpop.f32.mrb[0].mxu0
        %2888 = vdwg.mxu0
        %2889 = vmatprep.subr.mxu0 0.0
        %v2890 = vand.u32 %v978, 4294901760
        %v2891 = vsub.f32 %v978, %v2890
        %v2892 = vand.u32 %v2891, 4294901760
        %v2893 = vsub.f32 %v2891, %v2892
        %v2894 = vand.u32 %v2893, 4294901760
        %2895 = vmatpush1.msra.mxu0 %v2894
        %2896 = vmatprep.subr.mxu0 0.0
        %v2897 = vand.u32 %v984, 4294901760
        %v2898 = vsub.f32 %v984, %v2897
        %v2899 = vand.u32 %v2898, 4294901760
        %v2900 = vsub.f32 %v2898, %v2899
        %v2901 = vand.u32 %v2900, 4294901760
        %2902 = vmatpush1.msra.mxu0 %v2901
        %2903 = vmatprep.subr.mxu0 0.0
        %2904 = vmatpush1.msra.mxu0 0.0
        %2905 = vmatprep.subr.mxu0 0.0
        %2906 = vmatpush1.msra.mxu0 0.0
        %2907 = vmatprep.subr.mxu0 0.0
        %2908 = vmatpush1.msra.mxu0 0.0
        %2909 = vmatprep.subr.mxu0 0.0
        %2910 = vmatpush1.msra.mxu0 0.0
        %2911 = vmatprep.subr.mxu0 0.0
        %2912 = vmatpush1.msra.mxu0 0.0
        %2913 = vmatprep.subr.mxu0 0.0
        %2914 = vmatpush1.msra.mxu0 0.0
        %2915 = vmatprep.subr.mxu0 0.0
        %2916 = vmatpush1.msra.mxu0 0.0
        %2917 = vmatprep.subr.mxu0 0.0
        %2918 = vmatpush1.msra.mxu0 0.0
        %2919 = vmatprep.subr.mxu0 0.0
        %2920 = vmatpush1.msra.mxu0 0.0
        %2921 = vmatprep.subr.mxu0 0.0
        %2922 = vmatpush1.msra.mxu0 0.0
        %2923 = vmatprep.subr.mxu0 0.0
        %2924 = vmatpush1.msra.mxu0 0.0
        %2925 = vmatprep.subr.mxu0 0.0
        %2926 = vmatpush1.msra.mxu0 0.0
        %2927 = vmatprep.subr.mxu0 0.0
        %2928 = vmatpush1.msra.mxu0 0.0
        %2929 = vmatprep.subr.mxu0 0.0
        %2930 = vmatpush1.msra.mxu0 0.0
        %2931 = vmatprep.subr.mxu0 0.0
        %2932 = vmatpush1.msra.mxu0 0.0
        %2933 = vmatprep.subr.mxu0 0.0
        %2934 = vmatpush1.msra.mxu0 0.0
        %2935 = vmatprep.subr.mxu0 0.0
        %2936 = vmatpush1.msra.mxu0 0.0
        %2937 = vmatprep.subr.mxu0 0.0
        %2938 = vmatpush1.msra.mxu0 0.0
        %2939 = vmatprep.subr.mxu0 0.0
        %2940 = vmatpush1.msra.mxu0 0.0
        %2941 = vmatprep.subr.mxu0 0.0
        %2942 = vmatpush1.msra.mxu0 0.0
        %2943 = vmatprep.subr.mxu0 0.0
        %2944 = vmatpush1.msra.mxu0 0.0
        %2945 = vmatprep.subr.mxu0 0.0
        %2946 = vmatpush1.msra.mxu0 0.0
        %2947 = vmatprep.subr.mxu0 0.0
        %2948 = vmatpush1.msra.mxu0 0.0
        %2949 = vmatprep.subr.mxu0 0.0
        %2950 = vmatpush1.msra.mxu0 0.0
        %2951 = vmatprep.subr.mxu0 0.0
        %2952 = vmatpush1.msra.mxu0 0.0
        %2953 = vmatprep.subr.mxu0 0.0
        %2954 = vmatpush1.msra.mxu0 0.0
        %2955 = vmatprep.subr.mxu0 0.0
        %2956 = vmatpush1.msra.mxu0 0.0
        %2957 = vmatprep.subr.mxu0 0.0
        %2958 = vmatpush1.msra.mxu0 0.0
        %2959 = vmatprep.subr.mxu0 0.0
        %2960 = vmatpush1.msra.mxu0 0.0
        %2961 = vmatprep.subr.mxu0 0.0
        %2962 = vmatpush1.msra.mxu0 0.0
        %2963 = vmatprep.mubr.f32.mxu0 0.0
        %v2964 = vand.u32 %v992, 4294901760
        %2965 = vmatmul.mubr.f32.gmra.mrb[0].mxu0 %v2964
        %v2966 = vpop.f32.mrb[0].mxu0
        %v2967 = vadd.f32 %v2856, %v2966
        %v2968 = vpop.f32.mrb[0].mxu0
        %2969 = vmatprep.mubr.f32.mxu0 0.0
        %v2970 = vand.u32 %v995, 4294901760
        %2971 = vmatmul.mubr.f32.gmra.mrb[0].mxu0 %v2970
        %v2972 = vpop.f32.mrb[0].mxu0
        %v2973 = vadd.f32 %v2866, %v2972
        %v2974 = vpop.f32.mrb[0].mxu0
        %2975 = vmatprep.mubr.f32.mxu0 0.0
        %v2976 = vand.u32 %v998, 4294901760
        %2977 = vmatmul.mubr.f32.gmra.mrb[0].mxu0 %v2976
        %v2978 = vpop.f32.mrb[0].mxu0
        %v2979 = vadd.f32 %v2876, %v2978
        %v2980 = vpop.f32.mrb[0].mxu0
        %2981 = vmatprep.mubr.f32.mxu0 0.0
        %v2982 = vand.u32 %v1001, 4294901760
        %2983 = vmatmul.mubr.f32.gmra.mrb[0].mxu0 %v2982
        %v2984 = vpop.f32.mrb[0].mxu0
        %v2985 = vadd.f32 %v2886, %v2984
        %v2986 = vpop.f32.mrb[0].mxu0
        %2987 = vdwg.mxu0
        %2988 = vmatprep.subr.mxu0 0.0
        %v2989 = vand.u32 %v978, 4294901760
        %v2990 = vsub.f32 %v978, %v2989
        %2991 = vmatpush1.msra.mxu0 %v2990
        %2992 = vmatprep.subr.mxu0 0.0
        %v2993 = vand.u32 %v984, 4294901760
        %v2994 = vsub.f32 %v984, %v2993
        %2995 = vmatpush1.msra.mxu0 %v2994
        %2996 = vmatprep.subr.mxu0 0.0
        %2997 = vmatpush1.msra.mxu0 0.0
        %2998 = vmatprep.subr.mxu0 0.0
        %2999 = vmatpush1.msra.mxu0 0.0
        %3000 = vmatprep.subr.mxu0 0.0
        %3001 = vmatpush1.msra.mxu0 0.0
        %3002 = vmatprep.subr.mxu0 0.0
        %3003 = vmatpush1.msra.mxu0 0.0
        %3004 = vmatprep.subr.mxu0 0.0
        %3005 = vmatpush1.msra.mxu0 0.0
        %3006 = vmatprep.subr.mxu0 0.0
        %3007 = vmatpush1.msra.mxu0 0.0
        %3008 = vmatprep.subr.mxu0 0.0
        %3009 = vmatpush1.msra.mxu0 0.0
        %3010 = vmatprep.subr.mxu0 0.0
        %3011 = vmatpush1.msra.mxu0 0.0
        %3012 = vmatprep.subr.mxu0 0.0
        %3013 = vmatpush1.msra.mxu0 0.0
        %3014 = vmatprep.subr.mxu0 0.0
        %3015 = vmatpush1.msra.mxu0 0.0
        %3016 = vmatprep.subr.mxu0 0.0
        %3017 = vmatpush1.msra.mxu0 0.0
        %3018 = vmatprep.subr.mxu0 0.0
        %3019 = vmatpush1.msra.mxu0 0.0
        %3020 = vmatprep.subr.mxu0 0.0
        %3021 = vmatpush1.msra.mxu0 0.0
        %3022 = vmatprep.subr.mxu0 0.0
        %3023 = vmatpush1.msra.mxu0 0.0
        %3024 = vmatprep.subr.mxu0 0.0
        %3025 = vmatpush1.msra.mxu0 0.0
        %3026 = vmatprep.subr.mxu0 0.0
        %3027 = vmatpush1.msra.mxu0 0.0
        %3028 = vmatprep.subr.mxu0 0.0
        %3029 = vmatpush1.msra.mxu0 0.0
        %3030 = vmatprep.subr.mxu0 0.0
        %3031 = vmatpush1.msra.mxu0 0.0
        %3032 = vmatprep.subr.mxu0 0.0
        %3033 = vmatpush1.msra.mxu0 0.0
        %3034 = vmatprep.subr.mxu0 0.0
        %3035 = vmatpush1.msra.mxu0 0.0
        %3036 = vmatprep.subr.mxu0 0.0
        %3037 = vmatpush1.msra.mxu0 0.0
        %3038 = vmatprep.subr.mxu0 0.0
        %3039 = vmatpush1.msra.mxu0 0.0
        %3040 = vmatprep.subr.mxu0 0.0
        %3041 = vmatpush1.msra.mxu0 0.0
        %3042 = vmatprep.subr.mxu0 0.0
        %3043 = vmatpush1.msra.mxu0 0.0
        %3044 = vmatprep.subr.mxu0 0.0
        %3045 = vmatpush1.msra.mxu0 0.0
        %3046 = vmatprep.subr.mxu0 0.0
        %3047 = vmatpush1.msra.mxu0 0.0
        %3048 = vmatprep.subr.mxu0 0.0
        %3049 = vmatpush1.msra.mxu0 0.0
        %3050 = vmatprep.subr.mxu0 0.0
        %3051 = vmatpush1.msra.mxu0 0.0
        %3052 = vmatprep.subr.mxu0 0.0
        %3053 = vmatpush1.msra.mxu0 0.0
        %3054 = vmatprep.subr.mxu0 0.0
        %3055 = vmatpush1.msra.mxu0 0.0
        %3056 = vmatprep.mubr.f32.mxu0 0.0
        %v3057 = vand.u32 %v992, 4294901760
        %v3058 = vsub.f32 %v992, %v3057
        %3059 = vmatmul.mubr.f32.gmra.mrb[0].mxu0 %v3058
        %v3060 = vpop.f32.mrb[0].mxu0
        %v3061 = vadd.f32 %v2967, %v3060
        %v3062 = vpop.f32.mrb[0].mxu0
        %3063 = vmatprep.mubr.f32.mxu0 0.0
        %v3064 = vand.u32 %v995, 4294901760
        %v3065 = vsub.f32 %v995, %v3064
        %3066 = vmatmul.mubr.f32.gmra.mrb[0].mxu0 %v3065
        %v3067 = vpop.f32.mrb[0].mxu0
        %v3068 = vadd.f32 %v2973, %v3067
        %v3069 = vpop.f32.mrb[0].mxu0
        %3070 = vmatprep.mubr.f32.mxu0 0.0
        %v3071 = vand.u32 %v998, 4294901760
        %v3072 = vsub.f32 %v998, %v3071
        %3073 = vmatmul.mubr.f32.gmra.mrb[0].mxu0 %v3072
        %v3074 = vpop.f32.mrb[0].mxu0
        %v3075 = vadd.f32 %v2979, %v3074
        %v3076 = vpop.f32.mrb[0].mxu0
        %3077 = vmatprep.mubr.f32.mxu0 0.0
        %v3078 = vand.u32 %v1001, 4294901760
        %v3079 = vsub.f32 %v1001, %v3078
        %3080 = vmatmul.mubr.f32.gmra.mrb[0].mxu0 %v3079
        %v3081 = vpop.f32.mrb[0].mxu0
        %v3082 = vadd.f32 %v2985, %v3081
        %v3083 = vpop.f32.mrb[0].mxu0
        %3084 = vdwg.mxu0
        %3085 = vmatprep.subr.mxu0 0.0
        %v3086 = vand.u32 %v978, 4294901760
        %3087 = vmatpush1.msra.mxu0 %v3086
        %3088 = vmatprep.subr.mxu0 0.0
        %v3089 = vand.u32 %v984, 4294901760
        %3090 = vmatpush1.msra.mxu0 %v3089
        %3091 = vmatprep.subr.mxu0 0.0
        %3092 = vmatpush1.msra.mxu0 0.0
        %3093 = vmatprep.subr.mxu0 0.0
        %3094 = vmatpush1.msra.mxu0 0.0
        %3095 = vmatprep.subr.mxu0 0.0
        %3096 = vmatpush1.msra.mxu0 0.0
        %3097 = vmatprep.subr.mxu0 0.0
        %3098 = vmatpush1.msra.mxu0 0.0
        %3099 = vmatprep.subr.mxu0 0.0
        %3100 = vmatpush1.msra.mxu0 0.0
        %3101 = vmatprep.subr.mxu0 0.0
        %3102 = vmatpush1.msra.mxu0 0.0
        %3103 = vmatprep.subr.mxu0 0.0
        %3104 = vmatpush1.msra.mxu0 0.0
        %3105 = vmatprep.subr.mxu0 0.0
        %3106 = vmatpush1.msra.mxu0 0.0
        %3107 = vmatprep.subr.mxu0 0.0
        %3108 = vmatpush1.msra.mxu0 0.0
        %3109 = vmatprep.subr.mxu0 0.0
        %3110 = vmatpush1.msra.mxu0 0.0
        %3111 = vmatprep.subr.mxu0 0.0
        %3112 = vmatpush1.msra.mxu0 0.0
        %3113 = vmatprep.subr.mxu0 0.0
        %3114 = vmatpush1.msra.mxu0 0.0
        %3115 = vmatprep.subr.mxu0 0.0
        %3116 = vmatpush1.msra.mxu0 0.0
        %3117 = vmatprep.subr.mxu0 0.0
        %3118 = vmatpush1.msra.mxu0 0.0
        %3119 = vmatprep.subr.mxu0 0.0
        %3120 = vmatpush1.msra.mxu0 0.0
        %3121 = vmatprep.subr.mxu0 0.0
        %3122 = vmatpush1.msra.mxu0 0.0
        %3123 = vmatprep.subr.mxu0 0.0
        %3124 = vmatpush1.msra.mxu0 0.0
        %3125 = vmatprep.subr.mxu0 0.0
        %3126 = vmatpush1.msra.mxu0 0.0
        %3127 = vmatprep.subr.mxu0 0.0
        %3128 = vmatpush1.msra.mxu0 0.0
        %3129 = vmatprep.subr.mxu0 0.0
        %3130 = vmatpush1.msra.mxu0 0.0
        %3131 = vmatprep.subr.mxu0 0.0
        %3132 = vmatpush1.msra.mxu0 0.0
        %3133 = vmatprep.subr.mxu0 0.0
        %3134 = vmatpush1.msra.mxu0 0.0
        %3135 = vmatprep.subr.mxu0 0.0
        %3136 = vmatpush1.msra.mxu0 0.0
        %3137 = vmatprep.subr.mxu0 0.0
        %3138 = vmatpush1.msra.mxu0 0.0
        %3139 = vmatprep.subr.mxu0 0.0
        %3140 = vmatpush1.msra.mxu0 0.0
        %3141 = vmatprep.subr.mxu0 0.0
        %3142 = vmatpush1.msra.mxu0 0.0
        %3143 = vmatprep.subr.mxu0 0.0
        %3144 = vmatpush1.msra.mxu0 0.0
        %3145 = vmatprep.subr.mxu0 0.0
        %3146 = vmatpush1.msra.mxu0 0.0
        %3147 = vmatprep.subr.mxu0 0.0
        %3148 = vmatpush1.msra.mxu0 0.0
        %3149 = vmatprep.subr.mxu0 0.0
        %3150 = vmatpush1.msra.mxu0 0.0
        %3151 = vmatprep.mubr.f32.mxu0 0.0
        %v3152 = vand.u32 %v992, 4294901760
        %v3153 = vsub.f32 %v992, %v3152
        %v3154 = vand.u32 %v3153, 4294901760
        %3155 = vmatmul.mubr.f32.gmra.mrb[0].mxu0 %v3154
        %v3156 = vpop.f32.mrb[0].mxu0
        %v3157 = vadd.f32 %v3061, %v3156
        %v3158 = vpop.f32.mrb[0].mxu0
        %3159 = vmatprep.mubr.f32.mxu0 0.0
        %v3160 = vand.u32 %v995, 4294901760
        %v3161 = vsub.f32 %v995, %v3160
        %v3162 = vand.u32 %v3161, 4294901760
        %3163 = vmatmul.mubr.f32.gmra.mrb[0].mxu0 %v3162
        %v3164 = vpop.f32.mrb[0].mxu0
        %v3165 = vadd.f32 %v3068, %v3164
        %v3166 = vpop.f32.mrb[0].mxu0
        %3167 = vmatprep.mubr.f32.mxu0 0.0
        %v3168 = vand.u32 %v998, 4294901760
        %v3169 = vsub.f32 %v998, %v3168
        %v3170 = vand.u32 %v3169, 4294901760
        %3171 = vmatmul.mubr.f32.gmra.mrb[0].mxu0 %v3170
        %v3172 = vpop.f32.mrb[0].mxu0
        %v3173 = vadd.f32 %v3075, %v3172
        %v3174 = vpop.f32.mrb[0].mxu0
        %3175 = vmatprep.mubr.f32.mxu0 0.0
        %v3176 = vand.u32 %v1001, 4294901760
        %v3177 = vsub.f32 %v1001, %v3176
        %v3178 = vand.u32 %v3177, 4294901760
        %3179 = vmatmul.mubr.f32.gmra.mrb[0].mxu0 %v3178
        %v3180 = vpop.f32.mrb[0].mxu0
        %v3181 = vadd.f32 %v3082, %v3180
        %v3182 = vpop.f32.mrb[0].mxu0
        %3183 = vdwg.mxu0
        %3184 = vmatprep.subr.mxu0 0.0
        %v3185 = vand.u32 %v978, 4294901760
        %v3186 = vsub.f32 %v978, %v3185
        %v3187 = vand.u32 %v3186, 4294901760
        %3188 = vmatpush1.msra.mxu0 %v3187
        %3189 = vmatprep.subr.mxu0 0.0
        %v3190 = vand.u32 %v984, 4294901760
        %v3191 = vsub.f32 %v984, %v3190
        %v3192 = vand.u32 %v3191, 4294901760
        %3193 = vmatpush1.msra.mxu0 %v3192
        %3194 = vmatprep.subr.mxu0 0.0
        %3195 = vmatpush1.msra.mxu0 0.0
        %3196 = vmatprep.subr.mxu0 0.0
        %3197 = vmatpush1.msra.mxu0 0.0
        %3198 = vmatprep.subr.mxu0 0.0
        %3199 = vmatpush1.msra.mxu0 0.0
        %3200 = vmatprep.subr.mxu0 0.0
        %3201 = vmatpush1.msra.mxu0 0.0
        %3202 = vmatprep.subr.mxu0 0.0
        %3203 = vmatpush1.msra.mxu0 0.0
        %3204 = vmatprep.subr.mxu0 0.0
        %3205 = vmatpush1.msra.mxu0 0.0
        %3206 = vmatprep.subr.mxu0 0.0
        %3207 = vmatpush1.msra.mxu0 0.0
        %3208 = vmatprep.subr.mxu0 0.0
        %3209 = vmatpush1.msra.mxu0 0.0
        %3210 = vmatprep.subr.mxu0 0.0
        %3211 = vmatpush1.msra.mxu0 0.0
        %3212 = vmatprep.subr.mxu0 0.0
        %3213 = vmatpush1.msra.mxu0 0.0
        %3214 = vmatprep.subr.mxu0 0.0
        %3215 = vmatpush1.msra.mxu0 0.0
        %3216 = vmatprep.subr.mxu0 0.0
        %3217 = vmatpush1.msra.mxu0 0.0
        %3218 = vmatprep.subr.mxu0 0.0
        %3219 = vmatpush1.msra.mxu0 0.0
        %3220 = vmatprep.subr.mxu0 0.0
        %3221 = vmatpush1.msra.mxu0 0.0
        %3222 = vmatprep.subr.mxu0 0.0
        %3223 = vmatpush1.msra.mxu0 0.0
        %3224 = vmatprep.subr.mxu0 0.0
        %3225 = vmatpush1.msra.mxu0 0.0
        %3226 = vmatprep.subr.mxu0 0.0
        %3227 = vmatpush1.msra.mxu0 0.0
        %3228 = vmatprep.subr.mxu0 0.0
        %3229 = vmatpush1.msra.mxu0 0.0
        %3230 = vmatprep.subr.mxu0 0.0
        %3231 = vmatpush1.msra.mxu0 0.0
        %3232 = vmatprep.subr.mxu0 0.0
        %3233 = vmatpush1.msra.mxu0 0.0
        %3234 = vmatprep.subr.mxu0 0.0
        %3235 = vmatpush1.msra.mxu0 0.0
        %3236 = vmatprep.subr.mxu0 0.0
        %3237 = vmatpush1.msra.mxu0 0.0
        %3238 = vmatprep.subr.mxu0 0.0
        %3239 = vmatpush1.msra.mxu0 0.0
        %3240 = vmatprep.subr.mxu0 0.0
        %3241 = vmatpush1.msra.mxu0 0.0
        %3242 = vmatprep.subr.mxu0 0.0
        %3243 = vmatpush1.msra.mxu0 0.0
        %3244 = vmatprep.subr.mxu0 0.0
        %3245 = vmatpush1.msra.mxu0 0.0
        %3246 = vmatprep.subr.mxu0 0.0
        %3247 = vmatpush1.msra.mxu0 0.0
        %3248 = vmatprep.subr.mxu0 0.0
        %3249 = vmatpush1.msra.mxu0 0.0
        %3250 = vmatprep.subr.mxu0 0.0
        %3251 = vmatpush1.msra.mxu0 0.0
        %3252 = vmatprep.subr.mxu0 0.0
        %3253 = vmatpush1.msra.mxu0 0.0
        %3254 = vmatprep.mubr.f32.mxu0 0.0
        %v3255 = vand.u32 %v992, 4294901760
        %3256 = vmatmul.mubr.f32.gmra.mrb[0].mxu0 %v3255
        %v3257 = vpop.f32.mrb[0].mxu0
        %v3258 = vadd.f32 %v3157, %v3257
        %v3259 = vpop.f32.mrb[0].mxu0
        %3260 = vmatprep.mubr.f32.mxu0 0.0
        %v3261 = vand.u32 %v995, 4294901760
        %3262 = vmatmul.mubr.f32.gmra.mrb[0].mxu0 %v3261
        %v3263 = vpop.f32.mrb[0].mxu0
        %v3264 = vadd.f32 %v3165, %v3263
        %v3265 = vpop.f32.mrb[0].mxu0
        %3266 = vmatprep.mubr.f32.mxu0 0.0
        %v3267 = vand.u32 %v998, 4294901760
        %3268 = vmatmul.mubr.f32.gmra.mrb[0].mxu0 %v3267
        %v3269 = vpop.f32.mrb[0].mxu0
        %v3270 = vadd.f32 %v3173, %v3269
        %v3271 = vpop.f32.mrb[0].mxu0
        %3272 = vmatprep.mubr.f32.mxu0 0.0
        %v3273 = vand.u32 %v1001, 4294901760
        %3274 = vmatmul.mubr.f32.gmra.mrb[0].mxu0 %v3273
        %v3275 = vpop.f32.mrb[0].mxu0
        %v3276 = vadd.f32 %v3181, %v3275
        %v3277 = vpop.f32.mrb[0].mxu0
        %3278 = vdwg.mxu0
        %3279 = vmatprep.subr.mxu0 0.0
        %v3280 = vand.u32 %v978, 4294901760
        %3281 = vmatpush1.msra.mxu0 %v3280
        %3282 = vmatprep.subr.mxu0 0.0
        %v3283 = vand.u32 %v984, 4294901760
        %3284 = vmatpush1.msra.mxu0 %v3283
        %3285 = vmatprep.subr.mxu0 0.0
        %3286 = vmatpush1.msra.mxu0 0.0
        %3287 = vmatprep.subr.mxu0 0.0
        %3288 = vmatpush1.msra.mxu0 0.0
        %3289 = vmatprep.subr.mxu0 0.0
        %3290 = vmatpush1.msra.mxu0 0.0
        %3291 = vmatprep.subr.mxu0 0.0
        %3292 = vmatpush1.msra.mxu0 0.0
        %3293 = vmatprep.subr.mxu0 0.0
        %3294 = vmatpush1.msra.mxu0 0.0
        %3295 = vmatprep.subr.mxu0 0.0
        %3296 = vmatpush1.msra.mxu0 0.0
        %3297 = vmatprep.subr.mxu0 0.0
        %3298 = vmatpush1.msra.mxu0 0.0
        %3299 = vmatprep.subr.mxu0 0.0
        %3300 = vmatpush1.msra.mxu0 0.0
        %3301 = vmatprep.subr.mxu0 0.0
        %3302 = vmatpush1.msra.mxu0 0.0
        %3303 = vmatprep.subr.mxu0 0.0
        %3304 = vmatpush1.msra.mxu0 0.0
        %3305 = vmatprep.subr.mxu0 0.0
        %3306 = vmatpush1.msra.mxu0 0.0
        %3307 = vmatprep.subr.mxu0 0.0
        %3308 = vmatpush1.msra.mxu0 0.0
        %3309 = vmatprep.subr.mxu0 0.0
        %3310 = vmatpush1.msra.mxu0 0.0
        %3311 = vmatprep.subr.mxu0 0.0
        %3312 = vmatpush1.msra.mxu0 0.0
        %3313 = vmatprep.subr.mxu0 0.0
        %3314 = vmatpush1.msra.mxu0 0.0
        %3315 = vmatprep.subr.mxu0 0.0
        %3316 = vmatpush1.msra.mxu0 0.0
        %3317 = vmatprep.subr.mxu0 0.0
        %3318 = vmatpush1.msra.mxu0 0.0
        %3319 = vmatprep.subr.mxu0 0.0
        %3320 = vmatpush1.msra.mxu0 0.0
        %3321 = vmatprep.subr.mxu0 0.0
        %3322 = vmatpush1.msra.mxu0 0.0
        %3323 = vmatprep.subr.mxu0 0.0
        %3324 = vmatpush1.msra.mxu0 0.0
        %3325 = vmatprep.subr.mxu0 0.0
        %3326 = vmatpush1.msra.mxu0 0.0
        %3327 = vmatprep.subr.mxu0 0.0
        %3328 = vmatpush1.msra.mxu0 0.0
        %3329 = vmatprep.subr.mxu0 0.0
        %3330 = vmatpush1.msra.mxu0 0.0
        %3331 = vmatprep.subr.mxu0 0.0
        %3332 = vmatpush1.msra.mxu0 0.0
        %3333 = vmatprep.subr.mxu0 0.0
        %3334 = vmatpush1.msra.mxu0 0.0
        %3335 = vmatprep.subr.mxu0 0.0
        %3336 = vmatpush1.msra.mxu0 0.0
        %3337 = vmatprep.subr.mxu0 0.0
        %3338 = vmatpush1.msra.mxu0 0.0
        %3339 = vmatprep.subr.mxu0 0.0
        %3340 = vmatpush1.msra.mxu0 0.0
        %3341 = vmatprep.subr.mxu0 0.0
        %3342 = vmatpush1.msra.mxu0 0.0
        %3343 = vmatprep.subr.mxu0 0.0
        %3344 = vmatpush1.msra.mxu0 0.0
        %3345 = vmatprep.mubr.f32.mxu0 0.0
        %v3346 = vand.u32 %v992, 4294901760
        %3347 = vmatmul.mubr.f32.gmra.mrb[0].mxu0 %v3346
        %v3348 = vpop.f32.mrb[0].mxu0
        %v3349 = vadd.f32 %v3258, %v3348
        %v3350 = vpop.f32.mrb[0].mxu0
        %3351 = vmatprep.mubr.f32.mxu0 0.0
        %v3352 = vand.u32 %v995, 4294901760
        %3353 = vmatmul.mubr.f32.gmra.mrb[0].mxu0 %v3352
        %v3354 = vpop.f32.mrb[0].mxu0
        %v3355 = vadd.f32 %v3264, %v3354
        %v3356 = vpop.f32.mrb[0].mxu0
        %3357 = vmatprep.mubr.f32.mxu0 0.0
        %v3358 = vand.u32 %v998, 4294901760
        %3359 = vmatmul.mubr.f32.gmra.mrb[0].mxu0 %v3358
        %v3360 = vpop.f32.mrb[0].mxu0
        %v3361 = vadd.f32 %v3270, %v3360
        %v3362 = vpop.f32.mrb[0].mxu0
        %3363 = vmatprep.mubr.f32.mxu0 0.0
        %v3364 = vand.u32 %v1001, 4294901760
        %3365 = vmatmul.mubr.f32.gmra.mrb[0].mxu0 %v3364
        %v3366 = vpop.f32.mrb[0].mxu0
        %v3367 = vadd.f32 %v3276, %v3366
        %v3368 = vpop.f32.mrb[0].mxu0
        %3369 = vdwg.mxu0
        %s3370 = scalar_lea.vmem %s189, 96 [#allocation5]
        %3371 = vst.msk [vmem:[%s3370] sm:$0xff] %vm1591, %v3349
        %3372 = vst.msk [vmem:[%s3370 + $0x8] sm:$0xff] %vm1591, %v3355
        %3373 = vst.msk [vmem:[%s3370 + $0x10] sm:$0xff] %vm1591, %v3361
        %3374 = vst.msk [vmem:[%s3370 + $0x18] sm:$0xff] %vm1591, %v3367
        %s3375 = sand.u32 %s96, 1
        %s3376 = scalar_lea.sflag [#allocation4], %s3375
        %s3377 = sand.u32 %s96, 1
        %s3378 = smul.addr %s3377, 128
        %s3379 = scalar_lea.vmem [#allocation5], %s3378
        // Predicated region
        $region37: #{tpu_custom_call.1} parent=31 // pred_check
          %p3380 = pneg %p106
        $region38: #{tpu_custom_call.1} parent=31 // pred_check_branch
          %3382 = sbr.rel (%p3380) target = $region40
        $region39: #{tpu_custom_call.1} parent=31 // pred_region
          %s3383 = smul.u32 4, %s20
          %s3385 = ssub.s32 2048, 2048
          %3386 = vsyncadd %s3376, %s3385
          %s3387 = smul.addr %s3383, 4
          %s3388 = smul.addr %s3387, 128
          %s3389 = scalar_lea.hbm %s3, %s3388
          %s3390 = sshll.u32 %s3379, 4
          %s3391 = int_to_ptr.vmem [resolvable:$true] %s3390
          %3396 = dma.vmem_to_hbm [thread:$0]  %s3391, 2048, %s3389, %s3376, 128, 128, 8
        $region40: #{tpu_custom_call.1} parent=31 // pred_fallthru
          _
      $region32: #{tpu_custom_call.1} parent=5 // pred_fallthru
        _
      %p3397 = scmp.le.s32.totalorder 2, %s15
      // Predicated region
      $region41: #{tpu_custom_call.1} parent=5 // pred_check
        %p3398 = pneg %p3397
      $region42: #{tpu_custom_call.1} parent=5 // pred_check_branch
        %3400 = sbr.rel (%p3398) target = $region44
      $region43: #{tpu_custom_call.1} parent=5 // pred_region
        %s3401 = ssub.s32 %s15, 2
        // Predicated region
        $region45: #{tpu_custom_call.1} parent=43 // pred_check
          %p3402 = pneg %p112
        $region46: #{tpu_custom_call.1} parent=43 // pred_check_branch
          %3404 = sbr.rel (%p3402) target = $region48
        $region47: #{tpu_custom_call.1} parent=43 // pred_region
          %s3405 = sand.u32 %s97, 1
          %s3406 = scalar_lea.sflag [#allocation4], %s3405
          %s3407 = sand.u32 %s97, 1
          %s3408 = smul.addr %s3407, 128
          %s3409 = scalar_lea.vmem [#allocation5], %s3408
          %3410 = dma.done %s3406, 2048
        $region48: #{tpu_custom_call.1} parent=43 // pred_fallthru
          _
      $region44: #{tpu_custom_call.1} parent=5 // pred_fallthru
        _
    $region6: #{tpu_custom_call.1} parent=1 // loop_footer
      %s19 = sadd.s32 1, %s15
    $region7: #{tpu_custom_call.1} parent=1 // loop_footer_branch
      %14 = sbr.rel target = $region3
    $region8: #{tpu_custom_call.1} parent=1 // loop_exit
      _
    %3411 = vsyncpa [#allocation3], 1
    %s3412 = scalar_lea.sflag [#allocation3], 1
    %3413 = vsyncpa %s3412, 1
    %3414 = vsyncpa [#allocation4], 1
    %s3415 = scalar_lea.sflag [#allocation4], 1
    %3416 = vsyncpa %s3415, 1

// kernel: tpu_custom_call.1
$region0: #{tpu_custom_call.1}
  #allocation0 [shape = 'u32[]', space=smem, size = 0x4, offset = 0x4, fixed_abs, tag = 'smem constant byte address 0x4 - core index']
  #allocation1 [shape = 'u32[144,128]{1,0:T(1,128)}', space=vmem, size = 0x12000, scoped, tag = 'internal scratch']
  %s0 = inlined_call_operand.hbm [shape: f32[8,16,16], index: 0, kind: input, shape index: {}]
  %s1 = inlined_call_operand.vmem [shape: f32[32,16], index: 1, kind: input, shape index: {}]
  %s2 = inlined_call_operand.vmem [shape: f32[16,32], index: 2, kind: input, shape index: {}]
  %s3 = inlined_call_operand.hbm [shape: f32[8,32,32], index: 3, kind: output, shape index: {}]
  %s4 = sld [smem:[#allocation0]]
  $region49: #{tpu_custom_call.1} parent=0
    _
  %s6 = ssub.s32 1, %s4
  %s7 = scalar_select 0, %s6, %s4
  $region1: #{tpu_custom_call.1} parent=0
    #allocation2 [shape = 'u8[65536]{0}', space=vmem, size = 0x10000, scoped, tag = 'input window, operand 0']
    #allocation3 [shape = 's32[2]{0}', space=sflag, size = 0x8, scoped, tag = 'scoped memory for tpu_custom_call.1']
    #allocation4 [shape = 's32[2]{0}', space=sflag, size = 0x8, scoped, tag = 'scoped memory for tpu_custom_call.1']
    #allocation5 [shape = 'u8[131072]{0}', space=vmem, size = 0x20000, scoped, tag = 'output window, operand 0']
    %8 = vsyncpa [#allocation3], 0
    %s9 = scalar_lea.sflag [#allocation3], 1
    %10 = vsyncpa %s9, 0
    %11 = vsyncpa [#allocation4], 0
    %s12 = scalar_lea.sflag [#allocation4], 1
    %13 = vsyncpa %s12, 0
    loop: start=0, step=1, limit=4
    $region2: #{tpu_custom_call.1} parent=1 // loop_pre_header
      _
    $region3: #{tpu_custom_call.1} parent=1 // loop_header
      %s15 = sphi 0, %s19
      %p16 = scmp.ge.s32.totalorder %s15, 4
      %s25 = sphi 0, %s27
      %s28 = sphi 0, %s25
      %s29 = sphi 0, %s28
      %s45 = sphi 0, %s29
      %s49 = sphi 0, %s49
      %s51 = sphi 0, %s49
      %s52 = sphi 0, %s51
      %s66 = sphi 0, %s52
      %s70 = sphi 0, %s70
      %s72 = sphi 0, %s70
      %s73 = sphi 0, %s72
      %s87 = sphi 0, %s73
      %s93 = sphi 0, %s95
      %s96 = sphi 0, %s93
      %s97 = sphi 0, %s96
      %s113 = sphi 0, %s97
    $region4: #{tpu_custom_call.1} parent=1 // loop_header_branch
      %18 = sbr.rel (%p16) target = $region8
    $region5: #{tpu_custom_call.1} parent=1 // loop_body
      %s20 = ssub.s32 %s15, 1
      %s21 = ssub.s32 %s15, 2
      %s22 = sadd.s32 %s15, 1
      %s23 = ssub.s32 %s15, %s22
      %p24 = scmp.eq.s32.totalorder %s23, 0
      %s26 = sadd.s32 %s25, 1
      %s27 = scalar_select %p24, %s25, %s26
      %p30 = pneg %p24
      %p31 = scmp.eq.s32.totalorder %s15, 1
      %p32 = por %p30, %p31
      %p33 = scmp.ne.s32.totalorder %s25, %s28
      %p34 = scmp.eq.s32.totalorder %s15, 0
      %p35 = por %p33, %p34
      %p36 = scmp.ne.s32.totalorder %s25, %s28
      %p37 = scmp.eq.s32.totalorder %s20, 1
      %p38 = por %p36, %p37
      %p39 = scmp.ne.s32.totalorder %s28, %s29
      %p40 = scmp.eq.s32.totalorder %s20, 0
      %p41 = por %p39, %p40
      %p42 = scmp.ne.s32.totalorder %s28, %s29
      %p43 = scmp.eq.s32.totalorder %s21, 1
      %p44 = por %p42, %p43
      %p46 = scmp.ne.s32.totalorder %s29, %s45
      %p47 = scmp.eq.s32.totalorder %s21, 0
      %p48 = por %p46, %p47
      %s50 = sadd.s32 %s49, 1
      %p53 = scmp.eq.s32.totalorder %s15, 1
      %p54 = scmp.ne.s32.totalorder %s49, %s51
      %p55 = scmp.eq.s32.totalorder %s15, 0
      %p56 = por %p54, %p55
      %p57 = scmp.ne.s32.totalorder %s49, %s51
      %p58 = scmp.eq.s32.totalorder %s20, 1
      %p59 = por %p57, %p58
      %p60 = scmp.ne.s32.totalorder %s51, %s52
      %p61 = scmp.eq.s32.totalorder %s20, 0
      %p62 = por %p60, %p61
      %p63 = scmp.ne.s32.totalorder %s51, %s52
      %p64 = scmp.eq.s32.totalorder %s21, 1
      %p65 = por %p63, %p64
      %p67 = scmp.ne.s32.totalorder %s52, %s66
      %p68 = scmp.eq.s32.totalorder %s21, 0
      %p69 = por %p67, %p68
      %s71 = sadd.s32 %s70, 1
      %p74 = scmp.eq.s32.totalorder %s15, 1
      %p75 = scmp.ne.s32.totalorder %s70, %s72
      %p76 = scmp.eq.s32.totalorder %s15, 0
      %p77 = por %p75, %p76
      %p78 = scmp.ne.s32.totalorder %s70, %s72
      %p79 = scmp.eq.s32.totalorder %s20, 1
      %p80 = por %p78, %p79
      %p81 = scmp.ne.s32.totalorder %s72, %s73
      %p82 = scmp.eq.s32.totalorder %s20, 0
      %p83 = por %p81, %p82
      %p84 = scmp.ne.s32.totalorder %s72, %s73
      %p85 = scmp.eq.s32.totalorder %s21, 1
      %p86 = por %p84, %p85
      %p88 = scmp.ne.s32.totalorder %s73, %s87
      %p89 = scmp.eq.s32.totalorder %s21, 0
      %p90 = por %p88, %p89
      %s91 = ssub.s32 %s15, %s22
      %p92 = scmp.eq.s32.totalorder %s91, 0
      %s94 = sadd.s32 %s93, 1
      %s95 = scalar_select %p92, %s93, %s94
      %p98 = pneg %p92
      %p99 = scmp.eq.s32.totalorder %s15, 1
      %p100 = por %p98, %p99
      %p101 = scmp.ne.s32.totalorder %s93, %s96
      %p102 = scmp.eq.s32.totalorder %s15, 0
      %p103 = por %p101, %p102
      %p104 = scmp.ne.s32.totalorder %s93, %s96
      %p105 = scmp.eq.s32.totalorder %s20, 1
      %p106 = por %p104, %p105
      %p107 = scmp.ne.s32.totalorder %s96, %s97
      %p108 = scmp.eq.s32.totalorder %s20, 0
      %p109 = por %p107, %p108
      %p110 = scmp.ne.s32.totalorder %s96, %s97
      %p111 = scmp.eq.s32.totalorder %s21, 1
      %p112 = por %p110, %p111
      %p114 = scmp.ne.s32.totalorder %s97, %s113
      %p115 = scmp.eq.s32.totalorder %s21, 0
      %p116 = por %p114, %p115
      %p117 = scmp.le.s32.totalorder 1, %s15
      %p118 = scmp.lt.s32.totalorder %s15, 3
      %p119 = pnand %p117, %p118
      %p120 = pneg %p119
      // Predicated region
      $region9: #{tpu_custom_call.1} parent=5 // pred_check
        _
      $region10: #{tpu_custom_call.1} parent=5 // pred_check_branch
        %122 = sbr.rel (%p119) target = $region12
      $region11: #{tpu_custom_call.1} parent=5 // pred_region
        %s123 = ssub.s32 %s15, 1
        // Predicated region
        $region13: #{tpu_custom_call.1} parent=11 // pred_check
          %p124 = pneg %p62
        $region14: #{tpu_custom_call.1} parent=11 // pred_check_branch
          %126 = sbr.rel (%p124) target = $region16
        $region15: #{tpu_custom_call.1} parent=11 // pred_region
          _
        $region16: #{tpu_custom_call.1} parent=11 // pred_fallthru
          _
        // Predicated region
        $region17: #{tpu_custom_call.1} parent=11 // pred_check
          %p127 = pneg %p83
        $region18: #{tpu_custom_call.1} parent=11 // pred_check_branch
          %129 = sbr.rel (%p127) target = $region20
        $region19: #{tpu_custom_call.1} parent=11 // pred_region
          _
        $region20: #{tpu_custom_call.1} parent=11 // pred_fallthru
          _
      $region12: #{tpu_custom_call.1} parent=5 // pred_fallthru
        _
      %p130 = scmp.lt.s32.totalorder %s15, 2
      // Predicated region
      $region21: #{tpu_custom_call.1} parent=5 // pred_check
        %p131 = pneg %p130
      $region22: #{tpu_custom_call.1} parent=5 // pred_check_branch
        %133 = sbr.rel (%p131) target = $region24
      $region23: #{tpu_custom_call.1} parent=5 // pred_region
        // Predicated region
        $region25: #{tpu_custom_call.1} parent=23 // pred_check
          %p134 = pneg %p35
        $region26: #{tpu_custom_call.1} parent=23 // pred_check_branch
          %136 = sbr.rel (%p134) target = $region28
        $region27: #{tpu_custom_call.1} parent=23 // pred_region
          %s137 = sand.u32 %s25, 1
          %s138 = scalar_lea.sflag [#allocation3], %s137
          %s139 = sand.u32 %s25, 1
          %s140 = smul.addr %s139, 64
          %s141 = scalar_lea.vmem [#allocation2], %s140
          %s142 = smul.u32 4, %s15
          %s144 = ssub.s32 1024, 1024
          %145 = vsyncadd %s138, %s144
          %s146 = smul.addr %s142, 2
          %s147 = smul.addr %s146, 128
          %s148 = scalar_lea.hbm %s0, %s147
          %s149 = sshll.u32 %s141, 4
          %s150 = int_to_ptr.vmem [resolvable:$true] %s149
          %155 = dma.hbm_to_vmem [thread:$0]  %s148, 1024, %s150, %s138, 128, 128, 8
        $region28: #{tpu_custom_call.1} parent=23 // pred_fallthru
          _
      $region24: #{tpu_custom_call.1} parent=5 // pred_fallthru
        _
      %p156 = scmp.le.s32.totalorder 1, %s15
      %p157 = scmp.lt.s32.totalorder %s15, 3
      %p158 = pnand %p156, %p157
      %p159 = pneg %p158
      // Predicated region
      $region29: #{tpu_custom_call.1} parent=5 // pred_check
        _
      $region30: #{tpu_custom_call.1} parent=5 // pred_check_branch
        %161 = sbr.rel (%p158) target = $region32
      $region31: #{tpu_custom_call.1} parent=5 // pred_region
        %s162 = ssub.s32 %s15, 1
        %s163 = sand.u32 %s28, 1
        %s164 = scalar_lea.sflag [#allocation3], %s163
        %s165 = sand.u32 %s28, 1
        %s166 = smul.addr %s165, 64
        %s167 = scalar_lea.vmem [#allocation2], %s166
        // Predicated region
        $region33: #{tpu_custom_call.1} parent=31 // pred_check
          %p168 = pneg %p41
        $region34: #{tpu_custom_call.1} parent=31 // pred_check_branch
          %170 = sbr.rel (%p168) target = $region36
        $region35: #{tpu_custom_call.1} parent=31 // pred_region
          %171 = dma.done %s164, 1024
        $region36: #{tpu_custom_call.1} parent=31 // pred_fallthru
          _
        %s172 = sand.u32 %s28, 1
        %s173 = scalar_lea.sflag [#allocation3], %s172
        %s174 = sand.u32 %s28, 1
        %s175 = smul.addr %s174, 64
        %s176 = scalar_lea.vmem [#allocation2], %s175
        %p177 = pneg %p41
        %p178 = pneg %p38
        %p179 = pneg %p62
        %p180 = pneg %p59
        %p181 = pneg %p83
        %p182 = pneg %p80
        %p183 = pneg %p109
        %p184 = pneg %p106
        %s185 = sand.u32 %s96, 1
        %s186 = scalar_lea.sflag [#allocation4], %s185
        %s187 = sand.u32 %s96, 1
        %s188 = smul.addr %s187, 128
        %s189 = scalar_lea.vmem [#allocation5], %s188
        %s190 = smul.u32 4, %s20
        %s191 = smul.u32 4, %s20
        %v192 = vld [vmem:[%s167] sm:$0xff]
        %v193 = vld [vmem:[%s167 + $0x8] sm:$0xff]
        %v194 = vld [vmem:[%s167 + $0x10] sm:$0xff]
        %v195 = vld [vmem:[%s167 + $0x18] sm:$0xff]
        %v196 = vld [vmem:[%s167 + $0x20] sm:$0xff]
        %v197 = vld [vmem:[%s167 + $0x28] sm:$0xff]
        %v198 = vld [vmem:[%s167 + $0x30] sm:$0xff]
        %v199 = vld [vmem:[%s167 + $0x38] sm:$0xff]
        %v200 = vld [vmem:[%s2] sm:$0xff]
        %v201 = vld [vmem:[%s2 + $0x8] sm:$0xff]
        %vm202 = vcmask 130048
        %v204 = vsel %vm202, %v192, 0
        %v207 = vsel %vm202, %v193, 0
        %v210 = vsel %vm202, %v194, 0
        %v213 = vsel %vm202, %v195, 0
        %v216 = vsel %vm202, %v196, 0
        %v219 = vsel %vm202, %v197, 0
        %v222 = vsel %vm202, %v198, 0
        %v225 = vsel %vm202, %v199, 0
        %227 = vmatprep.subr.mxu0 0.0
        %v228 = vand.u32 %v200, 4294901760
        %229 = vmatpush1.msra.mxu0 %v228
        %230 = vmatprep.subr.mxu0 0.0
        %v231 = vand.u32 %v201, 4294901760
        %232 = vmatpush1.msra.mxu0 %v231
        %233 = vmatprep.subr.mxu0 0.0
        %234 = vmatpush1.msra.mxu0 0.0
        %235 = vmatprep.subr.mxu0 0.0
        %236 = vmatpush1.msra.mxu0 0.0
        %237 = vmatprep.subr.mxu0 0.0
        %238 = vmatpush1.msra.mxu0 0.0
        %239 = vmatprep.subr.mxu0 0.0
        %240 = vmatpush1.msra.mxu0 0.0
        %241 = vmatprep.subr.mxu0 0.0
        %242 = vmatpush1.msra.mxu0 0.0
        %243 = vmatprep.subr.mxu0 0.0
        %244 = vmatpush1.msra.mxu0 0.0
        %245 = vmatprep.subr.mxu0 0.0
        %246 = vmatpush1.msra.mxu0 0.0
        %247 = vmatprep.subr.mxu0 0.0
        %248 = vmatpush1.msra.mxu0 0.0
        %249 = vmatprep.subr.mxu0 0.0
        %250 = vmatpush1.msra.mxu0 0.0
        %251 = vmatprep.subr.mxu0 0.0
        %252 = vmatpush1.msra.mxu0 0.0
        %253 = vmatprep.subr.mxu0 0.0
        %254 = vmatpush1.msra.mxu0 0.0
        %255 = vmatprep.subr.mxu0 0.0
        %256 = vmatpush1.msra.mxu0 0.0
        %257 = vmatprep.subr.mxu0 0.0
        %258 = vmatpush1.msra.mxu0 0.0
        %259 = vmatprep.subr.mxu0 0.0
        %260 = vmatpush1.msra.mxu0 0.0
        %261 = vmatprep.subr.mxu0 0.0
        %262 = vmatpush1.msra.mxu0 0.0
        %263 = vmatprep.subr.mxu0 0.0
        %264 = vmatpush1.msra.mxu0 0.0
        %265 = vmatprep.subr.mxu0 0.0
        %266 = vmatpush1.msra.mxu0 0.0
        %267 = vmatprep.subr.mxu0 0.0
        %268 = vmatpush1.msra.mxu0 0.0
        %269 = vmatprep.subr.mxu0 0.0
        %270 = vmatpush1.msra.mxu0 0.0
        %271 = vmatprep.subr.mxu0 0.0
        %272 = vmatpush1.msra.mxu0 0.0
        %273 = vmatprep.subr.mxu0 0.0
        %274 = vmatpush1.msra.mxu0 0.0
        %275 = vmatprep.subr.mxu0 0.0
        %276 = vmatpush1.msra.mxu0 0.0
        %277 = vmatprep.subr.mxu0 0.0
        %278 = vmatpush1.msra.mxu0 0.0
        %279 = vmatprep.subr.mxu0 0.0
        %280 = vmatpush1.msra.mxu0 0.0
        %281 = vmatprep.subr.mxu0 0.0
        %282 = vmatpush1.msra.mxu0 0.0
        %283 = vmatprep.subr.mxu0 0.0
        %284 = vmatpush1.msra.mxu0 0.0
        %285 = vmatprep.subr.mxu0 0.0
        %286 = vmatpush1.msra.mxu0 0.0
        %287 = vmatprep.subr.mxu0 0.0
        %288 = vmatpush1.msra.mxu0 0.0
        %289 = vmatprep.subr.mxu0 0.0
        %290 = vmatpush1.msra.mxu0 0.0
        %291 = vmatprep.subr.mxu0 0.0
        %292 = vmatpush1.msra.mxu0 0.0
        %293 = vmatprep.mubr.f32.mxu0 0.0
        %v294 = vand.u32 %v204, 4294901760
        %v295 = vsub.f32 %v204, %v294
        %v296 = vand.u32 %v295, 4294901760
        %v297 = vsub.f32 %v295, %v296
        %v298 = vand.u32 %v297, 4294901760
        %299 = vmatmul.mubr.f32.gmra.mrb[0].mxu0 %v298
        %v300 = vpop.f32.mrb[0].mxu0
        %v301 = vadd.f32 0.0, %v300
        %v302 = vpop.f32.mrb[0].mxu0
        %303 = vmatprep.mubr.f32.mxu0 0.0
        %v304 = vand.u32 %v207, 4294901760
        %v305 = vsub.f32 %v207, %v304
        %v306 = vand.u32 %v305, 4294901760
        %v307 = vsub.f32 %v305, %v306
        %v308 = vand.u32 %v307, 4294901760
        %309 = vmatmul.mubr.f32.gmra.mrb[0].mxu0 %v308
        %v310 = vpop.f32.mrb[0].mxu0
        %v311 = vadd.f32 0.0, %v310
        %v312 = vpop.f32.mrb[0].mxu0
        %313 = vmatprep.mubr.f32.mxu0 0.0
        %v314 = vand.u32 %v210, 4294901760
        %v315 = vsub.f32 %v210, %v314
        %v316 = vand.u32 %v315, 4294901760
        %v317 = vsub.f32 %v315, %v316
        %v318 = vand.u32 %v317, 4294901760
        %319 = vmatmul.mubr.f32.gmra.mrb[0].mxu0 %v318
        %v320 = vpop.f32.mrb[0].mxu0
        %v321 = vadd.f32 0.0, %v320
        %v322 = vpop.f32.mrb[0].mxu0
        %323 = vmatprep.mubr.f32.mxu0 0.0
        %v324 = vand.u32 %v213, 4294901760
        %v325 = vsub.f32 %v213, %v324
        %v326 = vand.u32 %v325, 4294901760
        %v327 = vsub.f32 %v325, %v326
        %v328 = vand.u32 %v327, 4294901760
        %329 = vmatmul.mubr.f32.gmra.mrb[0].mxu0 %v328
        %v330 = vpop.f32.mrb[0].mxu0
        %v331 = vadd.f32 0.0, %v330
        %v332 = vpop.f32.mrb[0].mxu0
        %333 = vmatprep.mubr.f32.mxu0 0.0
        %v334 = vand.u32 %v216, 4294901760
        %v335 = vsub.f32 %v216, %v334
        %v336 = vand.u32 %v335, 4294901760
        %v337 = vsub.f32 %v335, %v336
        %v338 = vand.u32 %v337, 4294901760
        %339 = vmatmul.mubr.f32.gmra.mrb[0].mxu0 %v338
        %v340 = vpop.f32.mrb[0].mxu0
        %v341 = vadd.f32 0.0, %v340
        %v342 = vpop.f32.mrb[0].mxu0
        %343 = vmatprep.mubr.f32.mxu0 0.0
        %v344 = vand.u32 %v219, 4294901760
        %v345 = vsub.f32 %v219, %v344
        %v346 = vand.u32 %v345, 4294901760
        %v347 = vsub.f32 %v345, %v346
        %v348 = vand.u32 %v347, 4294901760
        %349 = vmatmul.mubr.f32.gmra.mrb[0].mxu0 %v348
        %v350 = vpop.f32.mrb[0].mxu0
        %v351 = vadd.f32 0.0, %v350
        %v352 = vpop.f32.mrb[0].mxu0
        %353 = vmatprep.mubr.f32.mxu0 0.0
        %v354 = vand.u32 %v222, 4294901760
        %v355 = vsub.f32 %v222, %v354
        %v356 = vand.u32 %v355, 4294901760
        %v357 = vsub.f32 %v355, %v356
        %v358 = vand.u32 %v357, 4294901760
        %359 = vmatmul.mubr.f32.gmra.mrb[0].mxu0 %v358
        %v360 = vpop.f32.mrb[0].mxu0
        %v361 = vadd.f32 0.0, %v360
        %v362 = vpop.f32.mrb[0].mxu0
        %363 = vmatprep.mubr.f32.mxu0 0.0
        %v364 = vand.u32 %v225, 4294901760
        %v365 = vsub.f32 %v225, %v364
        %v366 = vand.u32 %v365, 4294901760
        %v367 = vsub.f32 %v365, %v366
        %v368 = vand.u32 %v367, 4294901760
        %369 = vmatmul.mubr.f32.gmra.mrb[0].mxu0 %v368
        %v370 = vpop.f32.mrb[0].mxu0
        %v371 = vadd.f32 0.0, %v370
        %v372 = vpop.f32.mrb[0].mxu0
        %373 = vdwg.mxu0
        %374 = vmatprep.subr.mxu0 0.0
        %v375 = vand.u32 %v200, 4294901760
        %v376 = vsub.f32 %v200, %v375
        %v377 = vand.u32 %v376, 4294901760
        %v378 = vsub.f32 %v376, %v377
        %v379 = vand.u32 %v378, 4294901760
        %380 = vmatpush1.msra.mxu0 %v379
        %381 = vmatprep.subr.mxu0 0.0
        %v382 = vand.u32 %v201, 4294901760
        %v383 = vsub.f32 %v201, %v382
        %v384 = vand.u32 %v383, 4294901760
        %v385 = vsub.f32 %v383, %v384
        %v386 = vand.u32 %v385, 4294901760
        %387 = vmatpush1.msra.mxu0 %v386
        %388 = vmatprep.subr.mxu0 0.0
        %389 = vmatpush1.msra.mxu0 0.0
        %390 = vmatprep.subr.mxu0 0.0
        %391 = vmatpush1.msra.mxu0 0.0
        %392 = vmatprep.subr.mxu0 0.0
        %393 = vmatpush1.msra.mxu0 0.0
        %394 = vmatprep.subr.mxu0 0.0
        %395 = vmatpush1.msra.mxu0 0.0
        %396 = vmatprep.subr.mxu0 0.0
        %397 = vmatpush1.msra.mxu0 0.0
        %398 = vmatprep.subr.mxu0 0.0
        %399 = vmatpush1.msra.mxu0 0.0
        %400 = vmatprep.subr.mxu0 0.0
        %401 = vmatpush1.msra.mxu0 0.0
        %402 = vmatprep.subr.mxu0 0.0
        %403 = vmatpush1.msra.mxu0 0.0
        %404 = vmatprep.subr.mxu0 0.0
        %405 = vmatpush1.msra.mxu0 0.0
        %406 = vmatprep.subr.mxu0 0.0
        %407 = vmatpush1.msra.mxu0 0.0
        %408 = vmatprep.subr.mxu0 0.0
        %409 = vmatpush1.msra.mxu0 0.0
        %410 = vmatprep.subr.mxu0 0.0
        %411 = vmatpush1.msra.mxu0 0.0
        %412 = vmatprep.subr.mxu0 0.0
        %413 = vmatpush1.msra.mxu0 0.0
        %414 = vmatprep.subr.mxu0 0.0
        %415 = vmatpush1.msra.mxu0 0.0
        %416 = vmatprep.subr.mxu0 0.0
        %417 = vmatpush1.msra.mxu0 0.0
        %418 = vmatprep.subr.mxu0 0.0
        %419 = vmatpush1.msra.mxu0 0.0
        %420 = vmatprep.subr.mxu0 0.0
        %421 = vmatpush1.msra.mxu0 0.0
        %422 = vmatprep.subr.mxu0 0.0
        %423 = vmatpush1.msra.mxu0 0.0
        %424 = vmatprep.subr.mxu0 0.0
        %425 = vmatpush1.msra.mxu0 0.0
        %426 = vmatprep.subr.mxu0 0.0
        %427 = vmatpush1.msra.mxu0 0.0
        %428 = vmatprep.subr.mxu0 0.0
        %429 = vmatpush1.msra.mxu0 0.0
        %430 = vmatprep.subr.mxu0 0.0
        %431 = vmatpush1.msra.mxu0 0.0
        %432 = vmatprep.subr.mxu0 0.0
        %433 = vmatpush1.msra.mxu0 0.0
        %434 = vmatprep.subr.mxu0 0.0
        %435 = vmatpush1.msra.mxu0 0.0
        %436 = vmatprep.subr.mxu0 0.0
        %437 = vmatpush1.msra.mxu0 0.0
        %438 = vmatprep.subr.mxu0 0.0
        %439 = vmatpush1.msra.mxu0 0.0
        %440 = vmatprep.subr.mxu0 0.0
        %441 = vmatpush1.msra.mxu0 0.0
        %442 = vmatprep.subr.mxu0 0.0
        %443 = vmatpush1.msra.mxu0 0.0
        %444 = vmatprep.subr.mxu0 0.0
        %445 = vmatpush1.msra.mxu0 0.0
        %446 = vmatprep.subr.mxu0 0.0
        %447 = vmatpush1.msra.mxu0 0.0
        %448 = vmatprep.mubr.f32.mxu0 0.0
        %v449 = vand.u32 %v204, 4294901760
        %450 = vmatmul.mubr.f32.gmra.mrb[0].mxu0 %v449
        %v451 = vpop.f32.mrb[0].mxu0
        %v452 = vadd.f32 %v301, %v451
        %v453 = vpop.f32.mrb[0].mxu0
        %454 = vmatprep.mubr.f32.mxu0 0.0
        %v455 = vand.u32 %v207, 4294901760
        %456 = vmatmul.mubr.f32.gmra.mrb[0].mxu0 %v455
        %v457 = vpop.f32.mrb[0].mxu0
        %v458 = vadd.f32 %v311, %v457
        %v459 = vpop.f32.mrb[0].mxu0
        %460 = vmatprep.mubr.f32.mxu0 0.0
        %v461 = vand.u32 %v210, 4294901760
        %462 = vmatmul.mubr.f32.gmra.mrb[0].mxu0 %v461
        %v463 = vpop.f32.mrb[0].mxu0
        %v464 = vadd.f32 %v321, %v463
        %v465 = vpop.f32.mrb[0].mxu0
        %466 = vmatprep.mubr.f32.mxu0 0.0
        %v467 = vand.u32 %v213, 4294901760
        %468 = vmatmul.mubr.f32.gmra.mrb[0].mxu0 %v467
        %v469 = vpop.f32.mrb[0].mxu0
        %v470 = vadd.f32 %v331, %v469
        %v471 = vpop.f32.mrb[0].mxu0
        %472 = vmatprep.mubr.f32.mxu0 0.0
        %v473 = vand.u32 %v216, 4294901760
        %474 = vmatmul.mubr.f32.gmra.mrb[0].mxu0 %v473
        %v475 = vpop.f32.mrb[0].mxu0
        %v476 = vadd.f32 %v341, %v475
        %v477 = vpop.f32.mrb[0].mxu0
        %478 = vmatprep.mubr.f32.mxu0 0.0
        %v479 = vand.u32 %v219, 4294901760
        %480 = vmatmul.mubr.f32.gmra.mrb[0].mxu0 %v479
        %v481 = vpop.f32.mrb[0].mxu0
        %v482 = vadd.f32 %v351, %v481
        %v483 = vpop.f32.mrb[0].mxu0
        %484 = vmatprep.mubr.f32.mxu0 0.0
        %v485 = vand.u32 %v222, 4294901760
        %486 = vmatmul.mubr.f32.gmra.mrb[0].mxu0 %v485
        %v487 = vpop.f32.mrb[0].mxu0
        %v488 = vadd.f32 %v361, %v487
        %v489 = vpop.f32.mrb[0].mxu0
        %490 = vmatprep.mubr.f32.mxu0 0.0
        %v491 = vand.u32 %v225, 4294901760
        %492 = vmatmul.mubr.f32.gmra.mrb[0].mxu0 %v491
        %v493 = vpop.f32.mrb[0].mxu0
        %v494 = vadd.f32 %v371, %v493
        %v495 = vpop.f32.mrb[0].mxu0
        %496 = vdwg.mxu0
        %497 = vmatprep.subr.mxu0 0.0
        %v498 = vand.u32 %v200, 4294901760
        %v499 = vsub.f32 %v200, %v498
        %500 = vmatpush1.msra.mxu0 %v499
        %501 = vmatprep.subr.mxu0 0.0
        %v502 = vand.u32 %v201, 4294901760
        %v503 = vsub.f32 %v201, %v502
        %504 = vmatpush1.msra.mxu0 %v503
        %505 = vmatprep.subr.mxu0 0.0
        %506 = vmatpush1.msra.mxu0 0.0
        %507 = vmatprep.subr.mxu0 0.0
        %508 = vmatpush1.msra.mxu0 0.0
        %509 = vmatprep.subr.mxu0 0.0
        %510 = vmatpush1.msra.mxu0 0.0
        %511 = vmatprep.subr.mxu0 0.0
        %512 = vmatpush1.msra.mxu0 0.0
        %513 = vmatprep.subr.mxu0 0.0
        %514 = vmatpush1.msra.mxu0 0.0
        %515 = vmatprep.subr.mxu0 0.0
        %516 = vmatpush1.msra.mxu0 0.0
        %517 = vmatprep.subr.mxu0 0.0
        %518 = vmatpush1.msra.mxu0 0.0
        %519 = vmatprep.subr.mxu0 0.0
        %520 = vmatpush1.msra.mxu0 0.0
        %521 = vmatprep.subr.mxu0 0.0
        %522 = vmatpush1.msra.mxu0 0.0
        %523 = vmatprep.subr.mxu0 0.0
        %524 = vmatpush1.msra.mxu0 0.0
        %525 = vmatprep.subr.mxu0 0.0
        %526 = vmatpush1.msra.mxu0 0.0
        %527 = vmatprep.subr.mxu0 0.0
        %528 = vmatpush1.msra.mxu0 0.0
        %529 = vmatprep.subr.mxu0 0.0
        %530 = vmatpush1.msra.mxu0 0.0
        %531 = vmatprep.subr.mxu0 0.0
        %532 = vmatpush1.msra.mxu0 0.0
        %533 = vmatprep.subr.mxu0 0.0
        %534 = vmatpush1.msra.mxu0 0.0
        %535 = vmatprep.subr.mxu0 0.0
        %536 = vmatpush1.msra.mxu0 0.0
        %537 = vmatprep.subr.mxu0 0.0
        %538 = vmatpush1.msra.mxu0 0.0
        %539 = vmatprep.subr.mxu0 0.0
        %540 = vmatpush1.msra.mxu0 0.0
        %541 = vmatprep.subr.mxu0 0.0
        %542 = vmatpush1.msra.mxu0 0.0
        %543 = vmatprep.subr.mxu0 0.0
        %544 = vmatpush1.msra.mxu0 0.0
        %545 = vmatprep.subr.mxu0 0.0
        %546 = vmatpush1.msra.mxu0 0.0
        %547 = vmatprep.subr.mxu0 0.0
        %548 = vmatpush1.msra.mxu0 0.0
        %549 = vmatprep.subr.mxu0 0.0
        %550 = vmatpush1.msra.mxu0 0.0
        %551 = vmatprep.subr.mxu0 0.0
        %552 = vmatpush1.msra.mxu0 0.0
        %553 = vmatprep.subr.mxu0 0.0
        %554 = vmatpush1.msra.mxu0 0.0
        %555 = vmatprep.subr.mxu0 0.0
        %556 = vmatpush1.msra.mxu0 0.0
        %557 = vmatprep.subr.mxu0 0.0
        %558 = vmatpush1.msra.mxu0 0.0
        %559 = vmatprep.subr.mxu0 0.0
        %560 = vmatpush1.msra.mxu0 0.0
        %561 = vmatprep.subr.mxu0 0.0
        %562 = vmatpush1.msra.mxu0 0.0
        %563 = vmatprep.subr.mxu0 0.0
        %564 = vmatpush1.msra.mxu0 0.0
        %565 = vmatprep.mubr.f32.mxu0 0.0
        %v566 = vand.u32 %v204, 4294901760
        %v567 = vsub.f32 %v204, %v566
        %568 = vmatmul.mubr.f32.gmra.mrb[0].mxu0 %v567
        %v569 = vpop.f32.mrb[0].mxu0
        %v570 = vadd.f32 %v452, %v569
        %v571 = vpop.f32.mrb[0].mxu0
        %572 = vmatprep.mubr.f32.mxu0 0.0
        %v573 = vand.u32 %v207, 4294901760
        %v574 = vsub.f32 %v207, %v573
        %575 = vmatmul.mubr.f32.gmra.mrb[0].mxu0 %v574
        %v576 = vpop.f32.mrb[0].mxu0
        %v577 = vadd.f32 %v458, %v576
        %v578 = vpop.f32.mrb[0].mxu0
        %579 = vmatprep.mubr.f32.mxu0 0.0
        %v580 = vand.u32 %v210, 4294901760
        %v581 = vsub.f32 %v210, %v580
        %582 = vmatmul.mubr.f32.gmra.mrb[0].mxu0 %v581
        %v583 = vpop.f32.mrb[0].mxu0
        %v584 = vadd.f32 %v464, %v583
        %v585 = vpop.f32.mrb[0].mxu0
        %586 = vmatprep.mubr.f32.mxu0 0.0
        %v587 = vand.u32 %v213, 4294901760
        %v588 = vsub.f32 %v213, %v587
        %589 = vmatmul.mubr.f32.gmra.mrb[0].mxu0 %v588
        %v590 = vpop.f32.mrb[0].mxu0
        %v591 = vadd.f32 %v470, %v590
        %v592 = vpop.f32.mrb[0].mxu0
        %593 = vmatprep.mubr.f32.mxu0 0.0
        %v594 = vand.u32 %v216, 4294901760
        %v595 = vsub.f32 %v216, %v594
        %596 = vmatmul.mubr.f32.gmra.mrb[0].mxu0 %v595
        %v597 = vpop.f32.mrb[0].mxu0
        %v598 = vadd.f32 %v476, %v597
        %v599 = vpop.f32.mrb[0].mxu0
        %600 = vmatprep.mubr.f32.mxu0 0.0
        %v601 = vand.u32 %v219, 4294901760
        %v602 = vsub.f32 %v219, %v601
        %603 = vmatmul.mubr.f32.gmra.mrb[0].mxu0 %v602
        %v604 = vpop.f32.mrb[0].mxu0
        %v605 = vadd.f32 %v482, %v604
        %v606 = vpop.f32.mrb[0].mxu0
        %607 = vmatprep.mubr.f32.mxu0 0.0
        %v608 = vand.u32 %v222, 4294901760
        %v609 = vsub.f32 %v222, %v608
        %610 = vmatmul.mubr.f32.gmra.mrb[0].mxu0 %v609
        %v611 = vpop.f32.mrb[0].mxu0
        %v612 = vadd.f32 %v488, %v611
        %v613 = vpop.f32.mrb[0].mxu0
        %614 = vmatprep.mubr.f32.mxu0 0.0
        %v615 = vand.u32 %v225, 4294901760
        %v616 = vsub.f32 %v225, %v615
        %617 = vmatmul.mubr.f32.gmra.mrb[0].mxu0 %v616
        %v618 = vpop.f32.mrb[0].mxu0
        %v619 = vadd.f32 %v494, %v618
        %v620 = vpop.f32.mrb[0].mxu0
        %621 = vdwg.mxu0
        %622 = vmatprep.subr.mxu0 0.0
        %v623 = vand.u32 %v200, 4294901760
        %624 = vmatpush1.msra.mxu0 %v623
        %625 = vmatprep.subr.mxu0 0.0
        %v626 = vand.u32 %v201, 4294901760
        %627 = vmatpush1.msra.mxu0 %v626
        %628 = vmatprep.subr.mxu0 0.0
        %629 = vmatpush1.msra.mxu0 0.0
        %630 = vmatprep.subr.mxu0 0.0
        %631 = vmatpush1.msra.mxu0 0.0
        %632 = vmatprep.subr.mxu0 0.0
        %633 = vmatpush1.msra.mxu0 0.0
        %634 = vmatprep.subr.mxu0 0.0
        %635 = vmatpush1.msra.mxu0 0.0
        %636 = vmatprep.subr.mxu0 0.0
        %637 = vmatpush1.msra.mxu0 0.0
        %638 = vmatprep.subr.mxu0 0.0
        %639 = vmatpush1.msra.mxu0 0.0
        %640 = vmatprep.subr.mxu0 0.0
        %641 = vmatpush1.msra.mxu0 0.0
        %642 = vmatprep.subr.mxu0 0.0
        %643 = vmatpush1.msra.mxu0 0.0
        %644 = vmatprep.subr.mxu0 0.0
        %645 = vmatpush1.msra.mxu0 0.0
        %646 = vmatprep.subr.mxu0 0.0
        %647 = vmatpush1.msra.mxu0 0.0
        %648 = vmatprep.subr.mxu0 0.0
        %649 = vmatpush1.msra.mxu0 0.0
        %650 = vmatprep.subr.mxu0 0.0
        %651 = vmatpush1.msra.mxu0 0.0
        %652 = vmatprep.subr.mxu0 0.0
        %653 = vmatpush1.msra.mxu0 0.0
        %654 = vmatprep.subr.mxu0 0.0
        %655 = vmatpush1.msra.mxu0 0.0
        %656 = vmatprep.subr.mxu0 0.0
        %657 = vmatpush1.msra.mxu0 0.0
        %658 = vmatprep.subr.mxu0 0.0
        %659 = vmatpush1.msra.mxu0 0.0
        %660 = vmatprep.subr.mxu0 0.0
        %661 = vmatpush1.msra.mxu0 0.0
        %662 = vmatprep.subr.mxu0 0.0
        %663 = vmatpush1.msra.mxu0 0.0
        %664 = vmatprep.subr.mxu0 0.0
        %665 = vmatpush1.msra.mxu0 0.0
        %666 = vmatprep.subr.mxu0 0.0
        %667 = vmatpush1.msra.mxu0 0.0
        %668 = vmatprep.subr.mxu0 0.0
        %669 = vmatpush1.msra.mxu0 0.0
        %670 = vmatprep.subr.mxu0 0.0
        %671 = vmatpush1.msra.mxu0 0.0
        %672 = vmatprep.subr.mxu0 0.0
        %673 = vmatpush1.msra.mxu0 0.0
        %674 = vmatprep.subr.mxu0 0.0
        %675 = vmatpush1.msra.mxu0 0.0
        %676 = vmatprep.subr.mxu0 0.0
        %677 = vmatpush1.msra.mxu0 0.0
        %678 = vmatprep.subr.mxu0 0.0
        %679 = vmatpush1.msra.mxu0 0.0
        %680 = vmatprep.subr.mxu0 0.0
        %681 = vmatpush1.msra.mxu0 0.0
        %682 = vmatprep.subr.mxu0 0.0
        %683 = vmatpush1.msra.mxu0 0.0
        %684 = vmatprep.subr.mxu0 0.0
        %685 = vmatpush1.msra.mxu0 0.0
        %686 = vmatprep.subr.mxu0 0.0
        %687 = vmatpush1.msra.mxu0 0.0
        %688 = vmatprep.mubr.f32.mxu0 0.0
        %v689 = vand.u32 %v204, 4294901760
        %v690 = vsub.f32 %v204, %v689
        %v691 = vand.u32 %v690, 4294901760
        %692 = vmatmul.mubr.f32.gmra.mrb[0].mxu0 %v691
        %v693 = vpop.f32.mrb[0].mxu0
        %v694 = vadd.f32 %v570, %v693
        %v695 = vpop.f32.mrb[0].mxu0
        %696 = vmatprep.mubr.f32.mxu0 0.0
        %v697 = vand.u32 %v207, 4294901760
        %v698 = vsub.f32 %v207, %v697
        %v699 = vand.u32 %v698, 4294901760
        %700 = vmatmul.mubr.f32.gmra.mrb[0].mxu0 %v699
        %v701 = vpop.f32.mrb[0].mxu0
        %v702 = vadd.f32 %v577, %v701
        %v703 = vpop.f32.mrb[0].mxu0
        %704 = vmatprep.mubr.f32.mxu0 0.0
        %v705 = vand.u32 %v210, 4294901760
        %v706 = vsub.f32 %v210, %v705
        %v707 = vand.u32 %v706, 4294901760
        %708 = vmatmul.mubr.f32.gmra.mrb[0].mxu0 %v707
        %v709 = vpop.f32.mrb[0].mxu0
        %v710 = vadd.f32 %v584, %v709
        %v711 = vpop.f32.mrb[0].mxu0
        %712 = vmatprep.mubr.f32.mxu0 0.0
        %v713 = vand.u32 %v213, 4294901760
        %v714 = vsub.f32 %v213, %v713
        %v715 = vand.u32 %v714, 4294901760
        %716 = vmatmul.mubr.f32.gmra.mrb[0].mxu0 %v715
        %v717 = vpop.f32.mrb[0].mxu0
        %v718 = vadd.f32 %v591, %v717
        %v719 = vpop.f32.mrb[0].mxu0
        %720 = vmatprep.mubr.f32.mxu0 0.0
        %v721 = vand.u32 %v216, 4294901760
        %v722 = vsub.f32 %v216, %v721
        %v723 = vand.u32 %v722, 4294901760
        %724 = vmatmul.mubr.f32.gmra.mrb[0].mxu0 %v723
        %v725 = vpop.f32.mrb[0].mxu0
        %v726 = vadd.f32 %v598, %v725
        %v727 = vpop.f32.mrb[0].mxu0
        %728 = vmatprep.mubr.f32.mxu0 0.0
        %v729 = vand.u32 %v219, 4294901760
        %v730 = vsub.f32 %v219, %v729
        %v731 = vand.u32 %v730, 4294901760
        %732 = vmatmul.mubr.f32.gmra.mrb[0].mxu0 %v731
        %v733 = vpop.f32.mrb[0].mxu0
        %v734 = vadd.f32 %v605, %v733
        %v735 = vpop.f32.mrb[0].mxu0
        %736 = vmatprep.mubr.f32.mxu0 0.0
        %v737 = vand.u32 %v222, 4294901760
        %v738 = vsub.f32 %v222, %v737
        %v739 = vand.u32 %v738, 4294901760
        %740 = vmatmul.mubr.f32.gmra.mrb[0].mxu0 %v739
        %v741 = vpop.f32.mrb[0].mxu0
        %v742 = vadd.f32 %v612, %v741
        %v743 = vpop.f32.mrb[0].mxu0
        %744 = vmatprep.mubr.f32.mxu0 0.0
        %v745 = vand.u32 %v225, 4294901760
        %v746 = vsub.f32 %v225, %v745
        %v747 = vand.u32 %v746, 4294901760
        %748 = vmatmul.mubr.f32.gmra.mrb[0].mxu0 %v747
        %v749 = vpop.f32.mrb[0].mxu0
        %v750 = vadd.f32 %v619, %v749
        %v751 = vpop.f32.mrb[0].mxu0
        %752 = vdwg.mxu0
        %753 = vmatprep.subr.mxu0 0.0
        %v754 = vand.u32 %v200, 4294901760
        %v755 = vsub.f32 %v200, %v754
        %v756 = vand.u32 %v755, 4294901760
        %757 = vmatpush1.msra.mxu0 %v756
        %758 = vmatprep.subr.mxu0 0.0
        %v759 = vand.u32 %v201, 4294901760
        %v760 = vsub.f32 %v201, %v759
        %v761 = vand.u32 %v760, 4294901760
        %762 = vmatpush1.msra.mxu0 %v761
        %763 = vmatprep.subr.mxu0 0.0
        %764 = vmatpush1.msra.mxu0 0.0
        %765 = vmatprep.subr.mxu0 0.0
        %766 = vmatpush1.msra.mxu0 0.0
        %767 = vmatprep.subr.mxu0 0.0
        %768 = vmatpush1.msra.mxu0 0.0
        %769 = vmatprep.subr.mxu0 0.0
        %770 = vmatpush1.msra.mxu0 0.0
        %771 = vmatprep.subr.mxu0 0.0
        %772 = vmatpush1.msra.mxu0 0.0
        %773 = vmatprep.subr.mxu0 0.0
        %774 = vmatpush1.msra.mxu0 0.0
        %775 = vmatprep.subr.mxu0 0.0
        %776 = vmatpush1.msra.mxu0 0.0
        %777 = vmatprep.subr.mxu0 0.0
        %778 = vmatpush1.msra.mxu0 0.0
        %779 = vmatprep.subr.mxu0 0.0
        %780 = vmatpush1.msra.mxu0 0.0
        %781 = vmatprep.subr.mxu0 0.0
        %782 = vmatpush1.msra.mxu0 0.0
        %783 = vmatprep.subr.mxu0 0.0
        %784 = vmatpush1.msra.mxu0 0.0
        %785 = vmatprep.subr.mxu0 0.0
        %786 = vmatpush1.msra.mxu0 0.0
        %787 = vmatprep.subr.mxu0 0.0
        %788 = vmatpush1.msra.mxu0 0.0
        %789 = vmatprep.subr.mxu0 0.0
        %790 = vmatpush1.msra.mxu0 0.0
        %791 = vmatprep.subr.mxu0 0.0
        %792 = vmatpush1.msra.mxu0 0.0
        %793 = vmatprep.subr.mxu0 0.0
        %794 = vmatpush1.msra.mxu0 0.0
        %795 = vmatprep.subr.mxu0 0.0
        %796 = vmatpush1.msra.mxu0 0.0
        %797 = vmatprep.subr.mxu0 0.0
        %798 = vmatpush1.msra.mxu0 0.0
        %799 = vmatprep.subr.mxu0 0.0
        %800 = vmatpush1.msra.mxu0 0.0
        %801 = vmatprep.subr.mxu0 0.0
        %802 = vmatpush1.msra.mxu0 0.0
        %803 = vmatprep.subr.mxu0 0.0
        %804 = vmatpush1.msra.mxu0 0.0
        %805 = vmatprep.subr.mxu0 0.0
        %806 = vmatpush1.msra.mxu0 0.0
        %807 = vmatprep.subr.mxu0 0.0
        %808 = vmatpush1.msra.mxu0 0.0
        %809 = vmatprep.subr.mxu0 0.0
        %810 = vmatpush1.msra.mxu0 0.0
        %811 = vmatprep.subr.mxu0 0.0
        %812 = vmatpush1.msra.mxu0 0.0
        %813 = vmatprep.subr.mxu0 0.0
        %814 = vmatpush1.msra.mxu0 0.0
        %815 = vmatprep.subr.mxu0 0.0
        %816 = vmatpush1.msra.mxu0 0.0
        %817 = vmatprep.subr.mxu0 0.0
        %818 = vmatpush1.msra.mxu0 0.0
        %819 = vmatprep.subr.mxu0 0.0
        %820 = vmatpush1.msra.mxu0 0.0
        %821 = vmatprep.subr.mxu0 0.0
        %822 = vmatpush1.msra.mxu0 0.0
        %823 = vmatprep.mubr.f32.mxu0 0.0
        %v824 = vand.u32 %v204, 4294901760
        %825 = vmatmul.mubr.f32.gmra.mrb[0].mxu0 %v824
        %v826 = vpop.f32.mrb[0].mxu0
        %v827 = vadd.f32 %v694, %v826
        %v828 = vpop.f32.mrb[0].mxu0
        %829 = vmatprep.mubr.f32.mxu0 0.0
        %v830 = vand.u32 %v207, 4294901760
        %831 = vmatmul.mubr.f32.gmra.mrb[0].mxu0 %v830
        %v832 = vpop.f32.mrb[0].mxu0
        %v833 = vadd.f32 %v702, %v832
        %v834 = vpop.f32.mrb[0].mxu0
        %835 = vmatprep.mubr.f32.mxu0 0.0
        %v836 = vand.u32 %v210, 4294901760
        %837 = vmatmul.mubr.f32.gmra.mrb[0].mxu0 %v836
        %v838 = vpop.f32.mrb[0].mxu0
        %v839 = vadd.f32 %v710, %v838
        %v840 = vpop.f32.mrb[0].mxu0
        %841 = vmatprep.mubr.f32.mxu0 0.0
        %v842 = vand.u32 %v213, 4294901760
        %843 = vmatmul.mubr.f32.gmra.mrb[0].mxu0 %v842
        %v844 = vpop.f32.mrb[0].mxu0
        %v845 = vadd.f32 %v718, %v844
        %v846 = vpop.f32.mrb[0].mxu0
        %847 = vmatprep.mubr.f32.mxu0 0.0
        %v848 = vand.u32 %v216, 4294901760
        %849 = vmatmul.mubr.f32.gmra.mrb[0].mxu0 %v848
        %v850 = vpop.f32.mrb[0].mxu0
        %v851 = vadd.f32 %v726, %v850
        %v852 = vpop.f32.mrb[0].mxu0
        %853 = vmatprep.mubr.f32.mxu0 0.0
        %v854 = vand.u32 %v219, 4294901760
        %855 = vmatmul.mubr.f32.gmra.mrb[0].mxu0 %v854
        %v856 = vpop.f32.mrb[0].mxu0
        %v857 = vadd.f32 %v734, %v856
        %v858 = vpop.f32.mrb[0].mxu0
        %859 = vmatprep.mubr.f32.mxu0 0.0
        %v860 = vand.u32 %v222, 4294901760
        %861 = vmatmul.mubr.f32.gmra.mrb[0].mxu0 %v860
        %v862 = vpop.f32.mrb[0].mxu0
        %v863 = vadd.f32 %v742, %v862
        %v864 = vpop.f32.mrb[0].mxu0
        %865 = vmatprep.mubr.f32.mxu0 0.0
        %v866 = vand.u32 %v225, 4294901760
        %867 = vmatmul.mubr.f32.gmra.mrb[0].mxu0 %v866
        %v868 = vpop.f32.mrb[0].mxu0
        %v869 = vadd.f32 %v750, %v868
        %v870 = vpop.f32.mrb[0].mxu0
        %871 = vdwg.mxu0
        %872 = vmatprep.subr.mxu0 0.0
        %v873 = vand.u32 %v200, 4294901760
        %874 = vmatpush1.msra.mxu0 %v873
        %875 = vmatprep.subr.mxu0 0.0
        %v876 = vand.u32 %v201, 4294901760
        %877 = vmatpush1.msra.mxu0 %v876
        %878 = vmatprep.subr.mxu0 0.0
        %879 = vmatpush1.msra.mxu0 0.0
        %880 = vmatprep.subr.mxu0 0.0
        %881 = vmatpush1.msra.mxu0 0.0
        %882 = vmatprep.subr.mxu0 0.0
        %883 = vmatpush1.msra.mxu0 0.0
        %884 = vmatprep.subr.mxu0 0.0
        %885 = vmatpush1.msra.mxu0 0.0
        %886 = vmatprep.subr.mxu0 0.0
        %887 = vmatpush1.msra.mxu0 0.0
        %888 = vmatprep.subr.mxu0 0.0
        %889 = vmatpush1.msra.mxu0 0.0
        %890 = vmatprep.subr.mxu0 0.0
        %891 = vmatpush1.msra.mxu0 0.0
        %892 = vmatprep.subr.mxu0 0.0
        %893 = vmatpush1.msra.mxu0 0.0
        %894 = vmatprep.subr.mxu0 0.0
        %895 = vmatpush1.msra.mxu0 0.0
        %896 = vmatprep.subr.mxu0 0.0
        %897 = vmatpush1.msra.mxu0 0.0
        %898 = vmatprep.subr.mxu0 0.0
        %899 = vmatpush1.msra.mxu0 0.0
        %900 = vmatprep.subr.mxu0 0.0
        %901 = vmatpush1.msra.mxu0 0.0
        %902 = vmatprep.subr.mxu0 0.0
        %903 = vmatpush1.msra.mxu0 0.0
        %904 = vmatprep.subr.mxu0 0.0
        %905 = vmatpush1.msra.mxu0 0.0
        %906 = vmatprep.subr.mxu0 0.0
        %907 = vmatpush1.msra.mxu0 0.0
        %908 = vmatprep.subr.mxu0 0.0
        %909 = vmatpush1.msra.mxu0 0.0
        %910 = vmatprep.subr.mxu0 0.0
        %911 = vmatpush1.msra.mxu0 0.0
        %912 = vmatprep.subr.mxu0 0.0
        %913 = vmatpush1.msra.mxu0 0.0
        %914 = vmatprep.subr.mxu0 0.0
        %915 = vmatpush1.msra.mxu0 0.0
        %916 = vmatprep.subr.mxu0 0.0
        %917 = vmatpush1.msra.mxu0 0.0
        %918 = vmatprep.subr.mxu0 0.0
        %919 = vmatpush1.msra.mxu0 0.0
        %920 = vmatprep.subr.mxu0 0.0
        %921 = vmatpush1.msra.mxu0 0.0
        %922 = vmatprep.subr.mxu0 0.0
        %923 = vmatpush1.msra.mxu0 0.0
        %924 = vmatprep.subr.mxu0 0.0
        %925 = vmatpush1.msra.mxu0 0.0
        %926 = vmatprep.subr.mxu0 0.0
        %927 = vmatpush1.msra.mxu0 0.0
        %928 = vmatprep.subr.mxu0 0.0
        %929 = vmatpush1.msra.mxu0 0.0
        %930 = vmatprep.subr.mxu0 0.0
        %931 = vmatpush1.msra.mxu0 0.0
        %932 = vmatprep.subr.mxu0 0.0
        %933 = vmatpush1.msra.mxu0 0.0
        %934 = vmatprep.subr.mxu0 0.0
        %935 = vmatpush1.msra.mxu0 0.0
        %936 = vmatprep.subr.mxu0 0.0
        %937 = vmatpush1.msra.mxu0 0.0
        %938 = vmatprep.mubr.f32.mxu0 0.0
        %v939 = vand.u32 %v204, 4294901760
        %940 = vmatmul.mubr.f32.gmra.mrb[0].mxu0 %v939
        %v941 = vpop.f32.mrb[0].mxu0
        %v942 = vadd.f32 %v827, %v941
        %v943 = vpop.f32.mrb[0].mxu0
        %944 = vmatprep.mubr.f32.mxu0 0.0
        %v945 = vand.u32 %v207, 4294901760
        %946 = vmatmul.mubr.f32.gmra.mrb[0].mxu0 %v945
        %v947 = vpop.f32.mrb[0].mxu0
        %v948 = vadd.f32 %v833, %v947
        %v949 = vpop.f32.mrb[0].mxu0
        %950 = vmatprep.mubr.f32.mxu0 0.0
        %v951 = vand.u32 %v210, 4294901760
        %952 = vmatmul.mubr.f32.gmra.mrb[0].mxu0 %v951
        %v953 = vpop.f32.mrb[0].mxu0
        %v954 = vadd.f32 %v839, %v953
        %v955 = vpop.f32.mrb[0].mxu0
        %956 = vmatprep.mubr.f32.mxu0 0.0
        %v957 = vand.u32 %v213, 4294901760
        %958 = vmatmul.mubr.f32.gmra.mrb[0].mxu0 %v957
        %v959 = vpop.f32.mrb[0].mxu0
        %v960 = vadd.f32 %v845, %v959
        %v961 = vpop.f32.mrb[0].mxu0
        %962 = vmatprep.mubr.f32.mxu0 0.0
        %v963 = vand.u32 %v216, 4294901760
        %964 = vmatmul.mubr.f32.gmra.mrb[0].mxu0 %v963
        %v965 = vpop.f32.mrb[0].mxu0
        %v966 = vadd.f32 %v851, %v965
        %v967 = vpop.f32.mrb[0].mxu0
        %968 = vmatprep.mubr.f32.mxu0 0.0
        %v969 = vand.u32 %v219, 4294901760
        %970 = vmatmul.mubr.f32.gmra.mrb[0].mxu0 %v969
        %v971 = vpop.f32.mrb[0].mxu0
        %v972 = vadd.f32 %v857, %v971
        %v973 = vpop.f32.mrb[0].mxu0
        %974 = vmatprep.mubr.f32.mxu0 0.0
        %v975 = vand.u32 %v222, 4294901760
        %976 = vmatmul.mubr.f32.gmra.mrb[0].mxu0 %v975
        %v977 = vpop.f32.mrb[0].mxu0
        %v978 = vadd.f32 %v863, %v977
        %v979 = vpop.f32.mrb[0].mxu0
        %980 = vmatprep.mubr.f32.mxu0 0.0
        %v981 = vand.u32 %v225, 4294901760
        %982 = vmatmul.mubr.f32.gmra.mrb[0].mxu0 %v981
        %v983 = vpop.f32.mrb[0].mxu0
        %v984 = vadd.f32 %v869, %v983
        %v985 = vpop.f32.mrb[0].mxu0
        %986 = vdwg.mxu0
        %v987 = vld [vmem:[%s1] sm:$0xff]
        %v988 = vld [vmem:[%s1 + $0x8] sm:$0xff]
        %v989 = vld [vmem:[%s1 + $0x10] sm:$0xff]
        %v990 = vld [vmem:[%s1 + $0x18] sm:$0xff]
        %v992 = vsel %vm202, %v987, 0
        %v995 = vsel %vm202, %v988, 0
        %v998 = vsel %vm202, %v989, 0
        %v1001 = vsel %vm202, %v990, 0
        %1003 = vmatprep.subr.mxu0 0.0
        %v1004 = vand.u32 %v942, 4294901760
        %1005 = vmatpush1.msra.mxu0 %v1004
        %1006 = vmatprep.subr.mxu0 0.0
        %v1007 = vand.u32 %v948, 4294901760
        %1008 = vmatpush1.msra.mxu0 %v1007
        %1009 = vmatprep.subr.mxu0 0.0
        %1010 = vmatpush1.msra.mxu0 0.0
        %1011 = vmatprep.subr.mxu0 0.0
        %1012 = vmatpush1.msra.mxu0 0.0
        %1013 = vmatprep.subr.mxu0 0.0
        %1014 = vmatpush1.msra.mxu0 0.0
        %1015 = vmatprep.subr.mxu0 0.0
        %1016 = vmatpush1.msra.mxu0 0.0
        %1017 = vmatprep.subr.mxu0 0.0
        %1018 = vmatpush1.msra.mxu0 0.0
        %1019 = vmatprep.subr.mxu0 0.0
        %1020 = vmatpush1.msra.mxu0 0.0
        %1021 = vmatprep.subr.mxu0 0.0
        %1022 = vmatpush1.msra.mxu0 0.0
        %1023 = vmatprep.subr.mxu0 0.0
        %1024 = vmatpush1.msra.mxu0 0.0
        %1025 = vmatprep.subr.mxu0 0.0
        %1026 = vmatpush1.msra.mxu0 0.0
        %1027 = vmatprep.subr.mxu0 0.0
        %1028 = vmatpush1.msra.mxu0 0.0
        %1029 = vmatprep.subr.mxu0 0.0
        %1030 = vmatpush1.msra.mxu0 0.0
        %1031 = vmatprep.subr.mxu0 0.0
        %1032 = vmatpush1.msra.mxu0 0.0
        %1033 = vmatprep.subr.mxu0 0.0
        %1034 = vmatpush1.msra.mxu0 0.0
        %1035 = vmatprep.subr.mxu0 0.0
        %1036 = vmatpush1.msra.mxu0 0.0
        %1037 = vmatprep.subr.mxu0 0.0
        %1038 = vmatpush1.msra.mxu0 0.0
        %1039 = vmatprep.subr.mxu0 0.0
        %1040 = vmatpush1.msra.mxu0 0.0
        %1041 = vmatprep.subr.mxu0 0.0
        %1042 = vmatpush1.msra.mxu0 0.0
        %1043 = vmatprep.subr.mxu0 0.0
        %1044 = vmatpush1.msra.mxu0 0.0
        %1045 = vmatprep.subr.mxu0 0.0
        %1046 = vmatpush1.msra.mxu0 0.0
        %1047 = vmatprep.subr.mxu0 0.0
        %1048 = vmatpush1.msra.mxu0 0.0
        %1049 = vmatprep.subr.mxu0 0.0
        %1050 = vmatpush1.msra.mxu0 0.0
        %1051 = vmatprep.subr.mxu0 0.0
        %1052 = vmatpush1.msra.mxu0 0.0
        %1053 = vmatprep.subr.mxu0 0.0
        %1054 = vmatpush1.msra.mxu0 0.0
        %1055 = vmatprep.subr.mxu0 0.0
        %1056 = vmatpush1.msra.mxu0 0.0
        %1057 = vmatprep.subr.mxu0 0.0
        %1058 = vmatpush1.msra.mxu0 0.0
        %1059 = vmatprep.subr.mxu0 0.0
        %1060 = vmatpush1.msra.mxu0 0.0
        %1061 = vmatprep.subr.mxu0 0.0
        %1062 = vmatpush1.msra.mxu0 0.0
        %1063 = vmatprep.subr.mxu0 0.0
        %1064 = vmatpush1.msra.mxu0 0.0
        %1065 = vmatprep.subr.mxu0 0.0
        %1066 = vmatpush1.msra.mxu0 0.0
        %1067 = vmatprep.subr.mxu0 0.0
        %1068 = vmatpush1.msra.mxu0 0.0
        %1069 = vmatprep.mubr.f32.mxu0 0.0
        %v1070 = vand.u32 %v992, 4294901760
        %v1071 = vsub.f32 %v992, %v1070
        %v1072 = vand.u32 %v1071, 4294901760
        %v1073 = vsub.f32 %v1071, %v1072
        %v1074 = vand.u32 %v1073, 4294901760
        %1075 = vmatmul.mubr.f32.gmra.mrb[0].mxu0 %v1074
        %v1076 = vpop.f32.mrb[0].mxu0
        %v1077 = vadd.f32 0.0, %v1076
        %v1078 = vpop.f32.mrb[0].mxu0
        %1079 = vmatprep.mubr.f32.mxu0 0.0
        %v1080 = vand.u32 %v995, 4294901760
        %v1081 = vsub.f32 %v995, %v1080
        %v1082 = vand.u32 %v1081, 4294901760
        %v1083 = vsub.f32 %v1081, %v1082
        %v1084 = vand.u32 %v1083, 4294901760
        %1085 = vmatmul.mubr.f32.gmra.mrb[0].mxu0 %v1084
        %v1086 = vpop.f32.mrb[0].mxu0
        %v1087 = vadd.f32 0.0, %v1086
        %v1088 = vpop.f32.mrb[0].mxu0
        %1089 = vmatprep.mubr.f32.mxu0 0.0
        %v1090 = vand.u32 %v998, 4294901760
        %v1091 = vsub.f32 %v998, %v1090
        %v1092 = vand.u32 %v1091, 4294901760
        %v1093 = vsub.f32 %v1091, %v1092
        %v1094 = vand.u32 %v1093, 4294901760
        %1095 = vmatmul.mubr.f32.gmra.mrb[0].mxu0 %v1094
        %v1096 = vpop.f32.mrb[0].mxu0
        %v1097 = vadd.f32 0.0, %v1096
        %v1098 = vpop.f32.mrb[0].mxu0
        %1099 = vmatprep.mubr.f32.mxu0 0.0
        %v1100 = vand.u32 %v1001, 4294901760
        %v1101 = vsub.f32 %v1001, %v1100
        %v1102 = vand.u32 %v1101, 4294901760
        %v1103 = vsub.f32 %v1101, %v1102
        %v1104 = vand.u32 %v1103, 4294901760
        %1105 = vmatmul.mubr.f32.gmra.mrb[0].mxu0 %v1104
        %v1106 = vpop.f32.mrb[0].mxu0
        %v1107 = vadd.f32 0.0, %v1106
        %v1108 = vpop.f32.mrb[0].mxu0
        %1109 = vdwg.mxu0
        %1110 = vmatprep.subr.mxu0 0.0
        %v1111 = vand.u32 %v942, 4294901760
        %v1112 = vsub.f32 %v942, %v1111
        %v1113 = vand.u32 %v1112, 4294901760
        %v1114 = vsub.f32 %v1112, %v1113
        %v1115 = vand.u32 %v1114, 4294901760
        %1116 = vmatpush1.msra.mxu0 %v1115
        %1117 = vmatprep.subr.mxu0 0.0
        %v1118 = vand.u32 %v948, 4294901760
        %v1119 = vsub.f32 %v948, %v1118
        %v1120 = vand.u32 %v1119, 4294901760
        %v1121 = vsub.f32 %v1119, %v1120
        %v1122 = vand.u32 %v1121, 4294901760
        %1123 = vmatpush1.msra.mxu0 %v1122
        %1124 = vmatprep.subr.mxu0 0.0
        %1125 = vmatpush1.msra.mxu0 0.0
        %1126 = vmatprep.subr.mxu0 0.0
        %1127 = vmatpush1.msra.mxu0 0.0
        %1128 = vmatprep.subr.mxu0 0.0
        %1129 = vmatpush1.msra.mxu0 0.0
        %1130 = vmatprep.subr.mxu0 0.0
        %1131 = vmatpush1.msra.mxu0 0.0
        %1132 = vmatprep.subr.mxu0 0.0
        %1133 = vmatpush1.msra.mxu0 0.0
        %1134 = vmatprep.subr.mxu0 0.0
        %1135 = vmatpush1.msra.mxu0 0.0
        %1136 = vmatprep.subr.mxu0 0.0
        %1137 = vmatpush1.msra.mxu0 0.0
        %1138 = vmatprep.subr.mxu0 0.0
        %1139 = vmatpush1.msra.mxu0 0.0
        %1140 = vmatprep.subr.mxu0 0.0
        %1141 = vmatpush1.msra.mxu0 0.0
        %1142 = vmatprep.subr.mxu0 0.0
        %1143 = vmatpush1.msra.mxu0 0.0
        %1144 = vmatprep.subr.mxu0 0.0
        %1145 = vmatpush1.msra.mxu0 0.0
        %1146 = vmatprep.subr.mxu0 0.0
        %1147 = vmatpush1.msra.mxu0 0.0
        %1148 = vmatprep.subr.mxu0 0.0
        %1149 = vmatpush1.msra.mxu0 0.0
        %1150 = vmatprep.subr.mxu0 0.0
        %1151 = vmatpush1.msra.mxu0 0.0
        %1152 = vmatprep.subr.mxu0 0.0
        %1153 = vmatpush1.msra.mxu0 0.0
        %1154 = vmatprep.subr.mxu0 0.0
        %1155 = vmatpush1.msra.mxu0 0.0
        %1156 = vmatprep.subr.mxu0 0.0
        %1157 = vmatpush1.msra.mxu0 0.0
        %1158 = vmatprep.subr.mxu0 0.0
        %1159 = vmatpush1.msra.mxu0 0.0
        %1160 = vmatprep.subr.mxu0 0.0
        %1161 = vmatpush1.msra.mxu0 0.0
        %1162 = vmatprep.subr.mxu0 0.0
        %1163 = vmatpush1.msra.mxu0 0.0
        %1164 = vmatprep.subr.mxu0 0.0
        %1165 = vmatpush1.msra.mxu0 0.0
        %1166 = vmatprep.subr.mxu0 0.0
        %1167 = vmatpush1.msra.mxu0 0.0
        %1168 = vmatprep.subr.mxu0 0.0
        %1169 = vmatpush1.msra.mxu0 0.0
        %1170 = vmatprep.subr.mxu0 0.0
        %1171 = vmatpush1.msra.mxu0 0.0
        %1172 = vmatprep.subr.mxu0 0.0
        %1173 = vmatpush1.msra.mxu0 0.0
        %1174 = vmatprep.subr.mxu0 0.0
        %1175 = vmatpush1.msra.mxu0 0.0
        %1176 = vmatprep.subr.mxu0 0.0
        %1177 = vmatpush1.msra.mxu0 0.0
        %1178 = vmatprep.subr.mxu0 0.0
        %1179 = vmatpush1.msra.mxu0 0.0
        %1180 = vmatprep.subr.mxu0 0.0
        %1181 = vmatpush1.msra.mxu0 0.0
        %1182 = vmatprep.subr.mxu0 0.0
        %1183 = vmatpush1.msra.mxu0 0.0
        %1184 = vmatprep.mubr.f32.mxu0 0.0
        %v1185 = vand.u32 %v992, 4294901760
        %1186 = vmatmul.mubr.f32.gmra.mrb[0].mxu0 %v1185
        %v1187 = vpop.f32.mrb[0].mxu0
        %v1188 = vadd.f32 %v1077, %v1187
        %v1189 = vpop.f32.mrb[0].mxu0
        %1190 = vmatprep.mubr.f32.mxu0 0.0
        %v1191 = vand.u32 %v995, 4294901760
        %1192 = vmatmul.mubr.f32.gmra.mrb[0].mxu0 %v1191
        %v1193 = vpop.f32.mrb[0].mxu0
        %v1194 = vadd.f32 %v1087, %v1193
        %v1195 = vpop.f32.mrb[0].mxu0
        %1196 = vmatprep.mubr.f32.mxu0 0.0
        %v1197 = vand.u32 %v998, 4294901760
        %1198 = vmatmul.mubr.f32.gmra.mrb[0].mxu0 %v1197
        %v1199 = vpop.f32.mrb[0].mxu0
        %v1200 = vadd.f32 %v1097, %v1199
        %v1201 = vpop.f32.mrb[0].mxu0
        %1202 = vmatprep.mubr.f32.mxu0 0.0
        %v1203 = vand.u32 %v1001, 4294901760
        %1204 = vmatmul.mubr.f32.gmra.mrb[0].mxu0 %v1203
        %v1205 = vpop.f32.mrb[0].mxu0
        %v1206 = vadd.f32 %v1107, %v1205
        %v1207 = vpop.f32.mrb[0].mxu0
        %1208 = vdwg.mxu0
        %1209 = vmatprep.subr.mxu0 0.0
        %v1210 = vand.u32 %v942, 4294901760
        %v1211 = vsub.f32 %v942, %v1210
        %1212 = vmatpush1.msra.mxu0 %v1211
        %1213 = vmatprep.subr.mxu0 0.0
        %v1214 = vand.u32 %v948, 4294901760
        %v1215 = vsub.f32 %v948, %v1214
        %1216 = vmatpush1.msra.mxu0 %v1215
        %1217 = vmatprep.subr.mxu0 0.0
        %1218 = vmatpush1.msra.mxu0 0.0
        %1219 = vmatprep.subr.mxu0 0.0
        %1220 = vmatpush1.msra.mxu0 0.0
        %1221 = vmatprep.subr.mxu0 0.0
        %1222 = vmatpush1.msra.mxu0 0.0
        %1223 = vmatprep.subr.mxu0 0.0
        %1224 = vmatpush1.msra.mxu0 0.0
        %1225 = vmatprep.subr.mxu0 0.0
        %1226 = vmatpush1.msra.mxu0 0.0
        %1227 = vmatprep.subr.mxu0 0.0
        %1228 = vmatpush1.msra.mxu0 0.0
        %1229 = vmatprep.subr.mxu0 0.0
        %1230 = vmatpush1.msra.mxu0 0.0
        %1231 = vmatprep.subr.mxu0 0.0
        %1232 = vmatpush1.msra.mxu0 0.0
        %1233 = vmatprep.subr.mxu0 0.0
        %1234 = vmatpush1.msra.mxu0 0.0
        %1235 = vmatprep.subr.mxu0 0.0
        %1236 = vmatpush1.msra.mxu0 0.0
        %1237 = vmatprep.subr.mxu0 0.0
        %1238 = vmatpush1.msra.mxu0 0.0
        %1239 = vmatprep.subr.mxu0 0.0
        %1240 = vmatpush1.msra.mxu0 0.0
        %1241 = vmatprep.subr.mxu0 0.0
        %1242 = vmatpush1.msra.mxu0 0.0
        %1243 = vmatprep.subr.mxu0 0.0
        %1244 = vmatpush1.msra.mxu0 0.0
        %1245 = vmatprep.subr.mxu0 0.0
        %1246 = vmatpush1.msra.mxu0 0.0
        %1247 = vmatprep.subr.mxu0 0.0
        %1248 = vmatpush1.msra.mxu0 0.0
        %1249 = vmatprep.subr.mxu0 0.0
        %1250 = vmatpush1.msra.mxu0 0.0
        %1251 = vmatprep.subr.mxu0 0.0
        %1252 = vmatpush1.msra.mxu0 0.0
        %1253 = vmatprep.subr.mxu0 0.0
        %1254 = vmatpush1.msra.mxu0 0.0
        %1255 = vmatprep.subr.mxu0 0.0
        %1256 = vmatpush1.msra.mxu0 0.0
        %1257 = vmatprep.subr.mxu0 0.0
        %1258 = vmatpush1.msra.mxu0 0.0
        %1259 = vmatprep.subr.mxu0 0.0
        %1260 = vmatpush1.msra.mxu0 0.0
        %1261 = vmatprep.subr.mxu0 0.0
        %1262 = vmatpush1.msra.mxu0 0.0
        %1263 = vmatprep.subr.mxu0 0.0
        %1264 = vmatpush1.msra.mxu0 0.0
        %1265 = vmatprep.subr.mxu0 0.0
        %1266 = vmatpush1.msra.mxu0 0.0
        %1267 = vmatprep.subr.mxu0 0.0
        %1268 = vmatpush1.msra.mxu0 0.0
        %1269 = vmatprep.subr.mxu0 0.0
        %1270 = vmatpush1.msra.mxu0 0.0
        %1271 = vmatprep.subr.mxu0 0.0
        %1272 = vmatpush1.msra.mxu0 0.0
        %1273 = vmatprep.subr.mxu0 0.0
        %1274 = vmatpush1.msra.mxu0 0.0
        %1275 = vmatprep.subr.mxu0 0.0
        %1276 = vmatpush1.msra.mxu0 0.0
        %1277 = vmatprep.mubr.f32.mxu0 0.0
        %v1278 = vand.u32 %v992, 4294901760
        %v1279 = vsub.f32 %v992, %v1278
        %1280 = vmatmul.mubr.f32.gmra.mrb[0].mxu0 %v1279
        %v1281 = vpop.f32.mrb[0].mxu0
        %v1282 = vadd.f32 %v1188, %v1281
        %v1283 = vpop.f32.mrb[0].mxu0
        %1284 = vmatprep.mubr.f32.mxu0 0.0
        %v1285 = vand.u32 %v995, 4294901760
        %v1286 = vsub.f32 %v995, %v1285
        %1287 = vmatmul.mubr.f32.gmra.mrb[0].mxu0 %v1286
        %v1288 = vpop.f32.mrb[0].mxu0
        %v1289 = vadd.f32 %v1194, %v1288
        %v1290 = vpop.f32.mrb[0].mxu0
        %1291 = vmatprep.mubr.f32.mxu0 0.0
        %v1292 = vand.u32 %v998, 4294901760
        %v1293 = vsub.f32 %v998, %v1292
        %1294 = vmatmul.mubr.f32.gmra.mrb[0].mxu0 %v1293
        %v1295 = vpop.f32.mrb[0].mxu0
        %v1296 = vadd.f32 %v1200, %v1295
        %v1297 = vpop.f32.mrb[0].mxu0
        %1298 = vmatprep.mubr.f32.mxu0 0.0
        %v1299 = vand.u32 %v1001, 4294901760
        %v1300 = vsub.f32 %v1001, %v1299
        %1301 = vmatmul.mubr.f32.gmra.mrb[0].mxu0 %v1300
        %v1302 = vpop.f32.mrb[0].mxu0
        %v1303 = vadd.f32 %v1206, %v1302
        %v1304 = vpop.f32.mrb[0].mxu0
        %1305 = vdwg.mxu0
        %1306 = vmatprep.subr.mxu0 0.0
        %v1307 = vand.u32 %v942, 4294901760
        %1308 = vmatpush1.msra.mxu0 %v1307
        %1309 = vmatprep.subr.mxu0 0.0
        %v1310 = vand.u32 %v948, 4294901760
        %1311 = vmatpush1.msra.mxu0 %v1310
        %1312 = vmatprep.subr.mxu0 0.0
        %1313 = vmatpush1.msra.mxu0 0.0
        %1314 = vmatprep.subr.mxu0 0.0
        %1315 = vmatpush1.msra.mxu0 0.0
        %1316 = vmatprep.subr.mxu0 0.0
        %1317 = vmatpush1.msra.mxu0 0.0
        %1318 = vmatprep.subr.mxu0 0.0
        %1319 = vmatpush1.msra.mxu0 0.0
        %1320 = vmatprep.subr.mxu0 0.0
        %1321 = vmatpush1.msra.mxu0 0.0
        %1322 = vmatprep.subr.mxu0 0.0
        %1323 = vmatpush1.msra.mxu0 0.0
        %1324 = vmatprep.subr.mxu0 0.0
        %1325 = vmatpush1.msra.mxu0 0.0
        %1326 = vmatprep.subr.mxu0 0.0
        %1327 = vmatpush1.msra.mxu0 0.0
        %1328 = vmatprep.subr.mxu0 0.0
        %1329 = vmatpush1.msra.mxu0 0.0
        %1330 = vmatprep.subr.mxu0 0.0
        %1331 = vmatpush1.msra.mxu0 0.0
        %1332 = vmatprep.subr.mxu0 0.0
        %1333 = vmatpush1.msra.mxu0 0.0
        %1334 = vmatprep.subr.mxu0 0.0
        %1335 = vmatpush1.msra.mxu0 0.0
        %1336 = vmatprep.subr.mxu0 0.0
        %1337 = vmatpush1.msra.mxu0 0.0
        %1338 = vmatprep.subr.mxu0 0.0
        %1339 = vmatpush1.msra.mxu0 0.0
        %1340 = vmatprep.subr.mxu0 0.0
        %1341 = vmatpush1.msra.mxu0 0.0
        %1342 = vmatprep.subr.mxu0 0.0
        %1343 = vmatpush1.msra.mxu0 0.0
        %1344 = vmatprep.subr.mxu0 0.0
        %1345 = vmatpush1.msra.mxu0 0.0
        %1346 = vmatprep.subr.mxu0 0.0
        %1347 = vmatpush1.msra.mxu0 0.0
        %1348 = vmatprep.subr.mxu0 0.0
        %1349 = vmatpush1.msra.mxu0 0.0
        %1350 = vmatprep.subr.mxu0 0.0
        %1351 = vmatpush1.msra.mxu0 0.0
        %1352 = vmatprep.subr.mxu0 0.0
        %1353 = vmatpush1.msra.mxu0 0.0
        %1354 = vmatprep.subr.mxu0 0.0
        %1355 = vmatpush1.msra.mxu0 0.0
        %1356 = vmatprep.subr.mxu0 0.0
        %1357 = vmatpush1.msra.mxu0 0.0
        %1358 = vmatprep.subr.mxu0 0.0
        %1359 = vmatpush1.msra.mxu0 0.0
        %1360 = vmatprep.subr.mxu0 0.0
        %1361 = vmatpush1.msra.mxu0 0.0
        %1362 = vmatprep.subr.mxu0 0.0
        %1363 = vmatpush1.msra.mxu0 0.0
        %1364 = vmatprep.subr.mxu0 0.0
        %1365 = vmatpush1.msra.mxu0 0.0
        %1366 = vmatprep.subr.mxu0 0.0
        %1367 = vmatpush1.msra.mxu0 0.0
        %1368 = vmatprep.subr.mxu0 0.0
        %1369 = vmatpush1.msra.mxu0 0.0
        %1370 = vmatprep.subr.mxu0 0.0
        %1371 = vmatpush1.msra.mxu0 0.0
        %1372 = vmatprep.mubr.f32.mxu0 0.0
        %v1373 = vand.u32 %v992, 4294901760
        %v1374 = vsub.f32 %v992, %v1373
        %v1375 = vand.u32 %v1374, 4294901760
        %1376 = vmatmul.mubr.f32.gmra.mrb[0].mxu0 %v1375
        %v1377 = vpop.f32.mrb[0].mxu0
        %v1378 = vadd.f32 %v1282, %v1377
        %v1379 = vpop.f32.mrb[0].mxu0
        %1380 = vmatprep.mubr.f32.mxu0 0.0
        %v1381 = vand.u32 %v995, 4294901760
        %v1382 = vsub.f32 %v995, %v1381
        %v1383 = vand.u32 %v1382, 4294901760
        %1384 = vmatmul.mubr.f32.gmra.mrb[0].mxu0 %v1383
        %v1385 = vpop.f32.mrb[0].mxu0
        %v1386 = vadd.f32 %v1289, %v1385
        %v1387 = vpop.f32.mrb[0].mxu0
        %1388 = vmatprep.mubr.f32.mxu0 0.0
        %v1389 = vand.u32 %v998, 4294901760
        %v1390 = vsub.f32 %v998, %v1389
        %v1391 = vand.u32 %v1390, 4294901760
        %1392 = vmatmul.mubr.f32.gmra.mrb[0].mxu0 %v1391
        %v1393 = vpop.f32.mrb[0].mxu0
        %v1394 = vadd.f32 %v1296, %v1393
        %v1395 = vpop.f32.mrb[0].mxu0
        %1396 = vmatprep.mubr.f32.mxu0 0.0
        %v1397 = vand.u32 %v1001, 4294901760
        %v1398 = vsub.f32 %v1001, %v1397
        %v1399 = vand.u32 %v1398, 4294901760
        %1400 = vmatmul.mubr.f32.gmra.mrb[0].mxu0 %v1399
        %v1401 = vpop.f32.mrb[0].mxu0
        %v1402 = vadd.f32 %v1303, %v1401
        %v1403 = vpop.f32.mrb[0].mxu0
        %1404 = vdwg.mxu0
        %1405 = vmatprep.subr.mxu0 0.0
        %v1406 = vand.u32 %v942, 4294901760
        %v1407 = vsub.f32 %v942, %v1406
        %v1408 = vand.u32 %v1407, 4294901760
        %1409 = vmatpush1.msra.mxu0 %v1408
        %1410 = vmatprep.subr.mxu0 0.0
        %v1411 = vand.u32 %v948, 4294901760
        %v1412 = vsub.f32 %v948, %v1411
        %v1413 = vand.u32 %v1412, 4294901760
        %1414 = vmatpush1.msra.mxu0 %v1413
        %1415 = vmatprep.subr.mxu0 0.0
        %1416 = vmatpush1.msra.mxu0 0.0
        %1417 = vmatprep.subr.mxu0 0.0
        %1418 = vmatpush1.msra.mxu0 0.0
        %1419 = vmatprep.subr.mxu0 0.0
        %1420 = vmatpush1.msra.mxu0 0.0
        %1421 = vmatprep.subr.mxu0 0.0
        %1422 = vmatpush1.msra.mxu0 0.0
        %1423 = vmatprep.subr.mxu0 0.0
        %1424 = vmatpush1.msra.mxu0 0.0
        %1425 = vmatprep.subr.mxu0 0.0
        %1426 = vmatpush1.msra.mxu0 0.0
        %1427 = vmatprep.subr.mxu0 0.0
        %1428 = vmatpush1.msra.mxu0 0.0
        %1429 = vmatprep.subr.mxu0 0.0
        %1430 = vmatpush1.msra.mxu0 0.0
        %1431 = vmatprep.subr.mxu0 0.0
        %1432 = vmatpush1.msra.mxu0 0.0
        %1433 = vmatprep.subr.mxu0 0.0
        %1434 = vmatpush1.msra.mxu0 0.0
        %1435 = vmatprep.subr.mxu0 0.0
        %1436 = vmatpush1.msra.mxu0 0.0
        %1437 = vmatprep.subr.mxu0 0.0
        %1438 = vmatpush1.msra.mxu0 0.0
        %1439 = vmatprep.subr.mxu0 0.0
        %1440 = vmatpush1.msra.mxu0 0.0
        %1441 = vmatprep.subr.mxu0 0.0
        %1442 = vmatpush1.msra.mxu0 0.0
        %1443 = vmatprep.subr.mxu0 0.0
        %1444 = vmatpush1.msra.mxu0 0.0
        %1445 = vmatprep.subr.mxu0 0.0
        %1446 = vmatpush1.msra.mxu0 0.0
        %1447 = vmatprep.subr.mxu0 0.0
        %1448 = vmatpush1.msra.mxu0 0.0
        %1449 = vmatprep.subr.mxu0 0.0
        %1450 = vmatpush1.msra.mxu0 0.0
        %1451 = vmatprep.subr.mxu0 0.0
        %1452 = vmatpush1.msra.mxu0 0.0
        %1453 = vmatprep.subr.mxu0 0.0
        %1454 = vmatpush1.msra.mxu0 0.0
        %1455 = vmatprep.subr.mxu0 0.0
        %1456 = vmatpush1.msra.mxu0 0.0
        %1457 = vmatprep.subr.mxu0 0.0
        %1458 = vmatpush1.msra.mxu0 0.0
        %1459 = vmatprep.subr.mxu0 0.0
        %1460 = vmatpush1.msra.mxu0 0.0
        %1461 = vmatprep.subr.mxu0 0.0
        %1462 = vmatpush1.msra.mxu0 0.0
        %1463 = vmatprep.subr.mxu0 0.0
        %1464 = vmatpush1.msra.mxu0 0.0
        %1465 = vmatprep.subr.mxu0 0.0
        %1466 = vmatpush1.msra.mxu0 0.0
        %1467 = vmatprep.subr.mxu0 0.0
        %1468 = vmatpush1.msra.mxu0 0.0
        %1469 = vmatprep.subr.mxu0 0.0
        %1470 = vmatpush1.msra.mxu0 0.0
        %1471 = vmatprep.subr.mxu0 0.0
        %1472 = vmatpush1.msra.mxu0 0.0
        %1473 = vmatprep.subr.mxu0 0.0
        %1474 = vmatpush1.msra.mxu0 0.0
        %1475 = vmatprep.mubr.f32.mxu0 0.0
        %v1476 = vand.u32 %v992, 4294901760
        %1477 = vmatmul.mubr.f32.gmra.mrb[0].mxu0 %v1476
        %v1478 = vpop.f32.mrb[0].mxu0
        %v1479 = vadd.f32 %v1378, %v1478
        %v1480 = vpop.f32.mrb[0].mxu0
        %1481 = vmatprep.mubr.f32.mxu0 0.0
        %v1482 = vand.u32 %v995, 4294901760
        %1483 = vmatmul.mubr.f32.gmra.mrb[0].mxu0 %v1482
        %v1484 = vpop.f32.mrb[0].mxu0
        %v1485 = vadd.f32 %v1386, %v1484
        %v1486 = vpop.f32.mrb[0].mxu0
        %1487 = vmatprep.mubr.f32.mxu0 0.0
        %v1488 = vand.u32 %v998, 4294901760
        %1489 = vmatmul.mubr.f32.gmra.mrb[0].mxu0 %v1488
        %v1490 = vpop.f32.mrb[0].mxu0
        %v1491 = vadd.f32 %v1394, %v1490
        %v1492 = vpop.f32.mrb[0].mxu0
        %1493 = vmatprep.mubr.f32.mxu0 0.0
        %v1494 = vand.u32 %v1001, 4294901760
        %1495 = vmatmul.mubr.f32.gmra.mrb[0].mxu0 %v1494
        %v1496 = vpop.f32.mrb[0].mxu0
        %v1497 = vadd.f32 %v1402, %v1496
        %v1498 = vpop.f32.mrb[0].mxu0
        %1499 = vdwg.mxu0
        %1500 = vmatprep.subr.mxu0 0.0
        %v1501 = vand.u32 %v942, 4294901760
        %1502 = vmatpush1.msra.mxu0 %v1501
        %1503 = vmatprep.subr.mxu0 0.0
        %v1504 = vand.u32 %v948, 4294901760
        %1505 = vmatpush1.msra.mxu0 %v1504
        %1506 = vmatprep.subr.mxu0 0.0
        %1507 = vmatpush1.msra.mxu0 0.0
        %1508 = vmatprep.subr.mxu0 0.0
        %1509 = vmatpush1.msra.mxu0 0.0
        %1510 = vmatprep.subr.mxu0 0.0
        %1511 = vmatpush1.msra.mxu0 0.0
        %1512 = vmatprep.subr.mxu0 0.0
        %1513 = vmatpush1.msra.mxu0 0.0
        %1514 = vmatprep.subr.mxu0 0.0
        %1515 = vmatpush1.msra.mxu0 0.0
        %1516 = vmatprep.subr.mxu0 0.0
        %1517 = vmatpush1.msra.mxu0 0.0
        %1518 = vmatprep.subr.mxu0 0.0
        %1519 = vmatpush1.msra.mxu0 0.0
        %1520 = vmatprep.subr.mxu0 0.0
        %1521 = vmatpush1.msra.mxu0 0.0
        %1522 = vmatprep.subr.mxu0 0.0
        %1523 = vmatpush1.msra.mxu0 0.0
        %1524 = vmatprep.subr.mxu0 0.0
        %1525 = vmatpush1.msra.mxu0 0.0
        %1526 = vmatprep.subr.mxu0 0.0
        %1527 = vmatpush1.msra.mxu0 0.0
        %1528 = vmatprep.subr.mxu0 0.0
        %1529 = vmatpush1.msra.mxu0 0.0
        %1530 = vmatprep.subr.mxu0 0.0
        %1531 = vmatpush1.msra.mxu0 0.0
        %1532 = vmatprep.subr.mxu0 0.0
        %1533 = vmatpush1.msra.mxu0 0.0
        %1534 = vmatprep.subr.mxu0 0.0
        %1535 = vmatpush1.msra.mxu0 0.0
        %1536 = vmatprep.subr.mxu0 0.0
        %1537 = vmatpush1.msra.mxu0 0.0
        %1538 = vmatprep.subr.mxu0 0.0
        %1539 = vmatpush1.msra.mxu0 0.0
        %1540 = vmatprep.subr.mxu0 0.0
        %1541 = vmatpush1.msra.mxu0 0.0
        %1542 = vmatprep.subr.mxu0 0.0
        %1543 = vmatpush1.msra.mxu0 0.0
        %1544 = vmatprep.subr.mxu0 0.0
        %1545 = vmatpush1.msra.mxu0 0.0
        %1546 = vmatprep.subr.mxu0 0.0
        %1547 = vmatpush1.msra.mxu0 0.0
        %1548 = vmatprep.subr.mxu0 0.0
        %1549 = vmatpush1.msra.mxu0 0.0
        %1550 = vmatprep.subr.mxu0 0.0
        %1551 = vmatpush1.msra.mxu0 0.0
        %1552 = vmatprep.subr.mxu0 0.0
        %1553 = vmatpush1.msra.mxu0 0.0
        %1554 = vmatprep.subr.mxu0 0.0
        %1555 = vmatpush1.msra.mxu0 0.0
        %1556 = vmatprep.subr.mxu0 0.0
        %1557 = vmatpush1.msra.mxu0 0.0
        %1558 = vmatprep.subr.mxu0 0.0
        %1559 = vmatpush1.msra.mxu0 0.0
        %1560 = vmatprep.subr.mxu0 0.0
        %1561 = vmatpush1.msra.mxu0 0.0
        %1562 = vmatprep.subr.mxu0 0.0
        %1563 = vmatpush1.msra.mxu0 0.0
        %1564 = vmatprep.subr.mxu0 0.0
        %1565 = vmatpush1.msra.mxu0 0.0
        %1566 = vmatprep.mubr.f32.mxu0 0.0
        %v1567 = vand.u32 %v992, 4294901760
        %1568 = vmatmul.mubr.f32.gmra.mrb[0].mxu0 %v1567
        %v1569 = vpop.f32.mrb[0].mxu0
        %v1570 = vadd.f32 %v1479, %v1569
        %v1571 = vpop.f32.mrb[0].mxu0
        %1572 = vmatprep.mubr.f32.mxu0 0.0
        %v1573 = vand.u32 %v995, 4294901760
        %1574 = vmatmul.mubr.f32.gmra.mrb[0].mxu0 %v1573
        %v1575 = vpop.f32.mrb[0].mxu0
        %v1576 = vadd.f32 %v1485, %v1575
        %v1577 = vpop.f32.mrb[0].mxu0
        %1578 = vmatprep.mubr.f32.mxu0 0.0
        %v1579 = vand.u32 %v998, 4294901760
        %1580 = vmatmul.mubr.f32.gmra.mrb[0].mxu0 %v1579
        %v1581 = vpop.f32.mrb[0].mxu0
        %v1582 = vadd.f32 %v1491, %v1581
        %v1583 = vpop.f32.mrb[0].mxu0
        %1584 = vmatprep.mubr.f32.mxu0 0.0
        %v1585 = vand.u32 %v1001, 4294901760
        %1586 = vmatmul.mubr.f32.gmra.mrb[0].mxu0 %v1585
        %v1587 = vpop.f32.mrb[0].mxu0
        %v1588 = vadd.f32 %v1497, %v1587
        %v1589 = vpop.f32.mrb[0].mxu0
        %1590 = vdwg.mxu0
        %vm1591 = vcmask 261120
        %1592 = vst.msk [vmem:[%s189] sm:$0xff] %vm1591, %v1570
        %1593 = vst.msk [vmem:[%s189 + $0x8] sm:$0xff] %vm1591, %v1576
        %1594 = vst.msk [vmem:[%s189 + $0x10] sm:$0xff] %vm1591, %v1582
        %1595 = vst.msk [vmem:[%s189 + $0x18] sm:$0xff] %vm1591, %v1588
        %1596 = vmatprep.subr.mxu0 0.0
        %v1597 = vand.u32 %v954, 4294901760
        %1598 = vmatpush1.msra.mxu0 %v1597
        %1599 = vmatprep.subr.mxu0 0.0
        %v1600 = vand.u32 %v960, 4294901760
        %1601 = vmatpush1.msra.mxu0 %v1600
        %1602 = vmatprep.subr.mxu0 0.0
        %1603 = vmatpush1.msra.mxu0 0.0
        %1604 = vmatprep.subr.mxu0 0.0
        %1605 = vmatpush1.msra.mxu0 0.0
        %1606 = vmatprep.subr.mxu0 0.0
        %1607 = vmatpush1.msra.mxu0 0.0
        %1608 = vmatprep.subr.mxu0 0.0
        %1609 = vmatpush1.msra.mxu0 0.0
        %1610 = vmatprep.subr.mxu0 0.0
        %1611 = vmatpush1.msra.mxu0 0.0
        %1612 = vmatprep.subr.mxu0 0.0
        %1613 = vmatpush1.msra.mxu0 0.0
        %1614 = vmatprep.subr.mxu0 0.0
        %1615 = vmatpush1.msra.mxu0 0.0
        %1616 = vmatprep.subr.mxu0 0.0
        %1617 = vmatpush1.msra.mxu0 0.0
        %1618 = vmatprep.subr.mxu0 0.0
        %1619 = vmatpush1.msra.mxu0 0.0
        %1620 = vmatprep.subr.mxu0 0.0
        %1621 = vmatpush1.msra.mxu0 0.0
        %1622 = vmatprep.subr.mxu0 0.0
        %1623 = vmatpush1.msra.mxu0 0.0
        %1624 = vmatprep.subr.mxu0 0.0
        %1625 = vmatpush1.msra.mxu0 0.0
        %1626 = vmatprep.subr.mxu0 0.0
        %1627 = vmatpush1.msra.mxu0 0.0
        %1628 = vmatprep.subr.mxu0 0.0
        %1629 = vmatpush1.msra.mxu0 0.0
        %1630 = vmatprep.subr.mxu0 0.0
        %1631 = vmatpush1.msra.mxu0 0.0
        %1632 = vmatprep.subr.mxu0 0.0
        %1633 = vmatpush1.msra.mxu0 0.0
        %1634 = vmatprep.subr.mxu0 0.0
        %1635 = vmatpush1.msra.mxu0 0.0
        %1636 = vmatprep.subr.mxu0 0.0
        %1637 = vmatpush1.msra.mxu0 0.0
        %1638 = vmatprep.subr.mxu0 0.0
        %1639 = vmatpush1.msra.mxu0 0.0
        %1640 = vmatprep.subr.mxu0 0.0
        %1641 = vmatpush1.msra.mxu0 0.0
        %1642 = vmatprep.subr.mxu0 0.0
        %1643 = vmatpush1.msra.mxu0 0.0
        %1644 = vmatprep.subr.mxu0 0.0
        %1645 = vmatpush1.msra.mxu0 0.0
        %1646 = vmatprep.subr.mxu0 0.0
        %1647 = vmatpush1.msra.mxu0 0.0
        %1648 = vmatprep.subr.mxu0 0.0
        %1649 = vmatpush1.msra.mxu0 0.0
        %1650 = vmatprep.subr.mxu0 0.0
        %1651 = vmatpush1.msra.mxu0 0.0
        %1652 = vmatprep.subr.mxu0 0.0
        %1653 = vmatpush1.msra.mxu0 0.0
        %1654 = vmatprep.subr.mxu0 0.0
        %1655 = vmatpush1.msra.mxu0 0.0
        %1656 = vmatprep.subr.mxu0 0.0
        %1657 = vmatpush1.msra.mxu0 0.0
        %1658 = vmatprep.subr.mxu0 0.0
        %1659 = vmatpush1.msra.mxu0 0.0
        %1660 = vmatprep.subr.mxu0 0.0
        %1661 = vmatpush1.msra.mxu0 0.0
        %1662 = vmatprep.mubr.f32.mxu0 0.0
        %v1663 = vand.u32 %v992, 4294901760
        %v1664 = vsub.f32 %v992, %v1663
        %v1665 = vand.u32 %v1664, 4294901760
        %v1666 = vsub.f32 %v1664, %v1665
        %v1667 = vand.u32 %v1666, 4294901760
        %1668 = vmatmul.mubr.f32.gmra.mrb[0].mxu0 %v1667
        %v1669 = vpop.f32.mrb[0].mxu0
        %v1670 = vadd.f32 0.0, %v1669
        %v1671 = vpop.f32.mrb[0].mxu0
        %1672 = vmatprep.mubr.f32.mxu0 0.0
        %v1673 = vand.u32 %v995, 4294901760
        %v1674 = vsub.f32 %v995, %v1673
        %v1675 = vand.u32 %v1674, 4294901760
        %v1676 = vsub.f32 %v1674, %v1675
        %v1677 = vand.u32 %v1676, 4294901760
        %1678 = vmatmul.mubr.f32.gmra.mrb[0].mxu0 %v1677
        %v1679 = vpop.f32.mrb[0].mxu0
        %v1680 = vadd.f32 0.0, %v1679
        %v1681 = vpop.f32.mrb[0].mxu0
        %1682 = vmatprep.mubr.f32.mxu0 0.0
        %v1683 = vand.u32 %v998, 4294901760
        %v1684 = vsub.f32 %v998, %v1683
        %v1685 = vand.u32 %v1684, 4294901760
        %v1686 = vsub.f32 %v1684, %v1685
        %v1687 = vand.u32 %v1686, 4294901760
        %1688 = vmatmul.mubr.f32.gmra.mrb[0].mxu0 %v1687
        %v1689 = vpop.f32.mrb[0].mxu0
        %v1690 = vadd.f32 0.0, %v1689
        %v1691 = vpop.f32.mrb[0].mxu0
        %1692 = vmatprep.mubr.f32.mxu0 0.0
        %v1693 = vand.u32 %v1001, 4294901760
        %v1694 = vsub.f32 %v1001, %v1693
        %v1695 = vand.u32 %v1694, 4294901760
        %v1696 = vsub.f32 %v1694, %v1695
        %v1697 = vand.u32 %v1696, 4294901760
        %1698 = vmatmul.mubr.f32.gmra.mrb[0].mxu0 %v1697
        %v1699 = vpop.f32.mrb[0].mxu0
        %v1700 = vadd.f32 0.0, %v1699
        %v1701 = vpop.f32.mrb[0].mxu0
        %1702 = vdwg.mxu0
        %1703 = vmatprep.subr.mxu0 0.0
        %v1704 = vand.u32 %v954, 4294901760
        %v1705 = vsub.f32 %v954, %v1704
        %v1706 = vand.u32 %v1705, 4294901760
        %v1707 = vsub.f32 %v1705, %v1706
        %v1708 = vand.u32 %v1707, 4294901760
        %1709 = vmatpush1.msra.mxu0 %v1708
        %1710 = vmatprep.subr.mxu0 0.0
        %v1711 = vand.u32 %v960, 4294901760
        %v1712 = vsub.f32 %v960, %v1711
        %v1713 = vand.u32 %v1712, 4294901760
        %v1714 = vsub.f32 %v1712, %v1713
        %v1715 = vand.u32 %v1714, 4294901760
        %1716 = vmatpush1.msra.mxu0 %v1715
        %1717 = vmatprep.subr.mxu0 0.0
        %1718 = vmatpush1.msra.mxu0 0.0
        %1719 = vmatprep.subr.mxu0 0.0
        %1720 = vmatpush1.msra.mxu0 0.0
        %1721 = vmatprep.subr.mxu0 0.0
        %1722 = vmatpush1.msra.mxu0 0.0
        %1723 = vmatprep.subr.mxu0 0.0
        %1724 = vmatpush1.msra.mxu0 0.0
        %1725 = vmatprep.subr.mxu0 0.0
        %1726 = vmatpush1.msra.mxu0 0.0
        %1727 = vmatprep.subr.mxu0 0.0
        %1728 = vmatpush1.msra.mxu0 0.0
        %1729 = vmatprep.subr.mxu0 0.0
        %1730 = vmatpush1.msra.mxu0 0.0
        %1731 = vmatprep.subr.mxu0 0.0
        %1732 = vmatpush1.msra.mxu0 0.0
        %1733 = vmatprep.subr.mxu0 0.0
        %1734 = vmatpush1.msra.mxu0 0.0
        %1735 = vmatprep.subr.mxu0 0.0
        %1736 = vmatpush1.msra.mxu0 0.0
        %1737 = vmatprep.subr.mxu0 0.0
        %1738 = vmatpush1.msra.mxu0 0.0
        %1739 = vmatprep.subr.mxu0 0.0
        %1740 = vmatpush1.msra.mxu0 0.0
        %1741 = vmatprep.subr.mxu0 0.0
        %1742 = vmatpush1.msra.mxu0 0.0
        %1743 = vmatprep.subr.mxu0 0.0
        %1744 = vmatpush1.msra.mxu0 0.0
        %1745 = vmatprep.subr.mxu0 0.0
        %1746 = vmatpush1.msra.mxu0 0.0
        %1747 = vmatprep.subr.mxu0 0.0
        %1748 = vmatpush1.msra.mxu0 0.0
        %1749 = vmatprep.subr.mxu0 0.0
        %1750 = vmatpush1.msra.mxu0 0.0
        %1751 = vmatprep.subr.mxu0 0.0
        %1752 = vmatpush1.msra.mxu0 0.0
        %1753 = vmatprep.subr.mxu0 0.0
        %1754 = vmatpush1.msra.mxu0 0.0
        %1755 = vmatprep.subr.mxu0 0.0
        %1756 = vmatpush1.msra.mxu0 0.0
        %1757 = vmatprep.subr.mxu0 0.0
        %1758 = vmatpush1.msra.mxu0 0.0
        %1759 = vmatprep.subr.mxu0 0.0
        %1760 = vmatpush1.msra.mxu0 0.0
        %1761 = vmatprep.subr.mxu0 0.0
        %1762 = vmatpush1.msra.mxu0 0.0
        %1763 = vmatprep.subr.mxu0 0.0
        %1764 = vmatpush1.msra.mxu0 0.0
        %1765 = vmatprep.subr.mxu0 0.0
        %1766 = vmatpush1.msra.mxu0 0.0
        %1767 = vmatprep.subr.mxu0 0.0
        %1768 = vmatpush1.msra.mxu0 0.0
        %1769 = vmatprep.subr.mxu0 0.0
        %1770 = vmatpush1.msra.mxu0 0.0
        %1771 = vmatprep.subr.mxu0 0.0
        %1772 = vmatpush1.msra.mxu0 0.0
        %1773 = vmatprep.subr.mxu0 0.0
        %1774 = vmatpush1.msra.mxu0 0.0
        %1775 = vmatprep.subr.mxu0 0.0
        %1776 = vmatpush1.msra.mxu0 0.0
        %1777 = vmatprep.mubr.f32.mxu0 0.0
        %v1778 = vand.u32 %v992, 4294901760
        %1779 = vmatmul.mubr.f32.gmra.mrb[0].mxu0 %v1778
        %v1780 = vpop.f32.mrb[0].mxu0
        %v1781 = vadd.f32 %v1670, %v1780
        %v1782 = vpop.f32.mrb[0].mxu0
        %1783 = vmatprep.mubr.f32.mxu0 0.0
        %v1784 = vand.u32 %v995, 4294901760
        %1785 = vmatmul.mubr.f32.gmra.mrb[0].mxu0 %v1784
        %v1786 = vpop.f32.mrb[0].mxu0
        %v1787 = vadd.f32 %v1680, %v1786
        %v1788 = vpop.f32.mrb[0].mxu0
        %1789 = vmatprep.mubr.f32.mxu0 0.0
        %v1790 = vand.u32 %v998, 4294901760
        %1791 = vmatmul.mubr.f32.gmra.mrb[0].mxu0 %v1790
        %v1792 = vpop.f32.mrb[0].mxu0
        %v1793 = vadd.f32 %v1690, %v1792
        %v1794 = vpop.f32.mrb[0].mxu0
        %1795 = vmatprep.mubr.f32.mxu0 0.0
        %v1796 = vand.u32 %v1001, 4294901760
        %1797 = vmatmul.mubr.f32.gmra.mrb[0].mxu0 %v1796
        %v1798 = vpop.f32.mrb[0].mxu0
        %v1799 = vadd.f32 %v1700, %v1798
        %v1800 = vpop.f32.mrb[0].mxu0
        %1801 = vdwg.mxu0
        %1802 = vmatprep.subr.mxu0 0.0
        %v1803 = vand.u32 %v954, 4294901760
        %v1804 = vsub.f32 %v954, %v1803
        %1805 = vmatpush1.msra.mxu0 %v1804
        %1806 = vmatprep.subr.mxu0 0.0
        %v1807 = vand.u32 %v960, 4294901760
        %v1808 = vsub.f32 %v960, %v1807
        %1809 = vmatpush1.msra.mxu0 %v1808
        %1810 = vmatprep.subr.mxu0 0.0
        %1811 = vmatpush1.msra.mxu0 0.0
        %1812 = vmatprep.subr.mxu0 0.0
        %1813 = vmatpush1.msra.mxu0 0.0
        %1814 = vmatprep.subr.mxu0 0.0
        %1815 = vmatpush1.msra.mxu0 0.0
        %1816 = vmatprep.subr.mxu0 0.0
        %1817 = vmatpush1.msra.mxu0 0.0
        %1818 = vmatprep.subr.mxu0 0.0
        %1819 = vmatpush1.msra.mxu0 0.0
        %1820 = vmatprep.subr.mxu0 0.0
        %1821 = vmatpush1.msra.mxu0 0.0
        %1822 = vmatprep.subr.mxu0 0.0
        %1823 = vmatpush1.msra.mxu0 0.0
        %1824 = vmatprep.subr.mxu0 0.0
        %1825 = vmatpush1.msra.mxu0 0.0
        %1826 = vmatprep.subr.mxu0 0.0
        %1827 = vmatpush1.msra.mxu0 0.0
        %1828 = vmatprep.subr.mxu0 0.0
        %1829 = vmatpush1.msra.mxu0 0.0
        %1830 = vmatprep.subr.mxu0 0.0
        %1831 = vmatpush1.msra.mxu0 0.0
        %1832 = vmatprep.subr.mxu0 0.0
        %1833 = vmatpush1.msra.mxu0 0.0
        %1834 = vmatprep.subr.mxu0 0.0
        %1835 = vmatpush1.msra.mxu0 0.0
        %1836 = vmatprep.subr.mxu0 0.0
        %1837 = vmatpush1.msra.mxu0 0.0
        %1838 = vmatprep.subr.mxu0 0.0
        %1839 = vmatpush1.msra.mxu0 0.0
        %1840 = vmatprep.subr.mxu0 0.0
        %1841 = vmatpush1.msra.mxu0 0.0
        %1842 = vmatprep.subr.mxu0 0.0
        %1843 = vmatpush1.msra.mxu0 0.0
        %1844 = vmatprep.subr.mxu0 0.0
        %1845 = vmatpush1.msra.mxu0 0.0
        %1846 = vmatprep.subr.mxu0 0.0
        %1847 = vmatpush1.msra.mxu0 0.0
        %1848 = vmatprep.subr.mxu0 0.0
        %1849 = vmatpush1.msra.mxu0 0.0
        %1850 = vmatprep.subr.mxu0 0.0
        %1851 = vmatpush1.msra.mxu0 0.0
        %1852 = vmatprep.subr.mxu0 0.0
        %1853 = vmatpush1.msra.mxu0 0.0
        %1854 = vmatprep.subr.mxu0 0.0
        %1855 = vmatpush1.msra.mxu0 0.0
        %1856 = vmatprep.subr.mxu0 0.0
        %1857 = vmatpush1.msra.mxu0 0.0
        %1858 = vmatprep.subr.mxu0 0.0
        %1859 = vmatpush1.msra.mxu0 0.0
        %1860 = vmatprep.subr.mxu0 0.0
        %1861 = vmatpush1.msra.mxu0 0.0
        %1862 = vmatprep.subr.mxu0 0.0
        %1863 = vmatpush1.msra.mxu0 0.0
        %1864 = vmatprep.subr.mxu0 0.0
        %1865 = vmatpush1.msra.mxu0 0.0
        %1866 = vmatprep.subr.mxu0 0.0
        %1867 = vmatpush1.msra.mxu0 0.0
        %1868 = vmatprep.subr.mxu0 0.0
        %1869 = vmatpush1.msra.mxu0 0.0
        %1870 = vmatprep.mubr.f32.mxu0 0.0
        %v1871 = vand.u32 %v992, 4294901760
        %v1872 = vsub.f32 %v992, %v1871
        %1873 = vmatmul.mubr.f32.gmra.mrb[0].mxu0 %v1872
        %v1874 = vpop.f32.mrb[0].mxu0
        %v1875 = vadd.f32 %v1781, %v1874
        %v1876 = vpop.f32.mrb[0].mxu0
        %1877 = vmatprep.mubr.f32.mxu0 0.0
        %v1878 = vand.u32 %v995, 4294901760
        %v1879 = vsub.f32 %v995, %v1878
        %1880 = vmatmul.mubr.f32.gmra.mrb[0].mxu0 %v1879
        %v1881 = vpop.f32.mrb[0].mxu0
        %v1882 = vadd.f32 %v1787, %v1881
        %v1883 = vpop.f32.mrb[0].mxu0
        %1884 = vmatprep.mubr.f32.mxu0 0.0
        %v1885 = vand.u32 %v998, 4294901760
        %v1886 = vsub.f32 %v998, %v1885
        %1887 = vmatmul.mubr.f32.gmra.mrb[0].mxu0 %v1886
        %v1888 = vpop.f32.mrb[0].mxu0
        %v1889 = vadd.f32 %v1793, %v1888
        %v1890 = vpop.f32.mrb[0].mxu0
        %1891 = vmatprep.mubr.f32.mxu0 0.0
        %v1892 = vand.u32 %v1001, 4294901760
        %v1893 = vsub.f32 %v1001, %v1892
        %1894 = vmatmul.mubr.f32.gmra.mrb[0].mxu0 %v1893
        %v1895 = vpop.f32.mrb[0].mxu0
        %v1896 = vadd.f32 %v1799, %v1895
        %v1897 = vpop.f32.mrb[0].mxu0
        %1898 = vdwg.mxu0
        %1899 = vmatprep.subr.mxu0 0.0
        %v1900 = vand.u32 %v954, 4294901760
        %1901 = vmatpush1.msra.mxu0 %v1900
        %1902 = vmatprep.subr.mxu0 0.0
        %v1903 = vand.u32 %v960, 4294901760
        %1904 = vmatpush1.msra.mxu0 %v1903
        %1905 = vmatprep.subr.mxu0 0.0
        %1906 = vmatpush1.msra.mxu0 0.0
        %1907 = vmatprep.subr.mxu0 0.0
        %1908 = vmatpush1.msra.mxu0 0.0
        %1909 = vmatprep.subr.mxu0 0.0
        %1910 = vmatpush1.msra.mxu0 0.0
        %1911 = vmatprep.subr.mxu0 0.0
        %1912 = vmatpush1.msra.mxu0 0.0
        %1913 = vmatprep.subr.mxu0 0.0
        %1914 = vmatpush1.msra.mxu0 0.0
        %1915 = vmatprep.subr.mxu0 0.0
        %1916 = vmatpush1.msra.mxu0 0.0
        %1917 = vmatprep.subr.mxu0 0.0
        %1918 = vmatpush1.msra.mxu0 0.0
        %1919 = vmatprep.subr.mxu0 0.0
        %1920 = vmatpush1.msra.mxu0 0.0
        %1921 = vmatprep.subr.mxu0 0.0
        %1922 = vmatpush1.msra.mxu0 0.0
        %1923 = vmatprep.subr.mxu0 0.0
        %1924 = vmatpush1.msra.mxu0 0.0
        %1925 = vmatprep.subr.mxu0 0.0
        %1926 = vmatpush1.msra.mxu0 0.0
        %1927 = vmatprep.subr.mxu0 0.0
        %1928 = vmatpush1.msra.mxu0 0.0
        %1929 = vmatprep.subr.mxu0 0.0
        %1930 = vmatpush1.msra.mxu0 0.0
        %1931 = vmatprep.subr.mxu0 0.0
        %1932 = vmatpush1.msra.mxu0 0.0
        %1933 = vmatprep.subr.mxu0 0.0
        %1934 = vmatpush1.msra.mxu0 0.0
        %1935 = vmatprep.subr.mxu0 0.0
        %1936 = vmatpush1.msra.mxu0 0.0
        %1937 = vmatprep.subr.mxu0 0.0
        %1938 = vmatpush1.msra.mxu0 0.0
        %1939 = vmatprep.subr.mxu0 0.0
        %1940 = vmatpush1.msra.mxu0 0.0
        %1941 = vmatprep.subr.mxu0 0.0
        %1942 = vmatpush1.msra.mxu0 0.0
        %1943 = vmatprep.subr.mxu0 0.0
        %1944 = vmatpush1.msra.mxu0 0.0
        %1945 = vmatprep.subr.mxu0 0.0
        %1946 = vmatpush1.msra.mxu0 0.0
        %1947 = vmatprep.subr.mxu0 0.0
        %1948 = vmatpush1.msra.mxu0 0.0
        %1949 = vmatprep.subr.mxu0 0.0
        %1950 = vmatpush1.msra.mxu0 0.0
        %1951 = vmatprep.subr.mxu0 0.0
        %1952 = vmatpush1.msra.mxu0 0.0
        %1953 = vmatprep.subr.mxu0 0.0
        %1954 = vmatpush1.msra.mxu0 0.0
        %1955 = vmatprep.subr.mxu0 0.0
        %1956 = vmatpush1.msra.mxu0 0.0
        %1957 = vmatprep.subr.mxu0 0.0
        %1958 = vmatpush1.msra.mxu0 0.0
        %1959 = vmatprep.subr.mxu0 0.0
        %1960 = vmatpush1.msra.mxu0 0.0
        %1961 = vmatprep.subr.mxu0 0.0
        %1962 = vmatpush1.msra.mxu0 0.0
        %1963 = vmatprep.subr.mxu0 0.0
        %1964 = vmatpush1.msra.mxu0 0.0
        %1965 = vmatprep.mubr.f32.mxu0 0.0
        %v1966 = vand.u32 %v992, 4294901760
        %v1967 = vsub.f32 %v992, %v1966
        %v1968 = vand.u32 %v1967, 4294901760
        %1969 = vmatmul.mubr.f32.gmra.mrb[0].mxu0 %v1968
        %v1970 = vpop.f32.mrb[0].mxu0
        %v1971 = vadd.f32 %v1875, %v1970
        %v1972 = vpop.f32.mrb[0].mxu0
        %1973 = vmatprep.mubr.f32.mxu0 0.0
        %v1974 = vand.u32 %v995, 4294901760
        %v1975 = vsub.f32 %v995, %v1974
        %v1976 = vand.u32 %v1975, 4294901760
        %1977 = vmatmul.mubr.f32.gmra.mrb[0].mxu0 %v1976
        %v1978 = vpop.f32.mrb[0].mxu0
        %v1979 = vadd.f32 %v1882, %v1978
        %v1980 = vpop.f32.mrb[0].mxu0
        %1981 = vmatprep.mubr.f32.mxu0 0.0
        %v1982 = vand.u32 %v998, 4294901760
        %v1983 = vsub.f32 %v998, %v1982
        %v1984 = vand.u32 %v1983, 4294901760
        %1985 = vmatmul.mubr.f32.gmra.mrb[0].mxu0 %v1984
        %v1986 = vpop.f32.mrb[0].mxu0
        %v1987 = vadd.f32 %v1889, %v1986
        %v1988 = vpop.f32.mrb[0].mxu0
        %1989 = vmatprep.mubr.f32.mxu0 0.0
        %v1990 = vand.u32 %v1001, 4294901760
        %v1991 = vsub.f32 %v1001, %v1990
        %v1992 = vand.u32 %v1991, 4294901760
        %1993 = vmatmul.mubr.f32.gmra.mrb[0].mxu0 %v1992
        %v1994 = vpop.f32.mrb[0].mxu0
        %v1995 = vadd.f32 %v1896, %v1994
        %v1996 = vpop.f32.mrb[0].mxu0
        %1997 = vdwg.mxu0
        %1998 = vmatprep.subr.mxu0 0.0
        %v1999 = vand.u32 %v954, 4294901760
        %v2000 = vsub.f32 %v954, %v1999
        %v2001 = vand.u32 %v2000, 4294901760
        %2002 = vmatpush1.msra.mxu0 %v2001
        %2003 = vmatprep.subr.mxu0 0.0
        %v2004 = vand.u32 %v960, 4294901760
        %v2005 = vsub.f32 %v960, %v2004
        %v2006 = vand.u32 %v2005, 4294901760
        %2007 = vmatpush1.msra.mxu0 %v2006
        %2008 = vmatprep.subr.mxu0 0.0
        %2009 = vmatpush1.msra.mxu0 0.0
        %2010 = vmatprep.subr.mxu0 0.0
        %2011 = vmatpush1.msra.mxu0 0.0
        %2012 = vmatprep.subr.mxu0 0.0
        %2013 = vmatpush1.msra.mxu0 0.0
        %2014 = vmatprep.subr.mxu0 0.0
        %2015 = vmatpush1.msra.mxu0 0.0
        %2016 = vmatprep.subr.mxu0 0.0
        %2017 = vmatpush1.msra.mxu0 0.0
        %2018 = vmatprep.subr.mxu0 0.0
        %2019 = vmatpush1.msra.mxu0 0.0
        %2020 = vmatprep.subr.mxu0 0.0
        %2021 = vmatpush1.msra.mxu0 0.0
        %2022 = vmatprep.subr.mxu0 0.0
        %2023 = vmatpush1.msra.mxu0 0.0
        %2024 = vmatprep.subr.mxu0 0.0
        %2025 = vmatpush1.msra.mxu0 0.0
        %2026 = vmatprep.subr.mxu0 0.0
        %2027 = vmatpush1.msra.mxu0 0.0
        %2028 = vmatprep.subr.mxu0 0.0
        %2029 = vmatpush1.msra.mxu0 0.0
        %2030 = vmatprep.subr.mxu0 0.0
        %2031 = vmatpush1.msra.mxu0 0.0
        %2032 = vmatprep.subr.mxu0 0.0
        %2033 = vmatpush1.msra.mxu0 0.0
        %2034 = vmatprep.subr.mxu0 0.0
        %2035 = vmatpush1.msra.mxu0 0.0
        %2036 = vmatprep.subr.mxu0 0.0
        %2037 = vmatpush1.msra.mxu0 0.0
        %2038 = vmatprep.subr.mxu0 0.0
        %2039 = vmatpush1.msra.mxu0 0.0
        %2040 = vmatprep.subr.mxu0 0.0
        %2041 = vmatpush1.msra.mxu0 0.0
        %2042 = vmatprep.subr.mxu0 0.0
        %2043 = vmatpush1.msra.mxu0 0.0
        %2044 = vmatprep.subr.mxu0 0.0
        %2045 = vmatpush1.msra.mxu0 0.0
        %2046 = vmatprep.subr.mxu0 0.0
        %2047 = vmatpush1.msra.mxu0 0.0
        %2048 = vmatprep.subr.mxu0 0.0
        %2049 = vmatpush1.msra.mxu0 0.0
        %2050 = vmatprep.subr.mxu0 0.0
        %2051 = vmatpush1.msra.mxu0 0.0
        %2052 = vmatprep.subr.mxu0 0.0
        %2053 = vmatpush1.msra.mxu0 0.0
        %2054 = vmatprep.subr.mxu0 0.0
        %2055 = vmatpush1.msra.mxu0 0.0
        %2056 = vmatprep.subr.mxu0 0.0
        %2057 = vmatpush1.msra.mxu0 0.0
        %2058 = vmatprep.subr.mxu0 0.0
        %2059 = vmatpush1.msra.mxu0 0.0
        %2060 = vmatprep.subr.mxu0 0.0
        %2061 = vmatpush1.msra.mxu0 0.0
        %2062 = vmatprep.subr.mxu0 0.0
        %2063 = vmatpush1.msra.mxu0 0.0
        %2064 = vmatprep.subr.mxu0 0.0
        %2065 = vmatpush1.msra.mxu0 0.0
        %2066 = vmatprep.subr.mxu0 0.0
        %2067 = vmatpush1.msra.mxu0 0.0
        %2068 = vmatprep.mubr.f32.mxu0 0.0
        %v2069 = vand.u32 %v992, 4294901760
        %2070 = vmatmul.mubr.f32.gmra.mrb[0].mxu0 %v2069
        %v2071 = vpop.f32.mrb[0].mxu0
        %v2072 = vadd.f32 %v1971, %v2071
        %v2073 = vpop.f32.mrb[0].mxu0
        %2074 = vmatprep.mubr.f32.mxu0 0.0
        %v2075 = vand.u32 %v995, 4294901760
        %2076 = vmatmul.mubr.f32.gmra.mrb[0].mxu0 %v2075
        %v2077 = vpop.f32.mrb[0].mxu0
        %v2078 = vadd.f32 %v1979, %v2077
        %v2079 = vpop.f32.mrb[0].mxu0
        %2080 = vmatprep.mubr.f32.mxu0 0.0
        %v2081 = vand.u32 %v998, 4294901760
        %2082 = vmatmul.mubr.f32.gmra.mrb[0].mxu0 %v2081
        %v2083 = vpop.f32.mrb[0].mxu0
        %v2084 = vadd.f32 %v1987, %v2083
        %v2085 = vpop.f32.mrb[0].mxu0
        %2086 = vmatprep.mubr.f32.mxu0 0.0
        %v2087 = vand.u32 %v1001, 4294901760
        %2088 = vmatmul.mubr.f32.gmra.mrb[0].mxu0 %v2087
        %v2089 = vpop.f32.mrb[0].mxu0
        %v2090 = vadd.f32 %v1995, %v2089
        %v2091 = vpop.f32.mrb[0].mxu0
        %2092 = vdwg.mxu0
        %2093 = vmatprep.subr.mxu0 0.0
        %v2094 = vand.u32 %v954, 4294901760
        %2095 = vmatpush1.msra.mxu0 %v2094
        %2096 = vmatprep.subr.mxu0 0.0
        %v2097 = vand.u32 %v960, 4294901760
        %2098 = vmatpush1.msra.mxu0 %v2097
        %2099 = vmatprep.subr.mxu0 0.0
        %2100 = vmatpush1.msra.mxu0 0.0
        %2101 = vmatprep.subr.mxu0 0.0
        %2102 = vmatpush1.msra.mxu0 0.0
        %2103 = vmatprep.subr.mxu0 0.0
        %2104 = vmatpush1.msra.mxu0 0.0
        %2105 = vmatprep.subr.mxu0 0.0
        %2106 = vmatpush1.msra.mxu0 0.0
        %2107 = vmatprep.subr.mxu0 0.0
        %2108 = vmatpush1.msra.mxu0 0.0
        %2109 = vmatprep.subr.mxu0 0.0
        %2110 = vmatpush1.msra.mxu0 0.0
        %2111 = vmatprep.subr.mxu0 0.0
        %2112 = vmatpush1.msra.mxu0 0.0
        %2113 = vmatprep.subr.mxu0 0.0
        %2114 = vmatpush1.msra.mxu0 0.0
        %2115 = vmatprep.subr.mxu0 0.0
        %2116 = vmatpush1.msra.mxu0 0.0
        %2117 = vmatprep.subr.mxu0 0.0
        %2118 = vmatpush1.msra.mxu0 0.0
        %2119 = vmatprep.subr.mxu0 0.0
        %2120 = vmatpush1.msra.mxu0 0.0
        %2121 = vmatprep.subr.mxu0 0.0
        %2122 = vmatpush1.msra.mxu0 0.0
        %2123 = vmatprep.subr.mxu0 0.0
        %2124 = vmatpush1.msra.mxu0 0.0
        %2125 = vmatprep.subr.mxu0 0.0
        %2126 = vmatpush1.msra.mxu0 0.0
        %2127 = vmatprep.subr.mxu0 0.0
        %2128 = vmatpush1.msra.mxu0 0.0
        %2129 = vmatprep.subr.mxu0 0.0
        %2130 = vmatpush1.msra.mxu0 0.0
        %2131 = vmatprep.subr.mxu0 0.0
        %2132 = vmatpush1.msra.mxu0 0.0
        %2133 = vmatprep.subr.mxu0 0.0
        %2134 = vmatpush1.msra.mxu0 0.0
        %2135 = vmatprep.subr.mxu0 0.0
        %2136 = vmatpush1.msra.mxu0 0.0
        %2137 = vmatprep.subr.mxu0 0.0
        %2138 = vmatpush1.msra.mxu0 0.0
        %2139 = vmatprep.subr.mxu0 0.0
        %2140 = vmatpush1.msra.mxu0 0.0
        %2141 = vmatprep.subr.mxu0 0.0
        %2142 = vmatpush1.msra.mxu0 0.0
        %2143 = vmatprep.subr.mxu0 0.0
        %2144 = vmatpush1.msra.mxu0 0.0
        %2145 = vmatprep.subr.mxu0 0.0
        %2146 = vmatpush1.msra.mxu0 0.0
        %2147 = vmatprep.subr.mxu0 0.0
        %2148 = vmatpush1.msra.mxu0 0.0
        %2149 = vmatprep.subr.mxu0 0.0
        %2150 = vmatpush1.msra.mxu0 0.0
        %2151 = vmatprep.subr.mxu0 0.0
        %2152 = vmatpush1.msra.mxu0 0.0
        %2153 = vmatprep.subr.mxu0 0.0
        %2154 = vmatpush1.msra.mxu0 0.0
        %2155 = vmatprep.subr.mxu0 0.0
        %2156 = vmatpush1.msra.mxu0 0.0
        %2157 = vmatprep.subr.mxu0 0.0
        %2158 = vmatpush1.msra.mxu0 0.0
        %2159 = vmatprep.mubr.f32.mxu0 0.0
        %v2160 = vand.u32 %v992, 4294901760
        %2161 = vmatmul.mubr.f32.gmra.mrb[0].mxu0 %v2160
        %v2162 = vpop.f32.mrb[0].mxu0
        %v2163 = vadd.f32 %v2072, %v2162
        %v2164 = vpop.f32.mrb[0].mxu0
        %2165 = vmatprep.mubr.f32.mxu0 0.0
        %v2166 = vand.u32 %v995, 4294901760
        %2167 = vmatmul.mubr.f32.gmra.mrb[0].mxu0 %v2166
        %v2168 = vpop.f32.mrb[0].mxu0
        %v2169 = vadd.f32 %v2078, %v2168
        %v2170 = vpop.f32.mrb[0].mxu0
        %2171 = vmatprep.mubr.f32.mxu0 0.0
        %v2172 = vand.u32 %v998, 4294901760
        %2173 = vmatmul.mubr.f32.gmra.mrb[0].mxu0 %v2172
        %v2174 = vpop.f32.mrb[0].mxu0
        %v2175 = vadd.f32 %v2084, %v2174
        %v2176 = vpop.f32.mrb[0].mxu0
        %2177 = vmatprep.mubr.f32.mxu0 0.0
        %v2178 = vand.u32 %v1001, 4294901760
        %2179 = vmatmul.mubr.f32.gmra.mrb[0].mxu0 %v2178
        %v2180 = vpop.f32.mrb[0].mxu0
        %v2181 = vadd.f32 %v2090, %v2180
        %v2182 = vpop.f32.mrb[0].mxu0
        %2183 = vdwg.mxu0
        %s2184 = scalar_lea.vmem %s189, 32 [#allocation5]
        %2185 = vst.msk [vmem:[%s2184] sm:$0xff] %vm1591, %v2163
        %2186 = vst.msk [vmem:[%s2184 + $0x8] sm:$0xff] %vm1591, %v2169
        %2187 = vst.msk [vmem:[%s2184 + $0x10] sm:$0xff] %vm1591, %v2175
        %2188 = vst.msk [vmem:[%s2184 + $0x18] sm:$0xff] %vm1591, %v2181
        %2189 = vmatprep.subr.mxu0 0.0
        %v2190 = vand.u32 %v966, 4294901760
        %2191 = vmatpush1.msra.mxu0 %v2190
        %2192 = vmatprep.subr.mxu0 0.0
        %v2193 = vand.u32 %v972, 4294901760
        %2194 = vmatpush1.msra.mxu0 %v2193
        %2195 = vmatprep.subr.mxu0 0.0
        %2196 = vmatpush1.msra.mxu0 0.0
        %2197 = vmatprep.subr.mxu0 0.0
        %2198 = vmatpush1.msra.mxu0 0.0
        %2199 = vmatprep.subr.mxu0 0.0
        %2200 = vmatpush1.msra.mxu0 0.0
        %2201 = vmatprep.subr.mxu0 0.0
        %2202 = vmatpush1.msra.mxu0 0.0
        %2203 = vmatprep.subr.mxu0 0.0
        %2204 = vmatpush1.msra.mxu0 0.0
        %2205 = vmatprep.subr.mxu0 0.0
        %2206 = vmatpush1.msra.mxu0 0.0
        %2207 = vmatprep.subr.mxu0 0.0
        %2208 = vmatpush1.msra.mxu0 0.0
        %2209 = vmatprep.subr.mxu0 0.0
        %2210 = vmatpush1.msra.mxu0 0.0
        %2211 = vmatprep.subr.mxu0 0.0
        %2212 = vmatpush1.msra.mxu0 0.0
        %2213 = vmatprep.subr.mxu0 0.0
        %2214 = vmatpush1.msra.mxu0 0.0
        %2215 = vmatprep.subr.mxu0 0.0
        %2216 = vmatpush1.msra.mxu0 0.0
        %2217 = vmatprep.subr.mxu0 0.0
        %2218 = vmatpush1.msra.mxu0 0.0
        %2219 = vmatprep.subr.mxu0 0.0
        %2220 = vmatpush1.msra.mxu0 0.0
        %2221 = vmatprep.subr.mxu0 0.0
        %2222 = vmatpush1.msra.mxu0 0.0
        %2223 = vmatprep.subr.mxu0 0.0
        %2224 = vmatpush1.msra.mxu0 0.0
        %2225 = vmatprep.subr.mxu0 0.0
        %2226 = vmatpush1.msra.mxu0 0.0
        %2227 = vmatprep.subr.mxu0 0.0
        %2228 = vmatpush1.msra.mxu0 0.0
        %2229 = vmatprep.subr.mxu0 0.0
        %2230 = vmatpush1.msra.mxu0 0.0
        %2231 = vmatprep.subr.mxu0 0.0
        %2232 = vmatpush1.msra.mxu0 0.0
        %2233 = vmatprep.subr.mxu0 0.0
        %2234 = vmatpush1.msra.mxu0 0.0
        %2235 = vmatprep.subr.mxu0 0.0
        %2236 = vmatpush1.msra.mxu0 0.0
        %2237 = vmatprep.subr.mxu0 0.0
        %2238 = vmatpush1.msra.mxu0 0.0
        %2239 = vmatprep.subr.mxu0 0.0
        %2240 = vmatpush1.msra.mxu0 0.0
        %2241 = vmatprep.subr.mxu0 0.0
        %2242 = vmatpush1.msra.mxu0 0.0
        %2243 = vmatprep.subr.mxu0 0.0
        %2244 = vmatpush1.msra.mxu0 0.0
        %2245 = vmatprep.subr.mxu0 0.0
        %2246 = vmatpush1.msra.mxu0 0.0
        %2247 = vmatprep.subr.mxu0 0.0
        %2248 = vmatpush1.msra.mxu0 0.0
        %2249 = vmatprep.subr.mxu0 0.0
        %2250 = vmatpush1.msra.mxu0 0.0
        %2251 = vmatprep.subr.mxu0 0.0
        %2252 = vmatpush1.msra.mxu0 0.0
        %2253 = vmatprep.subr.mxu0 0.0
        %2254 = vmatpush1.msra.mxu0 0.0
        %2255 = vmatprep.mubr.f32.mxu0 0.0
        %v2256 = vand.u32 %v992, 4294901760
        %v2257 = vsub.f32 %v992, %v2256
        %v2258 = vand.u32 %v2257, 4294901760
        %v2259 = vsub.f32 %v2257, %v2258
        %v2260 = vand.u32 %v2259, 4294901760
        %2261 = vmatmul.mubr.f32.gmra.mrb[0].mxu0 %v2260
        %v2262 = vpop.f32.mrb[0].mxu0
        %v2263 = vadd.f32 0.0, %v2262
        %v2264 = vpop.f32.mrb[0].mxu0
        %2265 = vmatprep.mubr.f32.mxu0 0.0
        %v2266 = vand.u32 %v995, 4294901760
        %v2267 = vsub.f32 %v995, %v2266
        %v2268 = vand.u32 %v2267, 4294901760
        %v2269 = vsub.f32 %v2267, %v2268
        %v2270 = vand.u32 %v2269, 4294901760
        %2271 = vmatmul.mubr.f32.gmra.mrb[0].mxu0 %v2270
        %v2272 = vpop.f32.mrb[0].mxu0
        %v2273 = vadd.f32 0.0, %v2272
        %v2274 = vpop.f32.mrb[0].mxu0
        %2275 = vmatprep.mubr.f32.mxu0 0.0
        %v2276 = vand.u32 %v998, 4294901760
        %v2277 = vsub.f32 %v998, %v2276
        %v2278 = vand.u32 %v2277, 4294901760
        %v2279 = vsub.f32 %v2277, %v2278
        %v2280 = vand.u32 %v2279, 4294901760
        %2281 = vmatmul.mubr.f32.gmra.mrb[0].mxu0 %v2280
        %v2282 = vpop.f32.mrb[0].mxu0
        %v2283 = vadd.f32 0.0, %v2282
        %v2284 = vpop.f32.mrb[0].mxu0
        %2285 = vmatprep.mubr.f32.mxu0 0.0
        %v2286 = vand.u32 %v1001, 4294901760
        %v2287 = vsub.f32 %v1001, %v2286
        %v2288 = vand.u32 %v2287, 4294901760
        %v2289 = vsub.f32 %v2287, %v2288
        %v2290 = vand.u32 %v2289, 4294901760
        %2291 = vmatmul.mubr.f32.gmra.mrb[0].mxu0 %v2290
        %v2292 = vpop.f32.mrb[0].mxu0
        %v2293 = vadd.f32 0.0, %v2292
        %v2294 = vpop.f32.mrb[0].mxu0
        %2295 = vdwg.mxu0
        %2296 = vmatprep.subr.mxu0 0.0
        %v2297 = vand.u32 %v966, 4294901760
        %v2298 = vsub.f32 %v966, %v2297
        %v2299 = vand.u32 %v2298, 4294901760
        %v2300 = vsub.f32 %v2298, %v2299
        %v2301 = vand.u32 %v2300, 4294901760
        %2302 = vmatpush1.msra.mxu0 %v2301
        %2303 = vmatprep.subr.mxu0 0.0
        %v2304 = vand.u32 %v972, 4294901760
        %v2305 = vsub.f32 %v972, %v2304
        %v2306 = vand.u32 %v2305, 4294901760
        %v2307 = vsub.f32 %v2305, %v2306
        %v2308 = vand.u32 %v2307, 4294901760
        %2309 = vmatpush1.msra.mxu0 %v2308
        %2310 = vmatprep.subr.mxu0 0.0
        %2311 = vmatpush1.msra.mxu0 0.0
        %2312 = vmatprep.subr.mxu0 0.0
        %2313 = vmatpush1.msra.mxu0 0.0
        %2314 = vmatprep.subr.mxu0 0.0
        %2315 = vmatpush1.msra.mxu0 0.0
        %2316 = vmatprep.subr.mxu0 0.0
        %2317 = vmatpush1.msra.mxu0 0.0
        %2318 = vmatprep.subr.mxu0 0.0
        %2319 = vmatpush1.msra.mxu0 0.0
        %2320 = vmatprep.subr.mxu0 0.0
        %2321 = vmatpush1.msra.mxu0 0.0
        %2322 = vmatprep.subr.mxu0 0.0
        %2323 = vmatpush1.msra.mxu0 0.0
        %2324 = vmatprep.subr.mxu0 0.0
        %2325 = vmatpush1.msra.mxu0 0.0
        %2326 = vmatprep.subr.mxu0 0.0
        %2327 = vmatpush1.msra.mxu0 0.0
        %2328 = vmatprep.subr.mxu0 0.0
        %2329 = vmatpush1.msra.mxu0 0.0
        %2330 = vmatprep.subr.mxu0 0.0
        %2331 = vmatpush1.msra.mxu0 0.0
        %2332 = vmatprep.subr.mxu0 0.0
        %2333 = vmatpush1.msra.mxu0 0.0
        %2334 = vmatprep.subr.mxu0 0.0
        %2335 = vmatpush1.msra.mxu0 0.0
        %2336 = vmatprep.subr.mxu0 0.0
        %2337 = vmatpush1.msra.mxu0 0.0
        %2338 = vmatprep.subr.mxu0 0.0
        %2339 = vmatpush1.msra.mxu0 0.0
        %2340 = vmatprep.subr.mxu0 0.0
        %2341 = vmatpush1.msra.mxu0 0.0
        %2342 = vmatprep.subr.mxu0 0.0
        %2343 = vmatpush1.msra.mxu0 0.0
        %2344 = vmatprep.subr.mxu0 0.0
        %2345 = vmatpush1.msra.mxu0 0.0
        %2346 = vmatprep.subr.mxu0 0.0
        %2347 = vmatpush1.msra.mxu0 0.0
        %2348 = vmatprep.subr.mxu0 0.0
        %2349 = vmatpush1.msra.mxu0 0.0
        %2350 = vmatprep.subr.mxu0 0.0
        %2351 = vmatpush1.msra.mxu0 0.0
        %2352 = vmatprep.subr.mxu0 0.0
        %2353 = vmatpush1.msra.mxu0 0.0
        %2354 = vmatprep.subr.mxu0 0.0
        %2355 = vmatpush1.msra.mxu0 0.0
        %2356 = vmatprep.subr.mxu0 0.0
        %2357 = vmatpush1.msra.mxu0 0.0
        %2358 = vmatprep.subr.mxu0 0.0
        %2359 = vmatpush1.msra.mxu0 0.0
        %2360 = vmatprep.subr.mxu0 0.0
        %2361 = vmatpush1.msra.mxu0 0.0
        %2362 = vmatprep.subr.mxu0 0.0
        %2363 = vmatpush1.msra.mxu0 0.0
        %2364 = vmatprep.subr.mxu0 0.0
        %2365 = vmatpush1.msra.mxu0 0.0
        %2366 = vmatprep.subr.mxu0 0.0
        %2367 = vmatpush1.msra.mxu0 0.0
        %2368 = vmatprep.subr.mxu0 0.0
        %2369 = vmatpush1.msra.mxu0 0.0
        %2370 = vmatprep.mubr.f32.mxu0 0.0
        %v2371 = vand.u32 %v992, 4294901760
        %2372 = vmatmul.mubr.f32.gmra.mrb[0].mxu0 %v2371
        %v2373 = vpop.f32.mrb[0].mxu0
        %v2374 = vadd.f32 %v2263, %v2373
        %v2375 = vpop.f32.mrb[0].mxu0
        %2376 = vmatprep.mubr.f32.mxu0 0.0
        %v2377 = vand.u32 %v995, 4294901760
        %2378 = vmatmul.mubr.f32.gmra.mrb[0].mxu0 %v2377
        %v2379 = vpop.f32.mrb[0].mxu0
        %v2380 = vadd.f32 %v2273, %v2379
        %v2381 = vpop.f32.mrb[0].mxu0
        %2382 = vmatprep.mubr.f32.mxu0 0.0
        %v2383 = vand.u32 %v998, 4294901760
        %2384 = vmatmul.mubr.f32.gmra.mrb[0].mxu0 %v2383
        %v2385 = vpop.f32.mrb[0].mxu0
        %v2386 = vadd.f32 %v2283, %v2385
        %v2387 = vpop.f32.mrb[0].mxu0
        %2388 = vmatprep.mubr.f32.mxu0 0.0
        %v2389 = vand.u32 %v1001, 4294901760
        %2390 = vmatmul.mubr.f32.gmra.mrb[0].mxu0 %v2389
        %v2391 = vpop.f32.mrb[0].mxu0
        %v2392 = vadd.f32 %v2293, %v2391
        %v2393 = vpop.f32.mrb[0].mxu0
        %2394 = vdwg.mxu0
        %2395 = vmatprep.subr.mxu0 0.0
        %v2396 = vand.u32 %v966, 4294901760
        %v2397 = vsub.f32 %v966, %v2396
        %2398 = vmatpush1.msra.mxu0 %v2397
        %2399 = vmatprep.subr.mxu0 0.0
        %v2400 = vand.u32 %v972, 4294901760
        %v2401 = vsub.f32 %v972, %v2400
        %2402 = vmatpush1.msra.mxu0 %v2401
        %2403 = vmatprep.subr.mxu0 0.0
        %2404 = vmatpush1.msra.mxu0 0.0
        %2405 = vmatprep.subr.mxu0 0.0
        %2406 = vmatpush1.msra.mxu0 0.0
        %2407 = vmatprep.subr.mxu0 0.0
        %2408 = vmatpush1.msra.mxu0 0.0
        %2409 = vmatprep.subr.mxu0 0.0
        %2410 = vmatpush1.msra.mxu0 0.0
        %2411 = vmatprep.subr.mxu0 0.0
        %2412 = vmatpush1.msra.mxu0 0.0
        %2413 = vmatprep.subr.mxu0 0.0
        %2414 = vmatpush1.msra.mxu0 0.0
        %2415 = vmatprep.subr.mxu0 0.0
        %2416 = vmatpush1.msra.mxu0 0.0
        %2417 = vmatprep.subr.mxu0 0.0
        %2418 = vmatpush1.msra.mxu0 0.0
        %2419 = vmatprep.subr.mxu0 0.0
        %2420 = vmatpush1.msra.mxu0 0.0
        %2421 = vmatprep.subr.mxu0 0.0
        %2422 = vmatpush1.msra.mxu0 0.0
        %2423 = vmatprep.subr.mxu0 0.0
        %2424 = vmatpush1.msra.mxu0 0.0
        %2425 = vmatprep.subr.mxu0 0.0
        %2426 = vmatpush1.msra.mxu0 0.0
        %2427 = vmatprep.subr.mxu0 0.0
        %2428 = vmatpush1.msra.mxu0 0.0
        %2429 = vmatprep.subr.mxu0 0.0
        %2430 = vmatpush1.msra.mxu0 0.0
        %2431 = vmatprep.subr.mxu0 0.0
        %2432 = vmatpush1.msra.mxu0 0.0
        %2433 = vmatprep.subr.mxu0 0.0
        %2434 = vmatpush1.msra.mxu0 0.0
        %2435 = vmatprep.subr.mxu0 0.0
        %2436 = vmatpush1.msra.mxu0 0.0
        %2437 = vmatprep.subr.mxu0 0.0
        %2438 = vmatpush1.msra.mxu0 0.0
        %2439 = vmatprep.subr.mxu0 0.0
        %2440 = vmatpush1.msra.mxu0 0.0
        %2441 = vmatprep.subr.mxu0 0.0
        %2442 = vmatpush1.msra.mxu0 0.0
        %2443 = vmatprep.subr.mxu0 0.0
        %2444 = vmatpush1.msra.mxu0 0.0
        %2445 = vmatprep.subr.mxu0 0.0
        %2446 = vmatpush1.msra.mxu0 0.0
        %2447 = vmatprep.subr.mxu0 0.0
        %2448 = vmatpush1.msra.mxu0 0.0
        %2449 = vmatprep.subr.mxu0 0.0
        %2450 = vmatpush1.msra.mxu0 0.0
        %2451 = vmatprep.subr.mxu0 0.0
        %2452 = vmatpush1.msra.mxu0 0.0
        %2453 = vmatprep.subr.mxu0 0.0
        %2454 = vmatpush1.msra.mxu0 0.0
        %2455 = vmatprep.subr.mxu0 0.0
        %2456 = vmatpush1.msra.mxu0 0.0
        %2457 = vmatprep.subr.mxu0 0.0
        %2458 = vmatpush1.msra.mxu0 0.0
        %2459 = vmatprep.subr.mxu0 0.0
        %2460 = vmatpush1.msra.mxu0 0.0
        %2461 = vmatprep.subr.mxu0 0.0
        %2462 = vmatpush1.msra.mxu0 0.0
        %2463 = vmatprep.mubr.f32.mxu0 0.0
        %v2464 = vand.u32 %v992, 4294901760
        %v2465 = vsub.f32 %v992, %v2464
        %2466 = vmatmul.mubr.f32.gmra.mrb[0].mxu0 %v2465
        %v2467 = vpop.f32.mrb[0].mxu0
        %v2468 = vadd.f32 %v2374, %v2467
        %v2469 = vpop.f32.mrb[0].mxu0
        %2470 = vmatprep.mubr.f32.mxu0 0.0
        %v2471 = vand.u32 %v995, 4294901760
        %v2472 = vsub.f32 %v995, %v2471
        %2473 = vmatmul.mubr.f32.gmra.mrb[0].mxu0 %v2472
        %v2474 = vpop.f32.mrb[0].mxu0
        %v2475 = vadd.f32 %v2380, %v2474
        %v2476 = vpop.f32.mrb[0].mxu0
        %2477 = vmatprep.mubr.f32.mxu0 0.0
        %v2478 = vand.u32 %v998, 4294901760
        %v2479 = vsub.f32 %v998, %v2478
        %2480 = vmatmul.mubr.f32.gmra.mrb[0].mxu0 %v2479
        %v2481 = vpop.f32.mrb[0].mxu0
        %v2482 = vadd.f32 %v2386, %v2481
        %v2483 = vpop.f32.mrb[0].mxu0
        %2484 = vmatprep.mubr.f32.mxu0 0.0
        %v2485 = vand.u32 %v1001, 4294901760
        %v2486 = vsub.f32 %v1001, %v2485
        %2487 = vmatmul.mubr.f32.gmra.mrb[0].mxu0 %v2486
        %v2488 = vpop.f32.mrb[0].mxu0
        %v2489 = vadd.f32 %v2392, %v2488
        %v2490 = vpop.f32.mrb[0].mxu0
        %2491 = vdwg.mxu0
        %2492 = vmatprep.subr.mxu0 0.0
        %v2493 = vand.u32 %v966, 4294901760
        %2494 = vmatpush1.msra.mxu0 %v2493
        %2495 = vmatprep.subr.mxu0 0.0
        %v2496 = vand.u32 %v972, 4294901760
        %2497 = vmatpush1.msra.mxu0 %v2496
        %2498 = vmatprep.subr.mxu0 0.0
        %2499 = vmatpush1.msra.mxu0 0.0
        %2500 = vmatprep.subr.mxu0 0.0
        %2501 = vmatpush1.msra.mxu0 0.0
        %2502 = vmatprep.subr.mxu0 0.0
        %2503 = vmatpush1.msra.mxu0 0.0
        %2504 = vmatprep.subr.mxu0 0.0
        %2505 = vmatpush1.msra.mxu0 0.0
        %2506 = vmatprep.subr.mxu0 0.0
        %2507 = vmatpush1.msra.mxu0 0.0
        %2508 = vmatprep.subr.mxu0 0.0
        %2509 = vmatpush1.msra.mxu0 0.0
        %2510 = vmatprep.subr.mxu0 0.0
        %2511 = vmatpush1.msra.mxu0 0.0
        %2512 = vmatprep.subr.mxu0 0.0
        %2513 = vmatpush1.msra.mxu0 0.0
        %2514 = vmatprep.subr.mxu0 0.0
        %2515 = vmatpush1.msra.mxu0 0.0
        %2516 = vmatprep.subr.mxu0 0.0
        %2517 = vmatpush1.msra.mxu0 0.0
        %2518 = vmatprep.subr.mxu0 0.0
        %2519 = vmatpush1.msra.mxu0 0.0
        %2520 = vmatprep.subr.mxu0 0.0
        %2521 = vmatpush1.msra.mxu0 0.0
        %2522 = vmatprep.subr.mxu0 0.0
        %2523 = vmatpush1.msra.mxu0 0.0
        %2524 = vmatprep.subr.mxu0 0.0
        %2525 = vmatpush1.msra.mxu0 0.0
        %2526 = vmatprep.subr.mxu0 0.0
        %2527 = vmatpush1.msra.mxu0 0.0
        %2528 = vmatprep.subr.mxu0 0.0
        %2529 = vmatpush1.msra.mxu0 0.0
        %2530 = vmatprep.subr.mxu0 0.0
        %2531 = vmatpush1.msra.mxu0 0.0
        %2532 = vmatprep.subr.mxu0 0.0
        %2533 = vmatpush1.msra.mxu0 0.0
        %2534 = vmatprep.subr.mxu0 0.0
        %2535 = vmatpush1.msra.mxu0 0.0
        %2536 = vmatprep.subr.mxu0 0.0
        %2537 = vmatpush1.msra.mxu0 0.0
        %2538 = vmatprep.subr.mxu0 0.0
        %2539 = vmatpush1.msra.mxu0 0.0
        %2540 = vmatprep.subr.mxu0 0.0
        %2541 = vmatpush1.msra.mxu0 0.0
        %2542 = vmatprep.subr.mxu0 0.0
        %2543 = vmatpush1.msra.mxu0 0.0
        %2544 = vmatprep.subr.mxu0 0.0
        %2545 = vmatpush1.msra.mxu0 0.0
        %2546 = vmatprep.subr.mxu0 0.0
        %2547 = vmatpush1.msra.mxu0 0.0
        %2548 = vmatprep.subr.mxu0 0.0
        %2549 = vmatpush1.msra.mxu0 0.0
        %2550 = vmatprep.subr.mxu0 0.0
        %2551 = vmatpush1.msra.mxu0 0.0
        %2552 = vmatprep.subr.mxu0 0.0
        %2553 = vmatpush1.msra.mxu0 0.0
        %2554 = vmatprep.subr.mxu0 0.0
        %2555 = vmatpush1.msra.mxu0 0.0
        %2556 = vmatprep.subr.mxu0 0.0
        %2557 = vmatpush1.msra.mxu0 0.0
        %2558 = vmatprep.mubr.f32.mxu0 0.0
        %v2559 = vand.u32 %v992, 4294901760
        %v2560 = vsub.f32 %v992, %v2559
        %v2561 = vand.u32 %v2560, 4294901760
        %2562 = vmatmul.mubr.f32.gmra.mrb[0].mxu0 %v2561
        %v2563 = vpop.f32.mrb[0].mxu0
        %v2564 = vadd.f32 %v2468, %v2563
        %v2565 = vpop.f32.mrb[0].mxu0
        %2566 = vmatprep.mubr.f32.mxu0 0.0
        %v2567 = vand.u32 %v995, 4294901760
        %v2568 = vsub.f32 %v995, %v2567
        %v2569 = vand.u32 %v2568, 4294901760
        %2570 = vmatmul.mubr.f32.gmra.mrb[0].mxu0 %v2569
        %v2571 = vpop.f32.mrb[0].mxu0
        %v2572 = vadd.f32 %v2475, %v2571
        %v2573 = vpop.f32.mrb[0].mxu0
        %2574 = vmatprep.mubr.f32.mxu0 0.0
        %v2575 = vand.u32 %v998, 4294901760
        %v2576 = vsub.f32 %v998, %v2575
        %v2577 = vand.u32 %v2576, 4294901760
        %2578 = vmatmul.mubr.f32.gmra.mrb[0].mxu0 %v2577
        %v2579 = vpop.f32.mrb[0].mxu0
        %v2580 = vadd.f32 %v2482, %v2579
        %v2581 = vpop.f32.mrb[0].mxu0
        %2582 = vmatprep.mubr.f32.mxu0 0.0
        %v2583 = vand.u32 %v1001, 4294901760
        %v2584 = vsub.f32 %v1001, %v2583
        %v2585 = vand.u32 %v2584, 4294901760
        %2586 = vmatmul.mubr.f32.gmra.mrb[0].mxu0 %v2585
        %v2587 = vpop.f32.mrb[0].mxu0
        %v2588 = vadd.f32 %v2489, %v2587
        %v2589 = vpop.f32.mrb[0].mxu0
        %2590 = vdwg.mxu0
        %2591 = vmatprep.subr.mxu0 0.0
        %v2592 = vand.u32 %v966, 4294901760
        %v2593 = vsub.f32 %v966, %v2592
        %v2594 = vand.u32 %v2593, 4294901760
        %2595 = vmatpush1.msra.mxu0 %v2594
        %2596 = vmatprep.subr.mxu0 0.0
        %v2597 = vand.u32 %v972, 4294901760
        %v2598 = vsub.f32 %v972, %v2597
        %v2599 = vand.u32 %v2598, 4294901760
        %2600 = vmatpush1.msra.mxu0 %v2599
        %2601 = vmatprep.subr.mxu0 0.0
        %2602 = vmatpush1.msra.mxu0 0.0
        %2603 = vmatprep.subr.mxu0 0.0
        %2604 = vmatpush1.msra.mxu0 0.0
        %2605 = vmatprep.subr.mxu0 0.0
        %2606 = vmatpush1.msra.mxu0 0.0
        %2607 = vmatprep.subr.mxu0 0.0
        %2608 = vmatpush1.msra.mxu0 0.0
        %2609 = vmatprep.subr.mxu0 0.0
        %2610 = vmatpush1.msra.mxu0 0.0
        %2611 = vmatprep.subr.mxu0 0.0
        %2612 = vmatpush1.msra.mxu0 0.0
        %2613 = vmatprep.subr.mxu0 0.0
        %2614 = vmatpush1.msra.mxu0 0.0
        %2615 = vmatprep.subr.mxu0 0.0
        %2616 = vmatpush1.msra.mxu0 0.0
        %2617 = vmatprep.subr.mxu0 0.0
        %2618 = vmatpush1.msra.mxu0 0.0
        %2619 = vmatprep.subr.mxu0 0.0
        %2620 = vmatpush1.msra.mxu0 0.0
        %2621 = vmatprep.subr.mxu0 0.0
        %2622 = vmatpush1.msra.mxu0 0.0
        %2623 = vmatprep.subr.mxu0 0.0
        %2624 = vmatpush1.msra.mxu0 0.0
        %2625 = vmatprep.subr.mxu0 0.0
        %2626 = vmatpush1.msra.mxu0 0.0
        %2627 = vmatprep.subr.mxu0 0.0
        %2628 = vmatpush1.msra.mxu0 0.0
        %2629 = vmatprep.subr.mxu0 0.0
        %2630 = vmatpush1.msra.mxu0 0.0
        %2631 = vmatprep.subr.mxu0 0.0
        %2632 = vmatpush1.msra.mxu0 0.0
        %2633 = vmatprep.subr.mxu0 0.0
        %2634 = vmatpush1.msra.mxu0 0.0
        %2635 = vmatprep.subr.mxu0 0.0
        %2636 = vmatpush1.msra.mxu0 0.0
        %2637 = vmatprep.subr.mxu0 0.0
        %2638 = vmatpush1.msra.mxu0 0.0
        %2639 = vmatprep.subr.mxu0 0.0
        %2640 = vmatpush1.msra.mxu0 0.0
        %2641 = vmatprep.subr.mxu0 0.0
        %2642 = vmatpush1.msra.mxu0 0.0
        %2643 = vmatprep.subr.mxu0 0.0
        %2644 = vmatpush1.msra.mxu0 0.0
        %2645 = vmatprep.subr.mxu0 0.0
        %2646 = vmatpush1.msra.mxu0 0.0
        %2647 = vmatprep.subr.mxu0 0.0
        %2648 = vmatpush1.msra.mxu0 0.0
        %2649 = vmatprep.subr.mxu0 0.0
        %2650 = vmatpush1.msra.mxu0 0.0
        %2651 = vmatprep.subr.mxu0 0.0
        %2652 = vmatpush1.msra.mxu0 0.0
        %2653 = vmatprep.subr.mxu0 0.0
        %2654 = vmatpush1.msra.mxu0 0.0
        %2655 = vmatprep.subr.mxu0 0.0
        %2656 = vmatpush1.msra.mxu0 0.0
        %2657 = vmatprep.subr.mxu0 0.0
        %2658 = vmatpush1.msra.mxu0 0.0
        %2659 = vmatprep.subr.mxu0 0.0
        %2660 = vmatpush1.msra.mxu0 0.0
        %2661 = vmatprep.mubr.f32.mxu0 0.0
        %v2662 = vand.u32 %v992, 4294901760
        %2663 = vmatmul.mubr.f32.gmra.mrb[0].mxu0 %v2662
        %v2664 = vpop.f32.mrb[0].mxu0
        %v2665 = vadd.f32 %v2564, %v2664
        %v2666 = vpop.f32.mrb[0].mxu0
        %2667 = vmatprep.mubr.f32.mxu0 0.0
        %v2668 = vand.u32 %v995, 4294901760
        %2669 = vmatmul.mubr.f32.gmra.mrb[0].mxu0 %v2668
        %v2670 = vpop.f32.mrb[0].mxu0
        %v2671 = vadd.f32 %v2572, %v2670
        %v2672 = vpop.f32.mrb[0].mxu0
        %2673 = vmatprep.mubr.f32.mxu0 0.0
        %v2674 = vand.u32 %v998, 4294901760
        %2675 = vmatmul.mubr.f32.gmra.mrb[0].mxu0 %v2674
        %v2676 = vpop.f32.mrb[0].mxu0
        %v2677 = vadd.f32 %v2580, %v2676
        %v2678 = vpop.f32.mrb[0].mxu0
        %2679 = vmatprep.mubr.f32.mxu0 0.0
        %v2680 = vand.u32 %v1001, 4294901760
        %2681 = vmatmul.mubr.f32.gmra.mrb[0].mxu0 %v2680
        %v2682 = vpop.f32.mrb[0].mxu0
        %v2683 = vadd.f32 %v2588, %v2682
        %v2684 = vpop.f32.mrb[0].mxu0
        %2685 = vdwg.mxu0
        %2686 = vmatprep.subr.mxu0 0.0
        %v2687 = vand.u32 %v966, 4294901760
        %2688 = vmatpush1.msra.mxu0 %v2687
        %2689 = vmatprep.subr.mxu0 0.0
        %v2690 = vand.u32 %v972, 4294901760
        %2691 = vmatpush1.msra.mxu0 %v2690
        %2692 = vmatprep.subr.mxu0 0.0
        %2693 = vmatpush1.msra.mxu0 0.0
        %2694 = vmatprep.subr.mxu0 0.0
        %2695 = vmatpush1.msra.mxu0 0.0
        %2696 = vmatprep.subr.mxu0 0.0
        %2697 = vmatpush1.msra.mxu0 0.0
        %2698 = vmatprep.subr.mxu0 0.0
        %2699 = vmatpush1.msra.mxu0 0.0
        %2700 = vmatprep.subr.mxu0 0.0
        %2701 = vmatpush1.msra.mxu0 0.0
        %2702 = vmatprep.subr.mxu0 0.0
        %2703 = vmatpush1.msra.mxu0 0.0
        %2704 = vmatprep.subr.mxu0 0.0
        %2705 = vmatpush1.msra.mxu0 0.0
        %2706 = vmatprep.subr.mxu0 0.0
        %2707 = vmatpush1.msra.mxu0 0.0
        %2708 = vmatprep.subr.mxu0 0.0
        %2709 = vmatpush1.msra.mxu0 0.0
        %2710 = vmatprep.subr.mxu0 0.0
        %2711 = vmatpush1.msra.mxu0 0.0
        %2712 = vmatprep.subr.mxu0 0.0
        %2713 = vmatpush1.msra.mxu0 0.0
        %2714 = vmatprep.subr.mxu0 0.0
        %2715 = vmatpush1.msra.mxu0 0.0
        %2716 = vmatprep.subr.mxu0 0.0
        %2717 = vmatpush1.msra.mxu0 0.0
        %2718 = vmatprep.subr.mxu0 0.0
        %2719 = vmatpush1.msra.mxu0 0.0
        %2720 = vmatprep.subr.mxu0 0.0
        %2721 = vmatpush1.msra.mxu0 0.0
        %2722 = vmatprep.subr.mxu0 0.0
        %2723 = vmatpush1.msra.mxu0 0.0
        %2724 = vmatprep.subr.mxu0 0.0
        %2725 = vmatpush1.msra.mxu0 0.0
        %2726 = vmatprep.subr.mxu0 0.0
        %2727 = vmatpush1.msra.mxu0 0.0
        %2728 = vmatprep.subr.mxu0 0.0
        %2729 = vmatpush1.msra.mxu0 0.0
        %2730 = vmatprep.subr.mxu0 0.0
        %2731 = vmatpush1.msra.mxu0 0.0
        %2732 = vmatprep.subr.mxu0 0.0
        %2733 = vmatpush1.msra.mxu0 0.0
        %2734 = vmatprep.subr.mxu0 0.0
        %2735 = vmatpush1.msra.mxu0 0.0
        %2736 = vmatprep.subr.mxu0 0.0
        %2737 = vmatpush1.msra.mxu0 0.0
        %2738 = vmatprep.subr.mxu0 0.0
        %2739 = vmatpush1.msra.mxu0 0.0
        %2740 = vmatprep.subr.mxu0 0.0
        %2741 = vmatpush1.msra.mxu0 0.0
        %2742 = vmatprep.subr.mxu0 0.0
        %2743 = vmatpush1.msra.mxu0 0.0
        %2744 = vmatprep.subr.mxu0 0.0
        %2745 = vmatpush1.msra.mxu0 0.0
        %2746 = vmatprep.subr.mxu0 0.0
        %2747 = vmatpush1.msra.mxu0 0.0
        %2748 = vmatprep.subr.mxu0 0.0
        %2749 = vmatpush1.msra.mxu0 0.0
        %2750 = vmatprep.subr.mxu0 0.0
        %2751 = vmatpush1.msra.mxu0 0.0
        %2752 = vmatprep.mubr.f32.mxu0 0.0
        %v2753 = vand.u32 %v992, 4294901760
        %2754 = vmatmul.mubr.f32.gmra.mrb[0].mxu0 %v2753
        %v2755 = vpop.f32.mrb[0].mxu0
        %v2756 = vadd.f32 %v2665, %v2755
        %v2757 = vpop.f32.mrb[0].mxu0
        %2758 = vmatprep.mubr.f32.mxu0 0.0
        %v2759 = vand.u32 %v995, 4294901760
        %2760 = vmatmul.mubr.f32.gmra.mrb[0].mxu0 %v2759
        %v2761 = vpop.f32.mrb[0].mxu0
        %v2762 = vadd.f32 %v2671, %v2761
        %v2763 = vpop.f32.mrb[0].mxu0
        %2764 = vmatprep.mubr.f32.mxu0 0.0
        %v2765 = vand.u32 %v998, 4294901760
        %2766 = vmatmul.mubr.f32.gmra.mrb[0].mxu0 %v2765
        %v2767 = vpop.f32.mrb[0].mxu0
        %v2768 = vadd.f32 %v2677, %v2767
        %v2769 = vpop.f32.mrb[0].mxu0
        %2770 = vmatprep.mubr.f32.mxu0 0.0
        %v2771 = vand.u32 %v1001, 4294901760
        %2772 = vmatmul.mubr.f32.gmra.mrb[0].mxu0 %v2771
        %v2773 = vpop.f32.mrb[0].mxu0
        %v2774 = vadd.f32 %v2683, %v2773
        %v2775 = vpop.f32.mrb[0].mxu0
        %2776 = vdwg.mxu0
        %s2777 = scalar_lea.vmem %s189, 64 [#allocation5]
        %2778 = vst.msk [vmem:[%s2777] sm:$0xff] %vm1591, %v2756
        %2779 = vst.msk [vmem:[%s2777 + $0x8] sm:$0xff] %vm1591, %v2762
        %2780 = vst.msk [vmem:[%s2777 + $0x10] sm:$0xff] %vm1591, %v2768
        %2781 = vst.msk [vmem:[%s2777 + $0x18] sm:$0xff] %vm1591, %v2774
        %2782 = vmatprep.subr.mxu0 0.0
        %v2783 = vand.u32 %v978, 4294901760
        %2784 = vmatpush1.msra.mxu0 %v2783
        %2785 = vmatprep.subr.mxu0 0.0
        %v2786 = vand.u32 %v984, 4294901760
        %2787 = vmatpush1.msra.mxu0 %v2786
        %2788 = vmatprep.subr.mxu0 0.0
        %2789 = vmatpush1.msra.mxu0 0.0
        %2790 = vmatprep.subr.mxu0 0.0
        %2791 = vmatpush1.msra.mxu0 0.0
        %2792 = vmatprep.subr.mxu0 0.0
        %2793 = vmatpush1.msra.mxu0 0.0
        %2794 = vmatprep.subr.mxu0 0.0
        %2795 = vmatpush1.msra.mxu0 0.0
        %2796 = vmatprep.subr.mxu0 0.0
        %2797 = vmatpush1.msra.mxu0 0.0
        %2798 = vmatprep.subr.mxu0 0.0
        %2799 = vmatpush1.msra.mxu0 0.0
        %2800 = vmatprep.subr.mxu0 0.0
        %2801 = vmatpush1.msra.mxu0 0.0
        %2802 = vmatprep.subr.mxu0 0.0
        %2803 = vmatpush1.msra.mxu0 0.0
        %2804 = vmatprep.subr.mxu0 0.0
        %2805 = vmatpush1.msra.mxu0 0.0
        %2806 = vmatprep.subr.mxu0 0.0
        %2807 = vmatpush1.msra.mxu0 0.0
        %2808 = vmatprep.subr.mxu0 0.0
        %2809 = vmatpush1.msra.mxu0 0.0
        %2810 = vmatprep.subr.mxu0 0.0
        %2811 = vmatpush1.msra.mxu0 0.0
        %2812 = vmatprep.subr.mxu0 0.0
        %2813 = vmatpush1.msra.mxu0 0.0
        %2814 = vmatprep.subr.mxu0 0.0
        %2815 = vmatpush1.msra.mxu0 0.0
        %2816 = vmatprep.subr.mxu0 0.0
        %2817 = vmatpush1.msra.mxu0 0.0
        %2818 = vmatprep.subr.mxu0 0.0
        %2819 = vmatpush1.msra.mxu0 0.0
        %2820 = vmatprep.subr.mxu0 0.0
        %2821 = vmatpush1.msra.mxu0 0.0
        %2822 = vmatprep.subr.mxu0 0.0
        %2823 = vmatpush1.msra.mxu0 0.0
        %2824 = vmatprep.subr.mxu0 0.0
        %2825 = vmatpush1.msra.mxu0 0.0
        %2826 = vmatprep.subr.mxu0 0.0
        %2827 = vmatpush1.msra.mxu0 0.0
        %2828 = vmatprep.subr.mxu0 0.0
        %2829 = vmatpush1.msra.mxu0 0.0
        %2830 = vmatprep.subr.mxu0 0.0
        %2831 = vmatpush1.msra.mxu0 0.0
        %2832 = vmatprep.subr.mxu0 0.0
        %2833 = vmatpush1.msra.mxu0 0.0
        %2834 = vmatprep.subr.mxu0 0.0
        %2835 = vmatpush1.msra.mxu0 0.0
        %2836 = vmatprep.subr.mxu0 0.0
        %2837 = vmatpush1.msra.mxu0 0.0
        %2838 = vmatprep.subr.mxu0 0.0
        %2839 = vmatpush1.msra.mxu0 0.0
        %2840 = vmatprep.subr.mxu0 0.0
        %2841 = vmatpush1.msra.mxu0 0.0
        %2842 = vmatprep.subr.mxu0 0.0
        %2843 = vmatpush1.msra.mxu0 0.0
        %2844 = vmatprep.subr.mxu0 0.0
        %2845 = vmatpush1.msra.mxu0 0.0
        %2846 = vmatprep.subr.mxu0 0.0
        %2847 = vmatpush1.msra.mxu0 0.0
        %2848 = vmatprep.mubr.f32.mxu0 0.0
        %v2849 = vand.u32 %v992, 4294901760
        %v2850 = vsub.f32 %v992, %v2849
        %v2851 = vand.u32 %v2850, 4294901760
        %v2852 = vsub.f32 %v2850, %v2851
        %v2853 = vand.u32 %v2852, 4294901760
        %2854 = vmatmul.mubr.f32.gmra.mrb[0].mxu0 %v2853
        %v2855 = vpop.f32.mrb[0].mxu0
        %v2856 = vadd.f32 0.0, %v2855
        %v2857 = vpop.f32.mrb[0].mxu0
        %2858 = vmatprep.mubr.f32.mxu0 0.0
        %v2859 = vand.u32 %v995, 4294901760
        %v2860 = vsub.f32 %v995, %v2859
        %v2861 = vand.u32 %v2860, 4294901760
        %v2862 = vsub.f32 %v2860, %v2861
        %v2863 = vand.u32 %v2862, 4294901760
        %2864 = vmatmul.mubr.f32.gmra.mrb[0].mxu0 %v2863
        %v2865 = vpop.f32.mrb[0].mxu0
        %v2866 = vadd.f32 0.0, %v2865
        %v2867 = vpop.f32.mrb[0].mxu0
        %2868 = vmatprep.mubr.f32.mxu0 0.0
        %v2869 = vand.u32 %v998, 4294901760
        %v2870 = vsub.f32 %v998, %v2869
        %v2871 = vand.u32 %v2870, 4294901760
        %v2872 = vsub.f32 %v2870, %v2871
        %v2873 = vand.u32 %v2872, 4294901760
        %2874 = vmatmul.mubr.f32.gmra.mrb[0].mxu0 %v2873
        %v2875 = vpop.f32.mrb[0].mxu0
        %v2876 = vadd.f32 0.0, %v2875
        %v2877 = vpop.f32.mrb[0].mxu0
        %2878 = vmatprep.mubr.f32.mxu0 0.0
        %v2879 = vand.u32 %v1001, 4294901760
        %v2880 = vsub.f32 %v1001, %v2879
        %v2881 = vand.u32 %v2880, 4294901760
        %v2882 = vsub.f32 %v2880, %v2881
        %v2883 = vand.u32 %v2882, 4294901760
        %2884 = vmatmul.mubr.f32.gmra.mrb[0].mxu0 %v2883
        %v2885 = vpop.f32.mrb[0].mxu0
        %v2886 = vadd.f32 0.0, %v2885
        %v2887 = vpop.f32.mrb[0].mxu0
        %2888 = vdwg.mxu0
        %2889 = vmatprep.subr.mxu0 0.0
        %v2890 = vand.u32 %v978, 4294901760
        %v2891 = vsub.f32 %v978, %v2890
        %v2892 = vand.u32 %v2891, 4294901760
        %v2893 = vsub.f32 %v2891, %v2892
        %v2894 = vand.u32 %v2893, 4294901760
        %2895 = vmatpush1.msra.mxu0 %v2894
        %2896 = vmatprep.subr.mxu0 0.0
        %v2897 = vand.u32 %v984, 4294901760
        %v2898 = vsub.f32 %v984, %v2897
        %v2899 = vand.u32 %v2898, 4294901760
        %v2900 = vsub.f32 %v2898, %v2899
        %v2901 = vand.u32 %v2900, 4294901760
        %2902 = vmatpush1.msra.mxu0 %v2901
        %2903 = vmatprep.subr.mxu0 0.0
        %2904 = vmatpush1.msra.mxu0 0.0
        %2905 = vmatprep.subr.mxu0 0.0
        %2906 = vmatpush1.msra.mxu0 0.0
        %2907 = vmatprep.subr.mxu0 0.0
        %2908 = vmatpush1.msra.mxu0 0.0
        %2909 = vmatprep.subr.mxu0 0.0
        %2910 = vmatpush1.msra.mxu0 0.0
        %2911 = vmatprep.subr.mxu0 0.0
        %2912 = vmatpush1.msra.mxu0 0.0
        %2913 = vmatprep.subr.mxu0 0.0
        %2914 = vmatpush1.msra.mxu0 0.0
        %2915 = vmatprep.subr.mxu0 0.0
        %2916 = vmatpush1.msra.mxu0 0.0
        %2917 = vmatprep.subr.mxu0 0.0
        %2918 = vmatpush1.msra.mxu0 0.0
        %2919 = vmatprep.subr.mxu0 0.0
        %2920 = vmatpush1.msra.mxu0 0.0
        %2921 = vmatprep.subr.mxu0 0.0
        %2922 = vmatpush1.msra.mxu0 0.0
        %2923 = vmatprep.subr.mxu0 0.0
        %2924 = vmatpush1.msra.mxu0 0.0
        %2925 = vmatprep.subr.mxu0 0.0
        %2926 = vmatpush1.msra.mxu0 0.0
        %2927 = vmatprep.subr.mxu0 0.0
        %2928 = vmatpush1.msra.mxu0 0.0
        %2929 = vmatprep.subr.mxu0 0.0
        %2930 = vmatpush1.msra.mxu0 0.0
        %2931 = vmatprep.subr.mxu0 0.0
        %2932 = vmatpush1.msra.mxu0 0.0
        %2933 = vmatprep.subr.mxu0 0.0
        %2934 = vmatpush1.msra.mxu0 0.0
        %2935 = vmatprep.subr.mxu0 0.0
        %2936 = vmatpush1.msra.mxu0 0.0
        %2937 = vmatprep.subr.mxu0 0.0
        %2938 = vmatpush1.msra.mxu0 0.0
        %2939 = vmatprep.subr.mxu0 0.0
        %2940 = vmatpush1.msra.mxu0 0.0
        %2941 = vmatprep.subr.mxu0 0.0
        %2942 = vmatpush1.msra.mxu0 0.0
        %2943 = vmatprep.subr.mxu0 0.0
        %2944 = vmatpush1.msra.mxu0 0.0
        %2945 = vmatprep.subr.mxu0 0.0
        %2946 = vmatpush1.msra.mxu0 0.0
        %2947 = vmatprep.subr.mxu0 0.0
        %2948 = vmatpush1.msra.mxu0 0.0
        %2949 = vmatprep.subr.mxu0 0.0
        %2950 = vmatpush1.msra.mxu0 0.0
        %2951 = vmatprep.subr.mxu0 0.0
        %2952 = vmatpush1.msra.mxu0 0.0
        %2953 = vmatprep.subr.mxu0 0.0
        %2954 = vmatpush1.msra.mxu0 0.0
        %2955 = vmatprep.subr.mxu0 0.0
        %2956 = vmatpush1.msra.mxu0 0.0
        %2957 = vmatprep.subr.mxu0 0.0
        %2958 = vmatpush1.msra.mxu0 0.0
        %2959 = vmatprep.subr.mxu0 0.0
        %2960 = vmatpush1.msra.mxu0 0.0
        %2961 = vmatprep.subr.mxu0 0.0
        %2962 = vmatpush1.msra.mxu0 0.0
        %2963 = vmatprep.mubr.f32.mxu0 0.0
        %v2964 = vand.u32 %v992, 4294901760
        %2965 = vmatmul.mubr.f32.gmra.mrb[0].mxu0 %v2964
        %v2966 = vpop.f32.mrb[0].mxu0
        %v2967 = vadd.f32 %v2856, %v2966
        %v2968 = vpop.f32.mrb[0].mxu0
        %2969 = vmatprep.mubr.f32.mxu0 0.0
        %v2970 = vand.u32 %v995, 4294901760
        %2971 = vmatmul.mubr.f32.gmra.mrb[0].mxu0 %v2970
        %v2972 = vpop.f32.mrb[0].mxu0
        %v2973 = vadd.f32 %v2866, %v2972
        %v2974 = vpop.f32.mrb[0].mxu0
        %2975 = vmatprep.mubr.f32.mxu0 0.0
        %v2976 = vand.u32 %v998, 4294901760
        %2977 = vmatmul.mubr.f32.gmra.mrb[0].mxu0 %v2976
        %v2978 = vpop.f32.mrb[0].mxu0
        %v2979 = vadd.f32 %v2876, %v2978
        %v2980 = vpop.f32.mrb[0].mxu0
        %2981 = vmatprep.mubr.f32.mxu0 0.0
        %v2982 = vand.u32 %v1001, 4294901760
        %2983 = vmatmul.mubr.f32.gmra.mrb[0].mxu0 %v2982
        %v2984 = vpop.f32.mrb[0].mxu0
        %v2985 = vadd.f32 %v2886, %v2984
        %v2986 = vpop.f32.mrb[0].mxu0
        %2987 = vdwg.mxu0
        %2988 = vmatprep.subr.mxu0 0.0
        %v2989 = vand.u32 %v978, 4294901760
        %v2990 = vsub.f32 %v978, %v2989
        %2991 = vmatpush1.msra.mxu0 %v2990
        %2992 = vmatprep.subr.mxu0 0.0
        %v2993 = vand.u32 %v984, 4294901760
        %v2994 = vsub.f32 %v984, %v2993
        %2995 = vmatpush1.msra.mxu0 %v2994
        %2996 = vmatprep.subr.mxu0 0.0
        %2997 = vmatpush1.msra.mxu0 0.0
        %2998 = vmatprep.subr.mxu0 0.0
        %2999 = vmatpush1.msra.mxu0 0.0
        %3000 = vmatprep.subr.mxu0 0.0
        %3001 = vmatpush1.msra.mxu0 0.0
        %3002 = vmatprep.subr.mxu0 0.0
        %3003 = vmatpush1.msra.mxu0 0.0
        %3004 = vmatprep.subr.mxu0 0.0
        %3005 = vmatpush1.msra.mxu0 0.0
        %3006 = vmatprep.subr.mxu0 0.0
        %3007 = vmatpush1.msra.mxu0 0.0
        %3008 = vmatprep.subr.mxu0 0.0
        %3009 = vmatpush1.msra.mxu0 0.0
        %3010 = vmatprep.subr.mxu0 0.0
        %3011 = vmatpush1.msra.mxu0 0.0
        %3012 = vmatprep.subr.mxu0 0.0
        %3013 = vmatpush1.msra.mxu0 0.0
        %3014 = vmatprep.subr.mxu0 0.0
        %3015 = vmatpush1.msra.mxu0 0.0
        %3016 = vmatprep.subr.mxu0 0.0
        %3017 = vmatpush1.msra.mxu0 0.0
        %3018 = vmatprep.subr.mxu0 0.0
        %3019 = vmatpush1.msra.mxu0 0.0
        %3020 = vmatprep.subr.mxu0 0.0
        %3021 = vmatpush1.msra.mxu0 0.0
        %3022 = vmatprep.subr.mxu0 0.0
        %3023 = vmatpush1.msra.mxu0 0.0
        %3024 = vmatprep.subr.mxu0 0.0
        %3025 = vmatpush1.msra.mxu0 0.0
        %3026 = vmatprep.subr.mxu0 0.0
        %3027 = vmatpush1.msra.mxu0 0.0
        %3028 = vmatprep.subr.mxu0 0.0
        %3029 = vmatpush1.msra.mxu0 0.0
        %3030 = vmatprep.subr.mxu0 0.0
        %3031 = vmatpush1.msra.mxu0 0.0
        %3032 = vmatprep.subr.mxu0 0.0
        %3033 = vmatpush1.msra.mxu0 0.0
        %3034 = vmatprep.subr.mxu0 0.0
        %3035 = vmatpush1.msra.mxu0 0.0
        %3036 = vmatprep.subr.mxu0 0.0
        %3037 = vmatpush1.msra.mxu0 0.0
        %3038 = vmatprep.subr.mxu0 0.0
        %3039 = vmatpush1.msra.mxu0 0.0
        %3040 = vmatprep.subr.mxu0 0.0
        %3041 = vmatpush1.msra.mxu0 0.0
        %3042 = vmatprep.subr.mxu0 0.0
        %3043 = vmatpush1.msra.mxu0 0.0
        %3044 = vmatprep.subr.mxu0 0.0
        %3045 = vmatpush1.msra.mxu0 0.0
        %3046 = vmatprep.subr.mxu0 0.0
        %3047 = vmatpush1.msra.mxu0 0.0
        %3048 = vmatprep.subr.mxu0 0.0
        %3049 = vmatpush1.msra.mxu0 0.0
        %3050 = vmatprep.subr.mxu0 0.0
        %3051 = vmatpush1.msra.mxu0 0.0
        %3052 = vmatprep.subr.mxu0 0.0
        %3053 = vmatpush1.msra.mxu0 0.0
        %3054 = vmatprep.subr.mxu0 0.0
        %3055 = vmatpush1.msra.mxu0 0.0
        %3056 = vmatprep.mubr.f32.mxu0 0.0
        %v3057 = vand.u32 %v992, 4294901760
        %v3058 = vsub.f32 %v992, %v3057
        %3059 = vmatmul.mubr.f32.gmra.mrb[0].mxu0 %v3058
        %v3060 = vpop.f32.mrb[0].mxu0
        %v3061 = vadd.f32 %v2967, %v3060
        %v3062 = vpop.f32.mrb[0].mxu0
        %3063 = vmatprep.mubr.f32.mxu0 0.0
        %v3064 = vand.u32 %v995, 4294901760
        %v3065 = vsub.f32 %v995, %v3064
        %3066 = vmatmul.mubr.f32.gmra.mrb[0].mxu0 %v3065
        %v3067 = vpop.f32.mrb[0].mxu0
        %v3068 = vadd.f32 %v2973, %v3067
        %v3069 = vpop.f32.mrb[0].mxu0
        %3070 = vmatprep.mubr.f32.mxu0 0.0
        %v3071 = vand.u32 %v998, 4294901760
        %v3072 = vsub.f32 %v998, %v3071
        %3073 = vmatmul.mubr.f32.gmra.mrb[0].mxu0 %v3072
        %v3074 = vpop.f32.mrb[0].mxu0
        %v3075 = vadd.f32 %v2979, %v3074
        %v3076 = vpop.f32.mrb[0].mxu0
        %3077 = vmatprep.mubr.f32.mxu0 0.0
        %v3078 = vand.u32 %v1001, 4294901760
        %v3079 = vsub.f32 %v1001, %v3078
        %3080 = vmatmul.mubr.f32.gmra.mrb[0].mxu0 %v3079
        %v3081 = vpop.f32.mrb[0].mxu0
        %v3082 = vadd.f32 %v2985, %v3081
        %v3083 = vpop.f32.mrb[0].mxu0
        %3084 = vdwg.mxu0
        %3085 = vmatprep.subr.mxu0 0.0
        %v3086 = vand.u32 %v978, 4294901760
        %3087 = vmatpush1.msra.mxu0 %v3086
        %3088 = vmatprep.subr.mxu0 0.0
        %v3089 = vand.u32 %v984, 4294901760
        %3090 = vmatpush1.msra.mxu0 %v3089
        %3091 = vmatprep.subr.mxu0 0.0
        %3092 = vmatpush1.msra.mxu0 0.0
        %3093 = vmatprep.subr.mxu0 0.0
        %3094 = vmatpush1.msra.mxu0 0.0
        %3095 = vmatprep.subr.mxu0 0.0
        %3096 = vmatpush1.msra.mxu0 0.0
        %3097 = vmatprep.subr.mxu0 0.0
        %3098 = vmatpush1.msra.mxu0 0.0
        %3099 = vmatprep.subr.mxu0 0.0
        %3100 = vmatpush1.msra.mxu0 0.0
        %3101 = vmatprep.subr.mxu0 0.0
        %3102 = vmatpush1.msra.mxu0 0.0
        %3103 = vmatprep.subr.mxu0 0.0
        %3104 = vmatpush1.msra.mxu0 0.0
        %3105 = vmatprep.subr.mxu0 0.0
        %3106 = vmatpush1.msra.mxu0 0.0
        %3107 = vmatprep.subr.mxu0 0.0
        %3108 = vmatpush1.msra.mxu0 0.0
        %3109 = vmatprep.subr.mxu0 0.0
        %3110 = vmatpush1.msra.mxu0 0.0
        %3111 = vmatprep.subr.mxu0 0.0
        %3112 = vmatpush1.msra.mxu0 0.0
        %3113 = vmatprep.subr.mxu0 0.0
        %3114 = vmatpush1.msra.mxu0 0.0
        %3115 = vmatprep.subr.mxu0 0.0
        %3116 = vmatpush1.msra.mxu0 0.0
        %3117 = vmatprep.subr.mxu0 0.0
        %3118 = vmatpush1.msra.mxu0 0.0
        %3119 = vmatprep.subr.mxu0 0.0
        %3120 = vmatpush1.msra.mxu0 0.0
        %3121 = vmatprep.subr.mxu0 0.0
        %3122 = vmatpush1.msra.mxu0 0.0
        %3123 = vmatprep.subr.mxu0 0.0
        %3124 = vmatpush1.msra.mxu0 0.0
        %3125 = vmatprep.subr.mxu0 0.0
        %3126 = vmatpush1.msra.mxu0 0.0
        %3127 = vmatprep.subr.mxu0 0.0
        %3128 = vmatpush1.msra.mxu0 0.0
        %3129 = vmatprep.subr.mxu0 0.0
        %3130 = vmatpush1.msra.mxu0 0.0
        %3131 = vmatprep.subr.mxu0 0.0
        %3132 = vmatpush1.msra.mxu0 0.0
        %3133 = vmatprep.subr.mxu0 0.0
        %3134 = vmatpush1.msra.mxu0 0.0
        %3135 = vmatprep.subr.mxu0 0.0
        %3136 = vmatpush1.msra.mxu0 0.0
        %3137 = vmatprep.subr.mxu0 0.0
        %3138 = vmatpush1.msra.mxu0 0.0
        %3139 = vmatprep.subr.mxu0 0.0
        %3140 = vmatpush1.msra.mxu0 0.0
        %3141 = vmatprep.subr.mxu0 0.0
        %3142 = vmatpush1.msra.mxu0 0.0
        %3143 = vmatprep.subr.mxu0 0.0
        %3144 = vmatpush1.msra.mxu0 0.0
        %3145 = vmatprep.subr.mxu0 0.0
        %3146 = vmatpush1.msra.mxu0 0.0
        %3147 = vmatprep.subr.mxu0 0.0
        %3148 = vmatpush1.msra.mxu0 0.0
        %3149 = vmatprep.subr.mxu0 0.0
        %3150 = vmatpush1.msra.mxu0 0.0
        %3151 = vmatprep.mubr.f32.mxu0 0.0
        %v3152 = vand.u32 %v992, 4294901760
        %v3153 = vsub.f32 %v992, %v3152
        %v3154 = vand.u32 %v3153, 4294901760
        %3155 = vmatmul.mubr.f32.gmra.mrb[0].mxu0 %v3154
        %v3156 = vpop.f32.mrb[0].mxu0
        %v3157 = vadd.f32 %v3061, %v3156
        %v3158 = vpop.f32.mrb[0].mxu0
        %3159 = vmatprep.mubr.f32.mxu0 0.0
        %v3160 = vand.u32 %v995, 4294901760
        %v3161 = vsub.f32 %v995, %v3160
        %v3162 = vand.u32 %v3161, 4294901760
        %3163 = vmatmul.mubr.f32.gmra.mrb[0].mxu0 %v3162
        %v3164 = vpop.f32.mrb[0].mxu0
        %v3165 = vadd.f32 %v3068, %v3164
        %v3166 = vpop.f32.mrb[0].mxu0
        %3167 = vmatprep.mubr.f32.mxu0 0.0
        %v3168 = vand.u32 %v998, 4294901760
        %v3169 = vsub.f32 %v998, %v3168
        %v3170 = vand.u32 %v3169, 4294901760
        %3171 = vmatmul.mubr.f32.gmra.mrb[0].mxu0 %v3170
        %v3172 = vpop.f32.mrb[0].mxu0
        %v3173 = vadd.f32 %v3075, %v3172
        %v3174 = vpop.f32.mrb[0].mxu0
        %3175 = vmatprep.mubr.f32.mxu0 0.0
        %v3176 = vand.u32 %v1001, 4294901760
        %v3177 = vsub.f32 %v1001, %v3176
        %v3178 = vand.u32 %v3177, 4294901760
        %3179 = vmatmul.mubr.f32.gmra.mrb[0].mxu0 %v3178
        %v3180 = vpop.f32.mrb[0].mxu0
        %v3181 = vadd.f32 %v3082, %v3180
        %v3182 = vpop.f32.mrb[0].mxu0
        %3183 = vdwg.mxu0
        %3184 = vmatprep.subr.mxu0 0.0
        %v3185 = vand.u32 %v978, 4294901760
        %v3186 = vsub.f32 %v978, %v3185
        %v3187 = vand.u32 %v3186, 4294901760
        %3188 = vmatpush1.msra.mxu0 %v3187
        %3189 = vmatprep.subr.mxu0 0.0
        %v3190 = vand.u32 %v984, 4294901760
        %v3191 = vsub.f32 %v984, %v3190
        %v3192 = vand.u32 %v3191, 4294901760
        %3193 = vmatpush1.msra.mxu0 %v3192
        %3194 = vmatprep.subr.mxu0 0.0
        %3195 = vmatpush1.msra.mxu0 0.0
        %3196 = vmatprep.subr.mxu0 0.0
        %3197 = vmatpush1.msra.mxu0 0.0
        %3198 = vmatprep.subr.mxu0 0.0
        %3199 = vmatpush1.msra.mxu0 0.0
        %3200 = vmatprep.subr.mxu0 0.0
        %3201 = vmatpush1.msra.mxu0 0.0
        %3202 = vmatprep.subr.mxu0 0.0
        %3203 = vmatpush1.msra.mxu0 0.0
        %3204 = vmatprep.subr.mxu0 0.0
        %3205 = vmatpush1.msra.mxu0 0.0
        %3206 = vmatprep.subr.mxu0 0.0
        %3207 = vmatpush1.msra.mxu0 0.0
        %3208 = vmatprep.subr.mxu0 0.0
        %3209 = vmatpush1.msra.mxu0 0.0
        %3210 = vmatprep.subr.mxu0 0.0
        %3211 = vmatpush1.msra.mxu0 0.0
        %3212 = vmatprep.subr.mxu0 0.0
        %3213 = vmatpush1.msra.mxu0 0.0
        %3214 = vmatprep.subr.mxu0 0.0
        %3215 = vmatpush1.msra.mxu0 0.0
        %3216 = vmatprep.subr.mxu0 0.0
        %3217 = vmatpush1.msra.mxu0 0.0
        %3218 = vmatprep.subr.mxu0 0.0
        %3219 = vmatpush1.msra.mxu0 0.0
        %3220 = vmatprep.subr.mxu0 0.0
        %3221 = vmatpush1.msra.mxu0 0.0
        %3222 = vmatprep.subr.mxu0 0.0
        %3223 = vmatpush1.msra.mxu0 0.0
        %3224 = vmatprep.subr.mxu0 0.0
        %3225 = vmatpush1.msra.mxu0 0.0
        %3226 = vmatprep.subr.mxu0 0.0
        %3227 = vmatpush1.msra.mxu0 0.0
        %3228 = vmatprep.subr.mxu0 0.0
        %3229 = vmatpush1.msra.mxu0 0.0
        %3230 = vmatprep.subr.mxu0 0.0
        %3231 = vmatpush1.msra.mxu0 0.0
        %3232 = vmatprep.subr.mxu0 0.0
        %3233 = vmatpush1.msra.mxu0 0.0
        %3234 = vmatprep.subr.mxu0 0.0
        %3235 = vmatpush1.msra.mxu0 0.0
        %3236 = vmatprep.subr.mxu0 0.0
        %3237 = vmatpush1.msra.mxu0 0.0
        %3238 = vmatprep.subr.mxu0 0.0
        %3239 = vmatpush1.msra.mxu0 0.0
        %3240 = vmatprep.subr.mxu0 0.0
        %3241 = vmatpush1.msra.mxu0 0.0
        %3242 = vmatprep.subr.mxu0 0.0
        %3243 = vmatpush1.msra.mxu0 0.0
        %3244 = vmatprep.subr.mxu0 0.0
        %3245 = vmatpush1.msra.mxu0 0.0
        %3246 = vmatprep.subr.mxu0 0.0
        %3247 = vmatpush1.msra.mxu0 0.0
        %3248 = vmatprep.subr.mxu0 0.0
        %3249 = vmatpush1.msra.mxu0 0.0
        %3250 = vmatprep.subr.mxu0 0.0
        %3251 = vmatpush1.msra.mxu0 0.0
        %3252 = vmatprep.subr.mxu0 0.0
        %3253 = vmatpush1.msra.mxu0 0.0
        %3254 = vmatprep.mubr.f32.mxu0 0.0
        %v3255 = vand.u32 %v992, 4294901760
        %3256 = vmatmul.mubr.f32.gmra.mrb[0].mxu0 %v3255
        %v3257 = vpop.f32.mrb[0].mxu0
        %v3258 = vadd.f32 %v3157, %v3257
        %v3259 = vpop.f32.mrb[0].mxu0
        %3260 = vmatprep.mubr.f32.mxu0 0.0
        %v3261 = vand.u32 %v995, 4294901760
        %3262 = vmatmul.mubr.f32.gmra.mrb[0].mxu0 %v3261
        %v3263 = vpop.f32.mrb[0].mxu0
        %v3264 = vadd.f32 %v3165, %v3263
        %v3265 = vpop.f32.mrb[0].mxu0
        %3266 = vmatprep.mubr.f32.mxu0 0.0
        %v3267 = vand.u32 %v998, 4294901760
        %3268 = vmatmul.mubr.f32.gmra.mrb[0].mxu0 %v3267
        %v3269 = vpop.f32.mrb[0].mxu0
        %v3270 = vadd.f32 %v3173, %v3269
        %v3271 = vpop.f32.mrb[0].mxu0
        %3272 = vmatprep.mubr.f32.mxu0 0.0
        %v3273 = vand.u32 %v1001, 4294901760
        %3274 = vmatmul.mubr.f32.gmra.mrb[0].mxu0 %v3273
        %v3275 = vpop.f32.mrb[0].mxu0
        %v3276 = vadd.f32 %v3181, %v3275
        %v3277 = vpop.f32.mrb[0].mxu0
        %3278 = vdwg.mxu0
        %3279 = vmatprep.subr.mxu0 0.0
        %v3280 = vand.u32 %v978, 4294901760
        %3281 = vmatpush1.msra.mxu0 %v3280
        %3282 = vmatprep.subr.mxu0 0.0
        %v3283 = vand.u32 %v984, 4294901760
        %3284 = vmatpush1.msra.mxu0 %v3283
        %3285 = vmatprep.subr.mxu0 0.0
        %3286 = vmatpush1.msra.mxu0 0.0
        %3287 = vmatprep.subr.mxu0 0.0
        %3288 = vmatpush1.msra.mxu0 0.0
        %3289 = vmatprep.subr.mxu0 0.0
        %3290 = vmatpush1.msra.mxu0 0.0
        %3291 = vmatprep.subr.mxu0 0.0
        %3292 = vmatpush1.msra.mxu0 0.0
        %3293 = vmatprep.subr.mxu0 0.0
        %3294 = vmatpush1.msra.mxu0 0.0
        %3295 = vmatprep.subr.mxu0 0.0
        %3296 = vmatpush1.msra.mxu0 0.0
        %3297 = vmatprep.subr.mxu0 0.0
        %3298 = vmatpush1.msra.mxu0 0.0
        %3299 = vmatprep.subr.mxu0 0.0
        %3300 = vmatpush1.msra.mxu0 0.0
        %3301 = vmatprep.subr.mxu0 0.0
        %3302 = vmatpush1.msra.mxu0 0.0
        %3303 = vmatprep.subr.mxu0 0.0
        %3304 = vmatpush1.msra.mxu0 0.0
        %3305 = vmatprep.subr.mxu0 0.0
        %3306 = vmatpush1.msra.mxu0 0.0
        %3307 = vmatprep.subr.mxu0 0.0
        %3308 = vmatpush1.msra.mxu0 0.0
        %3309 = vmatprep.subr.mxu0 0.0
        %3310 = vmatpush1.msra.mxu0 0.0
        %3311 = vmatprep.subr.mxu0 0.0
        %3312 = vmatpush1.msra.mxu0 0.0
        %3313 = vmatprep.subr.mxu0 0.0
        %3314 = vmatpush1.msra.mxu0 0.0
        %3315 = vmatprep.subr.mxu0 0.0
        %3316 = vmatpush1.msra.mxu0 0.0
        %3317 = vmatprep.subr.mxu0 0.0
        %3318 = vmatpush1.msra.mxu0 0.0
        %3319 = vmatprep.subr.mxu0 0.0
        %3320 = vmatpush1.msra.mxu0 0.0
        %3321 = vmatprep.subr.mxu0 0.0
        %3322 = vmatpush1.msra.mxu0 0.0
        %3323 = vmatprep.subr.mxu0 0.0
        %3324 = vmatpush1.msra.mxu0 0.0
        %3325 = vmatprep.subr.mxu0 0.0
        %3326 = vmatpush1.msra.mxu0 0.0
        %3327 = vmatprep.subr.mxu0 0.0
        %3328 = vmatpush1.msra.mxu0 0.0
        %3329 = vmatprep.subr.mxu0 0.0
        %3330 = vmatpush1.msra.mxu0 0.0
        %3331 = vmatprep.subr.mxu0 0.0
        %3332 = vmatpush1.msra.mxu0 0.0
        %3333 = vmatprep.subr.mxu0 0.0
        %3334 = vmatpush1.msra.mxu0 0.0
        %3335 = vmatprep.subr.mxu0 0.0
        %3336 = vmatpush1.msra.mxu0 0.0
        %3337 = vmatprep.subr.mxu0 0.0
        %3338 = vmatpush1.msra.mxu0 0.0
        %3339 = vmatprep.subr.mxu0 0.0
        %3340 = vmatpush1.msra.mxu0 0.0
        %3341 = vmatprep.subr.mxu0 0.0
        %3342 = vmatpush1.msra.mxu0 0.0
        %3343 = vmatprep.subr.mxu0 0.0
        %3344 = vmatpush1.msra.mxu0 0.0
        %3345 = vmatprep.mubr.f32.mxu0 0.0
        %v3346 = vand.u32 %v992, 4294901760
        %3347 = vmatmul.mubr.f32.gmra.mrb[0].mxu0 %v3346
        %v3348 = vpop.f32.mrb[0].mxu0
        %v3349 = vadd.f32 %v3258, %v3348
        %v3350 = vpop.f32.mrb[0].mxu0
        %3351 = vmatprep.mubr.f32.mxu0 0.0
        %v3352 = vand.u32 %v995, 4294901760
        %3353 = vmatmul.mubr.f32.gmra.mrb[0].mxu0 %v3352
        %v3354 = vpop.f32.mrb[0].mxu0
        %v3355 = vadd.f32 %v3264, %v3354
        %v3356 = vpop.f32.mrb[0].mxu0
        %3357 = vmatprep.mubr.f32.mxu0 0.0
        %v3358 = vand.u32 %v998, 4294901760
        %3359 = vmatmul.mubr.f32.gmra.mrb[0].mxu0 %v3358
        %v3360 = vpop.f32.mrb[0].mxu0
        %v3361 = vadd.f32 %v3270, %v3360
        %v3362 = vpop.f32.mrb[0].mxu0
        %3363 = vmatprep.mubr.f32.mxu0 0.0
        %v3364 = vand.u32 %v1001, 4294901760
        %3365 = vmatmul.mubr.f32.gmra.mrb[0].mxu0 %v3364
        %v3366 = vpop.f32.mrb[0].mxu0
        %v3367 = vadd.f32 %v3276, %v3366
        %v3368 = vpop.f32.mrb[0].mxu0
        %3369 = vdwg.mxu0
        %s3370 = scalar_lea.vmem %s189, 96 [#allocation5]
        %3371 = vst.msk [vmem:[%s3370] sm:$0xff] %vm1591, %v3349
        %3372 = vst.msk [vmem:[%s3370 + $0x8] sm:$0xff] %vm1591, %v3355
        %3373 = vst.msk [vmem:[%s3370 + $0x10] sm:$0xff] %vm1591, %v3361
        %3374 = vst.msk [vmem:[%s3370 + $0x18] sm:$0xff] %vm1591, %v3367
        %s3375 = sand.u32 %s96, 1
        %s3376 = scalar_lea.sflag [#allocation4], %s3375
        %s3377 = sand.u32 %s96, 1
        %s3378 = smul.addr %s3377, 128
        %s3379 = scalar_lea.vmem [#allocation5], %s3378
        // Predicated region
        $region37: #{tpu_custom_call.1} parent=31 // pred_check
          %p3380 = pneg %p106
        $region38: #{tpu_custom_call.1} parent=31 // pred_check_branch
          %3382 = sbr.rel (%p3380) target = $region40
        $region39: #{tpu_custom_call.1} parent=31 // pred_region
          %s3383 = smul.u32 4, %s20
          %s3385 = ssub.s32 2048, 2048
          %3386 = vsyncadd %s3376, %s3385
          %s3387 = smul.addr %s3383, 4
          %s3388 = smul.addr %s3387, 128
          %s3389 = scalar_lea.hbm %s3, %s3388
          %s3390 = sshll.u32 %s3379, 4
          %s3391 = int_to_ptr.vmem [resolvable:$true] %s3390
          %3396 = dma.vmem_to_hbm [thread:$0]  %s3391, 2048, %s3389, %s3376, 128, 128, 8
        $region40: #{tpu_custom_call.1} parent=31 // pred_fallthru
          _
      $region32: #{tpu_custom_call.1} parent=5 // pred_fallthru
        _
      %p3397 = scmp.le.s32.totalorder 2, %s15
      // Predicated region
      $region41: #{tpu_custom_call.1} parent=5 // pred_check
        %p3398 = pneg %p3397
      $region42: #{tpu_custom_call.1} parent=5 // pred_check_branch
        %3400 = sbr.rel (%p3398) target = $region44
      $region43: #{tpu_custom_call.1} parent=5 // pred_region
        %s3401 = ssub.s32 %s15, 2
        // Predicated region
        $region45: #{tpu_custom_call.1} parent=43 // pred_check
          %p3402 = pneg %p112
        $region46: #{tpu_custom_call.1} parent=43 // pred_check_branch
          %3404 = sbr.rel (%p3402) target = $region48
        $region47: #{tpu_custom_call.1} parent=43 // pred_region
          %s3405 = sand.u32 %s97, 1
          %s3406 = scalar_lea.sflag [#allocation4], %s3405
          %s3407 = sand.u32 %s97, 1
          %s3408 = smul.addr %s3407, 128
          %s3409 = scalar_lea.vmem [#allocation5], %s3408
          %3410 = dma.done %s3406, 2048
        $region48: #{tpu_custom_call.1} parent=43 // pred_fallthru
          _
      $region44: #{tpu_custom_call.1} parent=5 // pred_fallthru
        _
    $region6: #{tpu_custom_call.1} parent=1 // loop_footer
      %s19 = sadd.s32 1, %s15
    $region7: #{tpu_custom_call.1} parent=1 // loop_footer_branch
      %14 = sbr.rel target = $region3
    $region8: #{tpu_custom_call.1} parent=1 // loop_exit
      _
    %3411 = vsyncpa [#allocation3], 1
    %s3412 = scalar_lea.sflag [#allocation3], 1
    %3413 = vsyncpa %s3412, 1
    %3414 = vsyncpa [#allocation4], 1
    %s3415 = scalar_lea.sflag [#allocation4], 1
    %3416 = vsyncpa %s3415, 1

</llo_original>
